<compile_context>
chip_gen: v6e
topology: v6e:2x2x1
jax: 0.10.0
libtpu: 0.0.40
codegen_flags: <defaults>
</compile_context>

<pallas_src>
import numpy as np
import jax
import jax.numpy as jnp
from jax.experimental import pallas as pl
from jax.experimental.pallas import tpu as pltpu

# ----------------------------- problem sizes --------------------------------
LATENT = 16          # latent_dimension
D_DEC = 3            # num_decoders
B = 2                # batch

C1, H1 = 32, 7       # after linear + view            -> (B, 32, 7, 7)
C2, H2 = 16, 14      # after ConvTranspose2d #1       -> (B, 16, 14, 14)
C3, H3 = 1, 28       # after ConvTranspose2d #2       -> (B, 1, 28, 28)

S1 = H1 * H1         # 49 spatial positions on the 7x7 grid
NL = B * S1          # 98 valid lanes: (batch, 7x7 spatial) fused
NLP = 128            # lane-padded N (unmasked full-lane loads/stores)
N1 = C1 * S1         # 1568  (linear output width)
M2 = C2 * 4          # 64 rows of deconv-1 output: (out-channel, 2x2 phase)
M3 = 16              # 16 rows of deconv-2 output: 4x4 sub-positions per cell
K2 = 9 * C1 + 8      # 296: 9 taps * 32 ch, then [bias row | 7 zero align rows]
K3 = 9 * M2 + 8      # 584: 9 taps * 64 rows, then [bias row | 7 zero rows]

# 3x3 tap offsets (dr, dc) on the 7x7 grid shared by both phase-decomposed deconvs.
OFFS = tuple((dr, dc) for dr in (-1, 0, 1) for dc in (-1, 0, 1))

PADL = 8             # left zero-guard of the spatial scratches (|shift| <= 8)
PADW = 256           # spatial scratch width (>= PADL + max_shift + NLP = 144)


# ---------------------- host-side parameter construction --------------------
def make_params(seed=0):
    rng = np.random.default_rng(seed)
    w1 = (0.08 * rng.standard_normal((D_DEC, LATENT, N1))).astype(np.float32)
    b1 = (0.08 * rng.standard_normal((D_DEC, 1, N1))).astype(np.float32)
    w2 = (0.08 * rng.standard_normal((D_DEC, C1, C2, 4, 4))).astype(np.float32)
    b2 = (0.08 * rng.standard_normal((D_DEC, C2))).astype(np.float32)
    w3 = (0.08 * rng.standard_normal((D_DEC, C2, C3, 4, 4))).astype(np.float32)
    b3 = (0.08 * rng.standard_normal((D_DEC, C3))).astype(np.float32)

    # ---- Deconv-1, K-stacked + bias column -> (D, 64, 296) -----------------
    # Output row (co, ph, pw) -> 4*co + 2*ph + pw.  Output phase (ph, pw) at
    # spatial tap (dr, dc) uses kernel tap kh = ph+1-2*dr, kw = pw+1-2*dc
    # (taps outside the 4x4 kernel stay zero).  K column t*32 + ci; column
    # 9*C1 holds the bias (matched by a constant ones-row in the staging
    # scratch); the last 7 columns are zero alignment padding.
    w2k = np.zeros((D_DEC, M2, K2), np.float32)
    for t, (dr, dc) in enumerate(OFFS):
        for ph in range(2):
            kh = ph + 1 - 2 * dr
            if not 0 <= kh < 4:
                continue
            for pw in range(2):
                kw = pw + 1 - 2 * dc
                if not 0 <= kw < 4:
                    continue
                for co in range(C2):
                    w2k[:, 4 * co + 2 * ph + pw, t * C1:(t + 1) * C1] = w2[:, :, co, kh, kw]
    w2k[:, :, 9 * C1] = np.repeat(b2, 4, axis=1)

    # ---- Deconv-2, K-stacked + bias column -> (D, 16, 584) -----------------
    # Input rows are deconv-1's (ci, ph, pw); output row (qh, qw) is the 28-grid
    # offset (4r+qh, 4c+qw).  kh = qh+1-4*dr-2*ph, kw = qw+1-4*dc-2*pw.
    w3k = np.zeros((D_DEC, M3, K3), np.float32)
    for t, (dr, dc) in enumerate(OFFS):
        for qh in range(4):
            for ph in range(2):
                kh = qh + 1 - 4 * dr - 2 * ph
                if not 0 <= kh < 4:
                    continue
                for qw in range(4):
                    for pw in range(2):
                        kw = qw + 1 - 4 * dc - 2 * pw
                        if not 0 <= kw < 4:
                            continue
                        for ci in range(C2):
                            w3k[:, 4 * qh + qw, t * M2 + 4 * ci + 2 * ph + pw] = \
                                w3[:, ci, 0, kh, kw]
    w3k[:, :, 9 * M2] = np.repeat(b3, M3, axis=1)

    raw = dict(w1=w1, b1=b1, w2=w2, b2=b2, w3=w3, b3=b3)
    packed = dict(w1=jnp.asarray(w1), b1=jnp.asarray(b1),
                  w2k=jnp.asarray(w2k), w3k=jnp.asarray(w3k))
    return raw, packed


# ------------------------------- kernel build --------------------------------
def _decoders_per_grid_step():
    # v7x has 2 TensorCores per chip: keep the decoder axis as a (parallel)
    # grid dimension so it can be sharded across cores.  Single-TC chips
    # (v5e / v6e): collapse to one grid step and unroll decoders in-kernel.
    # TODO(synk): a perfectly balanced v7x split would need an even 2-way
    # (e.g. lane-split) CORE_PARALLEL grid; 3 decoders over 2 cores is 2:1.
    try:
        kind = jax.devices()[0].device_kind.lower()
    except Exception:
        kind = ""
    return 1 if "v7" in kind else D_DEC


def build_forward(packed, decoders_per_step):
    dps = int(decoders_per_step)
    assert D_DEC % dps == 0
    grid = (D_DEC // dps,)

    def kernel(z1_ref, w2_ref, w3_ref, out_ref, pad1, pad2, st2, st3):
        # ---- per-grid-step setup (once total on v5e/v6e where grid == (1,)).
        # Guard lanes of the shifted-window scratches must be zero: they can be
        # read under a zero mask and uninitialized VMEM may hold NaN
        # (NaN * 0 == NaN).  Interiors are fully overwritten per decoder.
        pad1[...] = jnp.zeros_like(pad1)
        pad2[...] = jnp.zeros_like(pad2)
        # Constant rows of the K-stacked staging scratches: row 9*Cin is all
        # ones (pairs with the bias column folded into the weights); the 7
        # alignment rows after it are zero (their weight columns are zero too).
        bias_rows = (jax.lax.broadcasted_iota(jnp.int32, (8, NLP), 0) == 0
                     ).astype(jnp.float32)
        st2[9 * C1:9 * C1 + 8, :] = bias_rows
        st3[9 * M2:9 * M2 + 8, :] = bias_rows

        # Tap-validity masks rebuilt from iota (div-free; no HBM constant
        # fetch).  Lane b*49 + r*7 + c is valid for tap (dr, dc) iff
        # (r+dr, c+dc) stays on the 7x7 grid; lanes >= 98 are padding.
        lane = jax.lax.broadcasted_iota(jnp.int32, (1, NLP), 1)
        in_batch = lane < NL
        rem = lane - jnp.where(lane >= S1, S1, 0)          # lane mod 49 (where valid)
        r = jnp.zeros_like(rem)
        for k in range(1, H1):                             # rem // 7, via compares
            r = r + (rem >= k * H1).astype(jnp.int32)
        c = rem - H1 * r                                   # rem mod 7
        masks = []
        for dr, dc in OFFS:
            ok = (in_batch & (r + dr >= 0) & (r + dr < H1)
                  & (c + dc >= 0) & (c + dc < H1))
            masks.append(ok.astype(jnp.float32))

        # ---- decoders handled by this grid step (unrolled) ------------------
        for dd in range(dps):
            # Layer-1 activations (host-computed Linear+ReLU, already laid out
            # as channel-rows x 128 lanes) into the zero-guarded spatial
            # scratch so the 9 taps below are plain static slices.
            pad1[:, PADL:PADL + NLP] = z1_ref[dd]

            # ConvTranspose2d #1: stage 9 masked taps, one K=296 MXU matmul.
            for t, (dr, dc) in enumerate(OFFS):
                s = dr * H1 + dc
                st2[t * C1:(t + 1) * C1, :] = \
                    pad1[:, PADL + s:PADL + s + NLP] * masks[t]
            z2 = jnp.maximum(
                jnp.dot(w2_ref[dd], st2[...],
                        preferred_element_type=jnp.float32), 0.0)   # (64, 128)
            pad2[:, PADL:PADL + NLP] = z2

            # ConvTranspose2d #2: stage 9 masked taps, one K=584 MXU matmul.
            for t, (dr, dc) in enumerate(OFFS):
                s = dr * H1 + dc
                st3[t * M2:(t + 1) * M2, :] = \
                    pad2[:, PADL + s:PADL + s + NLP] * masks[t]
            pre = jnp.dot(w3_ref[dd], st3[...],
                          preferred_element_type=jnp.float32)        # (16, 128)
            # sigmoid: exp + approximate reciprocal, both on the EUP.
            out_ref[dd] = pl.reciprocal(1.0 + jnp.exp(-pre), approx=True)

    flops = D_DEC * 2 * (M2 * K2 + M3 * K3) * NLP
    bytes_acc = 4 * D_DEC * (C1 * NLP + M2 * K2 + M3 * K3 + M3 * NLP)

    dec_call = pl.pallas_call(
        kernel,
        out_shape=jax.ShapeDtypeStruct((D_DEC, M3, NLP), jnp.float32),
        grid=grid,
        in_specs=[
            pl.BlockSpec((dps, C1, NLP), lambda i: (i, 0, 0)),  # ReLU'd linear acts
            pl.BlockSpec((dps, M2, K2), lambda i: (i, 0, 0)),   # deconv-1, K-stacked
            pl.BlockSpec((dps, M3, K3), lambda i: (i, 0, 0)),   # deconv-2, K-stacked
        ],
        out_specs=pl.BlockSpec((dps, M3, NLP), lambda i: (i, 0, 0)),
        scratch_shapes=[
            pltpu.VMEM((C1, PADW), jnp.float32),   # zero-guarded z1 spatial scratch
            pltpu.VMEM((M2, PADW), jnp.float32),   # zero-guarded z2 spatial scratch
            pltpu.VMEM((K2, NLP), jnp.float32),    # K-stacked taps + ones row, layer 2
            pltpu.VMEM((K3, NLP), jnp.float32),    # K-stacked taps + ones row, layer 3
        ],
        compiler_params=pltpu.CompilerParams(
            dimension_semantics=("parallel",)),
        cost_estimate=pl.CostEstimate(flops=int(flops),
                                      transcendentals=int(D_DEC * M3 * NLP),
                                      bytes_accessed=int(bytes_acc)),
    )

    w1, b1 = packed['w1'], packed['b1']
    w2k, w3k = packed['w2k'], packed['w3k']

    @jax.jit
    def forward(latent, gating):
        gsm = jax.nn.softmax(gating)                       # F.softmax over gating
        # Linear + ReLU head hoisted into the same jit (tiny: 3 x (2,16)x(16,1568)),
        # emitted directly in the kernel's (channel-rows x batch*7*7-lane) layout
        # and lane-padded to 128.
        z1 = jnp.einsum('bl,dln->dbn', latent, w1,
                        precision=jax.lax.Precision.HIGHEST) + b1
        z1 = jnp.maximum(z1, 0.0)
        z1 = z1.reshape(D_DEC, B, C1, S1).transpose(0, 2, 1, 3).reshape(D_DEC, C1, NL)
        z1 = jnp.pad(z1, ((0, 0), (0, 0), (0, NLP - NL)))

        dec_out = dec_call(z1, w2k, w3k)[:, :, :NL]        # (D, 16, 98) valid lanes

        # Mixture epilogue (mean over decoders, 4x4 phase un-shuffle, torch-style
        # gating broadcast over the channel dim) -- fused into the same jit.
        mean = dec_out.mean(axis=0)                        # (16, 98)
        img = mean.reshape(4, 4, B, H1, H1)                # (qh, qw, b, r, c)
        img = img.transpose(2, 3, 0, 4, 1).reshape(B, H3, H3)   # rows 4r+qh, cols 4c+qw
        return gsm[None, :, None, None] * img[:, None, :, :]    # (B, D, 28, 28)

    return forward


# -------------------------- pure-JAX reference -------------------------------
def _convT_ref(x, W, b, s=2, p=1, k=4):
    # PyTorch ConvTranspose2d == lhs-dilated cross-correlation with flipped kernel.
    rhs = jnp.flip(jnp.asarray(W), axis=(2, 3)).transpose(1, 0, 2, 3)  # (Cout, Cin, k, k)
    y = jax.lax.conv_general_dilated(
        x, rhs, window_strides=(1, 1),
        padding=[(k - 1 - p, k - 1 - p)] * 2,
        lhs_dilation=(s, s),
        dimension_numbers=('NCHW', 'OIHW', 'NCHW'),
        precision=jax.lax.Precision.HIGHEST)
    return y + jnp.asarray(b).reshape(1, -1, 1, 1)


def modecoders_ref(latent, gating, raw):
    g = jax.nn.softmax(gating)
    outs = []
    for d in range(D_DEC):
        z = jnp.dot(latent, jnp.asarray(raw['w1'][d]),
                    precision=jax.lax.Precision.HIGHEST) + jnp.asarray(raw['b1'][d])
        z = jnp.maximum(z, 0.0)
        z = z.reshape(B, C1, H1, H1)
        z = _convT_ref(z, raw['w2'][d], raw['b2'][d])
        z = jnp.maximum(z, 0.0)
        z = _convT_ref(z, raw['w3'][d], raw['b3'][d])
        outs.append(jax.nn.sigmoid(z))
    x_stack = jnp.stack(outs)                  # (D, B, 1, 28, 28)
    x = x_stack * g.reshape(-1, 1, 1)          # torch-style broadcast -> (D, B, D, 28, 28)
    return x.mean(axis=0)                      # (B, D, 28, 28)


# ----------------------------------- main -------------------------------------
if __name__ == "__main__":
    key = jax.random.PRNGKey(0)
    k_lat, k_gate = jax.random.split(key)
    latent = jax.random.normal(k_lat, (B, LATENT), dtype=jnp.float32)
    gating = jax.random.normal(k_gate, (D_DEC,), dtype=jnp.float32)

    raw, packed = make_params(seed=0)
    forward = build_forward(packed, _decoders_per_grid_step())

    out = jax.block_until_ready(forward(latent, gating))

    ref = modecoders_ref(latent, gating, raw)
    assert out.shape == (B, D_DEC, H3, H3)
    np.testing.assert_allclose(np.asarray(out), np.asarray(ref), rtol=2e-3, atol=2e-3)
    print("KERNEL_OK")
</pallas_src>

<mosaic_0001>
module attributes {stable_mosaic.version = 11 : i64} {
  func.func @kernel(%arg0: i32, %arg1: memref<3x32x128xf32, #tpu.memory_space<vmem>>, %arg2: memref<3x64x296xf32, #tpu.memory_space<vmem>>, %arg3: memref<3x16x584xf32, #tpu.memory_space<vmem>>, %arg4: memref<3x16x128xf32, #tpu.memory_space<vmem>>, %arg5: memref<32x256xf32, #tpu.memory_space<vmem>>, %arg6: memref<64x256xf32, #tpu.memory_space<vmem>>, %arg7: memref<296x128xf32, #tpu.memory_space<vmem>>, %arg8: memref<584x128xf32, #tpu.memory_space<vmem>>) attributes {dimension_semantics = [#tpu.dimension_semantics<parallel>], iteration_bounds = array<i64: 1>, scalar_prefetch = 0 : i64, scratch_operands = 4 : i64, tpu.core_type = #tpu.core_type<tc>, window_params = [{transform_indices = @transform_0, window_bounds = array<i64: 3, 32, 128>}, {transform_indices = @transform_1, window_bounds = array<i64: 3, 64, 296>}, {transform_indices = @transform_2, window_bounds = array<i64: 3, 16, 584>}, {transform_indices = @transform_3, window_bounds = array<i64: 3, 16, 128>}]} {
    %cst = arith.constant 0.000000e+00 : f32
    %0 = vector.broadcast %cst : f32 to vector<32x256xf32>
    %c0 = arith.constant 0 : index
    %c0_0 = arith.constant 0 : index
    %1 = vector.load %arg5[%c0, %c0_0] : memref<32x256xf32, #tpu.memory_space<vmem>>, vector<32x256xf32>
    tpu.vector_store %arg5[%c0, %c0_0], %0 {strides = array<i32>} : memref<32x256xf32, #tpu.memory_space<vmem>>, vector<32x256xf32>,
    %cst_1 = arith.constant 0.000000e+00 : f32
    %2 = vector.broadcast %cst_1 : f32 to vector<64x256xf32>
    %c0_2 = arith.constant 0 : index
    %c0_3 = arith.constant 0 : index
    %3 = vector.load %arg6[%c0_2, %c0_3] : memref<64x256xf32, #tpu.memory_space<vmem>>, vector<64x256xf32>
    tpu.vector_store %arg6[%c0_2, %c0_3], %2 {strides = array<i32>} : memref<64x256xf32, #tpu.memory_space<vmem>>, vector<64x256xf32>,
    %4 = tpu.iota {dimensions = array<i32: 0>} : vector<8x128xi32>
    %c0_i32 = arith.constant 0 : i32
    %5 = vector.broadcast %c0_i32 : i32 to vector<8x128xi32>
    %6 = arith.cmpi eq, %4, %5 : vector<8x128xi32>
    %7 = arith.extui %6 : vector<8x128xi1> to vector<8x128xi32>
    %8 = arith.sitofp %7 : vector<8x128xi32> to vector<8x128xf32>
    %c288 = arith.constant 288 : index
    %c0_4 = arith.constant 0 : index
    %9 = vector.load %arg7[%c288, %c0_4] : memref<296x128xf32, #tpu.memory_space<vmem>>, vector<8x128xf32>
    tpu.vector_store %arg7[%c288, %c0_4], %8 {strides = array<i32>} : memref<296x128xf32, #tpu.memory_space<vmem>>, vector<8x128xf32>,
    %c576 = arith.constant 576 : index
    %c0_5 = arith.constant 0 : index
    %10 = vector.load %arg8[%c576, %c0_5] : memref<584x128xf32, #tpu.memory_space<vmem>>, vector<8x128xf32>
    tpu.vector_store %arg8[%c576, %c0_5], %8 {strides = array<i32>} : memref<584x128xf32, #tpu.memory_space<vmem>>, vector<8x128xf32>,
    %11 = tpu.iota {dimensions = array<i32: 1>} : vector<1x128xi32>
    %c98_i32 = arith.constant 98 : i32
    %12 = vector.broadcast %c98_i32 : i32 to vector<1x128xi32>
    %13 = arith.cmpi slt, %11, %12 : vector<1x128xi32>
    %c49_i32 = arith.constant 49 : i32
    %14 = vector.broadcast %c49_i32 : i32 to vector<1x128xi32>
    %15 = arith.cmpi sge, %11, %14 : vector<1x128xi32>
    %c49_i32_6 = arith.constant 49 : i32
    %c0_i32_7 = arith.constant 0 : i32
    %16 = vector.broadcast %c49_i32_6 : i32 to vector<1x128xi32>
    %17 = vector.broadcast %c0_i32_7 : i32 to vector<1x128xi32>
    %18 = arith.select %15, %16, %17 : vector<1x128xi1>, vector<1x128xi32>
    %19 = arith.subi %11, %18 : vector<1x128xi32>
    %c0_i32_8 = arith.constant 0 : i32
    %20 = vector.broadcast %c0_i32_8 : i32 to vector<1x128xi32>
    %c7_i32 = arith.constant 7 : i32
    %21 = vector.broadcast %c7_i32 : i32 to vector<1x128xi32>
    %22 = arith.cmpi sge, %19, %21 : vector<1x128xi32>
    %23 = arith.extui %22 : vector<1x128xi1> to vector<1x128xi32>
    %24 = arith.addi %20, %23 : vector<1x128xi32>
    %c14_i32 = arith.constant 14 : i32
    %25 = vector.broadcast %c14_i32 : i32 to vector<1x128xi32>
    %26 = arith.cmpi sge, %19, %25 : vector<1x128xi32>
    %27 = arith.extui %26 : vector<1x128xi1> to vector<1x128xi32>
    %28 = arith.addi %24, %27 : vector<1x128xi32>
    %c21_i32 = arith.constant 21 : i32
    %29 = vector.broadcast %c21_i32 : i32 to vector<1x128xi32>
    %30 = arith.cmpi sge, %19, %29 : vector<1x128xi32>
    %31 = arith.extui %30 : vector<1x128xi1> to vector<1x128xi32>
    %32 = arith.addi %28, %31 : vector<1x128xi32>
    %c28_i32 = arith.constant 28 : i32
    %33 = vector.broadcast %c28_i32 : i32 to vector<1x128xi32>
    %34 = arith.cmpi sge, %19, %33 : vector<1x128xi32>
    %35 = arith.extui %34 : vector<1x128xi1> to vector<1x128xi32>
    %36 = arith.addi %32, %35 : vector<1x128xi32>
    %c35_i32 = arith.constant 35 : i32
    %37 = vector.broadcast %c35_i32 : i32 to vector<1x128xi32>
    %38 = arith.cmpi sge, %19, %37 : vector<1x128xi32>
    %39 = arith.extui %38 : vector<1x128xi1> to vector<1x128xi32>
    %40 = arith.addi %36, %39 : vector<1x128xi32>
    %c42_i32 = arith.constant 42 : i32
    %41 = vector.broadcast %c42_i32 : i32 to vector<1x128xi32>
    %42 = arith.cmpi sge, %19, %41 : vector<1x128xi32>
    %43 = arith.extui %42 : vector<1x128xi1> to vector<1x128xi32>
    %44 = arith.addi %40, %43 : vector<1x128xi32>
    %c7_i32_9 = arith.constant 7 : i32
    %45 = vector.broadcast %c7_i32_9 : i32 to vector<1x128xi32>
    %46 = arith.muli %45, %44 : vector<1x128xi32>
    %47 = arith.subi %19, %46 : vector<1x128xi32>
    %c-1_i32 = arith.constant -1 : i32
    %48 = vector.broadcast %c-1_i32 : i32 to vector<1x128xi32>
    %49 = arith.addi %44, %48 : vector<1x128xi32>
    %c0_i32_10 = arith.constant 0 : i32
    %50 = vector.broadcast %c0_i32_10 : i32 to vector<1x128xi32>
    %51 = arith.cmpi sge, %49, %50 : vector<1x128xi32>
    %52 = arith.andi %13, %51 : vector<1x128xi1>
    %c-1_i32_11 = arith.constant -1 : i32
    %53 = vector.broadcast %c-1_i32_11 : i32 to vector<1x128xi32>
    %54 = arith.addi %44, %53 : vector<1x128xi32>
    %c7_i32_12 = arith.constant 7 : i32
    %55 = vector.broadcast %c7_i32_12 : i32 to vector<1x128xi32>
    %56 = arith.cmpi slt, %54, %55 : vector<1x128xi32>
    %57 = arith.andi %52, %56 : vector<1x128xi1>
    %c-1_i32_13 = arith.constant -1 : i32
    %58 = vector.broadcast %c-1_i32_13 : i32 to vector<1x128xi32>
    %59 = arith.addi %47, %58 : vector<1x128xi32>
    %c0_i32_14 = arith.constant 0 : i32
    %60 = vector.broadcast %c0_i32_14 : i32 to vector<1x128xi32>
    %61 = arith.cmpi sge, %59, %60 : vector<1x128xi32>
    %62 = arith.andi %57, %61 : vector<1x128xi1>
    %c-1_i32_15 = arith.constant -1 : i32
    %63 = vector.broadcast %c-1_i32_15 : i32 to vector<1x128xi32>
    %64 = arith.addi %47, %63 : vector<1x128xi32>
    %c7_i32_16 = arith.constant 7 : i32
    %65 = vector.broadcast %c7_i32_16 : i32 to vector<1x128xi32>
    %66 = arith.cmpi slt, %64, %65 : vector<1x128xi32>
    %67 = arith.andi %62, %66 : vector<1x128xi1>
    %68 = arith.extui %67 : vector<1x128xi1> to vector<1x128xi32>
    %69 = arith.sitofp %68 : vector<1x128xi32> to vector<1x128xf32>
    %c-1_i32_17 = arith.constant -1 : i32
    %70 = vector.broadcast %c-1_i32_17 : i32 to vector<1x128xi32>
    %71 = arith.addi %44, %70 : vector<1x128xi32>
    %c0_i32_18 = arith.constant 0 : i32
    %72 = vector.broadcast %c0_i32_18 : i32 to vector<1x128xi32>
    %73 = arith.cmpi sge, %71, %72 : vector<1x128xi32>
    %74 = arith.andi %13, %73 : vector<1x128xi1>
    %c-1_i32_19 = arith.constant -1 : i32
    %75 = vector.broadcast %c-1_i32_19 : i32 to vector<1x128xi32>
    %76 = arith.addi %44, %75 : vector<1x128xi32>
    %c7_i32_20 = arith.constant 7 : i32
    %77 = vector.broadcast %c7_i32_20 : i32 to vector<1x128xi32>
    %78 = arith.cmpi slt, %76, %77 : vector<1x128xi32>
    %79 = arith.andi %74, %78 : vector<1x128xi1>
    %c0_i32_21 = arith.constant 0 : i32
    %80 = vector.broadcast %c0_i32_21 : i32 to vector<1x128xi32>
    %81 = arith.addi %47, %80 : vector<1x128xi32>
    %c0_i32_22 = arith.constant 0 : i32
    %82 = vector.broadcast %c0_i32_22 : i32 to vector<1x128xi32>
    %83 = arith.cmpi sge, %81, %82 : vector<1x128xi32>
    %84 = arith.andi %79, %83 : vector<1x128xi1>
    %c0_i32_23 = arith.constant 0 : i32
    %85 = vector.broadcast %c0_i32_23 : i32 to vector<1x128xi32>
    %86 = arith.addi %47, %85 : vector<1x128xi32>
    %c7_i32_24 = arith.constant 7 : i32
    %87 = vector.broadcast %c7_i32_24 : i32 to vector<1x128xi32>
    %88 = arith.cmpi slt, %86, %87 : vector<1x128xi32>
    %89 = arith.andi %84, %88 : vector<1x128xi1>
    %90 = arith.extui %89 : vector<1x128xi1> to vector<1x128xi32>
    %91 = arith.sitofp %90 : vector<1x128xi32> to vector<1x128xf32>
    %c-1_i32_25 = arith.constant -1 : i32
    %92 = vector.broadcast %c-1_i32_25 : i32 to vector<1x128xi32>
    %93 = arith.addi %44, %92 : vector<1x128xi32>
    %c0_i32_26 = arith.constant 0 : i32
    %94 = vector.broadcast %c0_i32_26 : i32 to vector<1x128xi32>
    %95 = arith.cmpi sge, %93, %94 : vector<1x128xi32>
    %96 = arith.andi %13, %95 : vector<1x128xi1>
    %c-1_i32_27 = arith.constant -1 : i32
    %97 = vector.broadcast %c-1_i32_27 : i32 to vector<1x128xi32>
    %98 = arith.addi %44, %97 : vector<1x128xi32>
    %c7_i32_28 = arith.constant 7 : i32
    %99 = vector.broadcast %c7_i32_28 : i32 to vector<1x128xi32>
    %100 = arith.cmpi slt, %98, %99 : vector<1x128xi32>
    %101 = arith.andi %96, %100 : vector<1x128xi1>
    %c1_i32 = arith.constant 1 : i32
    %102 = vector.broadcast %c1_i32 : i32 to vector<1x128xi32>
    %103 = arith.addi %47, %102 : vector<1x128xi32>
    %c0_i32_29 = arith.constant 0 : i32
    %104 = vector.broadcast %c0_i32_29 : i32 to vector<1x128xi32>
    %105 = arith.cmpi sge, %103, %104 : vector<1x128xi32>
    %106 = arith.andi %101, %105 : vector<1x128xi1>
    %c1_i32_30 = arith.constant 1 : i32
    %107 = vector.broadcast %c1_i32_30 : i32 to vector<1x128xi32>
    %108 = arith.addi %47, %107 : vector<1x128xi32>
    %c7_i32_31 = arith.constant 7 : i32
    %109 = vector.broadcast %c7_i32_31 : i32 to vector<1x128xi32>
    %110 = arith.cmpi slt, %108, %109 : vector<1x128xi32>
    %111 = arith.andi %106, %110 : vector<1x128xi1>
    %112 = arith.extui %111 : vector<1x128xi1> to vector<1x128xi32>
    %113 = arith.sitofp %112 : vector<1x128xi32> to vector<1x128xf32>
    %c0_i32_32 = arith.constant 0 : i32
    %114 = vector.broadcast %c0_i32_32 : i32 to vector<1x128xi32>
    %115 = arith.addi %44, %114 : vector<1x128xi32>
    %c0_i32_33 = arith.constant 0 : i32
    %116 = vector.broadcast %c0_i32_33 : i32 to vector<1x128xi32>
    %117 = arith.cmpi sge, %115, %116 : vector<1x128xi32>
    %118 = arith.andi %13, %117 : vector<1x128xi1>
    %c0_i32_34 = arith.constant 0 : i32
    %119 = vector.broadcast %c0_i32_34 : i32 to vector<1x128xi32>
    %120 = arith.addi %44, %119 : vector<1x128xi32>
    %c7_i32_35 = arith.constant 7 : i32
    %121 = vector.broadcast %c7_i32_35 : i32 to vector<1x128xi32>
    %122 = arith.cmpi slt, %120, %121 : vector<1x128xi32>
    %123 = arith.andi %118, %122 : vector<1x128xi1>
    %c-1_i32_36 = arith.constant -1 : i32
    %124 = vector.broadcast %c-1_i32_36 : i32 to vector<1x128xi32>
    %125 = arith.addi %47, %124 : vector<1x128xi32>
    %c0_i32_37 = arith.constant 0 : i32
    %126 = vector.broadcast %c0_i32_37 : i32 to vector<1x128xi32>
    %127 = arith.cmpi sge, %125, %126 : vector<1x128xi32>
    %128 = arith.andi %123, %127 : vector<1x128xi1>
    %c-1_i32_38 = arith.constant -1 : i32
    %129 = vector.broadcast %c-1_i32_38 : i32 to vector<1x128xi32>
    %130 = arith.addi %47, %129 : vector<1x128xi32>
    %c7_i32_39 = arith.constant 7 : i32
    %131 = vector.broadcast %c7_i32_39 : i32 to vector<1x128xi32>
    %132 = arith.cmpi slt, %130, %131 : vector<1x128xi32>
    %133 = arith.andi %128, %132 : vector<1x128xi1>
    %134 = arith.extui %133 : vector<1x128xi1> to vector<1x128xi32>
    %135 = arith.sitofp %134 : vector<1x128xi32> to vector<1x128xf32>
    %c0_i32_40 = arith.constant 0 : i32
    %136 = vector.broadcast %c0_i32_40 : i32 to vector<1x128xi32>
    %137 = arith.addi %44, %136 : vector<1x128xi32>
    %c0_i32_41 = arith.constant 0 : i32
    %138 = vector.broadcast %c0_i32_41 : i32 to vector<1x128xi32>
    %139 = arith.cmpi sge, %137, %138 : vector<1x128xi32>
    %140 = arith.andi %13, %139 : vector<1x128xi1>
    %c0_i32_42 = arith.constant 0 : i32
    %141 = vector.broadcast %c0_i32_42 : i32 to vector<1x128xi32>
    %142 = arith.addi %44, %141 : vector<1x128xi32>
    %c7_i32_43 = arith.constant 7 : i32
    %143 = vector.broadcast %c7_i32_43 : i32 to vector<1x128xi32>
    %144 = arith.cmpi slt, %142, %143 : vector<1x128xi32>
    %145 = arith.andi %140, %144 : vector<1x128xi1>
    %c0_i32_44 = arith.constant 0 : i32
    %146 = vector.broadcast %c0_i32_44 : i32 to vector<1x128xi32>
    %147 = arith.addi %47, %146 : vector<1x128xi32>
    %c0_i32_45 = arith.constant 0 : i32
    %148 = vector.broadcast %c0_i32_45 : i32 to vector<1x128xi32>
    %149 = arith.cmpi sge, %147, %148 : vector<1x128xi32>
    %150 = arith.andi %145, %149 : vector<1x128xi1>
    %c0_i32_46 = arith.constant 0 : i32
    %151 = vector.broadcast %c0_i32_46 : i32 to vector<1x128xi32>
    %152 = arith.addi %47, %151 : vector<1x128xi32>
    %c7_i32_47 = arith.constant 7 : i32
    %153 = vector.broadcast %c7_i32_47 : i32 to vector<1x128xi32>
    %154 = arith.cmpi slt, %152, %153 : vector<1x128xi32>
    %155 = arith.andi %150, %154 : vector<1x128xi1>
    %156 = arith.extui %155 : vector<1x128xi1> to vector<1x128xi32>
    %157 = arith.sitofp %156 : vector<1x128xi32> to vector<1x128xf32>
    %c0_i32_48 = arith.constant 0 : i32
    %158 = vector.broadcast %c0_i32_48 : i32 to vector<1x128xi32>
    %159 = arith.addi %44, %158 : vector<1x128xi32>
    %c0_i32_49 = arith.constant 0 : i32
    %160 = vector.broadcast %c0_i32_49 : i32 to vector<1x128xi32>
    %161 = arith.cmpi sge, %159, %160 : vector<1x128xi32>
    %162 = arith.andi %13, %161 : vector<1x128xi1>
    %c0_i32_50 = arith.constant 0 : i32
    %163 = vector.broadcast %c0_i32_50 : i32 to vector<1x128xi32>
    %164 = arith.addi %44, %163 : vector<1x128xi32>
    %c7_i32_51 = arith.constant 7 : i32
    %165 = vector.broadcast %c7_i32_51 : i32 to vector<1x128xi32>
    %166 = arith.cmpi slt, %164, %165 : vector<1x128xi32>
    %167 = arith.andi %162, %166 : vector<1x128xi1>
    %c1_i32_52 = arith.constant 1 : i32
    %168 = vector.broadcast %c1_i32_52 : i32 to vector<1x128xi32>
    %169 = arith.addi %47, %168 : vector<1x128xi32>
    %c0_i32_53 = arith.constant 0 : i32
    %170 = vector.broadcast %c0_i32_53 : i32 to vector<1x128xi32>
    %171 = arith.cmpi sge, %169, %170 : vector<1x128xi32>
    %172 = arith.andi %167, %171 : vector<1x128xi1>
    %c1_i32_54 = arith.constant 1 : i32
    %173 = vector.broadcast %c1_i32_54 : i32 to vector<1x128xi32>
    %174 = arith.addi %47, %173 : vector<1x128xi32>
    %c7_i32_55 = arith.constant 7 : i32
    %175 = vector.broadcast %c7_i32_55 : i32 to vector<1x128xi32>
    %176 = arith.cmpi slt, %174, %175 : vector<1x128xi32>
    %177 = arith.andi %172, %176 : vector<1x128xi1>
    %178 = arith.extui %177 : vector<1x128xi1> to vector<1x128xi32>
    %179 = arith.sitofp %178 : vector<1x128xi32> to vector<1x128xf32>
    %c1_i32_56 = arith.constant 1 : i32
    %180 = vector.broadcast %c1_i32_56 : i32 to vector<1x128xi32>
    %181 = arith.addi %44, %180 : vector<1x128xi32>
    %c0_i32_57 = arith.constant 0 : i32
    %182 = vector.broadcast %c0_i32_57 : i32 to vector<1x128xi32>
    %183 = arith.cmpi sge, %181, %182 : vector<1x128xi32>
    %184 = arith.andi %13, %183 : vector<1x128xi1>
    %c1_i32_58 = arith.constant 1 : i32
    %185 = vector.broadcast %c1_i32_58 : i32 to vector<1x128xi32>
    %186 = arith.addi %44, %185 : vector<1x128xi32>
    %c7_i32_59 = arith.constant 7 : i32
    %187 = vector.broadcast %c7_i32_59 : i32 to vector<1x128xi32>
    %188 = arith.cmpi slt, %186, %187 : vector<1x128xi32>
    %189 = arith.andi %184, %188 : vector<1x128xi1>
    %c-1_i32_60 = arith.constant -1 : i32
    %190 = vector.broadcast %c-1_i32_60 : i32 to vector<1x128xi32>
    %191 = arith.addi %47, %190 : vector<1x128xi32>
    %c0_i32_61 = arith.constant 0 : i32
    %192 = vector.broadcast %c0_i32_61 : i32 to vector<1x128xi32>
    %193 = arith.cmpi sge, %191, %192 : vector<1x128xi32>
    %194 = arith.andi %189, %193 : vector<1x128xi1>
    %c-1_i32_62 = arith.constant -1 : i32
    %195 = vector.broadcast %c-1_i32_62 : i32 to vector<1x128xi32>
    %196 = arith.addi %47, %195 : vector<1x128xi32>
    %c7_i32_63 = arith.constant 7 : i32
    %197 = vector.broadcast %c7_i32_63 : i32 to vector<1x128xi32>
    %198 = arith.cmpi slt, %196, %197 : vector<1x128xi32>
    %199 = arith.andi %194, %198 : vector<1x128xi1>
    %200 = arith.extui %199 : vector<1x128xi1> to vector<1x128xi32>
    %201 = arith.sitofp %200 : vector<1x128xi32> to vector<1x128xf32>
    %c1_i32_64 = arith.constant 1 : i32
    %202 = vector.broadcast %c1_i32_64 : i32 to vector<1x128xi32>
    %203 = arith.addi %44, %202 : vector<1x128xi32>
    %c0_i32_65 = arith.constant 0 : i32
    %204 = vector.broadcast %c0_i32_65 : i32 to vector<1x128xi32>
    %205 = arith.cmpi sge, %203, %204 : vector<1x128xi32>
    %206 = arith.andi %13, %205 : vector<1x128xi1>
    %c1_i32_66 = arith.constant 1 : i32
    %207 = vector.broadcast %c1_i32_66 : i32 to vector<1x128xi32>
    %208 = arith.addi %44, %207 : vector<1x128xi32>
    %c7_i32_67 = arith.constant 7 : i32
    %209 = vector.broadcast %c7_i32_67 : i32 to vector<1x128xi32>
    %210 = arith.cmpi slt, %208, %209 : vector<1x128xi32>
    %211 = arith.andi %206, %210 : vector<1x128xi1>
    %c0_i32_68 = arith.constant 0 : i32
    %212 = vector.broadcast %c0_i32_68 : i32 to vector<1x128xi32>
    %213 = arith.addi %47, %212 : vector<1x128xi32>
    %c0_i32_69 = arith.constant 0 : i32
    %214 = vector.broadcast %c0_i32_69 : i32 to vector<1x128xi32>
    %215 = arith.cmpi sge, %213, %214 : vector<1x128xi32>
    %216 = arith.andi %211, %215 : vector<1x128xi1>
    %c0_i32_70 = arith.constant 0 : i32
    %217 = vector.broadcast %c0_i32_70 : i32 to vector<1x128xi32>
    %218 = arith.addi %47, %217 : vector<1x128xi32>
    %c7_i32_71 = arith.constant 7 : i32
    %219 = vector.broadcast %c7_i32_71 : i32 to vector<1x128xi32>
    %220 = arith.cmpi slt, %218, %219 : vector<1x128xi32>
    %221 = arith.andi %216, %220 : vector<1x128xi1>
    %222 = arith.extui %221 : vector<1x128xi1> to vector<1x128xi32>
    %223 = arith.sitofp %222 : vector<1x128xi32> to vector<1x128xf32>
    %c1_i32_72 = arith.constant 1 : i32
    %224 = vector.broadcast %c1_i32_72 : i32 to vector<1x128xi32>
    %225 = arith.addi %44, %224 : vector<1x128xi32>
    %c0_i32_73 = arith.constant 0 : i32
    %226 = vector.broadcast %c0_i32_73 : i32 to vector<1x128xi32>
    %227 = arith.cmpi sge, %225, %226 : vector<1x128xi32>
    %228 = arith.andi %13, %227 : vector<1x128xi1>
    %c1_i32_74 = arith.constant 1 : i32
    %229 = vector.broadcast %c1_i32_74 : i32 to vector<1x128xi32>
    %230 = arith.addi %44, %229 : vector<1x128xi32>
    %c7_i32_75 = arith.constant 7 : i32
    %231 = vector.broadcast %c7_i32_75 : i32 to vector<1x128xi32>
    %232 = arith.cmpi slt, %230, %231 : vector<1x128xi32>
    %233 = arith.andi %228, %232 : vector<1x128xi1>
    %c1_i32_76 = arith.constant 1 : i32
    %234 = vector.broadcast %c1_i32_76 : i32 to vector<1x128xi32>
    %235 = arith.addi %47, %234 : vector<1x128xi32>
    %c0_i32_77 = arith.constant 0 : i32
    %236 = vector.broadcast %c0_i32_77 : i32 to vector<1x128xi32>
    %237 = arith.cmpi sge, %235, %236 : vector<1x128xi32>
    %238 = arith.andi %233, %237 : vector<1x128xi1>
    %c1_i32_78 = arith.constant 1 : i32
    %239 = vector.broadcast %c1_i32_78 : i32 to vector<1x128xi32>
    %240 = arith.addi %47, %239 : vector<1x128xi32>
    %c7_i32_79 = arith.constant 7 : i32
    %241 = vector.broadcast %c7_i32_79 : i32 to vector<1x128xi32>
    %242 = arith.cmpi slt, %240, %241 : vector<1x128xi32>
    %243 = arith.andi %238, %242 : vector<1x128xi1>
    %244 = arith.extui %243 : vector<1x128xi1> to vector<1x128xi32>
    %245 = arith.sitofp %244 : vector<1x128xi32> to vector<1x128xf32>
    %c0_80 = arith.constant 0 : index
    %c0_81 = arith.constant 0 : index
    %c0_82 = arith.constant 0 : index
    %246 = vector.load %arg1[%c0_80, %c0_81, %c0_82] : memref<3x32x128xf32, #tpu.memory_space<vmem>>, vector<1x32x128xf32>
    %247 = vector.shape_cast %246 : vector<1x32x128xf32> to vector<32x128xf32>
    %c0_83 = arith.constant 0 : index
    %c8 = arith.constant 8 : index
    %248 = vector.load %arg5[%c0_83, %c8] : memref<32x256xf32, #tpu.memory_space<vmem>>, vector<32x128xf32>
    tpu.vector_store %arg5[%c0_83, %c8], %247 {strides = array<i32>} : memref<32x256xf32, #tpu.memory_space<vmem>>, vector<32x128xf32>,
    %c0_84 = arith.constant 0 : index
    %c0_85 = arith.constant 0 : index
    %249 = vector.load %arg5[%c0_84, %c0_85] : memref<32x256xf32, #tpu.memory_space<vmem>>, vector<32x128xf32>
    %250 = vector.broadcast %69 : vector<1x128xf32> to vector<32x128xf32>
    %251 = arith.mulf %249, %250 : vector<32x128xf32>
    %c0_86 = arith.constant 0 : index
    %c0_87 = arith.constant 0 : index
    %252 = vector.load %arg7[%c0_86, %c0_87] : memref<296x128xf32, #tpu.memory_space<vmem>>, vector<32x128xf32>
    tpu.vector_store %arg7[%c0_86, %c0_87], %251 {strides = array<i32>} : memref<296x128xf32, #tpu.memory_space<vmem>>, vector<32x128xf32>,
    %c0_88 = arith.constant 0 : index
    %c1 = arith.constant 1 : index
    %253 = vector.load %arg5[%c0_88, %c1] : memref<32x256xf32, #tpu.memory_space<vmem>>, vector<32x128xf32>
    %254 = vector.broadcast %91 : vector<1x128xf32> to vector<32x128xf32>
    %255 = arith.mulf %253, %254 : vector<32x128xf32>
    %c32 = arith.constant 32 : index
    %c0_89 = arith.constant 0 : index
    %256 = vector.load %arg7[%c32, %c0_89] : memref<296x128xf32, #tpu.memory_space<vmem>>, vector<32x128xf32>
    tpu.vector_store %arg7[%c32, %c0_89], %255 {strides = array<i32>} : memref<296x128xf32, #tpu.memory_space<vmem>>, vector<32x128xf32>,
    %c0_90 = arith.constant 0 : index
    %c2 = arith.constant 2 : index
    %257 = vector.load %arg5[%c0_90, %c2] : memref<32x256xf32, #tpu.memory_space<vmem>>, vector<32x128xf32>
    %258 = vector.broadcast %113 : vector<1x128xf32> to vector<32x128xf32>
    %259 = arith.mulf %257, %258 : vector<32x128xf32>
    %c64 = arith.constant 64 : index
    %c0_91 = arith.constant 0 : index
    %260 = vector.load %arg7[%c64, %c0_91] : memref<296x128xf32, #tpu.memory_space<vmem>>, vector<32x128xf32>
    tpu.vector_store %arg7[%c64, %c0_91], %259 {strides = array<i32>} : memref<296x128xf32, #tpu.memory_space<vmem>>, vector<32x128xf32>,
    %c0_92 = arith.constant 0 : index
    %c7 = arith.constant 7 : index
    %261 = vector.load %arg5[%c0_92, %c7] : memref<32x256xf32, #tpu.memory_space<vmem>>, vector<32x128xf32>
    %262 = vector.broadcast %135 : vector<1x128xf32> to vector<32x128xf32>
    %263 = arith.mulf %261, %262 : vector<32x128xf32>
    %c96 = arith.constant 96 : index
    %c0_93 = arith.constant 0 : index
    %264 = vector.load %arg7[%c96, %c0_93] : memref<296x128xf32, #tpu.memory_space<vmem>>, vector<32x128xf32>
    tpu.vector_store %arg7[%c96, %c0_93], %263 {strides = array<i32>} : memref<296x128xf32, #tpu.memory_space<vmem>>, vector<32x128xf32>,
    %c0_94 = arith.constant 0 : index
    %c8_95 = arith.constant 8 : index
    %265 = vector.load %arg5[%c0_94, %c8_95] : memref<32x256xf32, #tpu.memory_space<vmem>>, vector<32x128xf32>
    %266 = vector.broadcast %157 : vector<1x128xf32> to vector<32x128xf32>
    %267 = arith.mulf %265, %266 : vector<32x128xf32>
    %c128 = arith.constant 128 : index
    %c0_96 = arith.constant 0 : index
    %268 = vector.load %arg7[%c128, %c0_96] : memref<296x128xf32, #tpu.memory_space<vmem>>, vector<32x128xf32>
    tpu.vector_store %arg7[%c128, %c0_96], %267 {strides = array<i32>} : memref<296x128xf32, #tpu.memory_space<vmem>>, vector<32x128xf32>,
    %c0_97 = arith.constant 0 : index
    %c9 = arith.constant 9 : index
    %269 = vector.load %arg5[%c0_97, %c9] : memref<32x256xf32, #tpu.memory_space<vmem>>, vector<32x128xf32>
    %270 = vector.broadcast %179 : vector<1x128xf32> to vector<32x128xf32>
    %271 = arith.mulf %269, %270 : vector<32x128xf32>
    %c160 = arith.constant 160 : index
    %c0_98 = arith.constant 0 : index
    %272 = vector.load %arg7[%c160, %c0_98] : memref<296x128xf32, #tpu.memory_space<vmem>>, vector<32x128xf32>
    tpu.vector_store %arg7[%c160, %c0_98], %271 {strides = array<i32>} : memref<296x128xf32, #tpu.memory_space<vmem>>, vector<32x128xf32>,
    %c0_99 = arith.constant 0 : index
    %c14 = arith.constant 14 : index
    %273 = vector.load %arg5[%c0_99, %c14] : memref<32x256xf32, #tpu.memory_space<vmem>>, vector<32x128xf32>
    %274 = vector.broadcast %201 : vector<1x128xf32> to vector<32x128xf32>
    %275 = arith.mulf %273, %274 : vector<32x128xf32>
    %c192 = arith.constant 192 : index
    %c0_100 = arith.constant 0 : index
    %276 = vector.load %arg7[%c192, %c0_100] : memref<296x128xf32, #tpu.memory_space<vmem>>, vector<32x128xf32>
    tpu.vector_store %arg7[%c192, %c0_100], %275 {strides = array<i32>} : memref<296x128xf32, #tpu.memory_space<vmem>>, vector<32x128xf32>,
    %c0_101 = arith.constant 0 : index
    %c15 = arith.constant 15 : index
    %277 = vector.load %arg5[%c0_101, %c15] : memref<32x256xf32, #tpu.memory_space<vmem>>, vector<32x128xf32>
    %278 = vector.broadcast %223 : vector<1x128xf32> to vector<32x128xf32>
    %279 = arith.mulf %277, %278 : vector<32x128xf32>
    %c224 = arith.constant 224 : index
    %c0_102 = arith.constant 0 : index
    %280 = vector.load %arg7[%c224, %c0_102] : memref<296x128xf32, #tpu.memory_space<vmem>>, vector<32x128xf32>
    tpu.vector_store %arg7[%c224, %c0_102], %279 {strides = array<i32>} : memref<296x128xf32, #tpu.memory_space<vmem>>, vector<32x128xf32>,
    %c0_103 = arith.constant 0 : index
    %c16 = arith.constant 16 : index
    %281 = vector.load %arg5[%c0_103, %c16] : memref<32x256xf32, #tpu.memory_space<vmem>>, vector<32x128xf32>
    %282 = vector.broadcast %245 : vector<1x128xf32> to vector<32x128xf32>
    %283 = arith.mulf %281, %282 : vector<32x128xf32>
    %c256 = arith.constant 256 : index
    %c0_104 = arith.constant 0 : index
    %284 = vector.load %arg7[%c256, %c0_104] : memref<296x128xf32, #tpu.memory_space<vmem>>, vector<32x128xf32>
    tpu.vector_store %arg7[%c256, %c0_104], %283 {strides = array<i32>} : memref<296x128xf32, #tpu.memory_space<vmem>>, vector<32x128xf32>,
    %c0_105 = arith.constant 0 : index
    %c0_106 = arith.constant 0 : index
    %c0_107 = arith.constant 0 : index
    %285 = vector.load %arg2[%c0_105, %c0_106, %c0_107] : memref<3x64x296xf32, #tpu.memory_space<vmem>>, vector<1x64x296xf32>
    %286 = vector.shape_cast %285 : vector<1x64x296xf32> to vector<64x296xf32>
    %c0_108 = arith.constant 0 : index
    %c0_109 = arith.constant 0 : index
    %287 = vector.load %arg7[%c0_108, %c0_109] : memref<296x128xf32, #tpu.memory_space<vmem>>, vector<296x128xf32>
    %cst_110 = arith.constant dense<0.000000e+00> : vector<64x128xf32>
    %288 = tpu.matmul %286, %287, %cst_110 {dimension_numbers = #tpu.dot_dimension_numbers<[1], [0], [0], [1], [0, 0, 1, 1], [], []>} : vector<64x296xf32>, vector<296x128xf32>, vector<64x128xf32> -> vector<64x128xf32>
    %cst_111 = arith.constant 0.000000e+00 : f32
    %289 = vector.broadcast %cst_111 : f32 to vector<64x128xf32>
    %290 = arith.maximumf %288, %289 : vector<64x128xf32>
    %c0_112 = arith.constant 0 : index
    %c8_113 = arith.constant 8 : index
    %291 = vector.load %arg6[%c0_112, %c8_113] : memref<64x256xf32, #tpu.memory_space<vmem>>, vector<64x128xf32>
    tpu.vector_store %arg6[%c0_112, %c8_113], %290 {strides = array<i32>} : memref<64x256xf32, #tpu.memory_space<vmem>>, vector<64x128xf32>,
    %c0_114 = arith.constant 0 : index
    %c0_115 = arith.constant 0 : index
    %292 = vector.load %arg6[%c0_114, %c0_115] : memref<64x256xf32, #tpu.memory_space<vmem>>, vector<64x128xf32>
    %293 = vector.broadcast %69 : vector<1x128xf32> to vector<64x128xf32>
    %294 = arith.mulf %292, %293 : vector<64x128xf32>
    %c0_116 = arith.constant 0 : index
    %c0_117 = arith.constant 0 : index
    %295 = vector.load %arg8[%c0_116, %c0_117] : memref<584x128xf32, #tpu.memory_space<vmem>>, vector<64x128xf32>
    tpu.vector_store %arg8[%c0_116, %c0_117], %294 {strides = array<i32>} : memref<584x128xf32, #tpu.memory_space<vmem>>, vector<64x128xf32>,
    %c0_118 = arith.constant 0 : index
    %c1_119 = arith.constant 1 : index
    %296 = vector.load %arg6[%c0_118, %c1_119] : memref<64x256xf32, #tpu.memory_space<vmem>>, vector<64x128xf32>
    %297 = vector.broadcast %91 : vector<1x128xf32> to vector<64x128xf32>
    %298 = arith.mulf %296, %297 : vector<64x128xf32>
    %c64_120 = arith.constant 64 : index
    %c0_121 = arith.constant 0 : index
    %299 = vector.load %arg8[%c64_120, %c0_121] : memref<584x128xf32, #tpu.memory_space<vmem>>, vector<64x128xf32>
    tpu.vector_store %arg8[%c64_120, %c0_121], %298 {strides = array<i32>} : memref<584x128xf32, #tpu.memory_space<vmem>>, vector<64x128xf32>,
    %c0_122 = arith.constant 0 : index
    %c2_123 = arith.constant 2 : index
    %300 = vector.load %arg6[%c0_122, %c2_123] : memref<64x256xf32, #tpu.memory_space<vmem>>, vector<64x128xf32>
    %301 = vector.broadcast %113 : vector<1x128xf32> to vector<64x128xf32>
    %302 = arith.mulf %300, %301 : vector<64x128xf32>
    %c128_124 = arith.constant 128 : index
    %c0_125 = arith.constant 0 : index
    %303 = vector.load %arg8[%c128_124, %c0_125] : memref<584x128xf32, #tpu.memory_space<vmem>>, vector<64x128xf32>
    tpu.vector_store %arg8[%c128_124, %c0_125], %302 {strides = array<i32>} : memref<584x128xf32, #tpu.memory_space<vmem>>, vector<64x128xf32>,
    %c0_126 = arith.constant 0 : index
    %c7_127 = arith.constant 7 : index
    %304 = vector.load %arg6[%c0_126, %c7_127] : memref<64x256xf32, #tpu.memory_space<vmem>>, vector<64x128xf32>
    %305 = vector.broadcast %135 : vector<1x128xf32> to vector<64x128xf32>
    %306 = arith.mulf %304, %305 : vector<64x128xf32>
    %c192_128 = arith.constant 192 : index
    %c0_129 = arith.constant 0 : index
    %307 = vector.load %arg8[%c192_128, %c0_129] : memref<584x128xf32, #tpu.memory_space<vmem>>, vector<64x128xf32>
    tpu.vector_store %arg8[%c192_128, %c0_129], %306 {strides = array<i32>} : memref<584x128xf32, #tpu.memory_space<vmem>>, vector<64x128xf32>,
    %c0_130 = arith.constant 0 : index
    %c8_131 = arith.constant 8 : index
    %308 = vector.load %arg6[%c0_130, %c8_131] : memref<64x256xf32, #tpu.memory_space<vmem>>, vector<64x128xf32>
    %309 = vector.broadcast %157 : vector<1x128xf32> to vector<64x128xf32>
    %310 = arith.mulf %308, %309 : vector<64x128xf32>
    %c256_132 = arith.constant 256 : index
    %c0_133 = arith.constant 0 : index
    %311 = vector.load %arg8[%c256_132, %c0_133] : memref<584x128xf32, #tpu.memory_space<vmem>>, vector<64x128xf32>
    tpu.vector_store %arg8[%c256_132, %c0_133], %310 {strides = array<i32>} : memref<584x128xf32, #tpu.memory_space<vmem>>, vector<64x128xf32>,
    %c0_134 = arith.constant 0 : index
    %c9_135 = arith.constant 9 : index
    %312 = vector.load %arg6[%c0_134, %c9_135] : memref<64x256xf32, #tpu.memory_space<vmem>>, vector<64x128xf32>
    %313 = vector.broadcast %179 : vector<1x128xf32> to vector<64x128xf32>
    %314 = arith.mulf %312, %313 : vector<64x128xf32>
    %c320 = arith.constant 320 : index
    %c0_136 = arith.constant 0 : index
    %315 = vector.load %arg8[%c320, %c0_136] : memref<584x128xf32, #tpu.memory_space<vmem>>, vector<64x128xf32>
    tpu.vector_store %arg8[%c320, %c0_136], %314 {strides = array<i32>} : memref<584x128xf32, #tpu.memory_space<vmem>>, vector<64x128xf32>,
    %c0_137 = arith.constant 0 : index
    %c14_138 = arith.constant 14 : index
    %316 = vector.load %arg6[%c0_137, %c14_138] : memref<64x256xf32, #tpu.memory_space<vmem>>, vector<64x128xf32>
    %317 = vector.broadcast %201 : vector<1x128xf32> to vector<64x128xf32>
    %318 = arith.mulf %316, %317 : vector<64x128xf32>
    %c384 = arith.constant 384 : index
    %c0_139 = arith.constant 0 : index
    %319 = vector.load %arg8[%c384, %c0_139] : memref<584x128xf32, #tpu.memory_space<vmem>>, vector<64x128xf32>
    tpu.vector_store %arg8[%c384, %c0_139], %318 {strides = array<i32>} : memref<584x128xf32, #tpu.memory_space<vmem>>, vector<64x128xf32>,
    %c0_140 = arith.constant 0 : index
    %c15_141 = arith.constant 15 : index
    %320 = vector.load %arg6[%c0_140, %c15_141] : memref<64x256xf32, #tpu.memory_space<vmem>>, vector<64x128xf32>
    %321 = vector.broadcast %223 : vector<1x128xf32> to vector<64x128xf32>
    %322 = arith.mulf %320, %321 : vector<64x128xf32>
    %c448 = arith.constant 448 : index
    %c0_142 = arith.constant 0 : index
    %323 = vector.load %arg8[%c448, %c0_142] : memref<584x128xf32, #tpu.memory_space<vmem>>, vector<64x128xf32>
    tpu.vector_store %arg8[%c448, %c0_142], %322 {strides = array<i32>} : memref<584x128xf32, #tpu.memory_space<vmem>>, vector<64x128xf32>,
    %c0_143 = arith.constant 0 : index
    %c16_144 = arith.constant 16 : index
    %324 = vector.load %arg6[%c0_143, %c16_144] : memref<64x256xf32, #tpu.memory_space<vmem>>, vector<64x128xf32>
    %325 = vector.broadcast %245 : vector<1x128xf32> to vector<64x128xf32>
    %326 = arith.mulf %324, %325 : vector<64x128xf32>
    %c512 = arith.constant 512 : index
    %c0_145 = arith.constant 0 : index
    %327 = vector.load %arg8[%c512, %c0_145] : memref<584x128xf32, #tpu.memory_space<vmem>>, vector<64x128xf32>
    tpu.vector_store %arg8[%c512, %c0_145], %326 {strides = array<i32>} : memref<584x128xf32, #tpu.memory_space<vmem>>, vector<64x128xf32>,
    %c0_146 = arith.constant 0 : index
    %c0_147 = arith.constant 0 : index
    %c0_148 = arith.constant 0 : index
    %328 = vector.load %arg3[%c0_146, %c0_147, %c0_148] : memref<3x16x584xf32, #tpu.memory_space<vmem>>, vector<1x16x584xf32>
    %329 = vector.shape_cast %328 : vector<1x16x584xf32> to vector<16x584xf32>
    %c0_149 = arith.constant 0 : index
    %c0_150 = arith.constant 0 : index
    %330 = vector.load %arg8[%c0_149, %c0_150] : memref<584x128xf32, #tpu.memory_space<vmem>>, vector<584x128xf32>
    %cst_151 = arith.constant dense<0.000000e+00> : vector<16x128xf32>
    %331 = tpu.matmul %329, %330, %cst_151 {dimension_numbers = #tpu.dot_dimension_numbers<[1], [0], [0], [1], [0, 0, 1, 1], [], []>} : vector<16x584xf32>, vector<584x128xf32>, vector<16x128xf32> -> vector<16x128xf32>
    %cst_152 = arith.constant 0.000000e+00 : f32
    %332 = vector.broadcast %cst_152 : f32 to vector<16x128xf32>
    %333 = arith.subf %332, %331 : vector<16x128xf32>
    %334 = math.exp %333 : vector<16x128xf32>
    %cst_153 = arith.constant 1.000000e+00 : f32
    %335 = vector.broadcast %cst_153 : f32 to vector<16x128xf32>
    %336 = arith.addf %335, %334 : vector<16x128xf32>
    %337 = tpu.reciprocal %336 {approx = true} : vector<16x128xf32> -> vector<16x128xf32>
    %c0_154 = arith.constant 0 : index
    %c0_155 = arith.constant 0 : index
    %c0_156 = arith.constant 0 : index
    %338 = vector.load %arg4[%c0_154, %c0_155, %c0_156] : memref<3x16x128xf32, #tpu.memory_space<vmem>>, vector<1x16x128xf32>
    %339 = vector.shape_cast %338 : vector<1x16x128xf32> to vector<16x128xf32>
    %340 = vector.shape_cast %337 : vector<16x128xf32> to vector<1x16x128xf32>
    tpu.vector_store %arg4[%c0_154, %c0_155, %c0_156], %340 {strides = array<i32>} : memref<3x16x128xf32, #tpu.memory_space<vmem>>, vector<1x16x128xf32>,
    %c1_157 = arith.constant 1 : index
    %c0_158 = arith.constant 0 : index
    %c0_159 = arith.constant 0 : index
    %341 = vector.load %arg1[%c1_157, %c0_158, %c0_159] : memref<3x32x128xf32, #tpu.memory_space<vmem>>, vector<1x32x128xf32>
    %342 = vector.shape_cast %341 : vector<1x32x128xf32> to vector<32x128xf32>
    %c0_160 = arith.constant 0 : index
    %c8_161 = arith.constant 8 : index
    %343 = vector.load %arg5[%c0_160, %c8_161] : memref<32x256xf32, #tpu.memory_space<vmem>>, vector<32x128xf32>
    tpu.vector_store %arg5[%c0_160, %c8_161], %342 {strides = array<i32>} : memref<32x256xf32, #tpu.memory_space<vmem>>, vector<32x128xf32>,
    %c0_162 = arith.constant 0 : index
    %c0_163 = arith.constant 0 : index
    %344 = vector.load %arg5[%c0_162, %c0_163] : memref<32x256xf32, #tpu.memory_space<vmem>>, vector<32x128xf32>
    %345 = vector.broadcast %69 : vector<1x128xf32> to vector<32x128xf32>
    %346 = arith.mulf %344, %345 : vector<32x128xf32>
    %c0_164 = arith.constant 0 : index
    %c0_165 = arith.constant 0 : index
    %347 = vector.load %arg7[%c0_164, %c0_165] : memref<296x128xf32, #tpu.memory_space<vmem>>, vector<32x128xf32>
    tpu.vector_store %arg7[%c0_164, %c0_165], %346 {strides = array<i32>} : memref<296x128xf32, #tpu.memory_space<vmem>>, vector<32x128xf32>,
    %c0_166 = arith.constant 0 : index
    %c1_167 = arith.constant 1 : index
    %348 = vector.load %arg5[%c0_166, %c1_167] : memref<32x256xf32, #tpu.memory_space<vmem>>, vector<32x128xf32>
    %349 = vector.broadcast %91 : vector<1x128xf32> to vector<32x128xf32>
    %350 = arith.mulf %348, %349 : vector<32x128xf32>
    %c32_168 = arith.constant 32 : index
    %c0_169 = arith.constant 0 : index
    %351 = vector.load %arg7[%c32_168, %c0_169] : memref<296x128xf32, #tpu.memory_space<vmem>>, vector<32x128xf32>
    tpu.vector_store %arg7[%c32_168, %c0_169], %350 {strides = array<i32>} : memref<296x128xf32, #tpu.memory_space<vmem>>, vector<32x128xf32>,
    %c0_170 = arith.constant 0 : index
    %c2_171 = arith.constant 2 : index
    %352 = vector.load %arg5[%c0_170, %c2_171] : memref<32x256xf32, #tpu.memory_space<vmem>>, vector<32x128xf32>
    %353 = vector.broadcast %113 : vector<1x128xf32> to vector<32x128xf32>
    %354 = arith.mulf %352, %353 : vector<32x128xf32>
    %c64_172 = arith.constant 64 : index
    %c0_173 = arith.constant 0 : index
    %355 = vector.load %arg7[%c64_172, %c0_173] : memref<296x128xf32, #tpu.memory_space<vmem>>, vector<32x128xf32>
    tpu.vector_store %arg7[%c64_172, %c0_173], %354 {strides = array<i32>} : memref<296x128xf32, #tpu.memory_space<vmem>>, vector<32x128xf32>,
    %c0_174 = arith.constant 0 : index
    %c7_175 = arith.constant 7 : index
    %356 = vector.load %arg5[%c0_174, %c7_175] : memref<32x256xf32, #tpu.memory_space<vmem>>, vector<32x128xf32>
    %357 = vector.broadcast %135 : vector<1x128xf32> to vector<32x128xf32>
    %358 = arith.mulf %356, %357 : vector<32x128xf32>
    %c96_176 = arith.constant 96 : index
    %c0_177 = arith.constant 0 : index
    %359 = vector.load %arg7[%c96_176, %c0_177] : memref<296x128xf32, #tpu.memory_space<vmem>>, vector<32x128xf32>
    tpu.vector_store %arg7[%c96_176, %c0_177], %358 {strides = array<i32>} : memref<296x128xf32, #tpu.memory_space<vmem>>, vector<32x128xf32>,
    %c0_178 = arith.constant 0 : index
    %c8_179 = arith.constant 8 : index
    %360 = vector.load %arg5[%c0_178, %c8_179] : memref<32x256xf32, #tpu.memory_space<vmem>>, vector<32x128xf32>
    %361 = vector.broadcast %157 : vector<1x128xf32> to vector<32x128xf32>
    %362 = arith.mulf %360, %361 : vector<32x128xf32>
    %c128_180 = arith.constant 128 : index
    %c0_181 = arith.constant 0 : index
    %363 = vector.load %arg7[%c128_180, %c0_181] : memref<296x128xf32, #tpu.memory_space<vmem>>, vector<32x128xf32>
    tpu.vector_store %arg7[%c128_180, %c0_181], %362 {strides = array<i32>} : memref<296x128xf32, #tpu.memory_space<vmem>>, vector<32x128xf32>,
    %c0_182 = arith.constant 0 : index
    %c9_183 = arith.constant 9 : index
    %364 = vector.load %arg5[%c0_182, %c9_183] : memref<32x256xf32, #tpu.memory_space<vmem>>, vector<32x128xf32>
    %365 = vector.broadcast %179 : vector<1x128xf32> to vector<32x128xf32>
    %366 = arith.mulf %364, %365 : vector<32x128xf32>
    %c160_184 = arith.constant 160 : index
    %c0_185 = arith.constant 0 : index
    %367 = vector.load %arg7[%c160_184, %c0_185] : memref<296x128xf32, #tpu.memory_space<vmem>>, vector<32x128xf32>
    tpu.vector_store %arg7[%c160_184, %c0_185], %366 {strides = array<i32>} : memref<296x128xf32, #tpu.memory_space<vmem>>, vector<32x128xf32>,
    %c0_186 = arith.constant 0 : index
    %c14_187 = arith.constant 14 : index
    %368 = vector.load %arg5[%c0_186, %c14_187] : memref<32x256xf32, #tpu.memory_space<vmem>>, vector<32x128xf32>
    %369 = vector.broadcast %201 : vector<1x128xf32> to vector<32x128xf32>
    %370 = arith.mulf %368, %369 : vector<32x128xf32>
    %c192_188 = arith.constant 192 : index
    %c0_189 = arith.constant 0 : index
    %371 = vector.load %arg7[%c192_188, %c0_189] : memref<296x128xf32, #tpu.memory_space<vmem>>, vector<32x128xf32>
    tpu.vector_store %arg7[%c192_188, %c0_189], %370 {strides = array<i32>} : memref<296x128xf32, #tpu.memory_space<vmem>>, vector<32x128xf32>,
    %c0_190 = arith.constant 0 : index
    %c15_191 = arith.constant 15 : index
    %372 = vector.load %arg5[%c0_190, %c15_191] : memref<32x256xf32, #tpu.memory_space<vmem>>, vector<32x128xf32>
    %373 = vector.broadcast %223 : vector<1x128xf32> to vector<32x128xf32>
    %374 = arith.mulf %372, %373 : vector<32x128xf32>
    %c224_192 = arith.constant 224 : index
    %c0_193 = arith.constant 0 : index
    %375 = vector.load %arg7[%c224_192, %c0_193] : memref<296x128xf32, #tpu.memory_space<vmem>>, vector<32x128xf32>
    tpu.vector_store %arg7[%c224_192, %c0_193], %374 {strides = array<i32>} : memref<296x128xf32, #tpu.memory_space<vmem>>, vector<32x128xf32>,
    %c0_194 = arith.constant 0 : index
    %c16_195 = arith.constant 16 : index
    %376 = vector.load %arg5[%c0_194, %c16_195] : memref<32x256xf32, #tpu.memory_space<vmem>>, vector<32x128xf32>
    %377 = vector.broadcast %245 : vector<1x128xf32> to vector<32x128xf32>
    %378 = arith.mulf %376, %377 : vector<32x128xf32>
    %c256_196 = arith.constant 256 : index
    %c0_197 = arith.constant 0 : index
    %379 = vector.load %arg7[%c256_196, %c0_197] : memref<296x128xf32, #tpu.memory_space<vmem>>, vector<32x128xf32>
    tpu.vector_store %arg7[%c256_196, %c0_197], %378 {strides = array<i32>} : memref<296x128xf32, #tpu.memory_space<vmem>>, vector<32x128xf32>,
    %c1_198 = arith.constant 1 : index
    %c0_199 = arith.constant 0 : index
    %c0_200 = arith.constant 0 : index
    %380 = vector.load %arg2[%c1_198, %c0_199, %c0_200] : memref<3x64x296xf32, #tpu.memory_space<vmem>>, vector<1x64x296xf32>
    %381 = vector.shape_cast %380 : vector<1x64x296xf32> to vector<64x296xf32>
    %c0_201 = arith.constant 0 : index
    %c0_202 = arith.constant 0 : index
    %382 = vector.load %arg7[%c0_201, %c0_202] : memref<296x128xf32, #tpu.memory_space<vmem>>, vector<296x128xf32>
    %cst_203 = arith.constant dense<0.000000e+00> : vector<64x128xf32>
    %383 = tpu.matmul %381, %382, %cst_203 {dimension_numbers = #tpu.dot_dimension_numbers<[1], [0], [0], [1], [0, 0, 1, 1], [], []>} : vector<64x296xf32>, vector<296x128xf32>, vector<64x128xf32> -> vector<64x128xf32>
    %cst_204 = arith.constant 0.000000e+00 : f32
    %384 = vector.broadcast %cst_204 : f32 to vector<64x128xf32>
    %385 = arith.maximumf %383, %384 : vector<64x128xf32>
    %c0_205 = arith.constant 0 : index
    %c8_206 = arith.constant 8 : index
    %386 = vector.load %arg6[%c0_205, %c8_206] : memref<64x256xf32, #tpu.memory_space<vmem>>, vector<64x128xf32>
    tpu.vector_store %arg6[%c0_205, %c8_206], %385 {strides = array<i32>} : memref<64x256xf32, #tpu.memory_space<vmem>>, vector<64x128xf32>,
    %c0_207 = arith.constant 0 : index
    %c0_208 = arith.constant 0 : index
    %387 = vector.load %arg6[%c0_207, %c0_208] : memref<64x256xf32, #tpu.memory_space<vmem>>, vector<64x128xf32>
    %388 = vector.broadcast %69 : vector<1x128xf32> to vector<64x128xf32>
    %389 = arith.mulf %387, %388 : vector<64x128xf32>
    %c0_209 = arith.constant 0 : index
    %c0_210 = arith.constant 0 : index
    %390 = vector.load %arg8[%c0_209, %c0_210] : memref<584x128xf32, #tpu.memory_space<vmem>>, vector<64x128xf32>
    tpu.vector_store %arg8[%c0_209, %c0_210], %389 {strides = array<i32>} : memref<584x128xf32, #tpu.memory_space<vmem>>, vector<64x128xf32>,
    %c0_211 = arith.constant 0 : index
    %c1_212 = arith.constant 1 : index
    %391 = vector.load %arg6[%c0_211, %c1_212] : memref<64x256xf32, #tpu.memory_space<vmem>>, vector<64x128xf32>
    %392 = vector.broadcast %91 : vector<1x128xf32> to vector<64x128xf32>
    %393 = arith.mulf %391, %392 : vector<64x128xf32>
    %c64_213 = arith.constant 64 : index
    %c0_214 = arith.constant 0 : index
    %394 = vector.load %arg8[%c64_213, %c0_214] : memref<584x128xf32, #tpu.memory_space<vmem>>, vector<64x128xf32>
    tpu.vector_store %arg8[%c64_213, %c0_214], %393 {strides = array<i32>} : memref<584x128xf32, #tpu.memory_space<vmem>>, vector<64x128xf32>,
    %c0_215 = arith.constant 0 : index
    %c2_216 = arith.constant 2 : index
    %395 = vector.load %arg6[%c0_215, %c2_216] : memref<64x256xf32, #tpu.memory_space<vmem>>, vector<64x128xf32>
    %396 = vector.broadcast %113 : vector<1x128xf32> to vector<64x128xf32>
    %397 = arith.mulf %395, %396 : vector<64x128xf32>
    %c128_217 = arith.constant 128 : index
    %c0_218 = arith.constant 0 : index
    %398 = vector.load %arg8[%c128_217, %c0_218] : memref<584x128xf32, #tpu.memory_space<vmem>>, vector<64x128xf32>
    tpu.vector_store %arg8[%c128_217, %c0_218], %397 {strides = array<i32>} : memref<584x128xf32, #tpu.memory_space<vmem>>, vector<64x128xf32>,
    %c0_219 = arith.constant 0 : index
    %c7_220 = arith.constant 7 : index
    %399 = vector.load %arg6[%c0_219, %c7_220] : memref<64x256xf32, #tpu.memory_space<vmem>>, vector<64x128xf32>
    %400 = vector.broadcast %135 : vector<1x128xf32> to vector<64x128xf32>
    %401 = arith.mulf %399, %400 : vector<64x128xf32>
    %c192_221 = arith.constant 192 : index
    %c0_222 = arith.constant 0 : index
    %402 = vector.load %arg8[%c192_221, %c0_222] : memref<584x128xf32, #tpu.memory_space<vmem>>, vector<64x128xf32>
    tpu.vector_store %arg8[%c192_221, %c0_222], %401 {strides = array<i32>} : memref<584x128xf32, #tpu.memory_space<vmem>>, vector<64x128xf32>,
    %c0_223 = arith.constant 0 : index
    %c8_224 = arith.constant 8 : index
    %403 = vector.load %arg6[%c0_223, %c8_224] : memref<64x256xf32, #tpu.memory_space<vmem>>, vector<64x128xf32>
    %404 = vector.broadcast %157 : vector<1x128xf32> to vector<64x128xf32>
    %405 = arith.mulf %403, %404 : vector<64x128xf32>
    %c256_225 = arith.constant 256 : index
    %c0_226 = arith.constant 0 : index
    %406 = vector.load %arg8[%c256_225, %c0_226] : memref<584x128xf32, #tpu.memory_space<vmem>>, vector<64x128xf32>
    tpu.vector_store %arg8[%c256_225, %c0_226], %405 {strides = array<i32>} : memref<584x128xf32, #tpu.memory_space<vmem>>, vector<64x128xf32>,
    %c0_227 = arith.constant 0 : index
    %c9_228 = arith.constant 9 : index
    %407 = vector.load %arg6[%c0_227, %c9_228] : memref<64x256xf32, #tpu.memory_space<vmem>>, vector<64x128xf32>
    %408 = vector.broadcast %179 : vector<1x128xf32> to vector<64x128xf32>
    %409 = arith.mulf %407, %408 : vector<64x128xf32>
    %c320_229 = arith.constant 320 : index
    %c0_230 = arith.constant 0 : index
    %410 = vector.load %arg8[%c320_229, %c0_230] : memref<584x128xf32, #tpu.memory_space<vmem>>, vector<64x128xf32>
    tpu.vector_store %arg8[%c320_229, %c0_230], %409 {strides = array<i32>} : memref<584x128xf32, #tpu.memory_space<vmem>>, vector<64x128xf32>,
    %c0_231 = arith.constant 0 : index
    %c14_232 = arith.constant 14 : index
    %411 = vector.load %arg6[%c0_231, %c14_232] : memref<64x256xf32, #tpu.memory_space<vmem>>, vector<64x128xf32>
    %412 = vector.broadcast %201 : vector<1x128xf32> to vector<64x128xf32>
    %413 = arith.mulf %411, %412 : vector<64x128xf32>
    %c384_233 = arith.constant 384 : index
    %c0_234 = arith.constant 0 : index
    %414 = vector.load %arg8[%c384_233, %c0_234] : memref<584x128xf32, #tpu.memory_space<vmem>>, vector<64x128xf32>
    tpu.vector_store %arg8[%c384_233, %c0_234], %413 {strides = array<i32>} : memref<584x128xf32, #tpu.memory_space<vmem>>, vector<64x128xf32>,
    %c0_235 = arith.constant 0 : index
    %c15_236 = arith.constant 15 : index
    %415 = vector.load %arg6[%c0_235, %c15_236] : memref<64x256xf32, #tpu.memory_space<vmem>>, vector<64x128xf32>
    %416 = vector.broadcast %223 : vector<1x128xf32> to vector<64x128xf32>
    %417 = arith.mulf %415, %416 : vector<64x128xf32>
    %c448_237 = arith.constant 448 : index
    %c0_238 = arith.constant 0 : index
    %418 = vector.load %arg8[%c448_237, %c0_238] : memref<584x128xf32, #tpu.memory_space<vmem>>, vector<64x128xf32>
    tpu.vector_store %arg8[%c448_237, %c0_238], %417 {strides = array<i32>} : memref<584x128xf32, #tpu.memory_space<vmem>>, vector<64x128xf32>,
    %c0_239 = arith.constant 0 : index
    %c16_240 = arith.constant 16 : index
    %419 = vector.load %arg6[%c0_239, %c16_240] : memref<64x256xf32, #tpu.memory_space<vmem>>, vector<64x128xf32>
    %420 = vector.broadcast %245 : vector<1x128xf32> to vector<64x128xf32>
    %421 = arith.mulf %419, %420 : vector<64x128xf32>
    %c512_241 = arith.constant 512 : index
    %c0_242 = arith.constant 0 : index
    %422 = vector.load %arg8[%c512_241, %c0_242] : memref<584x128xf32, #tpu.memory_space<vmem>>, vector<64x128xf32>
    tpu.vector_store %arg8[%c512_241, %c0_242], %421 {strides = array<i32>} : memref<584x128xf32, #tpu.memory_space<vmem>>, vector<64x128xf32>,
    %c1_243 = arith.constant 1 : index
    %c0_244 = arith.constant 0 : index
    %c0_245 = arith.constant 0 : index
    %423 = vector.load %arg3[%c1_243, %c0_244, %c0_245] : memref<3x16x584xf32, #tpu.memory_space<vmem>>, vector<1x16x584xf32>
    %424 = vector.shape_cast %423 : vector<1x16x584xf32> to vector<16x584xf32>
    %c0_246 = arith.constant 0 : index
    %c0_247 = arith.constant 0 : index
    %425 = vector.load %arg8[%c0_246, %c0_247] : memref<584x128xf32, #tpu.memory_space<vmem>>, vector<584x128xf32>
    %cst_248 = arith.constant dense<0.000000e+00> : vector<16x128xf32>
    %426 = tpu.matmul %424, %425, %cst_248 {dimension_numbers = #tpu.dot_dimension_numbers<[1], [0], [0], [1], [0, 0, 1, 1], [], []>} : vector<16x584xf32>, vector<584x128xf32>, vector<16x128xf32> -> vector<16x128xf32>
    %cst_249 = arith.constant 0.000000e+00 : f32
    %427 = vector.broadcast %cst_249 : f32 to vector<16x128xf32>
    %428 = arith.subf %427, %426 : vector<16x128xf32>
    %429 = math.exp %428 : vector<16x128xf32>
    %cst_250 = arith.constant 1.000000e+00 : f32
    %430 = vector.broadcast %cst_250 : f32 to vector<16x128xf32>
    %431 = arith.addf %430, %429 : vector<16x128xf32>
    %432 = tpu.reciprocal %431 {approx = true} : vector<16x128xf32> -> vector<16x128xf32>
    %c1_251 = arith.constant 1 : index
    %c0_252 = arith.constant 0 : index
    %c0_253 = arith.constant 0 : index
    %433 = vector.load %arg4[%c1_251, %c0_252, %c0_253] : memref<3x16x128xf32, #tpu.memory_space<vmem>>, vector<1x16x128xf32>
    %434 = vector.shape_cast %433 : vector<1x16x128xf32> to vector<16x128xf32>
    %435 = vector.shape_cast %432 : vector<16x128xf32> to vector<1x16x128xf32>
    tpu.vector_store %arg4[%c1_251, %c0_252, %c0_253], %435 {strides = array<i32>} : memref<3x16x128xf32, #tpu.memory_space<vmem>>, vector<1x16x128xf32>,
    %c2_254 = arith.constant 2 : index
    %c0_255 = arith.constant 0 : index
    %c0_256 = arith.constant 0 : index
    %436 = vector.load %arg1[%c2_254, %c0_255, %c0_256] : memref<3x32x128xf32, #tpu.memory_space<vmem>>, vector<1x32x128xf32>
    %437 = vector.shape_cast %436 : vector<1x32x128xf32> to vector<32x128xf32>
    %c0_257 = arith.constant 0 : index
    %c8_258 = arith.constant 8 : index
    %438 = vector.load %arg5[%c0_257, %c8_258] : memref<32x256xf32, #tpu.memory_space<vmem>>, vector<32x128xf32>
    tpu.vector_store %arg5[%c0_257, %c8_258], %437 {strides = array<i32>} : memref<32x256xf32, #tpu.memory_space<vmem>>, vector<32x128xf32>,
    %c0_259 = arith.constant 0 : index
    %c0_260 = arith.constant 0 : index
    %439 = vector.load %arg5[%c0_259, %c0_260] : memref<32x256xf32, #tpu.memory_space<vmem>>, vector<32x128xf32>
    %440 = vector.broadcast %69 : vector<1x128xf32> to vector<32x128xf32>
    %441 = arith.mulf %439, %440 : vector<32x128xf32>
    %c0_261 = arith.constant 0 : index
    %c0_262 = arith.constant 0 : index
    %442 = vector.load %arg7[%c0_261, %c0_262] : memref<296x128xf32, #tpu.memory_space<vmem>>, vector<32x128xf32>
    tpu.vector_store %arg7[%c0_261, %c0_262], %441 {strides = array<i32>} : memref<296x128xf32, #tpu.memory_space<vmem>>, vector<32x128xf32>,
    %c0_263 = arith.constant 0 : index
    %c1_264 = arith.constant 1 : index
    %443 = vector.load %arg5[%c0_263, %c1_264] : memref<32x256xf32, #tpu.memory_space<vmem>>, vector<32x128xf32>
    %444 = vector.broadcast %91 : vector<1x128xf32> to vector<32x128xf32>
    %445 = arith.mulf %443, %444 : vector<32x128xf32>
    %c32_265 = arith.constant 32 : index
    %c0_266 = arith.constant 0 : index
    %446 = vector.load %arg7[%c32_265, %c0_266] : memref<296x128xf32, #tpu.memory_space<vmem>>, vector<32x128xf32>
    tpu.vector_store %arg7[%c32_265, %c0_266], %445 {strides = array<i32>} : memref<296x128xf32, #tpu.memory_space<vmem>>, vector<32x128xf32>,
    %c0_267 = arith.constant 0 : index
    %c2_268 = arith.constant 2 : index
    %447 = vector.load %arg5[%c0_267, %c2_268] : memref<32x256xf32, #tpu.memory_space<vmem>>, vector<32x128xf32>
    %448 = vector.broadcast %113 : vector<1x128xf32> to vector<32x128xf32>
    %449 = arith.mulf %447, %448 : vector<32x128xf32>
    %c64_269 = arith.constant 64 : index
    %c0_270 = arith.constant 0 : index
    %450 = vector.load %arg7[%c64_269, %c0_270] : memref<296x128xf32, #tpu.memory_space<vmem>>, vector<32x128xf32>
    tpu.vector_store %arg7[%c64_269, %c0_270], %449 {strides = array<i32>} : memref<296x128xf32, #tpu.memory_space<vmem>>, vector<32x128xf32>,
    %c0_271 = arith.constant 0 : index
    %c7_272 = arith.constant 7 : index
    %451 = vector.load %arg5[%c0_271, %c7_272] : memref<32x256xf32, #tpu.memory_space<vmem>>, vector<32x128xf32>
    %452 = vector.broadcast %135 : vector<1x128xf32> to vector<32x128xf32>
    %453 = arith.mulf %451, %452 : vector<32x128xf32>
    %c96_273 = arith.constant 96 : index
    %c0_274 = arith.constant 0 : index
    %454 = vector.load %arg7[%c96_273, %c0_274] : memref<296x128xf32, #tpu.memory_space<vmem>>, vector<32x128xf32>
    tpu.vector_store %arg7[%c96_273, %c0_274], %453 {strides = array<i32>} : memref<296x128xf32, #tpu.memory_space<vmem>>, vector<32x128xf32>,
    %c0_275 = arith.constant 0 : index
    %c8_276 = arith.constant 8 : index
    %455 = vector.load %arg5[%c0_275, %c8_276] : memref<32x256xf32, #tpu.memory_space<vmem>>, vector<32x128xf32>
    %456 = vector.broadcast %157 : vector<1x128xf32> to vector<32x128xf32>
    %457 = arith.mulf %455, %456 : vector<32x128xf32>
    %c128_277 = arith.constant 128 : index
    %c0_278 = arith.constant 0 : index
    %458 = vector.load %arg7[%c128_277, %c0_278] : memref<296x128xf32, #tpu.memory_space<vmem>>, vector<32x128xf32>
    tpu.vector_store %arg7[%c128_277, %c0_278], %457 {strides = array<i32>} : memref<296x128xf32, #tpu.memory_space<vmem>>, vector<32x128xf32>,
    %c0_279 = arith.constant 0 : index
    %c9_280 = arith.constant 9 : index
    %459 = vector.load %arg5[%c0_279, %c9_280] : memref<32x256xf32, #tpu.memory_space<vmem>>, vector<32x128xf32>
    %460 = vector.broadcast %179 : vector<1x128xf32> to vector<32x128xf32>
    %461 = arith.mulf %459, %460 : vector<32x128xf32>
    %c160_281 = arith.constant 160 : index
    %c0_282 = arith.constant 0 : index
    %462 = vector.load %arg7[%c160_281, %c0_282] : memref<296x128xf32, #tpu.memory_space<vmem>>, vector<32x128xf32>
    tpu.vector_store %arg7[%c160_281, %c0_282], %461 {strides = array<i32>} : memref<296x128xf32, #tpu.memory_space<vmem>>, vector<32x128xf32>,
    %c0_283 = arith.constant 0 : index
    %c14_284 = arith.constant 14 : index
    %463 = vector.load %arg5[%c0_283, %c14_284] : memref<32x256xf32, #tpu.memory_space<vmem>>, vector<32x128xf32>
    %464 = vector.broadcast %201 : vector<1x128xf32> to vector<32x128xf32>
    %465 = arith.mulf %463, %464 : vector<32x128xf32>
    %c192_285 = arith.constant 192 : index
    %c0_286 = arith.constant 0 : index
    %466 = vector.load %arg7[%c192_285, %c0_286] : memref<296x128xf32, #tpu.memory_space<vmem>>, vector<32x128xf32>
    tpu.vector_store %arg7[%c192_285, %c0_286], %465 {strides = array<i32>} : memref<296x128xf32, #tpu.memory_space<vmem>>, vector<32x128xf32>,
    %c0_287 = arith.constant 0 : index
    %c15_288 = arith.constant 15 : index
    %467 = vector.load %arg5[%c0_287, %c15_288] : memref<32x256xf32, #tpu.memory_space<vmem>>, vector<32x128xf32>
    %468 = vector.broadcast %223 : vector<1x128xf32> to vector<32x128xf32>
    %469 = arith.mulf %467, %468 : vector<32x128xf32>
    %c224_289 = arith.constant 224 : index
    %c0_290 = arith.constant 0 : index
    %470 = vector.load %arg7[%c224_289, %c0_290] : memref<296x128xf32, #tpu.memory_space<vmem>>, vector<32x128xf32>
    tpu.vector_store %arg7[%c224_289, %c0_290], %469 {strides = array<i32>} : memref<296x128xf32, #tpu.memory_space<vmem>>, vector<32x128xf32>,
    %c0_291 = arith.constant 0 : index
    %c16_292 = arith.constant 16 : index
    %471 = vector.load %arg5[%c0_291, %c16_292] : memref<32x256xf32, #tpu.memory_space<vmem>>, vector<32x128xf32>
    %472 = vector.broadcast %245 : vector<1x128xf32> to vector<32x128xf32>
    %473 = arith.mulf %471, %472 : vector<32x128xf32>
    %c256_293 = arith.constant 256 : index
    %c0_294 = arith.constant 0 : index
    %474 = vector.load %arg7[%c256_293, %c0_294] : memref<296x128xf32, #tpu.memory_space<vmem>>, vector<32x128xf32>
    tpu.vector_store %arg7[%c256_293, %c0_294], %473 {strides = array<i32>} : memref<296x128xf32, #tpu.memory_space<vmem>>, vector<32x128xf32>,
    %c2_295 = arith.constant 2 : index
    %c0_296 = arith.constant 0 : index
    %c0_297 = arith.constant 0 : index
    %475 = vector.load %arg2[%c2_295, %c0_296, %c0_297] : memref<3x64x296xf32, #tpu.memory_space<vmem>>, vector<1x64x296xf32>
    %476 = vector.shape_cast %475 : vector<1x64x296xf32> to vector<64x296xf32>
    %c0_298 = arith.constant 0 : index
    %c0_299 = arith.constant 0 : index
    %477 = vector.load %arg7[%c0_298, %c0_299] : memref<296x128xf32, #tpu.memory_space<vmem>>, vector<296x128xf32>
    %cst_300 = arith.constant dense<0.000000e+00> : vector<64x128xf32>
    %478 = tpu.matmul %476, %477, %cst_300 {dimension_numbers = #tpu.dot_dimension_numbers<[1], [0], [0], [1], [0, 0, 1, 1], [], []>} : vector<64x296xf32>, vector<296x128xf32>, vector<64x128xf32> -> vector<64x128xf32>
    %cst_301 = arith.constant 0.000000e+00 : f32
    %479 = vector.broadcast %cst_301 : f32 to vector<64x128xf32>
    %480 = arith.maximumf %478, %479 : vector<64x128xf32>
    %c0_302 = arith.constant 0 : index
    %c8_303 = arith.constant 8 : index
    %481 = vector.load %arg6[%c0_302, %c8_303] : memref<64x256xf32, #tpu.memory_space<vmem>>, vector<64x128xf32>
    tpu.vector_store %arg6[%c0_302, %c8_303], %480 {strides = array<i32>} : memref<64x256xf32, #tpu.memory_space<vmem>>, vector<64x128xf32>,
    %c0_304 = arith.constant 0 : index
    %c0_305 = arith.constant 0 : index
    %482 = vector.load %arg6[%c0_304, %c0_305] : memref<64x256xf32, #tpu.memory_space<vmem>>, vector<64x128xf32>
    %483 = vector.broadcast %69 : vector<1x128xf32> to vector<64x128xf32>
    %484 = arith.mulf %482, %483 : vector<64x128xf32>
    %c0_306 = arith.constant 0 : index
    %c0_307 = arith.constant 0 : index
    %485 = vector.load %arg8[%c0_306, %c0_307] : memref<584x128xf32, #tpu.memory_space<vmem>>, vector<64x128xf32>
    tpu.vector_store %arg8[%c0_306, %c0_307], %484 {strides = array<i32>} : memref<584x128xf32, #tpu.memory_space<vmem>>, vector<64x128xf32>,
    %c0_308 = arith.constant 0 : index
    %c1_309 = arith.constant 1 : index
    %486 = vector.load %arg6[%c0_308, %c1_309] : memref<64x256xf32, #tpu.memory_space<vmem>>, vector<64x128xf32>
    %487 = vector.broadcast %91 : vector<1x128xf32> to vector<64x128xf32>
    %488 = arith.mulf %486, %487 : vector<64x128xf32>
    %c64_310 = arith.constant 64 : index
    %c0_311 = arith.constant 0 : index
    %489 = vector.load %arg8[%c64_310, %c0_311] : memref<584x128xf32, #tpu.memory_space<vmem>>, vector<64x128xf32>
    tpu.vector_store %arg8[%c64_310, %c0_311], %488 {strides = array<i32>} : memref<584x128xf32, #tpu.memory_space<vmem>>, vector<64x128xf32>,
    %c0_312 = arith.constant 0 : index
    %c2_313 = arith.constant 2 : index
    %490 = vector.load %arg6[%c0_312, %c2_313] : memref<64x256xf32, #tpu.memory_space<vmem>>, vector<64x128xf32>
    %491 = vector.broadcast %113 : vector<1x128xf32> to vector<64x128xf32>
    %492 = arith.mulf %490, %491 : vector<64x128xf32>
    %c128_314 = arith.constant 128 : index
    %c0_315 = arith.constant 0 : index
    %493 = vector.load %arg8[%c128_314, %c0_315] : memref<584x128xf32, #tpu.memory_space<vmem>>, vector<64x128xf32>
    tpu.vector_store %arg8[%c128_314, %c0_315], %492 {strides = array<i32>} : memref<584x128xf32, #tpu.memory_space<vmem>>, vector<64x128xf32>,
    %c0_316 = arith.constant 0 : index
    %c7_317 = arith.constant 7 : index
    %494 = vector.load %arg6[%c0_316, %c7_317] : memref<64x256xf32, #tpu.memory_space<vmem>>, vector<64x128xf32>
    %495 = vector.broadcast %135 : vector<1x128xf32> to vector<64x128xf32>
    %496 = arith.mulf %494, %495 : vector<64x128xf32>
    %c192_318 = arith.constant 192 : index
    %c0_319 = arith.constant 0 : index
    %497 = vector.load %arg8[%c192_318, %c0_319] : memref<584x128xf32, #tpu.memory_space<vmem>>, vector<64x128xf32>
    tpu.vector_store %arg8[%c192_318, %c0_319], %496 {strides = array<i32>} : memref<584x128xf32, #tpu.memory_space<vmem>>, vector<64x128xf32>,
    %c0_320 = arith.constant 0 : index
    %c8_321 = arith.constant 8 : index
    %498 = vector.load %arg6[%c0_320, %c8_321] : memref<64x256xf32, #tpu.memory_space<vmem>>, vector<64x128xf32>
    %499 = vector.broadcast %157 : vector<1x128xf32> to vector<64x128xf32>
    %500 = arith.mulf %498, %499 : vector<64x128xf32>
    %c256_322 = arith.constant 256 : index
    %c0_323 = arith.constant 0 : index
    %501 = vector.load %arg8[%c256_322, %c0_323] : memref<584x128xf32, #tpu.memory_space<vmem>>, vector<64x128xf32>
    tpu.vector_store %arg8[%c256_322, %c0_323], %500 {strides = array<i32>} : memref<584x128xf32, #tpu.memory_space<vmem>>, vector<64x128xf32>,
    %c0_324 = arith.constant 0 : index
    %c9_325 = arith.constant 9 : index
    %502 = vector.load %arg6[%c0_324, %c9_325] : memref<64x256xf32, #tpu.memory_space<vmem>>, vector<64x128xf32>
    %503 = vector.broadcast %179 : vector<1x128xf32> to vector<64x128xf32>
    %504 = arith.mulf %502, %503 : vector<64x128xf32>
    %c320_326 = arith.constant 320 : index
    %c0_327 = arith.constant 0 : index
    %505 = vector.load %arg8[%c320_326, %c0_327] : memref<584x128xf32, #tpu.memory_space<vmem>>, vector<64x128xf32>
    tpu.vector_store %arg8[%c320_326, %c0_327], %504 {strides = array<i32>} : memref<584x128xf32, #tpu.memory_space<vmem>>, vector<64x128xf32>,
    %c0_328 = arith.constant 0 : index
    %c14_329 = arith.constant 14 : index
    %506 = vector.load %arg6[%c0_328, %c14_329] : memref<64x256xf32, #tpu.memory_space<vmem>>, vector<64x128xf32>
    %507 = vector.broadcast %201 : vector<1x128xf32> to vector<64x128xf32>
    %508 = arith.mulf %506, %507 : vector<64x128xf32>
    %c384_330 = arith.constant 384 : index
    %c0_331 = arith.constant 0 : index
    %509 = vector.load %arg8[%c384_330, %c0_331] : memref<584x128xf32, #tpu.memory_space<vmem>>, vector<64x128xf32>
    tpu.vector_store %arg8[%c384_330, %c0_331], %508 {strides = array<i32>} : memref<584x128xf32, #tpu.memory_space<vmem>>, vector<64x128xf32>,
    %c0_332 = arith.constant 0 : index
    %c15_333 = arith.constant 15 : index
    %510 = vector.load %arg6[%c0_332, %c15_333] : memref<64x256xf32, #tpu.memory_space<vmem>>, vector<64x128xf32>
    %511 = vector.broadcast %223 : vector<1x128xf32> to vector<64x128xf32>
    %512 = arith.mulf %510, %511 : vector<64x128xf32>
    %c448_334 = arith.constant 448 : index
    %c0_335 = arith.constant 0 : index
    %513 = vector.load %arg8[%c448_334, %c0_335] : memref<584x128xf32, #tpu.memory_space<vmem>>, vector<64x128xf32>
    tpu.vector_store %arg8[%c448_334, %c0_335], %512 {strides = array<i32>} : memref<584x128xf32, #tpu.memory_space<vmem>>, vector<64x128xf32>,
    %c0_336 = arith.constant 0 : index
    %c16_337 = arith.constant 16 : index
    %514 = vector.load %arg6[%c0_336, %c16_337] : memref<64x256xf32, #tpu.memory_space<vmem>>, vector<64x128xf32>
    %515 = vector.broadcast %245 : vector<1x128xf32> to vector<64x128xf32>
    %516 = arith.mulf %514, %515 : vector<64x128xf32>
    %c512_338 = arith.constant 512 : index
    %c0_339 = arith.constant 0 : index
    %517 = vector.load %arg8[%c512_338, %c0_339] : memref<584x128xf32, #tpu.memory_space<vmem>>, vector<64x128xf32>
    tpu.vector_store %arg8[%c512_338, %c0_339], %516 {strides = array<i32>} : memref<584x128xf32, #tpu.memory_space<vmem>>, vector<64x128xf32>,
    %c2_340 = arith.constant 2 : index
    %c0_341 = arith.constant 0 : index
    %c0_342 = arith.constant 0 : index
    %518 = vector.load %arg3[%c2_340, %c0_341, %c0_342] : memref<3x16x584xf32, #tpu.memory_space<vmem>>, vector<1x16x584xf32>
    %519 = vector.shape_cast %518 : vector<1x16x584xf32> to vector<16x584xf32>
    %c0_343 = arith.constant 0 : index
    %c0_344 = arith.constant 0 : index
    %520 = vector.load %arg8[%c0_343, %c0_344] : memref<584x128xf32, #tpu.memory_space<vmem>>, vector<584x128xf32>
    %cst_345 = arith.constant dense<0.000000e+00> : vector<16x128xf32>
    %521 = tpu.matmul %519, %520, %cst_345 {dimension_numbers = #tpu.dot_dimension_numbers<[1], [0], [0], [1], [0, 0, 1, 1], [], []>} : vector<16x584xf32>, vector<584x128xf32>, vector<16x128xf32> -> vector<16x128xf32>
    %cst_346 = arith.constant 0.000000e+00 : f32
    %522 = vector.broadcast %cst_346 : f32 to vector<16x128xf32>
    %523 = arith.subf %522, %521 : vector<16x128xf32>
    %524 = math.exp %523 : vector<16x128xf32>
    %cst_347 = arith.constant 1.000000e+00 : f32
    %525 = vector.broadcast %cst_347 : f32 to vector<16x128xf32>
    %526 = arith.addf %525, %524 : vector<16x128xf32>
    %527 = tpu.reciprocal %526 {approx = true} : vector<16x128xf32> -> vector<16x128xf32>
    %c2_348 = arith.constant 2 : index
    %c0_349 = arith.constant 0 : index
    %c0_350 = arith.constant 0 : index
    %528 = vector.load %arg4[%c2_348, %c0_349, %c0_350] : memref<3x16x128xf32, #tpu.memory_space<vmem>>, vector<1x16x128xf32>
    %529 = vector.shape_cast %528 : vector<1x16x128xf32> to vector<16x128xf32>
    %530 = vector.shape_cast %527 : vector<16x128xf32> to vector<1x16x128xf32>
    tpu.vector_store %arg4[%c2_348, %c0_349, %c0_350], %530 {strides = array<i32>} : memref<3x16x128xf32, #tpu.memory_space<vmem>>, vector<1x16x128xf32>,
    return
  }
  func.func @transform_0(%arg0: i32) -> (i32, i32, i32) {
    %c0_i32 = arith.constant 0 : i32
    %c0_i32_0 = arith.constant 0 : i32
    %c0_i32_1 = arith.constant 0 : i32
    return %arg0, %c0_i32, %c0_i32_0 : i32, i32, i32
  }
  func.func @transform_1(%arg0: i32) -> (i32, i32, i32) {
    %c0_i32 = arith.constant 0 : i32
    %c0_i32_0 = arith.constant 0 : i32
    %c0_i32_1 = arith.constant 0 : i32
    return %arg0, %c0_i32, %c0_i32_0 : i32, i32, i32
  }
  func.func @transform_2(%arg0: i32) -> (i32, i32, i32) {
    %c0_i32 = arith.constant 0 : i32
    %c0_i32_0 = arith.constant 0 : i32
    %c0_i32_1 = arith.constant 0 : i32
    return %arg0, %c0_i32, %c0_i32_0 : i32, i32, i32
  }
  func.func @transform_3(%arg0: i32) -> (i32, i32, i32) {
    %c0_i32 = arith.constant 0 : i32
    %c0_i32_0 = arith.constant 0 : i32
    %c0_i32_1 = arith.constant 0 : i32
    return %arg0, %c0_i32, %c0_i32_0 : i32, i32, i32
  }
}

</mosaic_0001>

<llo_original>
// kernel: mul.11
$region0: #{mul.11}
  %s0 = inlined_call_operand.vmem [shape: f32[2,7,4,7,4], index: 0, kind: input, shape index: {}]
  %s1 = inlined_call_operand.vmem [shape: f32[2,28,28], index: 1, kind: output, shape index: {}]
  $region1: #{mul.11} parent=0
    #allocation0 [shape = 'u8[114688]{0}', space=vmem, size = 0x1c000, scoped, tag = 'scoped mem for output reshape']
    %v2 = vld [vmem:[%s0] ss:$8 sm:$0xf]
    %v3 = vld [vmem:[%s0] ss:$8 sm:$0xf0]
    %vm4 = vcmask 1047556
    %v5 = vsel %vm4, %v3, %v2
    %vm6 = vcmask 31744
    %7 = vst.msk [vmem:[#allocation0] sm:$0x3] %vm6, %v5
    %s8 = scalar_lea.vmem [#allocation0], 6
    %9 = vst.msk [vmem:[%s8] sm:$0xc] %vm6, %v5
    %s10 = scalar_lea.vmem [#allocation0], 12
    %11 = vst.msk [vmem:[%s10] sm:$0x30] %vm6, %v5
    %s12 = scalar_lea.vmem [#allocation0], 18
    %13 = vst.msk [vmem:[%s12] sm:$0xc0] %vm6, %v5
    %s14 = scalar_lea.vmem %s0, 64
    %v15 = vld [vmem:[%s14] ss:$8 sm:$0xf]
    %s16 = scalar_lea.vmem %s0, 64
    %v17 = vld [vmem:[%s16] ss:$8 sm:$0xf0]
    %vm18 = vcmask 1047556
    %v19 = vsel %vm18, %v17, %v15
    %vm20 = vcmask 31744
    %s21 = scalar_lea.vmem [#allocation0], 32
    %22 = vst.msk [vmem:[%s21] sm:$0x3] %vm20, %v19
    %s23 = scalar_lea.vmem [#allocation0], 38
    %24 = vst.msk [vmem:[%s23] sm:$0xc] %vm20, %v19
    %s25 = scalar_lea.vmem [#allocation0], 44
    %26 = vst.msk [vmem:[%s25] sm:$0x30] %vm20, %v19
    %s27 = scalar_lea.vmem [#allocation0], 50
    %28 = vst.msk [vmem:[%s27] sm:$0xc0] %vm20, %v19
    %s29 = scalar_lea.vmem %s0, 128
    %v30 = vld [vmem:[%s29] ss:$8 sm:$0xf]
    %s31 = scalar_lea.vmem %s0, 128
    %v32 = vld [vmem:[%s31] ss:$8 sm:$0xf0]
    %vm33 = vcmask 1047556
    %v34 = vsel %vm33, %v32, %v30
    %vm35 = vcmask 31744
    %s36 = scalar_lea.vmem [#allocation0], 64
    %37 = vst.msk [vmem:[%s36] sm:$0x3] %vm35, %v34
    %s38 = scalar_lea.vmem [#allocation0], 70
    %39 = vst.msk [vmem:[%s38] sm:$0xc] %vm35, %v34
    %s40 = scalar_lea.vmem [#allocation0], 76
    %41 = vst.msk [vmem:[%s40] sm:$0x30] %vm35, %v34
    %s42 = scalar_lea.vmem [#allocation0], 82
    %43 = vst.msk [vmem:[%s42] sm:$0xc0] %vm35, %v34
    %s44 = scalar_lea.vmem %s0, 192
    %v45 = vld [vmem:[%s44] ss:$8 sm:$0xf]
    %s46 = scalar_lea.vmem %s0, 192
    %v47 = vld [vmem:[%s46] ss:$8 sm:$0xf0]
    %vm48 = vcmask 1047556
    %v49 = vsel %vm48, %v47, %v45
    %vm50 = vcmask 31744
    %s51 = scalar_lea.vmem [#allocation0], 96
    %52 = vst.msk [vmem:[%s51] sm:$0x3] %vm50, %v49
    %s53 = scalar_lea.vmem [#allocation0], 102
    %54 = vst.msk [vmem:[%s53] sm:$0xc] %vm50, %v49
    %s55 = scalar_lea.vmem [#allocation0], 108
    %56 = vst.msk [vmem:[%s55] sm:$0x30] %vm50, %v49
    %s57 = scalar_lea.vmem [#allocation0], 114
    %58 = vst.msk [vmem:[%s57] sm:$0xc0] %vm50, %v49
    %s59 = scalar_lea.vmem %s0, 256
    %v60 = vld [vmem:[%s59] ss:$8 sm:$0xf]
    %s61 = scalar_lea.vmem %s0, 256
    %v62 = vld [vmem:[%s61] ss:$8 sm:$0xf0]
    %vm63 = vcmask 1047556
    %v64 = vsel %vm63, %v62, %v60
    %vm65 = vcmask 31744
    %s66 = scalar_lea.vmem [#allocation0], 128
    %67 = vst.msk [vmem:[%s66] sm:$0x3] %vm65, %v64
    %s68 = scalar_lea.vmem [#allocation0], 134
    %69 = vst.msk [vmem:[%s68] sm:$0xc] %vm65, %v64
    %s70 = scalar_lea.vmem [#allocation0], 140
    %71 = vst.msk [vmem:[%s70] sm:$0x30] %vm65, %v64
    %s72 = scalar_lea.vmem [#allocation0], 146
    %73 = vst.msk [vmem:[%s72] sm:$0xc0] %vm65, %v64
    %s74 = scalar_lea.vmem %s0, 320
    %v75 = vld [vmem:[%s74] ss:$8 sm:$0xf]
    %s76 = scalar_lea.vmem %s0, 320
    %v77 = vld [vmem:[%s76] ss:$8 sm:$0xf0]
    %vm78 = vcmask 1047556
    %v79 = vsel %vm78, %v77, %v75
    %vm80 = vcmask 31744
    %s81 = scalar_lea.vmem [#allocation0], 160
    %82 = vst.msk [vmem:[%s81] sm:$0x3] %vm80, %v79
    %s83 = scalar_lea.vmem [#allocation0], 166
    %84 = vst.msk [vmem:[%s83] sm:$0xc] %vm80, %v79
    %s85 = scalar_lea.vmem [#allocation0], 172
    %86 = vst.msk [vmem:[%s85] sm:$0x30] %vm80, %v79
    %s87 = scalar_lea.vmem [#allocation0], 178
    %88 = vst.msk [vmem:[%s87] sm:$0xc0] %vm80, %v79
    %s89 = scalar_lea.vmem %s0, 384
    %v90 = vld [vmem:[%s89] ss:$8 sm:$0xf]
    %s91 = scalar_lea.vmem %s0, 384
    %v92 = vld [vmem:[%s91] ss:$8 sm:$0xf0]
    %vm93 = vcmask 1047556
    %v94 = vsel %vm93, %v92, %v90
    %vm95 = vcmask 31744
    %s96 = scalar_lea.vmem [#allocation0], 192
    %97 = vst.msk [vmem:[%s96] sm:$0x3] %vm95, %v94
    %s98 = scalar_lea.vmem [#allocation0], 198
    %99 = vst.msk [vmem:[%s98] sm:$0xc] %vm95, %v94
    %s100 = scalar_lea.vmem [#allocation0], 204
    %101 = vst.msk [vmem:[%s100] sm:$0x30] %vm95, %v94
    %s102 = scalar_lea.vmem [#allocation0], 210
    %103 = vst.msk [vmem:[%s102] sm:$0xc0] %vm95, %v94
    %s104 = scalar_lea.vmem %s0, 6
    %v105 = vld [vmem:[%s104] ss:$8 sm:$0xf]
    %s106 = scalar_lea.vmem %s0, 6
    %v107 = vld [vmem:[%s106] ss:$8 sm:$0xf0]
    %vm108 = vcmask 1047556
    %v109 = vsel %vm108, %v107, %v105
    %110 = vrot.lane.b32.xlu0 %v109, 24
    %v111 = vpop.permute.xlu0 %110
    %vm112 = vcmask 228544
    %113 = vst.msk [vmem:[#allocation0] sm:$0x3] %vm112, %v111
    %s114 = scalar_lea.vmem [#allocation0], 6
    %115 = vst.msk [vmem:[%s114] sm:$0xc] %vm112, %v111
    %s116 = scalar_lea.vmem [#allocation0], 12
    %117 = vst.msk [vmem:[%s116] sm:$0x30] %vm112, %v111
    %s118 = scalar_lea.vmem [#allocation0], 18
    %119 = vst.msk [vmem:[%s118] sm:$0xc0] %vm112, %v111
    %s120 = scalar_lea.vmem %s0, 70
    %v121 = vld [vmem:[%s120] ss:$8 sm:$0xf]
    %s122 = scalar_lea.vmem %s0, 70
    %v123 = vld [vmem:[%s122] ss:$8 sm:$0xf0]
    %vm124 = vcmask 1047556
    %v125 = vsel %vm124, %v123, %v121
    %126 = vrot.lane.b32.xlu0 %v125, 24
    %v127 = vpop.permute.xlu0 %126
    %vm128 = vcmask 228544
    %s129 = scalar_lea.vmem [#allocation0], 32
    %130 = vst.msk [vmem:[%s129] sm:$0x3] %vm128, %v127
    %s131 = scalar_lea.vmem [#allocation0], 38
    %132 = vst.msk [vmem:[%s131] sm:$0xc] %vm128, %v127
    %s133 = scalar_lea.vmem [#allocation0], 44
    %134 = vst.msk [vmem:[%s133] sm:$0x30] %vm128, %v127
    %s135 = scalar_lea.vmem [#allocation0], 50
    %136 = vst.msk [vmem:[%s135] sm:$0xc0] %vm128, %v127
    %s137 = scalar_lea.vmem %s0, 134
    %v138 = vld [vmem:[%s137] ss:$8 sm:$0xf]
    %s139 = scalar_lea.vmem %s0, 134
    %v140 = vld [vmem:[%s139] ss:$8 sm:$0xf0]
    %vm141 = vcmask 1047556
    %v142 = vsel %vm141, %v140, %v138
    %143 = vrot.lane.b32.xlu0 %v142, 24
    %v144 = vpop.permute.xlu0 %143
    %vm145 = vcmask 228544
    %s146 = scalar_lea.vmem [#allocation0], 64
    %147 = vst.msk [vmem:[%s146] sm:$0x3] %vm145, %v144
    %s148 = scalar_lea.vmem [#allocation0], 70
    %149 = vst.msk [vmem:[%s148] sm:$0xc] %vm145, %v144
    %s150 = scalar_lea.vmem [#allocation0], 76
    %151 = vst.msk [vmem:[%s150] sm:$0x30] %vm145, %v144
    %s152 = scalar_lea.vmem [#allocation0], 82
    %153 = vst.msk [vmem:[%s152] sm:$0xc0] %vm145, %v144
    %s154 = scalar_lea.vmem %s0, 198
    %v155 = vld [vmem:[%s154] ss:$8 sm:$0xf]
    %s156 = scalar_lea.vmem %s0, 198
    %v157 = vld [vmem:[%s156] ss:$8 sm:$0xf0]
    %vm158 = vcmask 1047556
    %v159 = vsel %vm158, %v157, %v155
    %160 = vrot.lane.b32.xlu0 %v159, 24
    %v161 = vpop.permute.xlu0 %160
    %vm162 = vcmask 228544
    %s163 = scalar_lea.vmem [#allocation0], 96
    %164 = vst.msk [vmem:[%s163] sm:$0x3] %vm162, %v161
    %s165 = scalar_lea.vmem [#allocation0], 102
    %166 = vst.msk [vmem:[%s165] sm:$0xc] %vm162, %v161
    %s167 = scalar_lea.vmem [#allocation0], 108
    %168 = vst.msk [vmem:[%s167] sm:$0x30] %vm162, %v161
    %s169 = scalar_lea.vmem [#allocation0], 114
    %170 = vst.msk [vmem:[%s169] sm:$0xc0] %vm162, %v161
    %s171 = scalar_lea.vmem %s0, 262
    %v172 = vld [vmem:[%s171] ss:$8 sm:$0xf]
    %s173 = scalar_lea.vmem %s0, 262
    %v174 = vld [vmem:[%s173] ss:$8 sm:$0xf0]
    %vm175 = vcmask 1047556
    %v176 = vsel %vm175, %v174, %v172
    %177 = vrot.lane.b32.xlu0 %v176, 24
    %v178 = vpop.permute.xlu0 %177
    %vm179 = vcmask 228544
    %s180 = scalar_lea.vmem [#allocation0], 128
    %181 = vst.msk [vmem:[%s180] sm:$0x3] %vm179, %v178
    %s182 = scalar_lea.vmem [#allocation0], 134
    %183 = vst.msk [vmem:[%s182] sm:$0xc] %vm179, %v178
    %s184 = scalar_lea.vmem [#allocation0], 140
    %185 = vst.msk [vmem:[%s184] sm:$0x30] %vm179, %v178
    %s186 = scalar_lea.vmem [#allocation0], 146
    %187 = vst.msk [vmem:[%s186] sm:$0xc0] %vm179, %v178
    %s188 = scalar_lea.vmem %s0, 326
    %v189 = vld [vmem:[%s188] ss:$8 sm:$0xf]
    %s190 = scalar_lea.vmem %s0, 326
    %v191 = vld [vmem:[%s190] ss:$8 sm:$0xf0]
    %vm192 = vcmask 1047556
    %v193 = vsel %vm192, %v191, %v189
    %194 = vrot.lane.b32.xlu0 %v193, 24
    %v195 = vpop.permute.xlu0 %194
    %vm196 = vcmask 228544
    %s197 = scalar_lea.vmem [#allocation0], 160
    %198 = vst.msk [vmem:[%s197] sm:$0x3] %vm196, %v195
    %s199 = scalar_lea.vmem [#allocation0], 166
    %200 = vst.msk [vmem:[%s199] sm:$0xc] %vm196, %v195
    %s201 = scalar_lea.vmem [#allocation0], 172
    %202 = vst.msk [vmem:[%s201] sm:$0x30] %vm196, %v195
    %s203 = scalar_lea.vmem [#allocation0], 178
    %204 = vst.msk [vmem:[%s203] sm:$0xc0] %vm196, %v195
    %s205 = scalar_lea.vmem %s0, 390
    %v206 = vld [vmem:[%s205] ss:$8 sm:$0xf]
    %s207 = scalar_lea.vmem %s0, 390
    %v208 = vld [vmem:[%s207] ss:$8 sm:$0xf0]
    %vm209 = vcmask 1047556
    %v210 = vsel %vm209, %v208, %v206
    %211 = vrot.lane.b32.xlu0 %v210, 24
    %v212 = vpop.permute.xlu0 %211
    %vm213 = vcmask 228544
    %s214 = scalar_lea.vmem [#allocation0], 192
    %215 = vst.msk [vmem:[%s214] sm:$0x3] %vm213, %v212
    %s216 = scalar_lea.vmem [#allocation0], 198
    %217 = vst.msk [vmem:[%s216] sm:$0xc] %vm213, %v212
    %s218 = scalar_lea.vmem [#allocation0], 204
    %219 = vst.msk [vmem:[%s218] sm:$0x30] %vm213, %v212
    %s220 = scalar_lea.vmem [#allocation0], 210
    %221 = vst.msk [vmem:[%s220] sm:$0xc0] %vm213, %v212
    %s222 = scalar_lea.vmem %s0, 5
    %v223 = vld [vmem:[%s222] ss:$8 sm:$0xf]
    %s224 = scalar_lea.vmem %s0, 5
    %v225 = vld [vmem:[%s224] ss:$8 sm:$0xf0]
    %vm226 = vcmask 1047556
    %v227 = vsel %vm226, %v225, %v223
    %228 = vrot.lane.b32.xlu0 %v227, 20
    %v229 = vpop.permute.xlu0 %228
    %vm230 = vcmask 195744
    %231 = vst.msk [vmem:[#allocation0] sm:$0x3] %vm230, %v229
    %s232 = scalar_lea.vmem [#allocation0], 6
    %233 = vst.msk [vmem:[%s232] sm:$0xc] %vm230, %v229
    %s234 = scalar_lea.vmem [#allocation0], 12
    %235 = vst.msk [vmem:[%s234] sm:$0x30] %vm230, %v229
    %s236 = scalar_lea.vmem [#allocation0], 18
    %237 = vst.msk [vmem:[%s236] sm:$0xc0] %vm230, %v229
    %s238 = scalar_lea.vmem %s0, 69
    %v239 = vld [vmem:[%s238] ss:$8 sm:$0xf]
    %s240 = scalar_lea.vmem %s0, 69
    %v241 = vld [vmem:[%s240] ss:$8 sm:$0xf0]
    %vm242 = vcmask 1047556
    %v243 = vsel %vm242, %v241, %v239
    %244 = vrot.lane.b32.xlu0 %v243, 20
    %v245 = vpop.permute.xlu0 %244
    %vm246 = vcmask 195744
    %s247 = scalar_lea.vmem [#allocation0], 32
    %248 = vst.msk [vmem:[%s247] sm:$0x3] %vm246, %v245
    %s249 = scalar_lea.vmem [#allocation0], 38
    %250 = vst.msk [vmem:[%s249] sm:$0xc] %vm246, %v245
    %s251 = scalar_lea.vmem [#allocation0], 44
    %252 = vst.msk [vmem:[%s251] sm:$0x30] %vm246, %v245
    %s253 = scalar_lea.vmem [#allocation0], 50
    %254 = vst.msk [vmem:[%s253] sm:$0xc0] %vm246, %v245
    %s255 = scalar_lea.vmem %s0, 133
    %v256 = vld [vmem:[%s255] ss:$8 sm:$0xf]
    %s257 = scalar_lea.vmem %s0, 133
    %v258 = vld [vmem:[%s257] ss:$8 sm:$0xf0]
    %vm259 = vcmask 1047556
    %v260 = vsel %vm259, %v258, %v256
    %261 = vrot.lane.b32.xlu0 %v260, 20
    %v262 = vpop.permute.xlu0 %261
    %vm263 = vcmask 195744
    %s264 = scalar_lea.vmem [#allocation0], 64
    %265 = vst.msk [vmem:[%s264] sm:$0x3] %vm263, %v262
    %s266 = scalar_lea.vmem [#allocation0], 70
    %267 = vst.msk [vmem:[%s266] sm:$0xc] %vm263, %v262
    %s268 = scalar_lea.vmem [#allocation0], 76
    %269 = vst.msk [vmem:[%s268] sm:$0x30] %vm263, %v262
    %s270 = scalar_lea.vmem [#allocation0], 82
    %271 = vst.msk [vmem:[%s270] sm:$0xc0] %vm263, %v262
    %s272 = scalar_lea.vmem %s0, 197
    %v273 = vld [vmem:[%s272] ss:$8 sm:$0xf]
    %s274 = scalar_lea.vmem %s0, 197
    %v275 = vld [vmem:[%s274] ss:$8 sm:$0xf0]
    %vm276 = vcmask 1047556
    %v277 = vsel %vm276, %v275, %v273
    %278 = vrot.lane.b32.xlu0 %v277, 20
    %v279 = vpop.permute.xlu0 %278
    %vm280 = vcmask 195744
    %s281 = scalar_lea.vmem [#allocation0], 96
    %282 = vst.msk [vmem:[%s281] sm:$0x3] %vm280, %v279
    %s283 = scalar_lea.vmem [#allocation0], 102
    %284 = vst.msk [vmem:[%s283] sm:$0xc] %vm280, %v279
    %s285 = scalar_lea.vmem [#allocation0], 108
    %286 = vst.msk [vmem:[%s285] sm:$0x30] %vm280, %v279
    %s287 = scalar_lea.vmem [#allocation0], 114
    %288 = vst.msk [vmem:[%s287] sm:$0xc0] %vm280, %v279
    %s289 = scalar_lea.vmem %s0, 261
    %v290 = vld [vmem:[%s289] ss:$8 sm:$0xf]
    %s291 = scalar_lea.vmem %s0, 261
    %v292 = vld [vmem:[%s291] ss:$8 sm:$0xf0]
    %vm293 = vcmask 1047556
    %v294 = vsel %vm293, %v292, %v290
    %295 = vrot.lane.b32.xlu0 %v294, 20
    %v296 = vpop.permute.xlu0 %295
    %vm297 = vcmask 195744
    %s298 = scalar_lea.vmem [#allocation0], 128
    %299 = vst.msk [vmem:[%s298] sm:$0x3] %vm297, %v296
    %s300 = scalar_lea.vmem [#allocation0], 134
    %301 = vst.msk [vmem:[%s300] sm:$0xc] %vm297, %v296
    %s302 = scalar_lea.vmem [#allocation0], 140
    %303 = vst.msk [vmem:[%s302] sm:$0x30] %vm297, %v296
    %s304 = scalar_lea.vmem [#allocation0], 146
    %305 = vst.msk [vmem:[%s304] sm:$0xc0] %vm297, %v296
    %s306 = scalar_lea.vmem %s0, 325
    %v307 = vld [vmem:[%s306] ss:$8 sm:$0xf]
    %s308 = scalar_lea.vmem %s0, 325
    %v309 = vld [vmem:[%s308] ss:$8 sm:$0xf0]
    %vm310 = vcmask 1047556
    %v311 = vsel %vm310, %v309, %v307
    %312 = vrot.lane.b32.xlu0 %v311, 20
    %v313 = vpop.permute.xlu0 %312
    %vm314 = vcmask 195744
    %s315 = scalar_lea.vmem [#allocation0], 160
    %316 = vst.msk [vmem:[%s315] sm:$0x3] %vm314, %v313
    %s317 = scalar_lea.vmem [#allocation0], 166
    %318 = vst.msk [vmem:[%s317] sm:$0xc] %vm314, %v313
    %s319 = scalar_lea.vmem [#allocation0], 172
    %320 = vst.msk [vmem:[%s319] sm:$0x30] %vm314, %v313
    %s321 = scalar_lea.vmem [#allocation0], 178
    %322 = vst.msk [vmem:[%s321] sm:$0xc0] %vm314, %v313
    %s323 = scalar_lea.vmem %s0, 389
    %v324 = vld [vmem:[%s323] ss:$8 sm:$0xf]
    %s325 = scalar_lea.vmem %s0, 389
    %v326 = vld [vmem:[%s325] ss:$8 sm:$0xf0]
    %vm327 = vcmask 1047556
    %v328 = vsel %vm327, %v326, %v324
    %329 = vrot.lane.b32.xlu0 %v328, 20
    %v330 = vpop.permute.xlu0 %329
    %vm331 = vcmask 195744
    %s332 = scalar_lea.vmem [#allocation0], 192
    %333 = vst.msk [vmem:[%s332] sm:$0x3] %vm331, %v330
    %s334 = scalar_lea.vmem [#allocation0], 198
    %335 = vst.msk [vmem:[%s334] sm:$0xc] %vm331, %v330
    %s336 = scalar_lea.vmem [#allocation0], 204
    %337 = vst.msk [vmem:[%s336] sm:$0x30] %vm331, %v330
    %s338 = scalar_lea.vmem [#allocation0], 210
    %339 = vst.msk [vmem:[%s338] sm:$0xc0] %vm331, %v330
    %s340 = scalar_lea.vmem %s0, 4
    %v341 = vld [vmem:[%s340] ss:$8 sm:$0xf]
    %s342 = scalar_lea.vmem %s0, 4
    %v343 = vld [vmem:[%s342] ss:$8 sm:$0xf0]
    %vm344 = vcmask 1047556
    %v345 = vsel %vm344, %v343, %v341
    %346 = vrot.lane.b32.xlu0 %v345, 16
    %v347 = vpop.permute.xlu0 %346
    %vm348 = vcmask 162944
    %349 = vst.msk [vmem:[#allocation0] sm:$0x3] %vm348, %v347
    %s350 = scalar_lea.vmem [#allocation0], 6
    %351 = vst.msk [vmem:[%s350] sm:$0xc] %vm348, %v347
    %s352 = scalar_lea.vmem [#allocation0], 12
    %353 = vst.msk [vmem:[%s352] sm:$0x30] %vm348, %v347
    %s354 = scalar_lea.vmem [#allocation0], 18
    %355 = vst.msk [vmem:[%s354] sm:$0xc0] %vm348, %v347
    %s356 = scalar_lea.vmem %s0, 68
    %v357 = vld [vmem:[%s356] ss:$8 sm:$0xf]
    %s358 = scalar_lea.vmem %s0, 68
    %v359 = vld [vmem:[%s358] ss:$8 sm:$0xf0]
    %vm360 = vcmask 1047556
    %v361 = vsel %vm360, %v359, %v357
    %362 = vrot.lane.b32.xlu0 %v361, 16
    %v363 = vpop.permute.xlu0 %362
    %vm364 = vcmask 162944
    %s365 = scalar_lea.vmem [#allocation0], 32
    %366 = vst.msk [vmem:[%s365] sm:$0x3] %vm364, %v363
    %s367 = scalar_lea.vmem [#allocation0], 38
    %368 = vst.msk [vmem:[%s367] sm:$0xc] %vm364, %v363
    %s369 = scalar_lea.vmem [#allocation0], 44
    %370 = vst.msk [vmem:[%s369] sm:$0x30] %vm364, %v363
    %s371 = scalar_lea.vmem [#allocation0], 50
    %372 = vst.msk [vmem:[%s371] sm:$0xc0] %vm364, %v363
    %s373 = scalar_lea.vmem %s0, 132
    %v374 = vld [vmem:[%s373] ss:$8 sm:$0xf]
    %s375 = scalar_lea.vmem %s0, 132
    %v376 = vld [vmem:[%s375] ss:$8 sm:$0xf0]
    %vm377 = vcmask 1047556
    %v378 = vsel %vm377, %v376, %v374
    %379 = vrot.lane.b32.xlu0 %v378, 16
    %v380 = vpop.permute.xlu0 %379
    %vm381 = vcmask 162944
    %s382 = scalar_lea.vmem [#allocation0], 64
    %383 = vst.msk [vmem:[%s382] sm:$0x3] %vm381, %v380
    %s384 = scalar_lea.vmem [#allocation0], 70
    %385 = vst.msk [vmem:[%s384] sm:$0xc] %vm381, %v380
    %s386 = scalar_lea.vmem [#allocation0], 76
    %387 = vst.msk [vmem:[%s386] sm:$0x30] %vm381, %v380
    %s388 = scalar_lea.vmem [#allocation0], 82
    %389 = vst.msk [vmem:[%s388] sm:$0xc0] %vm381, %v380
    %s390 = scalar_lea.vmem %s0, 196
    %v391 = vld [vmem:[%s390] ss:$8 sm:$0xf]
    %s392 = scalar_lea.vmem %s0, 196
    %v393 = vld [vmem:[%s392] ss:$8 sm:$0xf0]
    %vm394 = vcmask 1047556
    %v395 = vsel %vm394, %v393, %v391
    %396 = vrot.lane.b32.xlu0 %v395, 16
    %v397 = vpop.permute.xlu0 %396
    %vm398 = vcmask 162944
    %s399 = scalar_lea.vmem [#allocation0], 96
    %400 = vst.msk [vmem:[%s399] sm:$0x3] %vm398, %v397
    %s401 = scalar_lea.vmem [#allocation0], 102
    %402 = vst.msk [vmem:[%s401] sm:$0xc] %vm398, %v397
    %s403 = scalar_lea.vmem [#allocation0], 108
    %404 = vst.msk [vmem:[%s403] sm:$0x30] %vm398, %v397
    %s405 = scalar_lea.vmem [#allocation0], 114
    %406 = vst.msk [vmem:[%s405] sm:$0xc0] %vm398, %v397
    %s407 = scalar_lea.vmem %s0, 260
    %v408 = vld [vmem:[%s407] ss:$8 sm:$0xf]
    %s409 = scalar_lea.vmem %s0, 260
    %v410 = vld [vmem:[%s409] ss:$8 sm:$0xf0]
    %vm411 = vcmask 1047556
    %v412 = vsel %vm411, %v410, %v408
    %413 = vrot.lane.b32.xlu0 %v412, 16
    %v414 = vpop.permute.xlu0 %413
    %vm415 = vcmask 162944
    %s416 = scalar_lea.vmem [#allocation0], 128
    %417 = vst.msk [vmem:[%s416] sm:$0x3] %vm415, %v414
    %s418 = scalar_lea.vmem [#allocation0], 134
    %419 = vst.msk [vmem:[%s418] sm:$0xc] %vm415, %v414
    %s420 = scalar_lea.vmem [#allocation0], 140
    %421 = vst.msk [vmem:[%s420] sm:$0x30] %vm415, %v414
    %s422 = scalar_lea.vmem [#allocation0], 146
    %423 = vst.msk [vmem:[%s422] sm:$0xc0] %vm415, %v414
    %s424 = scalar_lea.vmem %s0, 324
    %v425 = vld [vmem:[%s424] ss:$8 sm:$0xf]
    %s426 = scalar_lea.vmem %s0, 324
    %v427 = vld [vmem:[%s426] ss:$8 sm:$0xf0]
    %vm428 = vcmask 1047556
    %v429 = vsel %vm428, %v427, %v425
    %430 = vrot.lane.b32.xlu0 %v429, 16
    %v431 = vpop.permute.xlu0 %430
    %vm432 = vcmask 162944
    %s433 = scalar_lea.vmem [#allocation0], 160
    %434 = vst.msk [vmem:[%s433] sm:$0x3] %vm432, %v431
    %s435 = scalar_lea.vmem [#allocation0], 166
    %436 = vst.msk [vmem:[%s435] sm:$0xc] %vm432, %v431
    %s437 = scalar_lea.vmem [#allocation0], 172
    %438 = vst.msk [vmem:[%s437] sm:$0x30] %vm432, %v431
    %s439 = scalar_lea.vmem [#allocation0], 178
    %440 = vst.msk [vmem:[%s439] sm:$0xc0] %vm432, %v431
    %s441 = scalar_lea.vmem %s0, 388
    %v442 = vld [vmem:[%s441] ss:$8 sm:$0xf]
    %s443 = scalar_lea.vmem %s0, 388
    %v444 = vld [vmem:[%s443] ss:$8 sm:$0xf0]
    %vm445 = vcmask 1047556
    %v446 = vsel %vm445, %v444, %v442
    %447 = vrot.lane.b32.xlu0 %v446, 16
    %v448 = vpop.permute.xlu0 %447
    %vm449 = vcmask 162944
    %s450 = scalar_lea.vmem [#allocation0], 192
    %451 = vst.msk [vmem:[%s450] sm:$0x3] %vm449, %v448
    %s452 = scalar_lea.vmem [#allocation0], 198
    %453 = vst.msk [vmem:[%s452] sm:$0xc] %vm449, %v448
    %s454 = scalar_lea.vmem [#allocation0], 204
    %455 = vst.msk [vmem:[%s454] sm:$0x30] %vm449, %v448
    %s456 = scalar_lea.vmem [#allocation0], 210
    %457 = vst.msk [vmem:[%s456] sm:$0xc0] %vm449, %v448
    %s458 = scalar_lea.vmem %s0, 3
    %v459 = vld [vmem:[%s458] ss:$8 sm:$0xf]
    %s460 = scalar_lea.vmem %s0, 3
    %v461 = vld [vmem:[%s460] ss:$8 sm:$0xf0]
    %vm462 = vcmask 1047556
    %v463 = vsel %vm462, %v461, %v459
    %464 = vrot.lane.b32.xlu0 %v463, 12
    %v465 = vpop.permute.xlu0 %464
    %vm466 = vcmask 130144
    %467 = vst.msk [vmem:[#allocation0] sm:$0x3] %vm466, %v465
    %s468 = scalar_lea.vmem [#allocation0], 6
    %469 = vst.msk [vmem:[%s468] sm:$0xc] %vm466, %v465
    %s470 = scalar_lea.vmem [#allocation0], 12
    %471 = vst.msk [vmem:[%s470] sm:$0x30] %vm466, %v465
    %s472 = scalar_lea.vmem [#allocation0], 18
    %473 = vst.msk [vmem:[%s472] sm:$0xc0] %vm466, %v465
    %s474 = scalar_lea.vmem %s0, 67
    %v475 = vld [vmem:[%s474] ss:$8 sm:$0xf]
    %s476 = scalar_lea.vmem %s0, 67
    %v477 = vld [vmem:[%s476] ss:$8 sm:$0xf0]
    %vm478 = vcmask 1047556
    %v479 = vsel %vm478, %v477, %v475
    %480 = vrot.lane.b32.xlu0 %v479, 12
    %v481 = vpop.permute.xlu0 %480
    %vm482 = vcmask 130144
    %s483 = scalar_lea.vmem [#allocation0], 32
    %484 = vst.msk [vmem:[%s483] sm:$0x3] %vm482, %v481
    %s485 = scalar_lea.vmem [#allocation0], 38
    %486 = vst.msk [vmem:[%s485] sm:$0xc] %vm482, %v481
    %s487 = scalar_lea.vmem [#allocation0], 44
    %488 = vst.msk [vmem:[%s487] sm:$0x30] %vm482, %v481
    %s489 = scalar_lea.vmem [#allocation0], 50
    %490 = vst.msk [vmem:[%s489] sm:$0xc0] %vm482, %v481
    %s491 = scalar_lea.vmem %s0, 131
    %v492 = vld [vmem:[%s491] ss:$8 sm:$0xf]
    %s493 = scalar_lea.vmem %s0, 131
    %v494 = vld [vmem:[%s493] ss:$8 sm:$0xf0]
    %vm495 = vcmask 1047556
    %v496 = vsel %vm495, %v494, %v492
    %497 = vrot.lane.b32.xlu0 %v496, 12
    %v498 = vpop.permute.xlu0 %497
    %vm499 = vcmask 130144
    %s500 = scalar_lea.vmem [#allocation0], 64
    %501 = vst.msk [vmem:[%s500] sm:$0x3] %vm499, %v498
    %s502 = scalar_lea.vmem [#allocation0], 70
    %503 = vst.msk [vmem:[%s502] sm:$0xc] %vm499, %v498
    %s504 = scalar_lea.vmem [#allocation0], 76
    %505 = vst.msk [vmem:[%s504] sm:$0x30] %vm499, %v498
    %s506 = scalar_lea.vmem [#allocation0], 82
    %507 = vst.msk [vmem:[%s506] sm:$0xc0] %vm499, %v498
    %s508 = scalar_lea.vmem %s0, 195
    %v509 = vld [vmem:[%s508] ss:$8 sm:$0xf]
    %s510 = scalar_lea.vmem %s0, 195
    %v511 = vld [vmem:[%s510] ss:$8 sm:$0xf0]
    %vm512 = vcmask 1047556
    %v513 = vsel %vm512, %v511, %v509
    %514 = vrot.lane.b32.xlu0 %v513, 12
    %v515 = vpop.permute.xlu0 %514
    %vm516 = vcmask 130144
    %s517 = scalar_lea.vmem [#allocation0], 96
    %518 = vst.msk [vmem:[%s517] sm:$0x3] %vm516, %v515
    %s519 = scalar_lea.vmem [#allocation0], 102
    %520 = vst.msk [vmem:[%s519] sm:$0xc] %vm516, %v515
    %s521 = scalar_lea.vmem [#allocation0], 108
    %522 = vst.msk [vmem:[%s521] sm:$0x30] %vm516, %v515
    %s523 = scalar_lea.vmem [#allocation0], 114
    %524 = vst.msk [vmem:[%s523] sm:$0xc0] %vm516, %v515
    %s525 = scalar_lea.vmem %s0, 259
    %v526 = vld [vmem:[%s525] ss:$8 sm:$0xf]
    %s527 = scalar_lea.vmem %s0, 259
    %v528 = vld [vmem:[%s527] ss:$8 sm:$0xf0]
    %vm529 = vcmask 1047556
    %v530 = vsel %vm529, %v528, %v526
    %531 = vrot.lane.b32.xlu0 %v530, 12
    %v532 = vpop.permute.xlu0 %531
    %vm533 = vcmask 130144
    %s534 = scalar_lea.vmem [#allocation0], 128
    %535 = vst.msk [vmem:[%s534] sm:$0x3] %vm533, %v532
    %s536 = scalar_lea.vmem [#allocation0], 134
    %537 = vst.msk [vmem:[%s536] sm:$0xc] %vm533, %v532
    %s538 = scalar_lea.vmem [#allocation0], 140
    %539 = vst.msk [vmem:[%s538] sm:$0x30] %vm533, %v532
    %s540 = scalar_lea.vmem [#allocation0], 146
    %541 = vst.msk [vmem:[%s540] sm:$0xc0] %vm533, %v532
    %s542 = scalar_lea.vmem %s0, 323
    %v543 = vld [vmem:[%s542] ss:$8 sm:$0xf]
    %s544 = scalar_lea.vmem %s0, 323
    %v545 = vld [vmem:[%s544] ss:$8 sm:$0xf0]
    %vm546 = vcmask 1047556
    %v547 = vsel %vm546, %v545, %v543
    %548 = vrot.lane.b32.xlu0 %v547, 12
    %v549 = vpop.permute.xlu0 %548
    %vm550 = vcmask 130144
    %s551 = scalar_lea.vmem [#allocation0], 160
    %552 = vst.msk [vmem:[%s551] sm:$0x3] %vm550, %v549
    %s553 = scalar_lea.vmem [#allocation0], 166
    %554 = vst.msk [vmem:[%s553] sm:$0xc] %vm550, %v549
    %s555 = scalar_lea.vmem [#allocation0], 172
    %556 = vst.msk [vmem:[%s555] sm:$0x30] %vm550, %v549
    %s557 = scalar_lea.vmem [#allocation0], 178
    %558 = vst.msk [vmem:[%s557] sm:$0xc0] %vm550, %v549
    %s559 = scalar_lea.vmem %s0, 387
    %v560 = vld [vmem:[%s559] ss:$8 sm:$0xf]
    %s561 = scalar_lea.vmem %s0, 387
    %v562 = vld [vmem:[%s561] ss:$8 sm:$0xf0]
    %vm563 = vcmask 1047556
    %v564 = vsel %vm563, %v562, %v560
    %565 = vrot.lane.b32.xlu0 %v564, 12
    %v566 = vpop.permute.xlu0 %565
    %vm567 = vcmask 130144
    %s568 = scalar_lea.vmem [#allocation0], 192
    %569 = vst.msk [vmem:[%s568] sm:$0x3] %vm567, %v566
    %s570 = scalar_lea.vmem [#allocation0], 198
    %571 = vst.msk [vmem:[%s570] sm:$0xc] %vm567, %v566
    %s572 = scalar_lea.vmem [#allocation0], 204
    %573 = vst.msk [vmem:[%s572] sm:$0x30] %vm567, %v566
    %s574 = scalar_lea.vmem [#allocation0], 210
    %575 = vst.msk [vmem:[%s574] sm:$0xc0] %vm567, %v566
    %s576 = scalar_lea.vmem %s0, 2
    %v577 = vld [vmem:[%s576] ss:$8 sm:$0xf]
    %s578 = scalar_lea.vmem %s0, 2
    %v579 = vld [vmem:[%s578] ss:$8 sm:$0xf0]
    %vm580 = vcmask 1047556
    %v581 = vsel %vm580, %v579, %v577
    %582 = vrot.lane.b32.xlu0 %v581, 8
    %v583 = vpop.permute.xlu0 %582
    %vm584 = vcmask 97344
    %585 = vst.msk [vmem:[#allocation0] sm:$0x3] %vm584, %v583
    %s586 = scalar_lea.vmem [#allocation0], 6
    %587 = vst.msk [vmem:[%s586] sm:$0xc] %vm584, %v583
    %s588 = scalar_lea.vmem [#allocation0], 12
    %589 = vst.msk [vmem:[%s588] sm:$0x30] %vm584, %v583
    %s590 = scalar_lea.vmem [#allocation0], 18
    %591 = vst.msk [vmem:[%s590] sm:$0xc0] %vm584, %v583
    %s592 = scalar_lea.vmem %s0, 66
    %v593 = vld [vmem:[%s592] ss:$8 sm:$0xf]
    %s594 = scalar_lea.vmem %s0, 66
    %v595 = vld [vmem:[%s594] ss:$8 sm:$0xf0]
    %vm596 = vcmask 1047556
    %v597 = vsel %vm596, %v595, %v593
    %598 = vrot.lane.b32.xlu0 %v597, 8
    %v599 = vpop.permute.xlu0 %598
    %vm600 = vcmask 97344
    %s601 = scalar_lea.vmem [#allocation0], 32
    %602 = vst.msk [vmem:[%s601] sm:$0x3] %vm600, %v599
    %s603 = scalar_lea.vmem [#allocation0], 38
    %604 = vst.msk [vmem:[%s603] sm:$0xc] %vm600, %v599
    %s605 = scalar_lea.vmem [#allocation0], 44
    %606 = vst.msk [vmem:[%s605] sm:$0x30] %vm600, %v599
    %s607 = scalar_lea.vmem [#allocation0], 50
    %608 = vst.msk [vmem:[%s607] sm:$0xc0] %vm600, %v599
    %s609 = scalar_lea.vmem %s0, 130
    %v610 = vld [vmem:[%s609] ss:$8 sm:$0xf]
    %s611 = scalar_lea.vmem %s0, 130
    %v612 = vld [vmem:[%s611] ss:$8 sm:$0xf0]
    %vm613 = vcmask 1047556
    %v614 = vsel %vm613, %v612, %v610
    %615 = vrot.lane.b32.xlu0 %v614, 8
    %v616 = vpop.permute.xlu0 %615
    %vm617 = vcmask 97344
    %s618 = scalar_lea.vmem [#allocation0], 64
    %619 = vst.msk [vmem:[%s618] sm:$0x3] %vm617, %v616
    %s620 = scalar_lea.vmem [#allocation0], 70
    %621 = vst.msk [vmem:[%s620] sm:$0xc] %vm617, %v616
    %s622 = scalar_lea.vmem [#allocation0], 76
    %623 = vst.msk [vmem:[%s622] sm:$0x30] %vm617, %v616
    %s624 = scalar_lea.vmem [#allocation0], 82
    %625 = vst.msk [vmem:[%s624] sm:$0xc0] %vm617, %v616
    %s626 = scalar_lea.vmem %s0, 194
    %v627 = vld [vmem:[%s626] ss:$8 sm:$0xf]
    %s628 = scalar_lea.vmem %s0, 194
    %v629 = vld [vmem:[%s628] ss:$8 sm:$0xf0]
    %vm630 = vcmask 1047556
    %v631 = vsel %vm630, %v629, %v627
    %632 = vrot.lane.b32.xlu0 %v631, 8
    %v633 = vpop.permute.xlu0 %632
    %vm634 = vcmask 97344
    %s635 = scalar_lea.vmem [#allocation0], 96
    %636 = vst.msk [vmem:[%s635] sm:$0x3] %vm634, %v633
    %s637 = scalar_lea.vmem [#allocation0], 102
    %638 = vst.msk [vmem:[%s637] sm:$0xc] %vm634, %v633
    %s639 = scalar_lea.vmem [#allocation0], 108
    %640 = vst.msk [vmem:[%s639] sm:$0x30] %vm634, %v633
    %s641 = scalar_lea.vmem [#allocation0], 114
    %642 = vst.msk [vmem:[%s641] sm:$0xc0] %vm634, %v633
    %s643 = scalar_lea.vmem %s0, 258
    %v644 = vld [vmem:[%s643] ss:$8 sm:$0xf]
    %s645 = scalar_lea.vmem %s0, 258
    %v646 = vld [vmem:[%s645] ss:$8 sm:$0xf0]
    %vm647 = vcmask 1047556
    %v648 = vsel %vm647, %v646, %v644
    %649 = vrot.lane.b32.xlu0 %v648, 8
    %v650 = vpop.permute.xlu0 %649
    %vm651 = vcmask 97344
    %s652 = scalar_lea.vmem [#allocation0], 128
    %653 = vst.msk [vmem:[%s652] sm:$0x3] %vm651, %v650
    %s654 = scalar_lea.vmem [#allocation0], 134
    %655 = vst.msk [vmem:[%s654] sm:$0xc] %vm651, %v650
    %s656 = scalar_lea.vmem [#allocation0], 140
    %657 = vst.msk [vmem:[%s656] sm:$0x30] %vm651, %v650
    %s658 = scalar_lea.vmem [#allocation0], 146
    %659 = vst.msk [vmem:[%s658] sm:$0xc0] %vm651, %v650
    %s660 = scalar_lea.vmem %s0, 322
    %v661 = vld [vmem:[%s660] ss:$8 sm:$0xf]
    %s662 = scalar_lea.vmem %s0, 322
    %v663 = vld [vmem:[%s662] ss:$8 sm:$0xf0]
    %vm664 = vcmask 1047556
    %v665 = vsel %vm664, %v663, %v661
    %666 = vrot.lane.b32.xlu0 %v665, 8
    %v667 = vpop.permute.xlu0 %666
    %vm668 = vcmask 97344
    %s669 = scalar_lea.vmem [#allocation0], 160
    %670 = vst.msk [vmem:[%s669] sm:$0x3] %vm668, %v667
    %s671 = scalar_lea.vmem [#allocation0], 166
    %672 = vst.msk [vmem:[%s671] sm:$0xc] %vm668, %v667
    %s673 = scalar_lea.vmem [#allocation0], 172
    %674 = vst.msk [vmem:[%s673] sm:$0x30] %vm668, %v667
    %s675 = scalar_lea.vmem [#allocation0], 178
    %676 = vst.msk [vmem:[%s675] sm:$0xc0] %vm668, %v667
    %s677 = scalar_lea.vmem %s0, 386
    %v678 = vld [vmem:[%s677] ss:$8 sm:$0xf]
    %s679 = scalar_lea.vmem %s0, 386
    %v680 = vld [vmem:[%s679] ss:$8 sm:$0xf0]
    %vm681 = vcmask 1047556
    %v682 = vsel %vm681, %v680, %v678
    %683 = vrot.lane.b32.xlu0 %v682, 8
    %v684 = vpop.permute.xlu0 %683
    %vm685 = vcmask 97344
    %s686 = scalar_lea.vmem [#allocation0], 192
    %687 = vst.msk [vmem:[%s686] sm:$0x3] %vm685, %v684
    %s688 = scalar_lea.vmem [#allocation0], 198
    %689 = vst.msk [vmem:[%s688] sm:$0xc] %vm685, %v684
    %s690 = scalar_lea.vmem [#allocation0], 204
    %691 = vst.msk [vmem:[%s690] sm:$0x30] %vm685, %v684
    %s692 = scalar_lea.vmem [#allocation0], 210
    %693 = vst.msk [vmem:[%s692] sm:$0xc0] %vm685, %v684
    %s694 = scalar_lea.vmem %s0, 1
    %v695 = vld [vmem:[%s694] ss:$8 sm:$0xf]
    %s696 = scalar_lea.vmem %s0, 1
    %v697 = vld [vmem:[%s696] ss:$8 sm:$0xf0]
    %vm698 = vcmask 1047556
    %v699 = vsel %vm698, %v697, %v695
    %700 = vrot.lane.b32.xlu0 %v699, 4
    %v701 = vpop.permute.xlu0 %700
    %vm702 = vcmask 64544
    %703 = vst.msk [vmem:[#allocation0] sm:$0x3] %vm702, %v701
    %s704 = scalar_lea.vmem [#allocation0], 6
    %705 = vst.msk [vmem:[%s704] sm:$0xc] %vm702, %v701
    %s706 = scalar_lea.vmem [#allocation0], 12
    %707 = vst.msk [vmem:[%s706] sm:$0x30] %vm702, %v701
    %s708 = scalar_lea.vmem [#allocation0], 18
    %709 = vst.msk [vmem:[%s708] sm:$0xc0] %vm702, %v701
    %s710 = scalar_lea.vmem %s0, 65
    %v711 = vld [vmem:[%s710] ss:$8 sm:$0xf]
    %s712 = scalar_lea.vmem %s0, 65
    %v713 = vld [vmem:[%s712] ss:$8 sm:$0xf0]
    %vm714 = vcmask 1047556
    %v715 = vsel %vm714, %v713, %v711
    %716 = vrot.lane.b32.xlu0 %v715, 4
    %v717 = vpop.permute.xlu0 %716
    %vm718 = vcmask 64544
    %s719 = scalar_lea.vmem [#allocation0], 32
    %720 = vst.msk [vmem:[%s719] sm:$0x3] %vm718, %v717
    %s721 = scalar_lea.vmem [#allocation0], 38
    %722 = vst.msk [vmem:[%s721] sm:$0xc] %vm718, %v717
    %s723 = scalar_lea.vmem [#allocation0], 44
    %724 = vst.msk [vmem:[%s723] sm:$0x30] %vm718, %v717
    %s725 = scalar_lea.vmem [#allocation0], 50
    %726 = vst.msk [vmem:[%s725] sm:$0xc0] %vm718, %v717
    %s727 = scalar_lea.vmem %s0, 129
    %v728 = vld [vmem:[%s727] ss:$8 sm:$0xf]
    %s729 = scalar_lea.vmem %s0, 129
    %v730 = vld [vmem:[%s729] ss:$8 sm:$0xf0]
    %vm731 = vcmask 1047556
    %v732 = vsel %vm731, %v730, %v728
    %733 = vrot.lane.b32.xlu0 %v732, 4
    %v734 = vpop.permute.xlu0 %733
    %vm735 = vcmask 64544
    %s736 = scalar_lea.vmem [#allocation0], 64
    %737 = vst.msk [vmem:[%s736] sm:$0x3] %vm735, %v734
    %s738 = scalar_lea.vmem [#allocation0], 70
    %739 = vst.msk [vmem:[%s738] sm:$0xc] %vm735, %v734
    %s740 = scalar_lea.vmem [#allocation0], 76
    %741 = vst.msk [vmem:[%s740] sm:$0x30] %vm735, %v734
    %s742 = scalar_lea.vmem [#allocation0], 82
    %743 = vst.msk [vmem:[%s742] sm:$0xc0] %vm735, %v734
    %s744 = scalar_lea.vmem %s0, 193
    %v745 = vld [vmem:[%s744] ss:$8 sm:$0xf]
    %s746 = scalar_lea.vmem %s0, 193
    %v747 = vld [vmem:[%s746] ss:$8 sm:$0xf0]
    %vm748 = vcmask 1047556
    %v749 = vsel %vm748, %v747, %v745
    %750 = vrot.lane.b32.xlu0 %v749, 4
    %v751 = vpop.permute.xlu0 %750
    %vm752 = vcmask 64544
    %s753 = scalar_lea.vmem [#allocation0], 96
    %754 = vst.msk [vmem:[%s753] sm:$0x3] %vm752, %v751
    %s755 = scalar_lea.vmem [#allocation0], 102
    %756 = vst.msk [vmem:[%s755] sm:$0xc] %vm752, %v751
    %s757 = scalar_lea.vmem [#allocation0], 108
    %758 = vst.msk [vmem:[%s757] sm:$0x30] %vm752, %v751
    %s759 = scalar_lea.vmem [#allocation0], 114
    %760 = vst.msk [vmem:[%s759] sm:$0xc0] %vm752, %v751
    %s761 = scalar_lea.vmem %s0, 257
    %v762 = vld [vmem:[%s761] ss:$8 sm:$0xf]
    %s763 = scalar_lea.vmem %s0, 257
    %v764 = vld [vmem:[%s763] ss:$8 sm:$0xf0]
    %vm765 = vcmask 1047556
    %v766 = vsel %vm765, %v764, %v762
    %767 = vrot.lane.b32.xlu0 %v766, 4
    %v768 = vpop.permute.xlu0 %767
    %vm769 = vcmask 64544
    %s770 = scalar_lea.vmem [#allocation0], 128
    %771 = vst.msk [vmem:[%s770] sm:$0x3] %vm769, %v768
    %s772 = scalar_lea.vmem [#allocation0], 134
    %773 = vst.msk [vmem:[%s772] sm:$0xc] %vm769, %v768
    %s774 = scalar_lea.vmem [#allocation0], 140
    %775 = vst.msk [vmem:[%s774] sm:$0x30] %vm769, %v768
    %s776 = scalar_lea.vmem [#allocation0], 146
    %777 = vst.msk [vmem:[%s776] sm:$0xc0] %vm769, %v768
    %s778 = scalar_lea.vmem %s0, 321
    %v779 = vld [vmem:[%s778] ss:$8 sm:$0xf]
    %s780 = scalar_lea.vmem %s0, 321
    %v781 = vld [vmem:[%s780] ss:$8 sm:$0xf0]
    %vm782 = vcmask 1047556
    %v783 = vsel %vm782, %v781, %v779
    %784 = vrot.lane.b32.xlu0 %v783, 4
    %v785 = vpop.permute.xlu0 %784
    %vm786 = vcmask 64544
    %s787 = scalar_lea.vmem [#allocation0], 160
    %788 = vst.msk [vmem:[%s787] sm:$0x3] %vm786, %v785
    %s789 = scalar_lea.vmem [#allocation0], 166
    %790 = vst.msk [vmem:[%s789] sm:$0xc] %vm786, %v785
    %s791 = scalar_lea.vmem [#allocation0], 172
    %792 = vst.msk [vmem:[%s791] sm:$0x30] %vm786, %v785
    %s793 = scalar_lea.vmem [#allocation0], 178
    %794 = vst.msk [vmem:[%s793] sm:$0xc0] %vm786, %v785
    %s795 = scalar_lea.vmem %s0, 385
    %v796 = vld [vmem:[%s795] ss:$8 sm:$0xf]
    %s797 = scalar_lea.vmem %s0, 385
    %v798 = vld [vmem:[%s797] ss:$8 sm:$0xf0]
    %vm799 = vcmask 1047556
    %v800 = vsel %vm799, %v798, %v796
    %801 = vrot.lane.b32.xlu0 %v800, 4
    %v802 = vpop.permute.xlu0 %801
    %vm803 = vcmask 64544
    %s804 = scalar_lea.vmem [#allocation0], 192
    %805 = vst.msk [vmem:[%s804] sm:$0x3] %vm803, %v802
    %s806 = scalar_lea.vmem [#allocation0], 198
    %807 = vst.msk [vmem:[%s806] sm:$0xc] %vm803, %v802
    %s808 = scalar_lea.vmem [#allocation0], 204
    %809 = vst.msk [vmem:[%s808] sm:$0x30] %vm803, %v802
    %s810 = scalar_lea.vmem [#allocation0], 210
    %811 = vst.msk [vmem:[%s810] sm:$0xc0] %vm803, %v802
    %s813 = sshll.u32 1, 2
    %s814 = ssub.s32 %s813, 1
    %v816 = vld [vmem:[#allocation0] sm:%s814]
    %s817 = sshll.u32 1, 2
    %s818 = ssub.s32 %s817, 1
    %819 = vst [vmem:[%s1] sm:%s818] %v816
    %s820 = scalar_lea.vmem [#allocation0], 8
    %v821 = vld [vmem:[%s820] sm:%s814]
    %s822 = sshll.u32 1, 2
    %s823 = ssub.s32 %s822, 1
    %s824 = scalar_lea.vmem %s1, 2
    %825 = vst [vmem:[%s824] sm:%s823] %v821
    %s826 = scalar_lea.vmem [#allocation0], 16
    %v827 = vld [vmem:[%s826] sm:%s814]
    %s828 = sshll.u32 1, 2
    %s829 = ssub.s32 %s828, 1
    %s830 = smul.addr 2, 2
    %s831 = scalar_lea.vmem %s1, %s830
    %832 = vst [vmem:[%s831] sm:%s829] %v827
    %s833 = scalar_lea.vmem [#allocation0], 24
    %v834 = vld [vmem:[%s833] sm:%s814]
    %s835 = sshll.u32 1, 2
    %s836 = ssub.s32 %s835, 1
    %s837 = smul.addr 2, 3
    %s838 = scalar_lea.vmem %s1, %s837
    %839 = vst [vmem:[%s838] sm:%s836] %v834
    %s840 = scalar_lea.vmem [#allocation0], 32
    %v841 = vld [vmem:[%s840] sm:%s814]
    %s842 = sshll.u32 1, 2
    %s843 = ssub.s32 %s842, 1
    %s844 = smul.addr 2, 4
    %s845 = scalar_lea.vmem %s1, %s844
    %846 = vst [vmem:[%s845] sm:%s843] %v841
    %s847 = scalar_lea.vmem [#allocation0], 40
    %v848 = vld [vmem:[%s847] sm:%s814]
    %s849 = sshll.u32 1, 2
    %s850 = ssub.s32 %s849, 1
    %s851 = smul.addr 2, 5
    %s852 = scalar_lea.vmem %s1, %s851
    %853 = vst [vmem:[%s852] sm:%s850] %v848
    %s854 = scalar_lea.vmem [#allocation0], 48
    %v855 = vld [vmem:[%s854] sm:%s814]
    %s856 = sshll.u32 1, 2
    %s857 = ssub.s32 %s856, 1
    %s858 = smul.addr 2, 6
    %s859 = scalar_lea.vmem %s1, %s858
    %860 = vst [vmem:[%s859] sm:%s857] %v855
    %s861 = scalar_lea.vmem [#allocation0], 56
    %v862 = vld [vmem:[%s861] sm:%s814]
    %s863 = sshll.u32 1, 2
    %s864 = ssub.s32 %s863, 1
    %s865 = smul.addr 2, 7
    %s866 = scalar_lea.vmem %s1, %s865
    %867 = vst [vmem:[%s866] sm:%s864] %v862
    %s868 = scalar_lea.vmem [#allocation0], 64
    %v869 = vld [vmem:[%s868] sm:%s814]
    %s870 = sshll.u32 1, 2
    %s871 = ssub.s32 %s870, 1
    %s872 = smul.addr 2, 8
    %s873 = scalar_lea.vmem %s1, %s872
    %874 = vst [vmem:[%s873] sm:%s871] %v869
    %s875 = scalar_lea.vmem [#allocation0], 72
    %v876 = vld [vmem:[%s875] sm:%s814]
    %s877 = sshll.u32 1, 2
    %s878 = ssub.s32 %s877, 1
    %s879 = smul.addr 2, 9
    %s880 = scalar_lea.vmem %s1, %s879
    %881 = vst [vmem:[%s880] sm:%s878] %v876
    %s882 = scalar_lea.vmem [#allocation0], 80
    %v883 = vld [vmem:[%s882] sm:%s814]
    %s884 = sshll.u32 1, 2
    %s885 = ssub.s32 %s884, 1
    %s886 = smul.addr 2, 10
    %s887 = scalar_lea.vmem %s1, %s886
    %888 = vst [vmem:[%s887] sm:%s885] %v883
    %s889 = scalar_lea.vmem [#allocation0], 88
    %v890 = vld [vmem:[%s889] sm:%s814]
    %s891 = sshll.u32 1, 2
    %s892 = ssub.s32 %s891, 1
    %s893 = smul.addr 2, 11
    %s894 = scalar_lea.vmem %s1, %s893
    %895 = vst [vmem:[%s894] sm:%s892] %v890
    %s896 = scalar_lea.vmem [#allocation0], 96
    %v897 = vld [vmem:[%s896] sm:%s814]
    %s898 = sshll.u32 1, 2
    %s899 = ssub.s32 %s898, 1
    %s900 = smul.addr 2, 12
    %s901 = scalar_lea.vmem %s1, %s900
    %902 = vst [vmem:[%s901] sm:%s899] %v897
    %s903 = scalar_lea.vmem [#allocation0], 104
    %v904 = vld [vmem:[%s903] sm:%s814]
    %s905 = sshll.u32 1, 2
    %s906 = ssub.s32 %s905, 1
    %s907 = smul.addr 2, 13
    %s908 = scalar_lea.vmem %s1, %s907
    %909 = vst [vmem:[%s908] sm:%s906] %v904
    %s910 = scalar_lea.vmem [#allocation0], 112
    %v911 = vld [vmem:[%s910] sm:%s814]
    %s912 = sshll.u32 1, 2
    %s913 = ssub.s32 %s912, 1
    %s914 = smul.addr 2, 14
    %s915 = scalar_lea.vmem %s1, %s914
    %916 = vst [vmem:[%s915] sm:%s913] %v911
    %s917 = scalar_lea.vmem [#allocation0], 120
    %v918 = vld [vmem:[%s917] sm:%s814]
    %s919 = sshll.u32 1, 2
    %s920 = ssub.s32 %s919, 1
    %s921 = smul.addr 2, 15
    %s922 = scalar_lea.vmem %s1, %s921
    %923 = vst [vmem:[%s922] sm:%s920] %v918
    %s924 = scalar_lea.vmem [#allocation0], 128
    %v925 = vld [vmem:[%s924] sm:%s814]
    %s926 = sshll.u32 1, 2
    %s927 = ssub.s32 %s926, 1
    %s928 = smul.addr 2, 16
    %s929 = scalar_lea.vmem %s1, %s928
    %930 = vst [vmem:[%s929] sm:%s927] %v925
    %s931 = scalar_lea.vmem [#allocation0], 136
    %v932 = vld [vmem:[%s931] sm:%s814]
    %s933 = sshll.u32 1, 2
    %s934 = ssub.s32 %s933, 1
    %s935 = smul.addr 2, 17
    %s936 = scalar_lea.vmem %s1, %s935
    %937 = vst [vmem:[%s936] sm:%s934] %v932
    %s938 = scalar_lea.vmem [#allocation0], 144
    %v939 = vld [vmem:[%s938] sm:%s814]
    %s940 = sshll.u32 1, 2
    %s941 = ssub.s32 %s940, 1
    %s942 = smul.addr 2, 18
    %s943 = scalar_lea.vmem %s1, %s942
    %944 = vst [vmem:[%s943] sm:%s941] %v939
    %s945 = scalar_lea.vmem [#allocation0], 152
    %v946 = vld [vmem:[%s945] sm:%s814]
    %s947 = sshll.u32 1, 2
    %s948 = ssub.s32 %s947, 1
    %s949 = smul.addr 2, 19
    %s950 = scalar_lea.vmem %s1, %s949
    %951 = vst [vmem:[%s950] sm:%s948] %v946
    %s952 = scalar_lea.vmem [#allocation0], 160
    %v953 = vld [vmem:[%s952] sm:%s814]
    %s954 = sshll.u32 1, 2
    %s955 = ssub.s32 %s954, 1
    %s956 = smul.addr 2, 20
    %s957 = scalar_lea.vmem %s1, %s956
    %958 = vst [vmem:[%s957] sm:%s955] %v953
    %s959 = scalar_lea.vmem [#allocation0], 168
    %v960 = vld [vmem:[%s959] sm:%s814]
    %s961 = sshll.u32 1, 2
    %s962 = ssub.s32 %s961, 1
    %s963 = smul.addr 2, 21
    %s964 = scalar_lea.vmem %s1, %s963
    %965 = vst [vmem:[%s964] sm:%s962] %v960
    %s966 = scalar_lea.vmem [#allocation0], 176
    %v967 = vld [vmem:[%s966] sm:%s814]
    %s968 = sshll.u32 1, 2
    %s969 = ssub.s32 %s968, 1
    %s970 = smul.addr 2, 22
    %s971 = scalar_lea.vmem %s1, %s970
    %972 = vst [vmem:[%s971] sm:%s969] %v967
    %s973 = scalar_lea.vmem [#allocation0], 184
    %v974 = vld [vmem:[%s973] sm:%s814]
    %s975 = sshll.u32 1, 2
    %s976 = ssub.s32 %s975, 1
    %s977 = smul.addr 2, 23
    %s978 = scalar_lea.vmem %s1, %s977
    %979 = vst [vmem:[%s978] sm:%s976] %v974
    %s980 = scalar_lea.vmem [#allocation0], 192
    %v981 = vld [vmem:[%s980] sm:%s814]
    %s982 = sshll.u32 1, 2
    %s983 = ssub.s32 %s982, 1
    %s984 = smul.addr 2, 24
    %s985 = scalar_lea.vmem %s1, %s984
    %986 = vst [vmem:[%s985] sm:%s983] %v981
    %s987 = scalar_lea.vmem [#allocation0], 200
    %v988 = vld [vmem:[%s987] sm:%s814]
    %s989 = sshll.u32 1, 2
    %s990 = ssub.s32 %s989, 1
    %s991 = smul.addr 2, 25
    %s992 = scalar_lea.vmem %s1, %s991
    %993 = vst [vmem:[%s992] sm:%s990] %v988
    %s994 = scalar_lea.vmem [#allocation0], 208
    %v995 = vld [vmem:[%s994] sm:%s814]
    %s996 = sshll.u32 1, 2
    %s997 = ssub.s32 %s996, 1
    %s998 = smul.addr 2, 26
    %s999 = scalar_lea.vmem %s1, %s998
    %1000 = vst [vmem:[%s999] sm:%s997] %v995
    %s1001 = scalar_lea.vmem [#allocation0], 216
    %v1002 = vld [vmem:[%s1001] sm:%s814]
    %s1003 = sshll.u32 1, 2
    %s1004 = ssub.s32 %s1003, 1
    %s1005 = smul.addr 2, 27
    %s1006 = scalar_lea.vmem %s1, %s1005
    %1007 = vst [vmem:[%s1006] sm:%s1004] %v1002

// kernel: forward.1
$region0: #{forward.1}
  #allocation0 [shape = 'u32[]', space=smem, size = 0x4, offset = 0x4, fixed_abs, tag = 'smem constant byte address 0x4 - core index']
  #allocation1 [shape = 'u32[144,128]{1,0:T(1,128)}', space=vmem, size = 0x12000, scoped, tag = 'internal scratch']
  #allocation2 [shape = 'f32[32,256]{1,0:T(8,128)}', space=vmem, size = 0x8000, scoped, tag = 'scratch operand']
  #allocation3 [shape = 'f32[64,256]{1,0:T(8,128)}', space=vmem, size = 0x10000, scoped, tag = 'scratch operand']
  #allocation4 [shape = 'f32[296,128]{1,0:T(8,128)}', space=vmem, size = 0x25000, scoped, tag = 'scratch operand']
  #allocation5 [shape = 'f32[584,128]{1,0:T(8,128)}', space=vmem, size = 0x49000, scoped, tag = 'scratch operand']
  %s0 = inlined_call_operand.vmem [shape: f32[3,32,128], index: 0, kind: input, shape index: {}]
  %s1 = inlined_call_operand.vmem [shape: f32[3,64,296], index: 1, kind: input, shape index: {}]
  %s2 = inlined_call_operand.vmem [shape: f32[3,16,584], index: 2, kind: input, shape index: {}]
  %s3 = inlined_call_operand.vmem [shape: f32[3,16,128], index: 3, kind: output, shape index: {}]
  %s4 = sld [smem:[#allocation0]]
  $region22: #{forward.1} parent=0
    _
  %s6 = ssub.s32 1, %s4
  %s7 = scalar_select 0, %s6, %s4
  // Predicated region
  $region2: #{forward.1} parent=0 // pred_check
    _
  $region3: #{forward.1} parent=0 // pred_check_branch
    %9 = sbr.rel (0) target = $region5
  $region4: #{forward.1} parent=0 // pred_region
    _
  $region5: #{forward.1} parent=0 // pred_fallthru
    _
  // Predicated region
  $region6: #{forward.1} parent=0 // pred_check
    _
  $region7: #{forward.1} parent=0 // pred_check_branch
    %11 = sbr.rel (0) target = $region9
  $region8: #{forward.1} parent=0 // pred_region
    _
  $region9: #{forward.1} parent=0 // pred_fallthru
    _
  // Predicated region
  $region10: #{forward.1} parent=0 // pred_check
    _
  $region11: #{forward.1} parent=0 // pred_check_branch
    %13 = sbr.rel (0) target = $region13
  $region12: #{forward.1} parent=0 // pred_region
    _
  $region13: #{forward.1} parent=0 // pred_fallthru
    _
  %14 = vst [vmem:[#allocation2] sm:$0xff] 0.0
  %15 = vst [vmem:[#allocation2 + $0x8] sm:$0xff] 0.0
  %16 = vst [vmem:[#allocation2 + $0x10] sm:$0xff] 0.0
  %17 = vst [vmem:[#allocation2 + $0x18] sm:$0xff] 0.0
  %18 = vst [vmem:[#allocation2 + $0x20] sm:$0xff] 0.0
  %19 = vst [vmem:[#allocation2 + $0x28] sm:$0xff] 0.0
  %20 = vst [vmem:[#allocation2 + $0x30] sm:$0xff] 0.0
  %21 = vst [vmem:[#allocation2 + $0x38] sm:$0xff] 0.0
  %22 = vst [vmem:[#allocation3] sm:$0xff] 0.0
  %23 = vst [vmem:[#allocation3 + $0x8] sm:$0xff] 0.0
  %24 = vst [vmem:[#allocation3 + $0x10] sm:$0xff] 0.0
  %25 = vst [vmem:[#allocation3 + $0x18] sm:$0xff] 0.0
  %26 = vst [vmem:[#allocation3 + $0x20] sm:$0xff] 0.0
  %27 = vst [vmem:[#allocation3 + $0x28] sm:$0xff] 0.0
  %28 = vst [vmem:[#allocation3 + $0x30] sm:$0xff] 0.0
  %29 = vst [vmem:[#allocation3 + $0x38] sm:$0xff] 0.0
  %30 = vst [vmem:[#allocation3 + $0x40] sm:$0xff] 0.0
  %31 = vst [vmem:[#allocation3 + $0x48] sm:$0xff] 0.0
  %32 = vst [vmem:[#allocation3 + $0x50] sm:$0xff] 0.0
  %33 = vst [vmem:[#allocation3 + $0x58] sm:$0xff] 0.0
  %34 = vst [vmem:[#allocation3 + $0x60] sm:$0xff] 0.0
  %35 = vst [vmem:[#allocation3 + $0x68] sm:$0xff] 0.0
  %36 = vst [vmem:[#allocation3 + $0x70] sm:$0xff] 0.0
  %37 = vst [vmem:[#allocation3 + $0x78] sm:$0xff] 0.0
  %v38 = vlaneseq
  %v39 = vshrl.u32 %v38, 7
  %vm40 = vcmp.eq.s32.totalorder %v39, 0
  %v41 = vsel %vm40, 1, 0
  %v42 = vcvt.s32.f32 %v41
  %43 = vst [vmem:[#allocation4 + $0x120] sm:$0xff] %v42
  %44 = vst [vmem:[#allocation5 + $0x240] sm:$0xff] %v42
  %v45 = vlaneseq
  %v46 = vand.u32 %v45, 127
  %vm47 = vcmp.lt.s32.totalorder %v46, 98
  %vm48 = vcmp.ge.s32.totalorder %v46, 49
  %v49 = vsel %vm48, 49, 0
  %v50 = vsub.s32 %v46, %v49
  %vm51 = vcmp.ge.s32.totalorder %v50, 7
  %v52 = vsel %vm51, 1, 0
  %vm53 = vcmp.ge.s32.totalorder %v50, 14
  %v54 = vsel %vm53, 1, 0
  %v55 = vadd.s32 %v52, %v54
  %vm56 = vcmp.ge.s32.totalorder %v50, 21
  %v57 = vsel %vm56, 1, 0
  %v58 = vadd.s32 %v55, %v57
  %vm59 = vcmp.ge.s32.totalorder %v50, 28
  %v60 = vsel %vm59, 1, 0
  %v61 = vadd.s32 %v58, %v60
  %vm62 = vcmp.ge.s32.totalorder %v50, 35
  %v63 = vsel %vm62, 1, 0
  %v64 = vadd.s32 %v61, %v63
  %vm65 = vcmp.ge.s32.totalorder %v50, 42
  %v66 = vsel %vm65, 1, 0
  %v67 = vadd.s32 %v64, %v66
  %v68 = vmul.u32 %v67, 7
  %v69 = vsub.s32 %v50, %v68
  %v70 = vadd.s32 %v67, 4294967295
  %vm71 = vcmp.ge.s32.totalorder %v70, 0
  %vm72 = vmand %vm47, %vm71
  %vm73 = vcmp.lt.s32.totalorder %v70, 7
  %vm74 = vmand %vm72, %vm73
  %v75 = vadd.s32 %v69, 4294967295
  %vm76 = vcmp.ge.s32.totalorder %v75, 0
  %vm77 = vmand %vm74, %vm76
  %vm78 = vcmp.lt.s32.totalorder %v75, 7
  %vm79 = vmand %vm77, %vm78
  %v80 = vsel %vm79, 1, 0
  %v81 = vcvt.s32.f32 %v80
  %vm82 = vcmp.ge.s32.totalorder %v69, 0
  %vm83 = vmand %vm74, %vm82
  %vm84 = vcmp.lt.s32.totalorder %v69, 7
  %vm85 = vmand %vm83, %vm84
  %v86 = vsel %vm85, 1, 0
  %v87 = vcvt.s32.f32 %v86
  %v88 = vadd.s32 %v69, 1
  %vm89 = vcmp.ge.s32.totalorder %v88, 0
  %vm90 = vmand %vm74, %vm89
  %vm91 = vcmp.lt.s32.totalorder %v88, 7
  %vm92 = vmand %vm90, %vm91
  %v93 = vsel %vm92, 1, 0
  %v94 = vcvt.s32.f32 %v93
  %vm95 = vcmp.ge.s32.totalorder %v67, 0
  %vm96 = vmand %vm47, %vm95
  %vm97 = vcmp.lt.s32.totalorder %v67, 7
  %vm98 = vmand %vm96, %vm97
  %vm99 = vmand %vm98, %vm76
  %vm100 = vmand %vm99, %vm78
  %v101 = vsel %vm100, 1, 0
  %v102 = vcvt.s32.f32 %v101
  %vm103 = vmand %vm98, %vm82
  %vm104 = vmand %vm103, %vm84
  %v105 = vsel %vm104, 1, 0
  %v106 = vcvt.s32.f32 %v105
  %vm107 = vmand %vm98, %vm89
  %vm108 = vmand %vm107, %vm91
  %v109 = vsel %vm108, 1, 0
  %v110 = vcvt.s32.f32 %v109
  %v111 = vadd.s32 %v67, 1
  %vm112 = vcmp.ge.s32.totalorder %v111, 0
  %vm113 = vmand %vm47, %vm112
  %vm114 = vcmp.lt.s32.totalorder %v111, 7
  %vm115 = vmand %vm113, %vm114
  %vm116 = vmand %vm115, %vm76
  %vm117 = vmand %vm116, %vm78
  %v118 = vsel %vm117, 1, 0
  %v119 = vcvt.s32.f32 %v118
  %vm120 = vmand %vm115, %vm82
  %vm121 = vmand %vm120, %vm84
  %v122 = vsel %vm121, 1, 0
  %v123 = vcvt.s32.f32 %v122
  %vm124 = vmand %vm115, %vm89
  %vm125 = vmand %vm124, %vm91
  %v126 = vsel %vm125, 1, 0
  %v127 = vcvt.s32.f32 %v126
  %v128 = vld [vmem:[%s0] sm:$0xff]
  %v129 = vld [vmem:[%s0 + $0x8] sm:$0xff]
  %v130 = vld [vmem:[%s0 + $0x10] sm:$0xff]
  %v131 = vld [vmem:[%s0 + $0x18] sm:$0xff]
  %136 = vrot.lane.b32.xlu0 %v128, 8
  %v137 = vpop.permute.xlu0 %136
  %138 = vrot.lane.b32.xlu0 %v129, 8
  %v139 = vpop.permute.xlu0 %138
  %140 = vrot.lane.b32.xlu0 %v130, 8
  %v141 = vpop.permute.xlu0 %140
  %142 = vrot.lane.b32.xlu0 %v131, 8
  %v143 = vpop.permute.xlu0 %142
  %vm148 = vcmask 1047616
  %149 = vst.msk [vmem:[#allocation2] sm:$0xff] %vm148, %v137
  %vm150 = vcmask 64512
  %151 = vst.msk [vmem:[#allocation2 + $0x8] sm:$0xff] %vm150, %v137
  %152 = vst.msk [vmem:[#allocation2 + $0x10] sm:$0xff] %vm148, %v139
  %153 = vst.msk [vmem:[#allocation2 + $0x18] sm:$0xff] %vm150, %v139
  %154 = vst.msk [vmem:[#allocation2 + $0x20] sm:$0xff] %vm148, %v141
  %155 = vst.msk [vmem:[#allocation2 + $0x28] sm:$0xff] %vm150, %v141
  %156 = vst.msk [vmem:[#allocation2 + $0x30] sm:$0xff] %vm148, %v143
  %157 = vst.msk [vmem:[#allocation2 + $0x38] sm:$0xff] %vm150, %v143
  %v158 = vld [vmem:[#allocation2] sm:$0xff]
  %v159 = vld [vmem:[#allocation2 + $0x10] sm:$0xff]
  %v160 = vld [vmem:[#allocation2 + $0x20] sm:$0xff]
  %v161 = vld [vmem:[#allocation2 + $0x30] sm:$0xff]
  %v162 = vmul.f32 %v158, %v81
  %v163 = vmul.f32 %v159, %v81
  %v164 = vmul.f32 %v160, %v81
  %v165 = vmul.f32 %v161, %v81
  %166 = vst [vmem:[#allocation4] sm:$0xff] %v162
  %167 = vst [vmem:[#allocation4 + $0x8] sm:$0xff] %v163
  %168 = vst [vmem:[#allocation4 + $0x10] sm:$0xff] %v164
  %169 = vst [vmem:[#allocation4 + $0x18] sm:$0xff] %v165
  %v170 = vld [vmem:[#allocation2] sm:$0xff]
  %v171 = vld [vmem:[#allocation2 + $0x8] sm:$0xff]
  %v172 = vld [vmem:[#allocation2 + $0x10] sm:$0xff]
  %v173 = vld [vmem:[#allocation2 + $0x18] sm:$0xff]
  %v174 = vld [vmem:[#allocation2 + $0x20] sm:$0xff]
  %v175 = vld [vmem:[#allocation2 + $0x28] sm:$0xff]
  %v176 = vld [vmem:[#allocation2 + $0x30] sm:$0xff]
  %v177 = vld [vmem:[#allocation2 + $0x38] sm:$0xff]
  %179 = vrot.lane.b32.xlu0 %v87, 1
  %v180 = vpop.permute.xlu0 %179
  %v182 = vmul.f32 %v170, %v180
  %v183 = vmul.f32 %v171, %v180
  %v184 = vmul.f32 %v172, %v180
  %v185 = vmul.f32 %v173, %v180
  %v186 = vmul.f32 %v174, %v180
  %v187 = vmul.f32 %v175, %v180
  %v188 = vmul.f32 %v176, %v180
  %v189 = vmul.f32 %v177, %v180
  %198 = vrot.lane.b32.xlu0 %v182, 127
  %v199 = vpop.permute.xlu0 %198
  %200 = vrot.lane.b32.xlu0 %v183, 127
  %v201 = vpop.permute.xlu0 %200
  %202 = vrot.lane.b32.xlu0 %v184, 127
  %v203 = vpop.permute.xlu0 %202
  %204 = vrot.lane.b32.xlu0 %v185, 127
  %v205 = vpop.permute.xlu0 %204
  %206 = vrot.lane.b32.xlu0 %v186, 127
  %v207 = vpop.permute.xlu0 %206
  %208 = vrot.lane.b32.xlu0 %v187, 127
  %v209 = vpop.permute.xlu0 %208
  %210 = vrot.lane.b32.xlu0 %v188, 127
  %v211 = vpop.permute.xlu0 %210
  %212 = vrot.lane.b32.xlu0 %v189, 127
  %v213 = vpop.permute.xlu0 %212
  %vm214 = vcmask 1039360
  %v215 = vsel %vm214, %v199, %v201
  %v216 = vsel %vm214, %v203, %v205
  %v217 = vsel %vm214, %v207, %v209
  %v218 = vsel %vm214, %v211, %v213
  %223 = vst [vmem:[#allocation4 + $0x20] sm:$0xff] %v215
  %224 = vst [vmem:[#allocation4 + $0x28] sm:$0xff] %v216
  %225 = vst [vmem:[#allocation4 + $0x30] sm:$0xff] %v217
  %226 = vst [vmem:[#allocation4 + $0x38] sm:$0xff] %v218
  %v227 = vld [vmem:[#allocation2] sm:$0xff]
  %v228 = vld [vmem:[#allocation2 + $0x8] sm:$0xff]
  %v229 = vld [vmem:[#allocation2 + $0x10] sm:$0xff]
  %v230 = vld [vmem:[#allocation2 + $0x18] sm:$0xff]
  %v231 = vld [vmem:[#allocation2 + $0x20] sm:$0xff]
  %v232 = vld [vmem:[#allocation2 + $0x28] sm:$0xff]
  %v233 = vld [vmem:[#allocation2 + $0x30] sm:$0xff]
  %v234 = vld [vmem:[#allocation2 + $0x38] sm:$0xff]
  %236 = vrot.lane.b32.xlu0 %v94, 2
  %v237 = vpop.permute.xlu0 %236
  %v239 = vmul.f32 %v227, %v237
  %v240 = vmul.f32 %v228, %v237
  %v241 = vmul.f32 %v229, %v237
  %v242 = vmul.f32 %v230, %v237
  %v243 = vmul.f32 %v231, %v237
  %v244 = vmul.f32 %v232, %v237
  %v245 = vmul.f32 %v233, %v237
  %v246 = vmul.f32 %v234, %v237
  %255 = vrot.lane.b32.xlu0 %v239, 126
  %v256 = vpop.permute.xlu0 %255
  %257 = vrot.lane.b32.xlu0 %v240, 126
  %v258 = vpop.permute.xlu0 %257
  %259 = vrot.lane.b32.xlu0 %v241, 126
  %v260 = vpop.permute.xlu0 %259
  %261 = vrot.lane.b32.xlu0 %v242, 126
  %v262 = vpop.permute.xlu0 %261
  %263 = vrot.lane.b32.xlu0 %v243, 126
  %v264 = vpop.permute.xlu0 %263
  %265 = vrot.lane.b32.xlu0 %v244, 126
  %v266 = vpop.permute.xlu0 %265
  %267 = vrot.lane.b32.xlu0 %v245, 126
  %v268 = vpop.permute.xlu0 %267
  %269 = vrot.lane.b32.xlu0 %v246, 126
  %v270 = vpop.permute.xlu0 %269
  %vm271 = vcmask 1031168
  %v272 = vsel %vm271, %v256, %v258
  %v273 = vsel %vm271, %v260, %v262
  %v274 = vsel %vm271, %v264, %v266
  %v275 = vsel %vm271, %v268, %v270
  %280 = vst [vmem:[#allocation4 + $0x40] sm:$0xff] %v272
  %281 = vst [vmem:[#allocation4 + $0x48] sm:$0xff] %v273
  %282 = vst [vmem:[#allocation4 + $0x50] sm:$0xff] %v274
  %283 = vst [vmem:[#allocation4 + $0x58] sm:$0xff] %v275
  %v284 = vld [vmem:[#allocation2] sm:$0xff]
  %v285 = vld [vmem:[#allocation2 + $0x8] sm:$0xff]
  %v286 = vld [vmem:[#allocation2 + $0x10] sm:$0xff]
  %v287 = vld [vmem:[#allocation2 + $0x18] sm:$0xff]
  %v288 = vld [vmem:[#allocation2 + $0x20] sm:$0xff]
  %v289 = vld [vmem:[#allocation2 + $0x28] sm:$0xff]
  %v290 = vld [vmem:[#allocation2 + $0x30] sm:$0xff]
  %v291 = vld [vmem:[#allocation2 + $0x38] sm:$0xff]
  %293 = vrot.lane.b32.xlu0 %v102, 7
  %v294 = vpop.permute.xlu0 %293
  %v296 = vmul.f32 %v284, %v294
  %v297 = vmul.f32 %v285, %v294
  %v298 = vmul.f32 %v286, %v294
  %v299 = vmul.f32 %v287, %v294
  %v300 = vmul.f32 %v288, %v294
  %v301 = vmul.f32 %v289, %v294
  %v302 = vmul.f32 %v290, %v294
  %v303 = vmul.f32 %v291, %v294
  %312 = vrot.lane.b32.xlu0 %v296, 121
  %v313 = vpop.permute.xlu0 %312
  %314 = vrot.lane.b32.xlu0 %v297, 121
  %v315 = vpop.permute.xlu0 %314
  %316 = vrot.lane.b32.xlu0 %v298, 121
  %v317 = vpop.permute.xlu0 %316
  %318 = vrot.lane.b32.xlu0 %v299, 121
  %v319 = vpop.permute.xlu0 %318
  %320 = vrot.lane.b32.xlu0 %v300, 121
  %v321 = vpop.permute.xlu0 %320
  %322 = vrot.lane.b32.xlu0 %v301, 121
  %v323 = vpop.permute.xlu0 %322
  %324 = vrot.lane.b32.xlu0 %v302, 121
  %v325 = vpop.permute.xlu0 %324
  %326 = vrot.lane.b32.xlu0 %v303, 121
  %v327 = vpop.permute.xlu0 %326
  %vm328 = vcmask 990208
  %v329 = vsel %vm328, %v313, %v315
  %v330 = vsel %vm328, %v317, %v319
  %v331 = vsel %vm328, %v321, %v323
  %v332 = vsel %vm328, %v325, %v327
  %337 = vst [vmem:[#allocation4 + $0x60] sm:$0xff] %v329
  %338 = vst [vmem:[#allocation4 + $0x68] sm:$0xff] %v330
  %339 = vst [vmem:[#allocation4 + $0x70] sm:$0xff] %v331
  %340 = vst [vmem:[#allocation4 + $0x78] sm:$0xff] %v332
  %v341 = vld [vmem:[#allocation2] sm:$0xff]
  %v342 = vld [vmem:[#allocation2 + $0x8] sm:$0xff]
  %v343 = vld [vmem:[#allocation2 + $0x10] sm:$0xff]
  %v344 = vld [vmem:[#allocation2 + $0x18] sm:$0xff]
  %v345 = vld [vmem:[#allocation2 + $0x20] sm:$0xff]
  %v346 = vld [vmem:[#allocation2 + $0x28] sm:$0xff]
  %v347 = vld [vmem:[#allocation2 + $0x30] sm:$0xff]
  %v348 = vld [vmem:[#allocation2 + $0x38] sm:$0xff]
  %350 = vrot.lane.b32.xlu0 %v106, 8
  %v351 = vpop.permute.xlu0 %350
  %v353 = vmul.f32 %v341, %v351
  %v354 = vmul.f32 %v342, %v351
  %v355 = vmul.f32 %v343, %v351
  %v356 = vmul.f32 %v344, %v351
  %v357 = vmul.f32 %v345, %v351
  %v358 = vmul.f32 %v346, %v351
  %v359 = vmul.f32 %v347, %v351
  %v360 = vmul.f32 %v348, %v351
  %369 = vrot.lane.b32.xlu0 %v353, 120
  %v370 = vpop.permute.xlu0 %369
  %371 = vrot.lane.b32.xlu0 %v354, 120
  %v372 = vpop.permute.xlu0 %371
  %373 = vrot.lane.b32.xlu0 %v355, 120
  %v374 = vpop.permute.xlu0 %373
  %375 = vrot.lane.b32.xlu0 %v356, 120
  %v376 = vpop.permute.xlu0 %375
  %377 = vrot.lane.b32.xlu0 %v357, 120
  %v378 = vpop.permute.xlu0 %377
  %379 = vrot.lane.b32.xlu0 %v358, 120
  %v380 = vpop.permute.xlu0 %379
  %381 = vrot.lane.b32.xlu0 %v359, 120
  %v382 = vpop.permute.xlu0 %381
  %383 = vrot.lane.b32.xlu0 %v360, 120
  %v384 = vpop.permute.xlu0 %383
  %vm385 = vcmask 982016
  %v386 = vsel %vm385, %v370, %v372
  %v387 = vsel %vm385, %v374, %v376
  %v388 = vsel %vm385, %v378, %v380
  %v389 = vsel %vm385, %v382, %v384
  %394 = vst [vmem:[#allocation4 + $0x80] sm:$0xff] %v386
  %395 = vst [vmem:[#allocation4 + $0x88] sm:$0xff] %v387
  %396 = vst [vmem:[#allocation4 + $0x90] sm:$0xff] %v388
  %397 = vst [vmem:[#allocation4 + $0x98] sm:$0xff] %v389
  %v398 = vld [vmem:[#allocation2] sm:$0xff]
  %v399 = vld [vmem:[#allocation2 + $0x8] sm:$0xff]
  %v400 = vld [vmem:[#allocation2 + $0x10] sm:$0xff]
  %v401 = vld [vmem:[#allocation2 + $0x18] sm:$0xff]
  %v402 = vld [vmem:[#allocation2 + $0x20] sm:$0xff]
  %v403 = vld [vmem:[#allocation2 + $0x28] sm:$0xff]
  %v404 = vld [vmem:[#allocation2 + $0x30] sm:$0xff]
  %v405 = vld [vmem:[#allocation2 + $0x38] sm:$0xff]
  %407 = vrot.lane.b32.xlu0 %v110, 9
  %v408 = vpop.permute.xlu0 %407
  %v410 = vmul.f32 %v398, %v408
  %v411 = vmul.f32 %v399, %v408
  %v412 = vmul.f32 %v400, %v408
  %v413 = vmul.f32 %v401, %v408
  %v414 = vmul.f32 %v402, %v408
  %v415 = vmul.f32 %v403, %v408
  %v416 = vmul.f32 %v404, %v408
  %v417 = vmul.f32 %v405, %v408
  %426 = vrot.lane.b32.xlu0 %v410, 119
  %v427 = vpop.permute.xlu0 %426
  %428 = vrot.lane.b32.xlu0 %v411, 119
  %v429 = vpop.permute.xlu0 %428
  %430 = vrot.lane.b32.xlu0 %v412, 119
  %v431 = vpop.permute.xlu0 %430
  %432 = vrot.lane.b32.xlu0 %v413, 119
  %v433 = vpop.permute.xlu0 %432
  %434 = vrot.lane.b32.xlu0 %v414, 119
  %v435 = vpop.permute.xlu0 %434
  %436 = vrot.lane.b32.xlu0 %v415, 119
  %v437 = vpop.permute.xlu0 %436
  %438 = vrot.lane.b32.xlu0 %v416, 119
  %v439 = vpop.permute.xlu0 %438
  %440 = vrot.lane.b32.xlu0 %v417, 119
  %v441 = vpop.permute.xlu0 %440
  %vm442 = vcmask 973824
  %v443 = vsel %vm442, %v427, %v429
  %v444 = vsel %vm442, %v431, %v433
  %v445 = vsel %vm442, %v435, %v437
  %v446 = vsel %vm442, %v439, %v441
  %451 = vst [vmem:[#allocation4 + $0xa0] sm:$0xff] %v443
  %452 = vst [vmem:[#allocation4 + $0xa8] sm:$0xff] %v444
  %453 = vst [vmem:[#allocation4 + $0xb0] sm:$0xff] %v445
  %454 = vst [vmem:[#allocation4 + $0xb8] sm:$0xff] %v446
  %v455 = vld [vmem:[#allocation2] sm:$0xff]
  %v456 = vld [vmem:[#allocation2 + $0x8] sm:$0xff]
  %v457 = vld [vmem:[#allocation2 + $0x10] sm:$0xff]
  %v458 = vld [vmem:[#allocation2 + $0x18] sm:$0xff]
  %v459 = vld [vmem:[#allocation2 + $0x20] sm:$0xff]
  %v460 = vld [vmem:[#allocation2 + $0x28] sm:$0xff]
  %v461 = vld [vmem:[#allocation2 + $0x30] sm:$0xff]
  %v462 = vld [vmem:[#allocation2 + $0x38] sm:$0xff]
  %464 = vrot.lane.b32.xlu0 %v119, 14
  %v465 = vpop.permute.xlu0 %464
  %v467 = vmul.f32 %v455, %v465
  %v468 = vmul.f32 %v456, %v465
  %v469 = vmul.f32 %v457, %v465
  %v470 = vmul.f32 %v458, %v465
  %v471 = vmul.f32 %v459, %v465
  %v472 = vmul.f32 %v460, %v465
  %v473 = vmul.f32 %v461, %v465
  %v474 = vmul.f32 %v462, %v465
  %483 = vrot.lane.b32.xlu0 %v467, 114
  %v484 = vpop.permute.xlu0 %483
  %485 = vrot.lane.b32.xlu0 %v468, 114
  %v486 = vpop.permute.xlu0 %485
  %487 = vrot.lane.b32.xlu0 %v469, 114
  %v488 = vpop.permute.xlu0 %487
  %489 = vrot.lane.b32.xlu0 %v470, 114
  %v490 = vpop.permute.xlu0 %489
  %491 = vrot.lane.b32.xlu0 %v471, 114
  %v492 = vpop.permute.xlu0 %491
  %493 = vrot.lane.b32.xlu0 %v472, 114
  %v494 = vpop.permute.xlu0 %493
  %495 = vrot.lane.b32.xlu0 %v473, 114
  %v496 = vpop.permute.xlu0 %495
  %497 = vrot.lane.b32.xlu0 %v474, 114
  %v498 = vpop.permute.xlu0 %497
  %vm499 = vcmask 932864
  %v500 = vsel %vm499, %v484, %v486
  %v501 = vsel %vm499, %v488, %v490
  %v502 = vsel %vm499, %v492, %v494
  %v503 = vsel %vm499, %v496, %v498
  %508 = vst [vmem:[#allocation4 + $0xc0] sm:$0xff] %v500
  %509 = vst [vmem:[#allocation4 + $0xc8] sm:$0xff] %v501
  %510 = vst [vmem:[#allocation4 + $0xd0] sm:$0xff] %v502
  %511 = vst [vmem:[#allocation4 + $0xd8] sm:$0xff] %v503
  %v512 = vld [vmem:[#allocation2] sm:$0xff]
  %v513 = vld [vmem:[#allocation2 + $0x8] sm:$0xff]
  %v514 = vld [vmem:[#allocation2 + $0x10] sm:$0xff]
  %v515 = vld [vmem:[#allocation2 + $0x18] sm:$0xff]
  %v516 = vld [vmem:[#allocation2 + $0x20] sm:$0xff]
  %v517 = vld [vmem:[#allocation2 + $0x28] sm:$0xff]
  %v518 = vld [vmem:[#allocation2 + $0x30] sm:$0xff]
  %v519 = vld [vmem:[#allocation2 + $0x38] sm:$0xff]
  %521 = vrot.lane.b32.xlu0 %v123, 15
  %v522 = vpop.permute.xlu0 %521
  %v524 = vmul.f32 %v512, %v522
  %v525 = vmul.f32 %v513, %v522
  %v526 = vmul.f32 %v514, %v522
  %v527 = vmul.f32 %v515, %v522
  %v528 = vmul.f32 %v516, %v522
  %v529 = vmul.f32 %v517, %v522
  %v530 = vmul.f32 %v518, %v522
  %v531 = vmul.f32 %v519, %v522
  %540 = vrot.lane.b32.xlu0 %v524, 113
  %v541 = vpop.permute.xlu0 %540
  %542 = vrot.lane.b32.xlu0 %v525, 113
  %v543 = vpop.permute.xlu0 %542
  %544 = vrot.lane.b32.xlu0 %v526, 113
  %v545 = vpop.permute.xlu0 %544
  %546 = vrot.lane.b32.xlu0 %v527, 113
  %v547 = vpop.permute.xlu0 %546
  %548 = vrot.lane.b32.xlu0 %v528, 113
  %v549 = vpop.permute.xlu0 %548
  %550 = vrot.lane.b32.xlu0 %v529, 113
  %v551 = vpop.permute.xlu0 %550
  %552 = vrot.lane.b32.xlu0 %v530, 113
  %v553 = vpop.permute.xlu0 %552
  %554 = vrot.lane.b32.xlu0 %v531, 113
  %v555 = vpop.permute.xlu0 %554
  %vm556 = vcmask 924672
  %v557 = vsel %vm556, %v541, %v543
  %v558 = vsel %vm556, %v545, %v547
  %v559 = vsel %vm556, %v549, %v551
  %v560 = vsel %vm556, %v553, %v555
  %565 = vst [vmem:[#allocation4 + $0xe0] sm:$0xff] %v557
  %566 = vst [vmem:[#allocation4 + $0xe8] sm:$0xff] %v558
  %567 = vst [vmem:[#allocation4 + $0xf0] sm:$0xff] %v559
  %568 = vst [vmem:[#allocation4 + $0xf8] sm:$0xff] %v560
  %v569 = vld [vmem:[#allocation2] sm:$0xff]
  %v570 = vld [vmem:[#allocation2 + $0x8] sm:$0xff]
  %v571 = vld [vmem:[#allocation2 + $0x10] sm:$0xff]
  %v572 = vld [vmem:[#allocation2 + $0x18] sm:$0xff]
  %v573 = vld [vmem:[#allocation2 + $0x20] sm:$0xff]
  %v574 = vld [vmem:[#allocation2 + $0x28] sm:$0xff]
  %v575 = vld [vmem:[#allocation2 + $0x30] sm:$0xff]
  %v576 = vld [vmem:[#allocation2 + $0x38] sm:$0xff]
  %578 = vrot.lane.b32.xlu0 %v127, 16
  %v579 = vpop.permute.xlu0 %578
  %v581 = vmul.f32 %v569, %v579
  %v582 = vmul.f32 %v570, %v579
  %v583 = vmul.f32 %v571, %v579
  %v584 = vmul.f32 %v572, %v579
  %v585 = vmul.f32 %v573, %v579
  %v586 = vmul.f32 %v574, %v579
  %v587 = vmul.f32 %v575, %v579
  %v588 = vmul.f32 %v576, %v579
  %597 = vrot.lane.b32.xlu0 %v581, 112
  %v598 = vpop.permute.xlu0 %597
  %599 = vrot.lane.b32.xlu0 %v582, 112
  %v600 = vpop.permute.xlu0 %599
  %601 = vrot.lane.b32.xlu0 %v583, 112
  %v602 = vpop.permute.xlu0 %601
  %603 = vrot.lane.b32.xlu0 %v584, 112
  %v604 = vpop.permute.xlu0 %603
  %605 = vrot.lane.b32.xlu0 %v585, 112
  %v606 = vpop.permute.xlu0 %605
  %607 = vrot.lane.b32.xlu0 %v586, 112
  %v608 = vpop.permute.xlu0 %607
  %609 = vrot.lane.b32.xlu0 %v587, 112
  %v610 = vpop.permute.xlu0 %609
  %611 = vrot.lane.b32.xlu0 %v588, 112
  %v612 = vpop.permute.xlu0 %611
  %vm613 = vcmask 916480
  %v614 = vsel %vm613, %v598, %v600
  %v615 = vsel %vm613, %v602, %v604
  %v616 = vsel %vm613, %v606, %v608
  %v617 = vsel %vm613, %v610, %v612
  %622 = vst [vmem:[#allocation4 + $0x100] sm:$0xff] %v614
  %623 = vst [vmem:[#allocation4 + $0x108] sm:$0xff] %v615
  %624 = vst [vmem:[#allocation4 + $0x110] sm:$0xff] %v616
  %625 = vst [vmem:[#allocation4 + $0x118] sm:$0xff] %v617
  %v626 = vld [vmem:[%s1] sm:$0xff]
  %v627 = vld [vmem:[%s1 + $0x8] sm:$0xff]
  %v628 = vld [vmem:[%s1 + $0x10] sm:$0xff]
  %v629 = vld [vmem:[%s1 + $0x18] sm:$0xff]
  %v630 = vld [vmem:[%s1 + $0x20] sm:$0xff]
  %v631 = vld [vmem:[%s1 + $0x28] sm:$0xff]
  %v632 = vld [vmem:[%s1 + $0x30] sm:$0xff]
  %v633 = vld [vmem:[%s1 + $0x38] sm:$0xff]
  %v634 = vld [vmem:[%s1 + $0x40] sm:$0xff]
  %v635 = vld [vmem:[%s1 + $0x48] sm:$0xff]
  %v636 = vld [vmem:[%s1 + $0x50] sm:$0xff]
  %v637 = vld [vmem:[%s1 + $0x58] sm:$0xff]
  %v638 = vld [vmem:[%s1 + $0x60] sm:$0xff]
  %v639 = vld [vmem:[%s1 + $0x68] sm:$0xff]
  %v640 = vld [vmem:[%s1 + $0x70] sm:$0xff]
  %v641 = vld [vmem:[%s1 + $0x78] sm:$0xff]
  %v642 = vld [vmem:[%s1 + $0x80] sm:$0xff]
  %v643 = vld [vmem:[%s1 + $0x88] sm:$0xff]
  %v644 = vld [vmem:[%s1 + $0x90] sm:$0xff]
  %v645 = vld [vmem:[%s1 + $0x98] sm:$0xff]
  %v646 = vld [vmem:[%s1 + $0xa0] sm:$0xff]
  %v647 = vld [vmem:[%s1 + $0xa8] sm:$0xff]
  %v648 = vld [vmem:[%s1 + $0xb0] sm:$0xff]
  %v649 = vld [vmem:[%s1 + $0xb8] sm:$0xff]
  %v650 = vld [vmem:[#allocation4] sm:$0xff]
  %v651 = vld [vmem:[#allocation4 + $0x8] sm:$0xff]
  %v652 = vld [vmem:[#allocation4 + $0x10] sm:$0xff]
  %v653 = vld [vmem:[#allocation4 + $0x18] sm:$0xff]
  %v654 = vld [vmem:[#allocation4 + $0x20] sm:$0xff]
  %v655 = vld [vmem:[#allocation4 + $0x28] sm:$0xff]
  %v656 = vld [vmem:[#allocation4 + $0x30] sm:$0xff]
  %v657 = vld [vmem:[#allocation4 + $0x38] sm:$0xff]
  %v658 = vld [vmem:[#allocation4 + $0x40] sm:$0xff]
  %v659 = vld [vmem:[#allocation4 + $0x48] sm:$0xff]
  %v660 = vld [vmem:[#allocation4 + $0x50] sm:$0xff]
  %v661 = vld [vmem:[#allocation4 + $0x58] sm:$0xff]
  %v662 = vld [vmem:[#allocation4 + $0x60] sm:$0xff]
  %v663 = vld [vmem:[#allocation4 + $0x68] sm:$0xff]
  %v664 = vld [vmem:[#allocation4 + $0x70] sm:$0xff]
  %v665 = vld [vmem:[#allocation4 + $0x78] sm:$0xff]
  %v666 = vld [vmem:[#allocation4 + $0x80] sm:$0xff]
  %v667 = vld [vmem:[#allocation4 + $0x88] sm:$0xff]
  %v668 = vld [vmem:[#allocation4 + $0x90] sm:$0xff]
  %v669 = vld [vmem:[#allocation4 + $0x98] sm:$0xff]
  %v670 = vld [vmem:[#allocation4 + $0xa0] sm:$0xff]
  %v671 = vld [vmem:[#allocation4 + $0xa8] sm:$0xff]
  %v672 = vld [vmem:[#allocation4 + $0xb0] sm:$0xff]
  %v673 = vld [vmem:[#allocation4 + $0xb8] sm:$0xff]
  %v674 = vld [vmem:[#allocation4 + $0xc0] sm:$0xff]
  %v675 = vld [vmem:[#allocation4 + $0xc8] sm:$0xff]
  %v676 = vld [vmem:[#allocation4 + $0xd0] sm:$0xff]
  %v677 = vld [vmem:[#allocation4 + $0xd8] sm:$0xff]
  %v678 = vld [vmem:[#allocation4 + $0xe0] sm:$0xff]
  %v679 = vld [vmem:[#allocation4 + $0xe8] sm:$0xff]
  %v680 = vld [vmem:[#allocation4 + $0xf0] sm:$0xff]
  %v681 = vld [vmem:[#allocation4 + $0xf8] sm:$0xff]
  %v682 = vld [vmem:[#allocation4 + $0x100] sm:$0xff]
  %v683 = vld [vmem:[#allocation4 + $0x108] sm:$0xff]
  %v684 = vld [vmem:[#allocation4 + $0x110] sm:$0xff]
  %v685 = vld [vmem:[#allocation4 + $0x118] sm:$0xff]
  %v686 = vld [vmem:[#allocation4 + $0x120] sm:$0xff]
  %vm687 = vcmask 326656
  %v689 = vsel %vm687, %v628, 0
  %v692 = vsel %vm687, %v631, 0
  %v695 = vsel %vm687, %v634, 0
  %v698 = vsel %vm687, %v637, 0
  %v701 = vsel %vm687, %v640, 0
  %v704 = vsel %vm687, %v643, 0
  %v707 = vsel %vm687, %v646, 0
  %v710 = vsel %vm687, %v649, 0
  %712 = vmatprep.subr.mxu0 0.0
  %713 = vmatpush1.msra.mxu0 %v665
  %714 = vmatprep.subr.mxu0 0.0
  %715 = vmatpush1.msra.mxu0 %v664
  %716 = vmatprep.subr.mxu0 0.0
  %717 = vmatpush1.msra.mxu0 %v663
  %718 = vmatprep.subr.mxu0 0.0
  %719 = vmatpush1.msra.mxu0 %v662
  %720 = vmatprep.subr.mxu0 0.0
  %721 = vmatpush1.msra.mxu0 %v661
  %722 = vmatprep.subr.mxu0 0.0
  %723 = vmatpush1.msra.mxu0 %v660
  %724 = vmatprep.subr.mxu0 0.0
  %725 = vmatpush1.msra.mxu0 %v659
  %726 = vmatprep.subr.mxu0 0.0
  %727 = vmatpush1.msra.mxu0 %v658
  %728 = vmatprep.subr.mxu0 0.0
  %729 = vmatpush1.msra.mxu0 %v657
  %730 = vmatprep.subr.mxu0 0.0
  %731 = vmatpush1.msra.mxu0 %v656
  %732 = vmatprep.subr.mxu0 0.0
  %733 = vmatpush1.msra.mxu0 %v655
  %734 = vmatprep.subr.mxu0 0.0
  %735 = vmatpush1.msra.mxu0 %v654
  %736 = vmatprep.subr.mxu0 0.0
  %737 = vmatpush1.msra.mxu0 %v653
  %738 = vmatprep.subr.mxu0 0.0
  %739 = vmatpush1.msra.mxu0 %v652
  %740 = vmatprep.subr.mxu0 0.0
  %741 = vmatpush1.msra.mxu0 %v651
  %742 = vmatprep.subr.mxu0 0.0
  %743 = vmatpush1.msra.mxu0 %v650
  %744 = vmatprep.subr.mxu0 0.0
  %745 = vmatpush2.msra.mxu0 %v681
  %746 = vmatprep.subr.mxu0 0.0
  %747 = vmatpush2.msra.mxu0 %v680
  %748 = vmatprep.subr.mxu0 0.0
  %749 = vmatpush2.msra.mxu0 %v679
  %750 = vmatprep.subr.mxu0 0.0
  %751 = vmatpush2.msra.mxu0 %v678
  %752 = vmatprep.subr.mxu0 0.0
  %753 = vmatpush2.msra.mxu0 %v677
  %754 = vmatprep.subr.mxu0 0.0
  %755 = vmatpush2.msra.mxu0 %v676
  %756 = vmatprep.subr.mxu0 0.0
  %757 = vmatpush2.msra.mxu0 %v675
  %758 = vmatprep.subr.mxu0 0.0
  %759 = vmatpush2.msra.mxu0 %v674
  %760 = vmatprep.subr.mxu0 0.0
  %761 = vmatpush2.msra.mxu0 %v673
  %762 = vmatprep.subr.mxu0 0.0
  %763 = vmatpush2.msra.mxu0 %v672
  %764 = vmatprep.subr.mxu0 0.0
  %765 = vmatpush2.msra.mxu0 %v671
  %766 = vmatprep.subr.mxu0 0.0
  %767 = vmatpush2.msra.mxu0 %v670
  %768 = vmatprep.subr.mxu0 0.0
  %769 = vmatpush2.msra.mxu0 %v669
  %770 = vmatprep.subr.mxu0 0.0
  %771 = vmatpush2.msra.mxu0 %v668
  %772 = vmatprep.subr.mxu0 0.0
  %773 = vmatpush2.msra.mxu0 %v667
  %774 = vmatprep.subr.mxu0 0.0
  %775 = vmatpush2.msra.mxu0 %v666
  %776 = vmatprep.mubr.f32.mxu0 %v627
  %777 = vmatmul.mubr.f32.gmra.mxu0 %v626
  %v778 = vpop.f32.mrf.mxu0
  %v779 = vadd.f32 0.0, %v778
  %v780 = vpop.f32.mrf.mxu0
  %781 = vmatprep.mubr.f32.mxu0 %v630
  %782 = vmatmul.mubr.f32.gmra.mxu0 %v629
  %v783 = vpop.f32.mrf.mxu0
  %v784 = vadd.f32 0.0, %v783
  %v785 = vpop.f32.mrf.mxu0
  %786 = vmatprep.mubr.f32.mxu0 %v633
  %787 = vmatmul.mubr.f32.gmra.mxu0 %v632
  %v788 = vpop.f32.mrf.mxu0
  %v789 = vadd.f32 0.0, %v788
  %v790 = vpop.f32.mrf.mxu0
  %791 = vmatprep.mubr.f32.mxu0 %v636
  %792 = vmatmul.mubr.f32.gmra.mxu0 %v635
  %v793 = vpop.f32.mrf.mxu0
  %v794 = vadd.f32 0.0, %v793
  %v795 = vpop.f32.mrf.mxu0
  %796 = vmatprep.mubr.f32.mxu0 %v639
  %797 = vmatmul.mubr.f32.gmra.mxu0 %v638
  %v798 = vpop.f32.mrf.mxu0
  %v799 = vadd.f32 0.0, %v798
  %v800 = vpop.f32.mrf.mxu0
  %801 = vmatprep.mubr.f32.mxu0 %v642
  %802 = vmatmul.mubr.f32.gmra.mxu0 %v641
  %v803 = vpop.f32.mrf.mxu0
  %v804 = vadd.f32 0.0, %v803
  %v805 = vpop.f32.mrf.mxu0
  %806 = vmatprep.mubr.f32.mxu0 %v645
  %807 = vmatmul.mubr.f32.gmra.mxu0 %v644
  %v808 = vpop.f32.mrf.mxu0
  %v809 = vadd.f32 0.0, %v808
  %v810 = vpop.f32.mrf.mxu0
  %811 = vmatprep.mubr.f32.mxu0 %v648
  %812 = vmatmul.mubr.f32.gmra.mxu0 %v647
  %v813 = vpop.f32.mrf.mxu0
  %v814 = vadd.f32 0.0, %v813
  %v815 = vpop.f32.mrf.mxu0
  %816 = vdwg.mxu0
  %817 = vmatprep.subr.mxu0 0.0
  %818 = vmatpush1.msra.mxu0 0.0
  %819 = vmatprep.subr.mxu0 0.0
  %820 = vmatpush1.msra.mxu0 0.0
  %821 = vmatprep.subr.mxu0 0.0
  %822 = vmatpush1.msra.mxu0 0.0
  %823 = vmatprep.subr.mxu0 0.0
  %824 = vmatpush1.msra.mxu0 0.0
  %825 = vmatprep.subr.mxu0 0.0
  %826 = vmatpush1.msra.mxu0 0.0
  %827 = vmatprep.subr.mxu0 0.0
  %828 = vmatpush1.msra.mxu0 0.0
  %829 = vmatprep.subr.mxu0 0.0
  %830 = vmatpush1.msra.mxu0 0.0
  %831 = vmatprep.subr.mxu0 0.0
  %832 = vmatpush1.msra.mxu0 0.0
  %833 = vmatprep.subr.mxu0 0.0
  %834 = vmatpush1.msra.mxu0 0.0
  %835 = vmatprep.subr.mxu0 0.0
  %836 = vmatpush1.msra.mxu0 0.0
  %837 = vmatprep.subr.mxu0 0.0
  %838 = vmatpush1.msra.mxu0 0.0
  %839 = vmatprep.subr.mxu0 0.0
  %840 = vmatpush1.msra.mxu0 %v686
  %841 = vmatprep.subr.mxu0 0.0
  %842 = vmatpush1.msra.mxu0 %v685
  %843 = vmatprep.subr.mxu0 0.0
  %844 = vmatpush1.msra.mxu0 %v684
  %845 = vmatprep.subr.mxu0 0.0
  %846 = vmatpush1.msra.mxu0 %v683
  %847 = vmatprep.subr.mxu0 0.0
  %848 = vmatpush1.msra.mxu0 %v682
  %849 = vmatprep.subr.mxu0 0.0
  %850 = vmatpush2.msra.mxu0 0.0
  %851 = vmatprep.subr.mxu0 0.0
  %852 = vmatpush2.msra.mxu0 0.0
  %853 = vmatprep.subr.mxu0 0.0
  %854 = vmatpush2.msra.mxu0 0.0
  %855 = vmatprep.subr.mxu0 0.0
  %856 = vmatpush2.msra.mxu0 0.0
  %857 = vmatprep.subr.mxu0 0.0
  %858 = vmatpush2.msra.mxu0 0.0
  %859 = vmatprep.subr.mxu0 0.0
  %860 = vmatpush2.msra.mxu0 0.0
  %861 = vmatprep.subr.mxu0 0.0
  %862 = vmatpush2.msra.mxu0 0.0
  %863 = vmatprep.subr.mxu0 0.0
  %864 = vmatpush2.msra.mxu0 0.0
  %865 = vmatprep.subr.mxu0 0.0
  %866 = vmatpush2.msra.mxu0 0.0
  %867 = vmatprep.subr.mxu0 0.0
  %868 = vmatpush2.msra.mxu0 0.0
  %869 = vmatprep.subr.mxu0 0.0
  %870 = vmatpush2.msra.mxu0 0.0
  %871 = vmatprep.subr.mxu0 0.0
  %872 = vmatpush2.msra.mxu0 0.0
  %873 = vmatprep.subr.mxu0 0.0
  %874 = vmatpush2.msra.mxu0 0.0
  %875 = vmatprep.subr.mxu0 0.0
  %876 = vmatpush2.msra.mxu0 0.0
  %877 = vmatprep.subr.mxu0 0.0
  %878 = vmatpush2.msra.mxu0 0.0
  %879 = vmatprep.subr.mxu0 0.0
  %880 = vmatpush2.msra.mxu0 0.0
  %881 = vmatprep.mubr.f32.mxu0 0.0
  %882 = vmatmul.mubr.f32.gmra.mxu0 %v689
  %v883 = vpop.f32.mrf.mxu0
  %v884 = vadd.f32 %v779, %v883
  %v885 = vpop.f32.mrf.mxu0
  %886 = vmatprep.mubr.f32.mxu0 0.0
  %887 = vmatmul.mubr.f32.gmra.mxu0 %v692
  %v888 = vpop.f32.mrf.mxu0
  %v889 = vadd.f32 %v784, %v888
  %v890 = vpop.f32.mrf.mxu0
  %891 = vmatprep.mubr.f32.mxu0 0.0
  %892 = vmatmul.mubr.f32.gmra.mxu0 %v695
  %v893 = vpop.f32.mrf.mxu0
  %v894 = vadd.f32 %v789, %v893
  %v895 = vpop.f32.mrf.mxu0
  %896 = vmatprep.mubr.f32.mxu0 0.0
  %897 = vmatmul.mubr.f32.gmra.mxu0 %v698
  %v898 = vpop.f32.mrf.mxu0
  %v899 = vadd.f32 %v794, %v898
  %v900 = vpop.f32.mrf.mxu0
  %901 = vmatprep.mubr.f32.mxu0 0.0
  %902 = vmatmul.mubr.f32.gmra.mxu0 %v701
  %v903 = vpop.f32.mrf.mxu0
  %v904 = vadd.f32 %v799, %v903
  %v905 = vpop.f32.mrf.mxu0
  %906 = vmatprep.mubr.f32.mxu0 0.0
  %907 = vmatmul.mubr.f32.gmra.mxu0 %v704
  %v908 = vpop.f32.mrf.mxu0
  %v909 = vadd.f32 %v804, %v908
  %v910 = vpop.f32.mrf.mxu0
  %911 = vmatprep.mubr.f32.mxu0 0.0
  %912 = vmatmul.mubr.f32.gmra.mxu0 %v707
  %v913 = vpop.f32.mrf.mxu0
  %v914 = vadd.f32 %v809, %v913
  %v915 = vpop.f32.mrf.mxu0
  %916 = vmatprep.mubr.f32.mxu0 0.0
  %917 = vmatmul.mubr.f32.gmra.mxu0 %v710
  %v918 = vpop.f32.mrf.mxu0
  %v919 = vadd.f32 %v814, %v918
  %v920 = vpop.f32.mrf.mxu0
  %921 = vdwg.mxu0
  %v922 = vmax.f32 %v884, 0.0
  %v923 = vmax.f32 %v889, 0.0
  %v924 = vmax.f32 %v894, 0.0
  %v925 = vmax.f32 %v899, 0.0
  %v926 = vmax.f32 %v904, 0.0
  %v927 = vmax.f32 %v909, 0.0
  %v928 = vmax.f32 %v914, 0.0
  %v929 = vmax.f32 %v919, 0.0
  %938 = vrot.lane.b32.xlu0 %v922, 8
  %v939 = vpop.permute.xlu0 %938
  %940 = vrot.lane.b32.xlu0 %v923, 8
  %v941 = vpop.permute.xlu0 %940
  %942 = vrot.lane.b32.xlu0 %v924, 8
  %v943 = vpop.permute.xlu0 %942
  %944 = vrot.lane.b32.xlu0 %v925, 8
  %v945 = vpop.permute.xlu0 %944
  %946 = vrot.lane.b32.xlu0 %v926, 8
  %v947 = vpop.permute.xlu0 %946
  %948 = vrot.lane.b32.xlu0 %v927, 8
  %v949 = vpop.permute.xlu0 %948
  %950 = vrot.lane.b32.xlu0 %v928, 8
  %v951 = vpop.permute.xlu0 %950
  %952 = vrot.lane.b32.xlu0 %v929, 8
  %v953 = vpop.permute.xlu0 %952
  %962 = vst.msk [vmem:[#allocation3] sm:$0xff] %vm148, %v939
  %963 = vst.msk [vmem:[#allocation3 + $0x8] sm:$0xff] %vm150, %v939
  %964 = vst.msk [vmem:[#allocation3 + $0x10] sm:$0xff] %vm148, %v941
  %965 = vst.msk [vmem:[#allocation3 + $0x18] sm:$0xff] %vm150, %v941
  %966 = vst.msk [vmem:[#allocation3 + $0x20] sm:$0xff] %vm148, %v943
  %967 = vst.msk [vmem:[#allocation3 + $0x28] sm:$0xff] %vm150, %v943
  %968 = vst.msk [vmem:[#allocation3 + $0x30] sm:$0xff] %vm148, %v945
  %969 = vst.msk [vmem:[#allocation3 + $0x38] sm:$0xff] %vm150, %v945
  %970 = vst.msk [vmem:[#allocation3 + $0x40] sm:$0xff] %vm148, %v947
  %971 = vst.msk [vmem:[#allocation3 + $0x48] sm:$0xff] %vm150, %v947
  %972 = vst.msk [vmem:[#allocation3 + $0x50] sm:$0xff] %vm148, %v949
  %973 = vst.msk [vmem:[#allocation3 + $0x58] sm:$0xff] %vm150, %v949
  %974 = vst.msk [vmem:[#allocation3 + $0x60] sm:$0xff] %vm148, %v951
  %975 = vst.msk [vmem:[#allocation3 + $0x68] sm:$0xff] %vm150, %v951
  %976 = vst.msk [vmem:[#allocation3 + $0x70] sm:$0xff] %vm148, %v953
  %977 = vst.msk [vmem:[#allocation3 + $0x78] sm:$0xff] %vm150, %v953
  %v978 = vld [vmem:[#allocation3] sm:$0xff]
  %v979 = vld [vmem:[#allocation3 + $0x10] sm:$0xff]
  %v980 = vld [vmem:[#allocation3 + $0x20] sm:$0xff]
  %v981 = vld [vmem:[#allocation3 + $0x30] sm:$0xff]
  %v982 = vld [vmem:[#allocation3 + $0x40] sm:$0xff]
  %v983 = vld [vmem:[#allocation3 + $0x50] sm:$0xff]
  %v984 = vld [vmem:[#allocation3 + $0x60] sm:$0xff]
  %v985 = vld [vmem:[#allocation3 + $0x70] sm:$0xff]
  %v986 = vmul.f32 %v978, %v81
  %v987 = vmul.f32 %v979, %v81
  %v988 = vmul.f32 %v980, %v81
  %v989 = vmul.f32 %v981, %v81
  %v990 = vmul.f32 %v982, %v81
  %v991 = vmul.f32 %v983, %v81
  %v992 = vmul.f32 %v984, %v81
  %v993 = vmul.f32 %v985, %v81
  %994 = vst [vmem:[#allocation5] sm:$0xff] %v986
  %995 = vst [vmem:[#allocation5 + $0x8] sm:$0xff] %v987
  %996 = vst [vmem:[#allocation5 + $0x10] sm:$0xff] %v988
  %997 = vst [vmem:[#allocation5 + $0x18] sm:$0xff] %v989
  %998 = vst [vmem:[#allocation5 + $0x20] sm:$0xff] %v990
  %999 = vst [vmem:[#allocation5 + $0x28] sm:$0xff] %v991
  %1000 = vst [vmem:[#allocation5 + $0x30] sm:$0xff] %v992
  %1001 = vst [vmem:[#allocation5 + $0x38] sm:$0xff] %v993
  %v1002 = vld [vmem:[#allocation3] sm:$0xff]
  %v1003 = vld [vmem:[#allocation3 + $0x8] sm:$0xff]
  %v1004 = vld [vmem:[#allocation3 + $0x10] sm:$0xff]
  %v1005 = vld [vmem:[#allocation3 + $0x18] sm:$0xff]
  %v1006 = vld [vmem:[#allocation3 + $0x20] sm:$0xff]
  %v1007 = vld [vmem:[#allocation3 + $0x28] sm:$0xff]
  %v1008 = vld [vmem:[#allocation3 + $0x30] sm:$0xff]
  %v1009 = vld [vmem:[#allocation3 + $0x38] sm:$0xff]
  %v1010 = vld [vmem:[#allocation3 + $0x40] sm:$0xff]
  %v1011 = vld [vmem:[#allocation3 + $0x48] sm:$0xff]
  %v1012 = vld [vmem:[#allocation3 + $0x50] sm:$0xff]
  %v1013 = vld [vmem:[#allocation3 + $0x58] sm:$0xff]
  %v1014 = vld [vmem:[#allocation3 + $0x60] sm:$0xff]
  %v1015 = vld [vmem:[#allocation3 + $0x68] sm:$0xff]
  %v1016 = vld [vmem:[#allocation3 + $0x70] sm:$0xff]
  %v1017 = vld [vmem:[#allocation3 + $0x78] sm:$0xff]
  %v1018 = vmul.f32 %v1002, %v180
  %v1019 = vmul.f32 %v1003, %v180
  %v1020 = vmul.f32 %v1004, %v180
  %v1021 = vmul.f32 %v1005, %v180
  %v1022 = vmul.f32 %v1006, %v180
  %v1023 = vmul.f32 %v1007, %v180
  %v1024 = vmul.f32 %v1008, %v180
  %v1025 = vmul.f32 %v1009, %v180
  %v1026 = vmul.f32 %v1010, %v180
  %v1027 = vmul.f32 %v1011, %v180
  %v1028 = vmul.f32 %v1012, %v180
  %v1029 = vmul.f32 %v1013, %v180
  %v1030 = vmul.f32 %v1014, %v180
  %v1031 = vmul.f32 %v1015, %v180
  %v1032 = vmul.f32 %v1016, %v180
  %v1033 = vmul.f32 %v1017, %v180
  %1050 = vrot.lane.b32.xlu0 %v1018, 127
  %v1051 = vpop.permute.xlu0 %1050
  %1052 = vrot.lane.b32.xlu0 %v1019, 127
  %v1053 = vpop.permute.xlu0 %1052
  %1054 = vrot.lane.b32.xlu0 %v1020, 127
  %v1055 = vpop.permute.xlu0 %1054
  %1056 = vrot.lane.b32.xlu0 %v1021, 127
  %v1057 = vpop.permute.xlu0 %1056
  %1058 = vrot.lane.b32.xlu0 %v1022, 127
  %v1059 = vpop.permute.xlu0 %1058
  %1060 = vrot.lane.b32.xlu0 %v1023, 127
  %v1061 = vpop.permute.xlu0 %1060
  %1062 = vrot.lane.b32.xlu0 %v1024, 127
  %v1063 = vpop.permute.xlu0 %1062
  %1064 = vrot.lane.b32.xlu0 %v1025, 127
  %v1065 = vpop.permute.xlu0 %1064
  %1066 = vrot.lane.b32.xlu0 %v1026, 127
  %v1067 = vpop.permute.xlu0 %1066
  %1068 = vrot.lane.b32.xlu0 %v1027, 127
  %v1069 = vpop.permute.xlu0 %1068
  %1070 = vrot.lane.b32.xlu0 %v1028, 127
  %v1071 = vpop.permute.xlu0 %1070
  %1072 = vrot.lane.b32.xlu0 %v1029, 127
  %v1073 = vpop.permute.xlu0 %1072
  %1074 = vrot.lane.b32.xlu0 %v1030, 127
  %v1075 = vpop.permute.xlu0 %1074
  %1076 = vrot.lane.b32.xlu0 %v1031, 127
  %v1077 = vpop.permute.xlu0 %1076
  %1078 = vrot.lane.b32.xlu0 %v1032, 127
  %v1079 = vpop.permute.xlu0 %1078
  %1080 = vrot.lane.b32.xlu0 %v1033, 127
  %v1081 = vpop.permute.xlu0 %1080
  %v1082 = vsel %vm214, %v1051, %v1053
  %v1083 = vsel %vm214, %v1055, %v1057
  %v1084 = vsel %vm214, %v1059, %v1061
  %v1085 = vsel %vm214, %v1063, %v1065
  %v1086 = vsel %vm214, %v1067, %v1069
  %v1087 = vsel %vm214, %v1071, %v1073
  %v1088 = vsel %vm214, %v1075, %v1077
  %v1089 = vsel %vm214, %v1079, %v1081
  %1098 = vst [vmem:[#allocation5 + $0x40] sm:$0xff] %v1082
  %1099 = vst [vmem:[#allocation5 + $0x48] sm:$0xff] %v1083
  %1100 = vst [vmem:[#allocation5 + $0x50] sm:$0xff] %v1084
  %1101 = vst [vmem:[#allocation5 + $0x58] sm:$0xff] %v1085
  %1102 = vst [vmem:[#allocation5 + $0x60] sm:$0xff] %v1086
  %1103 = vst [vmem:[#allocation5 + $0x68] sm:$0xff] %v1087
  %1104 = vst [vmem:[#allocation5 + $0x70] sm:$0xff] %v1088
  %1105 = vst [vmem:[#allocation5 + $0x78] sm:$0xff] %v1089
  %v1106 = vld [vmem:[#allocation3] sm:$0xff]
  %v1107 = vld [vmem:[#allocation3 + $0x8] sm:$0xff]
  %v1108 = vld [vmem:[#allocation3 + $0x10] sm:$0xff]
  %v1109 = vld [vmem:[#allocation3 + $0x18] sm:$0xff]
  %v1110 = vld [vmem:[#allocation3 + $0x20] sm:$0xff]
  %v1111 = vld [vmem:[#allocation3 + $0x28] sm:$0xff]
  %v1112 = vld [vmem:[#allocation3 + $0x30] sm:$0xff]
  %v1113 = vld [vmem:[#allocation3 + $0x38] sm:$0xff]
  %v1114 = vld [vmem:[#allocation3 + $0x40] sm:$0xff]
  %v1115 = vld [vmem:[#allocation3 + $0x48] sm:$0xff]
  %v1116 = vld [vmem:[#allocation3 + $0x50] sm:$0xff]
  %v1117 = vld [vmem:[#allocation3 + $0x58] sm:$0xff]
  %v1118 = vld [vmem:[#allocation3 + $0x60] sm:$0xff]
  %v1119 = vld [vmem:[#allocation3 + $0x68] sm:$0xff]
  %v1120 = vld [vmem:[#allocation3 + $0x70] sm:$0xff]
  %v1121 = vld [vmem:[#allocation3 + $0x78] sm:$0xff]
  %v1122 = vmul.f32 %v1106, %v237
  %v1123 = vmul.f32 %v1107, %v237
  %v1124 = vmul.f32 %v1108, %v237
  %v1125 = vmul.f32 %v1109, %v237
  %v1126 = vmul.f32 %v1110, %v237
  %v1127 = vmul.f32 %v1111, %v237
  %v1128 = vmul.f32 %v1112, %v237
  %v1129 = vmul.f32 %v1113, %v237
  %v1130 = vmul.f32 %v1114, %v237
  %v1131 = vmul.f32 %v1115, %v237
  %v1132 = vmul.f32 %v1116, %v237
  %v1133 = vmul.f32 %v1117, %v237
  %v1134 = vmul.f32 %v1118, %v237
  %v1135 = vmul.f32 %v1119, %v237
  %v1136 = vmul.f32 %v1120, %v237
  %v1137 = vmul.f32 %v1121, %v237
  %1154 = vrot.lane.b32.xlu0 %v1122, 126
  %v1155 = vpop.permute.xlu0 %1154
  %1156 = vrot.lane.b32.xlu0 %v1123, 126
  %v1157 = vpop.permute.xlu0 %1156
  %1158 = vrot.lane.b32.xlu0 %v1124, 126
  %v1159 = vpop.permute.xlu0 %1158
  %1160 = vrot.lane.b32.xlu0 %v1125, 126
  %v1161 = vpop.permute.xlu0 %1160
  %1162 = vrot.lane.b32.xlu0 %v1126, 126
  %v1163 = vpop.permute.xlu0 %1162
  %1164 = vrot.lane.b32.xlu0 %v1127, 126
  %v1165 = vpop.permute.xlu0 %1164
  %1166 = vrot.lane.b32.xlu0 %v1128, 126
  %v1167 = vpop.permute.xlu0 %1166
  %1168 = vrot.lane.b32.xlu0 %v1129, 126
  %v1169 = vpop.permute.xlu0 %1168
  %1170 = vrot.lane.b32.xlu0 %v1130, 126
  %v1171 = vpop.permute.xlu0 %1170
  %1172 = vrot.lane.b32.xlu0 %v1131, 126
  %v1173 = vpop.permute.xlu0 %1172
  %1174 = vrot.lane.b32.xlu0 %v1132, 126
  %v1175 = vpop.permute.xlu0 %1174
  %1176 = vrot.lane.b32.xlu0 %v1133, 126
  %v1177 = vpop.permute.xlu0 %1176
  %1178 = vrot.lane.b32.xlu0 %v1134, 126
  %v1179 = vpop.permute.xlu0 %1178
  %1180 = vrot.lane.b32.xlu0 %v1135, 126
  %v1181 = vpop.permute.xlu0 %1180
  %1182 = vrot.lane.b32.xlu0 %v1136, 126
  %v1183 = vpop.permute.xlu0 %1182
  %1184 = vrot.lane.b32.xlu0 %v1137, 126
  %v1185 = vpop.permute.xlu0 %1184
  %v1186 = vsel %vm271, %v1155, %v1157
  %v1187 = vsel %vm271, %v1159, %v1161
  %v1188 = vsel %vm271, %v1163, %v1165
  %v1189 = vsel %vm271, %v1167, %v1169
  %v1190 = vsel %vm271, %v1171, %v1173
  %v1191 = vsel %vm271, %v1175, %v1177
  %v1192 = vsel %vm271, %v1179, %v1181
  %v1193 = vsel %vm271, %v1183, %v1185
  %1202 = vst [vmem:[#allocation5 + $0x80] sm:$0xff] %v1186
  %1203 = vst [vmem:[#allocation5 + $0x88] sm:$0xff] %v1187
  %1204 = vst [vmem:[#allocation5 + $0x90] sm:$0xff] %v1188
  %1205 = vst [vmem:[#allocation5 + $0x98] sm:$0xff] %v1189
  %1206 = vst [vmem:[#allocation5 + $0xa0] sm:$0xff] %v1190
  %1207 = vst [vmem:[#allocation5 + $0xa8] sm:$0xff] %v1191
  %1208 = vst [vmem:[#allocation5 + $0xb0] sm:$0xff] %v1192
  %1209 = vst [vmem:[#allocation5 + $0xb8] sm:$0xff] %v1193
  %v1210 = vld [vmem:[#allocation3] sm:$0xff]
  %v1211 = vld [vmem:[#allocation3 + $0x8] sm:$0xff]
  %v1212 = vld [vmem:[#allocation3 + $0x10] sm:$0xff]
  %v1213 = vld [vmem:[#allocation3 + $0x18] sm:$0xff]
  %v1214 = vld [vmem:[#allocation3 + $0x20] sm:$0xff]
  %v1215 = vld [vmem:[#allocation3 + $0x28] sm:$0xff]
  %v1216 = vld [vmem:[#allocation3 + $0x30] sm:$0xff]
  %v1217 = vld [vmem:[#allocation3 + $0x38] sm:$0xff]
  %v1218 = vld [vmem:[#allocation3 + $0x40] sm:$0xff]
  %v1219 = vld [vmem:[#allocation3 + $0x48] sm:$0xff]
  %v1220 = vld [vmem:[#allocation3 + $0x50] sm:$0xff]
  %v1221 = vld [vmem:[#allocation3 + $0x58] sm:$0xff]
  %v1222 = vld [vmem:[#allocation3 + $0x60] sm:$0xff]
  %v1223 = vld [vmem:[#allocation3 + $0x68] sm:$0xff]
  %v1224 = vld [vmem:[#allocation3 + $0x70] sm:$0xff]
  %v1225 = vld [vmem:[#allocation3 + $0x78] sm:$0xff]
  %v1226 = vmul.f32 %v1210, %v294
  %v1227 = vmul.f32 %v1211, %v294
  %v1228 = vmul.f32 %v1212, %v294
  %v1229 = vmul.f32 %v1213, %v294
  %v1230 = vmul.f32 %v1214, %v294
  %v1231 = vmul.f32 %v1215, %v294
  %v1232 = vmul.f32 %v1216, %v294
  %v1233 = vmul.f32 %v1217, %v294
  %v1234 = vmul.f32 %v1218, %v294
  %v1235 = vmul.f32 %v1219, %v294
  %v1236 = vmul.f32 %v1220, %v294
  %v1237 = vmul.f32 %v1221, %v294
  %v1238 = vmul.f32 %v1222, %v294
  %v1239 = vmul.f32 %v1223, %v294
  %v1240 = vmul.f32 %v1224, %v294
  %v1241 = vmul.f32 %v1225, %v294
  %1258 = vrot.lane.b32.xlu0 %v1226, 121
  %v1259 = vpop.permute.xlu0 %1258
  %1260 = vrot.lane.b32.xlu0 %v1227, 121
  %v1261 = vpop.permute.xlu0 %1260
  %1262 = vrot.lane.b32.xlu0 %v1228, 121
  %v1263 = vpop.permute.xlu0 %1262
  %1264 = vrot.lane.b32.xlu0 %v1229, 121
  %v1265 = vpop.permute.xlu0 %1264
  %1266 = vrot.lane.b32.xlu0 %v1230, 121
  %v1267 = vpop.permute.xlu0 %1266
  %1268 = vrot.lane.b32.xlu0 %v1231, 121
  %v1269 = vpop.permute.xlu0 %1268
  %1270 = vrot.lane.b32.xlu0 %v1232, 121
  %v1271 = vpop.permute.xlu0 %1270
  %1272 = vrot.lane.b32.xlu0 %v1233, 121
  %v1273 = vpop.permute.xlu0 %1272
  %1274 = vrot.lane.b32.xlu0 %v1234, 121
  %v1275 = vpop.permute.xlu0 %1274
  %1276 = vrot.lane.b32.xlu0 %v1235, 121
  %v1277 = vpop.permute.xlu0 %1276
  %1278 = vrot.lane.b32.xlu0 %v1236, 121
  %v1279 = vpop.permute.xlu0 %1278
  %1280 = vrot.lane.b32.xlu0 %v1237, 121
  %v1281 = vpop.permute.xlu0 %1280
  %1282 = vrot.lane.b32.xlu0 %v1238, 121
  %v1283 = vpop.permute.xlu0 %1282
  %1284 = vrot.lane.b32.xlu0 %v1239, 121
  %v1285 = vpop.permute.xlu0 %1284
  %1286 = vrot.lane.b32.xlu0 %v1240, 121
  %v1287 = vpop.permute.xlu0 %1286
  %1288 = vrot.lane.b32.xlu0 %v1241, 121
  %v1289 = vpop.permute.xlu0 %1288
  %v1290 = vsel %vm328, %v1259, %v1261
  %v1291 = vsel %vm328, %v1263, %v1265
  %v1292 = vsel %vm328, %v1267, %v1269
  %v1293 = vsel %vm328, %v1271, %v1273
  %v1294 = vsel %vm328, %v1275, %v1277
  %v1295 = vsel %vm328, %v1279, %v1281
  %v1296 = vsel %vm328, %v1283, %v1285
  %v1297 = vsel %vm328, %v1287, %v1289
  %1306 = vst [vmem:[#allocation5 + $0xc0] sm:$0xff] %v1290
  %1307 = vst [vmem:[#allocation5 + $0xc8] sm:$0xff] %v1291
  %1308 = vst [vmem:[#allocation5 + $0xd0] sm:$0xff] %v1292
  %1309 = vst [vmem:[#allocation5 + $0xd8] sm:$0xff] %v1293
  %1310 = vst [vmem:[#allocation5 + $0xe0] sm:$0xff] %v1294
  %1311 = vst [vmem:[#allocation5 + $0xe8] sm:$0xff] %v1295
  %1312 = vst [vmem:[#allocation5 + $0xf0] sm:$0xff] %v1296
  %1313 = vst [vmem:[#allocation5 + $0xf8] sm:$0xff] %v1297
  %v1314 = vld [vmem:[#allocation3] sm:$0xff]
  %v1315 = vld [vmem:[#allocation3 + $0x8] sm:$0xff]
  %v1316 = vld [vmem:[#allocation3 + $0x10] sm:$0xff]
  %v1317 = vld [vmem:[#allocation3 + $0x18] sm:$0xff]
  %v1318 = vld [vmem:[#allocation3 + $0x20] sm:$0xff]
  %v1319 = vld [vmem:[#allocation3 + $0x28] sm:$0xff]
  %v1320 = vld [vmem:[#allocation3 + $0x30] sm:$0xff]
  %v1321 = vld [vmem:[#allocation3 + $0x38] sm:$0xff]
  %v1322 = vld [vmem:[#allocation3 + $0x40] sm:$0xff]
  %v1323 = vld [vmem:[#allocation3 + $0x48] sm:$0xff]
  %v1324 = vld [vmem:[#allocation3 + $0x50] sm:$0xff]
  %v1325 = vld [vmem:[#allocation3 + $0x58] sm:$0xff]
  %v1326 = vld [vmem:[#allocation3 + $0x60] sm:$0xff]
  %v1327 = vld [vmem:[#allocation3 + $0x68] sm:$0xff]
  %v1328 = vld [vmem:[#allocation3 + $0x70] sm:$0xff]
  %v1329 = vld [vmem:[#allocation3 + $0x78] sm:$0xff]
  %v1330 = vmul.f32 %v1314, %v351
  %v1331 = vmul.f32 %v1315, %v351
  %v1332 = vmul.f32 %v1316, %v351
  %v1333 = vmul.f32 %v1317, %v351
  %v1334 = vmul.f32 %v1318, %v351
  %v1335 = vmul.f32 %v1319, %v351
  %v1336 = vmul.f32 %v1320, %v351
  %v1337 = vmul.f32 %v1321, %v351
  %v1338 = vmul.f32 %v1322, %v351
  %v1339 = vmul.f32 %v1323, %v351
  %v1340 = vmul.f32 %v1324, %v351
  %v1341 = vmul.f32 %v1325, %v351
  %v1342 = vmul.f32 %v1326, %v351
  %v1343 = vmul.f32 %v1327, %v351
  %v1344 = vmul.f32 %v1328, %v351
  %v1345 = vmul.f32 %v1329, %v351
  %1362 = vrot.lane.b32.xlu0 %v1330, 120
  %v1363 = vpop.permute.xlu0 %1362
  %1364 = vrot.lane.b32.xlu0 %v1331, 120
  %v1365 = vpop.permute.xlu0 %1364
  %1366 = vrot.lane.b32.xlu0 %v1332, 120
  %v1367 = vpop.permute.xlu0 %1366
  %1368 = vrot.lane.b32.xlu0 %v1333, 120
  %v1369 = vpop.permute.xlu0 %1368
  %1370 = vrot.lane.b32.xlu0 %v1334, 120
  %v1371 = vpop.permute.xlu0 %1370
  %1372 = vrot.lane.b32.xlu0 %v1335, 120
  %v1373 = vpop.permute.xlu0 %1372
  %1374 = vrot.lane.b32.xlu0 %v1336, 120
  %v1375 = vpop.permute.xlu0 %1374
  %1376 = vrot.lane.b32.xlu0 %v1337, 120
  %v1377 = vpop.permute.xlu0 %1376
  %1378 = vrot.lane.b32.xlu0 %v1338, 120
  %v1379 = vpop.permute.xlu0 %1378
  %1380 = vrot.lane.b32.xlu0 %v1339, 120
  %v1381 = vpop.permute.xlu0 %1380
  %1382 = vrot.lane.b32.xlu0 %v1340, 120
  %v1383 = vpop.permute.xlu0 %1382
  %1384 = vrot.lane.b32.xlu0 %v1341, 120
  %v1385 = vpop.permute.xlu0 %1384
  %1386 = vrot.lane.b32.xlu0 %v1342, 120
  %v1387 = vpop.permute.xlu0 %1386
  %1388 = vrot.lane.b32.xlu0 %v1343, 120
  %v1389 = vpop.permute.xlu0 %1388
  %1390 = vrot.lane.b32.xlu0 %v1344, 120
  %v1391 = vpop.permute.xlu0 %1390
  %1392 = vrot.lane.b32.xlu0 %v1345, 120
  %v1393 = vpop.permute.xlu0 %1392
  %v1394 = vsel %vm385, %v1363, %v1365
  %v1395 = vsel %vm385, %v1367, %v1369
  %v1396 = vsel %vm385, %v1371, %v1373
  %v1397 = vsel %vm385, %v1375, %v1377
  %v1398 = vsel %vm385, %v1379, %v1381
  %v1399 = vsel %vm385, %v1383, %v1385
  %v1400 = vsel %vm385, %v1387, %v1389
  %v1401 = vsel %vm385, %v1391, %v1393
  %1410 = vst [vmem:[#allocation5 + $0x100] sm:$0xff] %v1394
  %1411 = vst [vmem:[#allocation5 + $0x108] sm:$0xff] %v1395
  %1412 = vst [vmem:[#allocation5 + $0x110] sm:$0xff] %v1396
  %1413 = vst [vmem:[#allocation5 + $0x118] sm:$0xff] %v1397
  %1414 = vst [vmem:[#allocation5 + $0x120] sm:$0xff] %v1398
  %1415 = vst [vmem:[#allocation5 + $0x128] sm:$0xff] %v1399
  %1416 = vst [vmem:[#allocation5 + $0x130] sm:$0xff] %v1400
  %1417 = vst [vmem:[#allocation5 + $0x138] sm:$0xff] %v1401
  %v1418 = vld [vmem:[#allocation3] sm:$0xff]
  %v1419 = vld [vmem:[#allocation3 + $0x8] sm:$0xff]
  %v1420 = vld [vmem:[#allocation3 + $0x10] sm:$0xff]
  %v1421 = vld [vmem:[#allocation3 + $0x18] sm:$0xff]
  %v1422 = vld [vmem:[#allocation3 + $0x20] sm:$0xff]
  %v1423 = vld [vmem:[#allocation3 + $0x28] sm:$0xff]
  %v1424 = vld [vmem:[#allocation3 + $0x30] sm:$0xff]
  %v1425 = vld [vmem:[#allocation3 + $0x38] sm:$0xff]
  %v1426 = vld [vmem:[#allocation3 + $0x40] sm:$0xff]
  %v1427 = vld [vmem:[#allocation3 + $0x48] sm:$0xff]
  %v1428 = vld [vmem:[#allocation3 + $0x50] sm:$0xff]
  %v1429 = vld [vmem:[#allocation3 + $0x58] sm:$0xff]
  %v1430 = vld [vmem:[#allocation3 + $0x60] sm:$0xff]
  %v1431 = vld [vmem:[#allocation3 + $0x68] sm:$0xff]
  %v1432 = vld [vmem:[#allocation3 + $0x70] sm:$0xff]
  %v1433 = vld [vmem:[#allocation3 + $0x78] sm:$0xff]
  %v1434 = vmul.f32 %v1418, %v408
  %v1435 = vmul.f32 %v1419, %v408
  %v1436 = vmul.f32 %v1420, %v408
  %v1437 = vmul.f32 %v1421, %v408
  %v1438 = vmul.f32 %v1422, %v408
  %v1439 = vmul.f32 %v1423, %v408
  %v1440 = vmul.f32 %v1424, %v408
  %v1441 = vmul.f32 %v1425, %v408
  %v1442 = vmul.f32 %v1426, %v408
  %v1443 = vmul.f32 %v1427, %v408
  %v1444 = vmul.f32 %v1428, %v408
  %v1445 = vmul.f32 %v1429, %v408
  %v1446 = vmul.f32 %v1430, %v408
  %v1447 = vmul.f32 %v1431, %v408
  %v1448 = vmul.f32 %v1432, %v408
  %v1449 = vmul.f32 %v1433, %v408
  %1466 = vrot.lane.b32.xlu0 %v1434, 119
  %v1467 = vpop.permute.xlu0 %1466
  %1468 = vrot.lane.b32.xlu0 %v1435, 119
  %v1469 = vpop.permute.xlu0 %1468
  %1470 = vrot.lane.b32.xlu0 %v1436, 119
  %v1471 = vpop.permute.xlu0 %1470
  %1472 = vrot.lane.b32.xlu0 %v1437, 119
  %v1473 = vpop.permute.xlu0 %1472
  %1474 = vrot.lane.b32.xlu0 %v1438, 119
  %v1475 = vpop.permute.xlu0 %1474
  %1476 = vrot.lane.b32.xlu0 %v1439, 119
  %v1477 = vpop.permute.xlu0 %1476
  %1478 = vrot.lane.b32.xlu0 %v1440, 119
  %v1479 = vpop.permute.xlu0 %1478
  %1480 = vrot.lane.b32.xlu0 %v1441, 119
  %v1481 = vpop.permute.xlu0 %1480
  %1482 = vrot.lane.b32.xlu0 %v1442, 119
  %v1483 = vpop.permute.xlu0 %1482
  %1484 = vrot.lane.b32.xlu0 %v1443, 119
  %v1485 = vpop.permute.xlu0 %1484
  %1486 = vrot.lane.b32.xlu0 %v1444, 119
  %v1487 = vpop.permute.xlu0 %1486
  %1488 = vrot.lane.b32.xlu0 %v1445, 119
  %v1489 = vpop.permute.xlu0 %1488
  %1490 = vrot.lane.b32.xlu0 %v1446, 119
  %v1491 = vpop.permute.xlu0 %1490
  %1492 = vrot.lane.b32.xlu0 %v1447, 119
  %v1493 = vpop.permute.xlu0 %1492
  %1494 = vrot.lane.b32.xlu0 %v1448, 119
  %v1495 = vpop.permute.xlu0 %1494
  %1496 = vrot.lane.b32.xlu0 %v1449, 119
  %v1497 = vpop.permute.xlu0 %1496
  %v1498 = vsel %vm442, %v1467, %v1469
  %v1499 = vsel %vm442, %v1471, %v1473
  %v1500 = vsel %vm442, %v1475, %v1477
  %v1501 = vsel %vm442, %v1479, %v1481
  %v1502 = vsel %vm442, %v1483, %v1485
  %v1503 = vsel %vm442, %v1487, %v1489
  %v1504 = vsel %vm442, %v1491, %v1493
  %v1505 = vsel %vm442, %v1495, %v1497
  %1514 = vst [vmem:[#allocation5 + $0x140] sm:$0xff] %v1498
  %1515 = vst [vmem:[#allocation5 + $0x148] sm:$0xff] %v1499
  %1516 = vst [vmem:[#allocation5 + $0x150] sm:$0xff] %v1500
  %1517 = vst [vmem:[#allocation5 + $0x158] sm:$0xff] %v1501
  %1518 = vst [vmem:[#allocation5 + $0x160] sm:$0xff] %v1502
  %1519 = vst [vmem:[#allocation5 + $0x168] sm:$0xff] %v1503
  %1520 = vst [vmem:[#allocation5 + $0x170] sm:$0xff] %v1504
  %1521 = vst [vmem:[#allocation5 + $0x178] sm:$0xff] %v1505
  %v1522 = vld [vmem:[#allocation3] sm:$0xff]
  %v1523 = vld [vmem:[#allocation3 + $0x8] sm:$0xff]
  %v1524 = vld [vmem:[#allocation3 + $0x10] sm:$0xff]
  %v1525 = vld [vmem:[#allocation3 + $0x18] sm:$0xff]
  %v1526 = vld [vmem:[#allocation3 + $0x20] sm:$0xff]
  %v1527 = vld [vmem:[#allocation3 + $0x28] sm:$0xff]
  %v1528 = vld [vmem:[#allocation3 + $0x30] sm:$0xff]
  %v1529 = vld [vmem:[#allocation3 + $0x38] sm:$0xff]
  %v1530 = vld [vmem:[#allocation3 + $0x40] sm:$0xff]
  %v1531 = vld [vmem:[#allocation3 + $0x48] sm:$0xff]
  %v1532 = vld [vmem:[#allocation3 + $0x50] sm:$0xff]
  %v1533 = vld [vmem:[#allocation3 + $0x58] sm:$0xff]
  %v1534 = vld [vmem:[#allocation3 + $0x60] sm:$0xff]
  %v1535 = vld [vmem:[#allocation3 + $0x68] sm:$0xff]
  %v1536 = vld [vmem:[#allocation3 + $0x70] sm:$0xff]
  %v1537 = vld [vmem:[#allocation3 + $0x78] sm:$0xff]
  %v1538 = vmul.f32 %v1522, %v465
  %v1539 = vmul.f32 %v1523, %v465
  %v1540 = vmul.f32 %v1524, %v465
  %v1541 = vmul.f32 %v1525, %v465
  %v1542 = vmul.f32 %v1526, %v465
  %v1543 = vmul.f32 %v1527, %v465
  %v1544 = vmul.f32 %v1528, %v465
  %v1545 = vmul.f32 %v1529, %v465
  %v1546 = vmul.f32 %v1530, %v465
  %v1547 = vmul.f32 %v1531, %v465
  %v1548 = vmul.f32 %v1532, %v465
  %v1549 = vmul.f32 %v1533, %v465
  %v1550 = vmul.f32 %v1534, %v465
  %v1551 = vmul.f32 %v1535, %v465
  %v1552 = vmul.f32 %v1536, %v465
  %v1553 = vmul.f32 %v1537, %v465
  %1570 = vrot.lane.b32.xlu0 %v1538, 114
  %v1571 = vpop.permute.xlu0 %1570
  %1572 = vrot.lane.b32.xlu0 %v1539, 114
  %v1573 = vpop.permute.xlu0 %1572
  %1574 = vrot.lane.b32.xlu0 %v1540, 114
  %v1575 = vpop.permute.xlu0 %1574
  %1576 = vrot.lane.b32.xlu0 %v1541, 114
  %v1577 = vpop.permute.xlu0 %1576
  %1578 = vrot.lane.b32.xlu0 %v1542, 114
  %v1579 = vpop.permute.xlu0 %1578
  %1580 = vrot.lane.b32.xlu0 %v1543, 114
  %v1581 = vpop.permute.xlu0 %1580
  %1582 = vrot.lane.b32.xlu0 %v1544, 114
  %v1583 = vpop.permute.xlu0 %1582
  %1584 = vrot.lane.b32.xlu0 %v1545, 114
  %v1585 = vpop.permute.xlu0 %1584
  %1586 = vrot.lane.b32.xlu0 %v1546, 114
  %v1587 = vpop.permute.xlu0 %1586
  %1588 = vrot.lane.b32.xlu0 %v1547, 114
  %v1589 = vpop.permute.xlu0 %1588
  %1590 = vrot.lane.b32.xlu0 %v1548, 114
  %v1591 = vpop.permute.xlu0 %1590
  %1592 = vrot.lane.b32.xlu0 %v1549, 114
  %v1593 = vpop.permute.xlu0 %1592
  %1594 = vrot.lane.b32.xlu0 %v1550, 114
  %v1595 = vpop.permute.xlu0 %1594
  %1596 = vrot.lane.b32.xlu0 %v1551, 114
  %v1597 = vpop.permute.xlu0 %1596
  %1598 = vrot.lane.b32.xlu0 %v1552, 114
  %v1599 = vpop.permute.xlu0 %1598
  %1600 = vrot.lane.b32.xlu0 %v1553, 114
  %v1601 = vpop.permute.xlu0 %1600
  %v1602 = vsel %vm499, %v1571, %v1573
  %v1603 = vsel %vm499, %v1575, %v1577
  %v1604 = vsel %vm499, %v1579, %v1581
  %v1605 = vsel %vm499, %v1583, %v1585
  %v1606 = vsel %vm499, %v1587, %v1589
  %v1607 = vsel %vm499, %v1591, %v1593
  %v1608 = vsel %vm499, %v1595, %v1597
  %v1609 = vsel %vm499, %v1599, %v1601
  %1618 = vst [vmem:[#allocation5 + $0x180] sm:$0xff] %v1602
  %1619 = vst [vmem:[#allocation5 + $0x188] sm:$0xff] %v1603
  %1620 = vst [vmem:[#allocation5 + $0x190] sm:$0xff] %v1604
  %1621 = vst [vmem:[#allocation5 + $0x198] sm:$0xff] %v1605
  %1622 = vst [vmem:[#allocation5 + $0x1a0] sm:$0xff] %v1606
  %1623 = vst [vmem:[#allocation5 + $0x1a8] sm:$0xff] %v1607
  %1624 = vst [vmem:[#allocation5 + $0x1b0] sm:$0xff] %v1608
  %1625 = vst [vmem:[#allocation5 + $0x1b8] sm:$0xff] %v1609
  %v1626 = vld [vmem:[#allocation3] sm:$0xff]
  %v1627 = vld [vmem:[#allocation3 + $0x8] sm:$0xff]
  %v1628 = vld [vmem:[#allocation3 + $0x10] sm:$0xff]
  %v1629 = vld [vmem:[#allocation3 + $0x18] sm:$0xff]
  %v1630 = vld [vmem:[#allocation3 + $0x20] sm:$0xff]
  %v1631 = vld [vmem:[#allocation3 + $0x28] sm:$0xff]
  %v1632 = vld [vmem:[#allocation3 + $0x30] sm:$0xff]
  %v1633 = vld [vmem:[#allocation3 + $0x38] sm:$0xff]
  %v1634 = vld [vmem:[#allocation3 + $0x40] sm:$0xff]
  %v1635 = vld [vmem:[#allocation3 + $0x48] sm:$0xff]
  %v1636 = vld [vmem:[#allocation3 + $0x50] sm:$0xff]
  %v1637 = vld [vmem:[#allocation3 + $0x58] sm:$0xff]
  %v1638 = vld [vmem:[#allocation3 + $0x60] sm:$0xff]
  %v1639 = vld [vmem:[#allocation3 + $0x68] sm:$0xff]
  %v1640 = vld [vmem:[#allocation3 + $0x70] sm:$0xff]
  %v1641 = vld [vmem:[#allocation3 + $0x78] sm:$0xff]
  %v1642 = vmul.f32 %v1626, %v522
  %v1643 = vmul.f32 %v1627, %v522
  %v1644 = vmul.f32 %v1628, %v522
  %v1645 = vmul.f32 %v1629, %v522
  %v1646 = vmul.f32 %v1630, %v522
  %v1647 = vmul.f32 %v1631, %v522
  %v1648 = vmul.f32 %v1632, %v522
  %v1649 = vmul.f32 %v1633, %v522
  %v1650 = vmul.f32 %v1634, %v522
  %v1651 = vmul.f32 %v1635, %v522
  %v1652 = vmul.f32 %v1636, %v522
  %v1653 = vmul.f32 %v1637, %v522
  %v1654 = vmul.f32 %v1638, %v522
  %v1655 = vmul.f32 %v1639, %v522
  %v1656 = vmul.f32 %v1640, %v522
  %v1657 = vmul.f32 %v1641, %v522
  %1674 = vrot.lane.b32.xlu0 %v1642, 113
  %v1675 = vpop.permute.xlu0 %1674
  %1676 = vrot.lane.b32.xlu0 %v1643, 113
  %v1677 = vpop.permute.xlu0 %1676
  %1678 = vrot.lane.b32.xlu0 %v1644, 113
  %v1679 = vpop.permute.xlu0 %1678
  %1680 = vrot.lane.b32.xlu0 %v1645, 113
  %v1681 = vpop.permute.xlu0 %1680
  %1682 = vrot.lane.b32.xlu0 %v1646, 113
  %v1683 = vpop.permute.xlu0 %1682
  %1684 = vrot.lane.b32.xlu0 %v1647, 113
  %v1685 = vpop.permute.xlu0 %1684
  %1686 = vrot.lane.b32.xlu0 %v1648, 113
  %v1687 = vpop.permute.xlu0 %1686
  %1688 = vrot.lane.b32.xlu0 %v1649, 113
  %v1689 = vpop.permute.xlu0 %1688
  %1690 = vrot.lane.b32.xlu0 %v1650, 113
  %v1691 = vpop.permute.xlu0 %1690
  %1692 = vrot.lane.b32.xlu0 %v1651, 113
  %v1693 = vpop.permute.xlu0 %1692
  %1694 = vrot.lane.b32.xlu0 %v1652, 113
  %v1695 = vpop.permute.xlu0 %1694
  %1696 = vrot.lane.b32.xlu0 %v1653, 113
  %v1697 = vpop.permute.xlu0 %1696
  %1698 = vrot.lane.b32.xlu0 %v1654, 113
  %v1699 = vpop.permute.xlu0 %1698
  %1700 = vrot.lane.b32.xlu0 %v1655, 113
  %v1701 = vpop.permute.xlu0 %1700
  %1702 = vrot.lane.b32.xlu0 %v1656, 113
  %v1703 = vpop.permute.xlu0 %1702
  %1704 = vrot.lane.b32.xlu0 %v1657, 113
  %v1705 = vpop.permute.xlu0 %1704
  %v1706 = vsel %vm556, %v1675, %v1677
  %v1707 = vsel %vm556, %v1679, %v1681
  %v1708 = vsel %vm556, %v1683, %v1685
  %v1709 = vsel %vm556, %v1687, %v1689
  %v1710 = vsel %vm556, %v1691, %v1693
  %v1711 = vsel %vm556, %v1695, %v1697
  %v1712 = vsel %vm556, %v1699, %v1701
  %v1713 = vsel %vm556, %v1703, %v1705
  %1722 = vst [vmem:[#allocation5 + $0x1c0] sm:$0xff] %v1706
  %1723 = vst [vmem:[#allocation5 + $0x1c8] sm:$0xff] %v1707
  %1724 = vst [vmem:[#allocation5 + $0x1d0] sm:$0xff] %v1708
  %1725 = vst [vmem:[#allocation5 + $0x1d8] sm:$0xff] %v1709
  %1726 = vst [vmem:[#allocation5 + $0x1e0] sm:$0xff] %v1710
  %1727 = vst [vmem:[#allocation5 + $0x1e8] sm:$0xff] %v1711
  %1728 = vst [vmem:[#allocation5 + $0x1f0] sm:$0xff] %v1712
  %1729 = vst [vmem:[#allocation5 + $0x1f8] sm:$0xff] %v1713
  %v1730 = vld [vmem:[#allocation3] sm:$0xff]
  %v1731 = vld [vmem:[#allocation3 + $0x8] sm:$0xff]
  %v1732 = vld [vmem:[#allocation3 + $0x10] sm:$0xff]
  %v1733 = vld [vmem:[#allocation3 + $0x18] sm:$0xff]
  %v1734 = vld [vmem:[#allocation3 + $0x20] sm:$0xff]
  %v1735 = vld [vmem:[#allocation3 + $0x28] sm:$0xff]
  %v1736 = vld [vmem:[#allocation3 + $0x30] sm:$0xff]
  %v1737 = vld [vmem:[#allocation3 + $0x38] sm:$0xff]
  %v1738 = vld [vmem:[#allocation3 + $0x40] sm:$0xff]
  %v1739 = vld [vmem:[#allocation3 + $0x48] sm:$0xff]
  %v1740 = vld [vmem:[#allocation3 + $0x50] sm:$0xff]
  %v1741 = vld [vmem:[#allocation3 + $0x58] sm:$0xff]
  %v1742 = vld [vmem:[#allocation3 + $0x60] sm:$0xff]
  %v1743 = vld [vmem:[#allocation3 + $0x68] sm:$0xff]
  %v1744 = vld [vmem:[#allocation3 + $0x70] sm:$0xff]
  %v1745 = vld [vmem:[#allocation3 + $0x78] sm:$0xff]
  %v1746 = vmul.f32 %v1730, %v579
  %v1747 = vmul.f32 %v1731, %v579
  %v1748 = vmul.f32 %v1732, %v579
  %v1749 = vmul.f32 %v1733, %v579
  %v1750 = vmul.f32 %v1734, %v579
  %v1751 = vmul.f32 %v1735, %v579
  %v1752 = vmul.f32 %v1736, %v579
  %v1753 = vmul.f32 %v1737, %v579
  %v1754 = vmul.f32 %v1738, %v579
  %v1755 = vmul.f32 %v1739, %v579
  %v1756 = vmul.f32 %v1740, %v579
  %v1757 = vmul.f32 %v1741, %v579
  %v1758 = vmul.f32 %v1742, %v579
  %v1759 = vmul.f32 %v1743, %v579
  %v1760 = vmul.f32 %v1744, %v579
  %v1761 = vmul.f32 %v1745, %v579
  %1778 = vrot.lane.b32.xlu0 %v1746, 112
  %v1779 = vpop.permute.xlu0 %1778
  %1780 = vrot.lane.b32.xlu0 %v1747, 112
  %v1781 = vpop.permute.xlu0 %1780
  %1782 = vrot.lane.b32.xlu0 %v1748, 112
  %v1783 = vpop.permute.xlu0 %1782
  %1784 = vrot.lane.b32.xlu0 %v1749, 112
  %v1785 = vpop.permute.xlu0 %1784
  %1786 = vrot.lane.b32.xlu0 %v1750, 112
  %v1787 = vpop.permute.xlu0 %1786
  %1788 = vrot.lane.b32.xlu0 %v1751, 112
  %v1789 = vpop.permute.xlu0 %1788
  %1790 = vrot.lane.b32.xlu0 %v1752, 112
  %v1791 = vpop.permute.xlu0 %1790
  %1792 = vrot.lane.b32.xlu0 %v1753, 112
  %v1793 = vpop.permute.xlu0 %1792
  %1794 = vrot.lane.b32.xlu0 %v1754, 112
  %v1795 = vpop.permute.xlu0 %1794
  %1796 = vrot.lane.b32.xlu0 %v1755, 112
  %v1797 = vpop.permute.xlu0 %1796
  %1798 = vrot.lane.b32.xlu0 %v1756, 112
  %v1799 = vpop.permute.xlu0 %1798
  %1800 = vrot.lane.b32.xlu0 %v1757, 112
  %v1801 = vpop.permute.xlu0 %1800
  %1802 = vrot.lane.b32.xlu0 %v1758, 112
  %v1803 = vpop.permute.xlu0 %1802
  %1804 = vrot.lane.b32.xlu0 %v1759, 112
  %v1805 = vpop.permute.xlu0 %1804
  %1806 = vrot.lane.b32.xlu0 %v1760, 112
  %v1807 = vpop.permute.xlu0 %1806
  %1808 = vrot.lane.b32.xlu0 %v1761, 112
  %v1809 = vpop.permute.xlu0 %1808
  %v1810 = vsel %vm613, %v1779, %v1781
  %v1811 = vsel %vm613, %v1783, %v1785
  %v1812 = vsel %vm613, %v1787, %v1789
  %v1813 = vsel %vm613, %v1791, %v1793
  %v1814 = vsel %vm613, %v1795, %v1797
  %v1815 = vsel %vm613, %v1799, %v1801
  %v1816 = vsel %vm613, %v1803, %v1805
  %v1817 = vsel %vm613, %v1807, %v1809
  %1826 = vst [vmem:[#allocation5 + $0x200] sm:$0xff] %v1810
  %1827 = vst [vmem:[#allocation5 + $0x208] sm:$0xff] %v1811
  %1828 = vst [vmem:[#allocation5 + $0x210] sm:$0xff] %v1812
  %1829 = vst [vmem:[#allocation5 + $0x218] sm:$0xff] %v1813
  %1830 = vst [vmem:[#allocation5 + $0x220] sm:$0xff] %v1814
  %1831 = vst [vmem:[#allocation5 + $0x228] sm:$0xff] %v1815
  %1832 = vst [vmem:[#allocation5 + $0x230] sm:$0xff] %v1816
  %1833 = vst [vmem:[#allocation5 + $0x238] sm:$0xff] %v1817
  %v1834 = vld [vmem:[%s2] sm:$0xff]
  %v1835 = vld [vmem:[%s2 + $0x8] sm:$0xff]
  %v1836 = vld [vmem:[%s2 + $0x10] sm:$0xff]
  %v1837 = vld [vmem:[%s2 + $0x18] sm:$0xff]
  %v1838 = vld [vmem:[%s2 + $0x20] sm:$0xff]
  %v1839 = vld [vmem:[%s2 + $0x28] sm:$0xff]
  %v1840 = vld [vmem:[%s2 + $0x30] sm:$0xff]
  %v1841 = vld [vmem:[%s2 + $0x38] sm:$0xff]
  %v1842 = vld [vmem:[%s2 + $0x40] sm:$0xff]
  %v1843 = vld [vmem:[%s2 + $0x48] sm:$0xff]
  %v1844 = vld [vmem:[#allocation5] sm:$0xff]
  %v1845 = vld [vmem:[#allocation5 + $0x8] sm:$0xff]
  %v1846 = vld [vmem:[#allocation5 + $0x10] sm:$0xff]
  %v1847 = vld [vmem:[#allocation5 + $0x18] sm:$0xff]
  %v1848 = vld [vmem:[#allocation5 + $0x20] sm:$0xff]
  %v1849 = vld [vmem:[#allocation5 + $0x28] sm:$0xff]
  %v1850 = vld [vmem:[#allocation5 + $0x30] sm:$0xff]
  %v1851 = vld [vmem:[#allocation5 + $0x38] sm:$0xff]
  %v1852 = vld [vmem:[#allocation5 + $0x40] sm:$0xff]
  %v1853 = vld [vmem:[#allocation5 + $0x48] sm:$0xff]
  %v1854 = vld [vmem:[#allocation5 + $0x50] sm:$0xff]
  %v1855 = vld [vmem:[#allocation5 + $0x58] sm:$0xff]
  %v1856 = vld [vmem:[#allocation5 + $0x60] sm:$0xff]
  %v1857 = vld [vmem:[#allocation5 + $0x68] sm:$0xff]
  %v1858 = vld [vmem:[#allocation5 + $0x70] sm:$0xff]
  %v1859 = vld [vmem:[#allocation5 + $0x78] sm:$0xff]
  %v1860 = vld [vmem:[#allocation5 + $0x80] sm:$0xff]
  %v1861 = vld [vmem:[#allocation5 + $0x88] sm:$0xff]
  %v1862 = vld [vmem:[#allocation5 + $0x90] sm:$0xff]
  %v1863 = vld [vmem:[#allocation5 + $0x98] sm:$0xff]
  %v1864 = vld [vmem:[#allocation5 + $0xa0] sm:$0xff]
  %v1865 = vld [vmem:[#allocation5 + $0xa8] sm:$0xff]
  %v1866 = vld [vmem:[#allocation5 + $0xb0] sm:$0xff]
  %v1867 = vld [vmem:[#allocation5 + $0xb8] sm:$0xff]
  %v1868 = vld [vmem:[#allocation5 + $0xc0] sm:$0xff]
  %v1869 = vld [vmem:[#allocation5 + $0xc8] sm:$0xff]
  %v1870 = vld [vmem:[#allocation5 + $0xd0] sm:$0xff]
  %v1871 = vld [vmem:[#allocation5 + $0xd8] sm:$0xff]
  %v1872 = vld [vmem:[#allocation5 + $0xe0] sm:$0xff]
  %v1873 = vld [vmem:[#allocation5 + $0xe8] sm:$0xff]
  %v1874 = vld [vmem:[#allocation5 + $0xf0] sm:$0xff]
  %v1875 = vld [vmem:[#allocation5 + $0xf8] sm:$0xff]
  %v1876 = vld [vmem:[#allocation5 + $0x100] sm:$0xff]
  %v1877 = vld [vmem:[#allocation5 + $0x108] sm:$0xff]
  %v1878 = vld [vmem:[#allocation5 + $0x110] sm:$0xff]
  %v1879 = vld [vmem:[#allocation5 + $0x118] sm:$0xff]
  %v1880 = vld [vmem:[#allocation5 + $0x120] sm:$0xff]
  %v1881 = vld [vmem:[#allocation5 + $0x128] sm:$0xff]
  %v1882 = vld [vmem:[#allocation5 + $0x130] sm:$0xff]
  %v1883 = vld [vmem:[#allocation5 + $0x138] sm:$0xff]
  %v1884 = vld [vmem:[#allocation5 + $0x140] sm:$0xff]
  %v1885 = vld [vmem:[#allocation5 + $0x148] sm:$0xff]
  %v1886 = vld [vmem:[#allocation5 + $0x150] sm:$0xff]
  %v1887 = vld [vmem:[#allocation5 + $0x158] sm:$0xff]
  %v1888 = vld [vmem:[#allocation5 + $0x160] sm:$0xff]
  %v1889 = vld [vmem:[#allocation5 + $0x168] sm:$0xff]
  %v1890 = vld [vmem:[#allocation5 + $0x170] sm:$0xff]
  %v1891 = vld [vmem:[#allocation5 + $0x178] sm:$0xff]
  %v1892 = vld [vmem:[#allocation5 + $0x180] sm:$0xff]
  %v1893 = vld [vmem:[#allocation5 + $0x188] sm:$0xff]
  %v1894 = vld [vmem:[#allocation5 + $0x190] sm:$0xff]
  %v1895 = vld [vmem:[#allocation5 + $0x198] sm:$0xff]
  %v1896 = vld [vmem:[#allocation5 + $0x1a0] sm:$0xff]
  %v1897 = vld [vmem:[#allocation5 + $0x1a8] sm:$0xff]
  %v1898 = vld [vmem:[#allocation5 + $0x1b0] sm:$0xff]
  %v1899 = vld [vmem:[#allocation5 + $0x1b8] sm:$0xff]
  %v1900 = vld [vmem:[#allocation5 + $0x1c0] sm:$0xff]
  %v1901 = vld [vmem:[#allocation5 + $0x1c8] sm:$0xff]
  %v1902 = vld [vmem:[#allocation5 + $0x1d0] sm:$0xff]
  %v1903 = vld [vmem:[#allocation5 + $0x1d8] sm:$0xff]
  %v1904 = vld [vmem:[#allocation5 + $0x1e0] sm:$0xff]
  %v1905 = vld [vmem:[#allocation5 + $0x1e8] sm:$0xff]
  %v1906 = vld [vmem:[#allocation5 + $0x1f0] sm:$0xff]
  %v1907 = vld [vmem:[#allocation5 + $0x1f8] sm:$0xff]
  %v1908 = vld [vmem:[#allocation5 + $0x200] sm:$0xff]
  %v1909 = vld [vmem:[#allocation5 + $0x208] sm:$0xff]
  %v1910 = vld [vmem:[#allocation5 + $0x210] sm:$0xff]
  %v1911 = vld [vmem:[#allocation5 + $0x218] sm:$0xff]
  %v1912 = vld [vmem:[#allocation5 + $0x220] sm:$0xff]
  %v1913 = vld [vmem:[#allocation5 + $0x228] sm:$0xff]
  %v1914 = vld [vmem:[#allocation5 + $0x230] sm:$0xff]
  %v1915 = vld [vmem:[#allocation5 + $0x238] sm:$0xff]
  %v1916 = vld [vmem:[#allocation5 + $0x240] sm:$0xff]
  %vm1917 = vcmask 588800
  %v1919 = vsel %vm1917, %v1838, 0
  %v1922 = vsel %vm1917, %v1843, 0
  %1924 = vmatprep.subr.mxu0 0.0
  %1925 = vmatpush1.msra.mxu0 %v1859
  %1926 = vmatprep.subr.mxu0 0.0
  %1927 = vmatpush1.msra.mxu0 %v1858
  %1928 = vmatprep.subr.mxu0 0.0
  %1929 = vmatpush1.msra.mxu0 %v1857
  %1930 = vmatprep.subr.mxu0 0.0
  %1931 = vmatpush1.msra.mxu0 %v1856
  %1932 = vmatprep.subr.mxu0 0.0
  %1933 = vmatpush1.msra.mxu0 %v1855
  %1934 = vmatprep.subr.mxu0 0.0
  %1935 = vmatpush1.msra.mxu0 %v1854
  %1936 = vmatprep.subr.mxu0 0.0
  %1937 = vmatpush1.msra.mxu0 %v1853
  %1938 = vmatprep.subr.mxu0 0.0
  %1939 = vmatpush1.msra.mxu0 %v1852
  %1940 = vmatprep.subr.mxu0 0.0
  %1941 = vmatpush1.msra.mxu0 %v1851
  %1942 = vmatprep.subr.mxu0 0.0
  %1943 = vmatpush1.msra.mxu0 %v1850
  %1944 = vmatprep.subr.mxu0 0.0
  %1945 = vmatpush1.msra.mxu0 %v1849
  %1946 = vmatprep.subr.mxu0 0.0
  %1947 = vmatpush1.msra.mxu0 %v1848
  %1948 = vmatprep.subr.mxu0 0.0
  %1949 = vmatpush1.msra.mxu0 %v1847
  %1950 = vmatprep.subr.mxu0 0.0
  %1951 = vmatpush1.msra.mxu0 %v1846
  %1952 = vmatprep.subr.mxu0 0.0
  %1953 = vmatpush1.msra.mxu0 %v1845
  %1954 = vmatprep.subr.mxu0 0.0
  %1955 = vmatpush1.msra.mxu0 %v1844
  %1956 = vmatprep.subr.mxu0 0.0
  %1957 = vmatpush2.msra.mxu0 %v1875
  %1958 = vmatprep.subr.mxu0 0.0
  %1959 = vmatpush2.msra.mxu0 %v1874
  %1960 = vmatprep.subr.mxu0 0.0
  %1961 = vmatpush2.msra.mxu0 %v1873
  %1962 = vmatprep.subr.mxu0 0.0
  %1963 = vmatpush2.msra.mxu0 %v1872
  %1964 = vmatprep.subr.mxu0 0.0
  %1965 = vmatpush2.msra.mxu0 %v1871
  %1966 = vmatprep.subr.mxu0 0.0
  %1967 = vmatpush2.msra.mxu0 %v1870
  %1968 = vmatprep.subr.mxu0 0.0
  %1969 = vmatpush2.msra.mxu0 %v1869
  %1970 = vmatprep.subr.mxu0 0.0
  %1971 = vmatpush2.msra.mxu0 %v1868
  %1972 = vmatprep.subr.mxu0 0.0
  %1973 = vmatpush2.msra.mxu0 %v1867
  %1974 = vmatprep.subr.mxu0 0.0
  %1975 = vmatpush2.msra.mxu0 %v1866
  %1976 = vmatprep.subr.mxu0 0.0
  %1977 = vmatpush2.msra.mxu0 %v1865
  %1978 = vmatprep.subr.mxu0 0.0
  %1979 = vmatpush2.msra.mxu0 %v1864
  %1980 = vmatprep.subr.mxu0 0.0
  %1981 = vmatpush2.msra.mxu0 %v1863
  %1982 = vmatprep.subr.mxu0 0.0
  %1983 = vmatpush2.msra.mxu0 %v1862
  %1984 = vmatprep.subr.mxu0 0.0
  %1985 = vmatpush2.msra.mxu0 %v1861
  %1986 = vmatprep.subr.mxu0 0.0
  %1987 = vmatpush2.msra.mxu0 %v1860
  %1988 = vmatprep.mubr.f32.mxu0 %v1835
  %1989 = vmatmul.mubr.f32.gmra.mxu0 %v1834
  %v1990 = vpop.f32.mrf.mxu0
  %v1991 = vadd.f32 0.0, %v1990
  %v1992 = vpop.f32.mrf.mxu0
  %1993 = vmatprep.mubr.f32.mxu0 %v1840
  %1994 = vmatmul.mubr.f32.gmra.mxu0 %v1839
  %v1995 = vpop.f32.mrf.mxu0
  %v1996 = vadd.f32 0.0, %v1995
  %v1997 = vpop.f32.mrf.mxu0
  %1998 = vdwg.mxu0
  %1999 = vmatprep.subr.mxu0 0.0
  %2000 = vmatpush1.msra.mxu0 %v1891
  %2001 = vmatprep.subr.mxu0 0.0
  %2002 = vmatpush1.msra.mxu0 %v1890
  %2003 = vmatprep.subr.mxu0 0.0
  %2004 = vmatpush1.msra.mxu0 %v1889
  %2005 = vmatprep.subr.mxu0 0.0
  %2006 = vmatpush1.msra.mxu0 %v1888
  %2007 = vmatprep.subr.mxu0 0.0
  %2008 = vmatpush1.msra.mxu0 %v1887
  %2009 = vmatprep.subr.mxu0 0.0
  %2010 = vmatpush1.msra.mxu0 %v1886
  %2011 = vmatprep.subr.mxu0 0.0
  %2012 = vmatpush1.msra.mxu0 %v1885
  %2013 = vmatprep.subr.mxu0 0.0
  %2014 = vmatpush1.msra.mxu0 %v1884
  %2015 = vmatprep.subr.mxu0 0.0
  %2016 = vmatpush1.msra.mxu0 %v1883
  %2017 = vmatprep.subr.mxu0 0.0
  %2018 = vmatpush1.msra.mxu0 %v1882
  %2019 = vmatprep.subr.mxu0 0.0
  %2020 = vmatpush1.msra.mxu0 %v1881
  %2021 = vmatprep.subr.mxu0 0.0
  %2022 = vmatpush1.msra.mxu0 %v1880
  %2023 = vmatprep.subr.mxu0 0.0
  %2024 = vmatpush1.msra.mxu0 %v1879
  %2025 = vmatprep.subr.mxu0 0.0
  %2026 = vmatpush1.msra.mxu0 %v1878
  %2027 = vmatprep.subr.mxu0 0.0
  %2028 = vmatpush1.msra.mxu0 %v1877
  %2029 = vmatprep.subr.mxu0 0.0
  %2030 = vmatpush1.msra.mxu0 %v1876
  %2031 = vmatprep.subr.mxu0 0.0
  %2032 = vmatpush2.msra.mxu0 %v1907
  %2033 = vmatprep.subr.mxu0 0.0
  %2034 = vmatpush2.msra.mxu0 %v1906
  %2035 = vmatprep.subr.mxu0 0.0
  %2036 = vmatpush2.msra.mxu0 %v1905
  %2037 = vmatprep.subr.mxu0 0.0
  %2038 = vmatpush2.msra.mxu0 %v1904
  %2039 = vmatprep.subr.mxu0 0.0
  %2040 = vmatpush2.msra.mxu0 %v1903
  %2041 = vmatprep.subr.mxu0 0.0
  %2042 = vmatpush2.msra.mxu0 %v1902
  %2043 = vmatprep.subr.mxu0 0.0
  %2044 = vmatpush2.msra.mxu0 %v1901
  %2045 = vmatprep.subr.mxu0 0.0
  %2046 = vmatpush2.msra.mxu0 %v1900
  %2047 = vmatprep.subr.mxu0 0.0
  %2048 = vmatpush2.msra.mxu0 %v1899
  %2049 = vmatprep.subr.mxu0 0.0
  %2050 = vmatpush2.msra.mxu0 %v1898
  %2051 = vmatprep.subr.mxu0 0.0
  %2052 = vmatpush2.msra.mxu0 %v1897
  %2053 = vmatprep.subr.mxu0 0.0
  %2054 = vmatpush2.msra.mxu0 %v1896
  %2055 = vmatprep.subr.mxu0 0.0
  %2056 = vmatpush2.msra.mxu0 %v1895
  %2057 = vmatprep.subr.mxu0 0.0
  %2058 = vmatpush2.msra.mxu0 %v1894
  %2059 = vmatprep.subr.mxu0 0.0
  %2060 = vmatpush2.msra.mxu0 %v1893
  %2061 = vmatprep.subr.mxu0 0.0
  %2062 = vmatpush2.msra.mxu0 %v1892
  %2063 = vmatprep.mubr.f32.mxu0 %v1837
  %2064 = vmatmul.mubr.f32.gmra.mxu0 %v1836
  %v2065 = vpop.f32.mrf.mxu0
  %v2066 = vadd.f32 %v1991, %v2065
  %v2067 = vpop.f32.mrf.mxu0
  %2068 = vmatprep.mubr.f32.mxu0 %v1842
  %2069 = vmatmul.mubr.f32.gmra.mxu0 %v1841
  %v2070 = vpop.f32.mrf.mxu0
  %v2071 = vadd.f32 %v1996, %v2070
  %v2072 = vpop.f32.mrf.mxu0
  %2073 = vdwg.mxu0
  %2074 = vmatprep.subr.mxu0 0.0
  %2075 = vmatpush1.msra.mxu0 0.0
  %2076 = vmatprep.subr.mxu0 0.0
  %2077 = vmatpush1.msra.mxu0 0.0
  %2078 = vmatprep.subr.mxu0 0.0
  %2079 = vmatpush1.msra.mxu0 0.0
  %2080 = vmatprep.subr.mxu0 0.0
  %2081 = vmatpush1.msra.mxu0 0.0
  %2082 = vmatprep.subr.mxu0 0.0
  %2083 = vmatpush1.msra.mxu0 0.0
  %2084 = vmatprep.subr.mxu0 0.0
  %2085 = vmatpush1.msra.mxu0 0.0
  %2086 = vmatprep.subr.mxu0 0.0
  %2087 = vmatpush1.msra.mxu0 0.0
  %2088 = vmatprep.subr.mxu0 0.0
  %2089 = vmatpush1.msra.mxu0 %v1916
  %2090 = vmatprep.subr.mxu0 0.0
  %2091 = vmatpush1.msra.mxu0 %v1915
  %2092 = vmatprep.subr.mxu0 0.0
  %2093 = vmatpush1.msra.mxu0 %v1914
  %2094 = vmatprep.subr.mxu0 0.0
  %2095 = vmatpush1.msra.mxu0 %v1913
  %2096 = vmatprep.subr.mxu0 0.0
  %2097 = vmatpush1.msra.mxu0 %v1912
  %2098 = vmatprep.subr.mxu0 0.0
  %2099 = vmatpush1.msra.mxu0 %v1911
  %2100 = vmatprep.subr.mxu0 0.0
  %2101 = vmatpush1.msra.mxu0 %v1910
  %2102 = vmatprep.subr.mxu0 0.0
  %2103 = vmatpush1.msra.mxu0 %v1909
  %2104 = vmatprep.subr.mxu0 0.0
  %2105 = vmatpush1.msra.mxu0 %v1908
  %2106 = vmatprep.subr.mxu0 0.0
  %2107 = vmatpush2.msra.mxu0 0.0
  %2108 = vmatprep.subr.mxu0 0.0
  %2109 = vmatpush2.msra.mxu0 0.0
  %2110 = vmatprep.subr.mxu0 0.0
  %2111 = vmatpush2.msra.mxu0 0.0
  %2112 = vmatprep.subr.mxu0 0.0
  %2113 = vmatpush2.msra.mxu0 0.0
  %2114 = vmatprep.subr.mxu0 0.0
  %2115 = vmatpush2.msra.mxu0 0.0
  %2116 = vmatprep.subr.mxu0 0.0
  %2117 = vmatpush2.msra.mxu0 0.0
  %2118 = vmatprep.subr.mxu0 0.0
  %2119 = vmatpush2.msra.mxu0 0.0
  %2120 = vmatprep.subr.mxu0 0.0
  %2121 = vmatpush2.msra.mxu0 0.0
  %2122 = vmatprep.subr.mxu0 0.0
  %2123 = vmatpush2.msra.mxu0 0.0
  %2124 = vmatprep.subr.mxu0 0.0
  %2125 = vmatpush2.msra.mxu0 0.0
  %2126 = vmatprep.subr.mxu0 0.0
  %2127 = vmatpush2.msra.mxu0 0.0
  %2128 = vmatprep.subr.mxu0 0.0
  %2129 = vmatpush2.msra.mxu0 0.0
  %2130 = vmatprep.subr.mxu0 0.0
  %2131 = vmatpush2.msra.mxu0 0.0
  %2132 = vmatprep.subr.mxu0 0.0
  %2133 = vmatpush2.msra.mxu0 0.0
  %2134 = vmatprep.subr.mxu0 0.0
  %2135 = vmatpush2.msra.mxu0 0.0
  %2136 = vmatprep.subr.mxu0 0.0
  %2137 = vmatpush2.msra.mxu0 0.0
  %2138 = vmatprep.mubr.f32.mxu0 0.0
  %2139 = vmatmul.mubr.f32.gmra.mxu0 %v1919
  %v2140 = vpop.f32.mrf.mxu0
  %v2141 = vadd.f32 %v2066, %v2140
  %v2142 = vpop.f32.mrf.mxu0
  %2143 = vmatprep.mubr.f32.mxu0 0.0
  %2144 = vmatmul.mubr.f32.gmra.mxu0 %v1922
  %v2145 = vpop.f32.mrf.mxu0
  %v2146 = vadd.f32 %v2071, %v2145
  %v2147 = vpop.f32.mrf.mxu0
  %2148 = vdwg.mxu0
  %v2149 = vsub.f32 0.0, %v2141
  %v2150 = vsub.f32 0.0, %v2146
  %v2151 = vmul.f32 %v2149, 1.442695
  %v2152 = vpow.pop %v2151
  %v2153 = vmul.f32 %v2150, 1.442695
  %v2154 = vpow.pop %v2153
  %v2155 = vadd.f32 %v2152, 1.0
  %v2156 = vadd.f32 %v2154, 1.0
  %v2157 = vrcp.pop %v2155
  %v2158 = vrcp.pop %v2156
  %2159 = vst [vmem:[%s3] sm:$0xff] %v2157
  %2160 = vst [vmem:[%s3 + $0x8] sm:$0xff] %v2158
  %s2161 = scalar_lea.vmem %s0, 32
  %v2162 = vld [vmem:[%s2161] sm:$0xff]
  %v2163 = vld [vmem:[%s2161 + $0x8] sm:$0xff]
  %v2164 = vld [vmem:[%s2161 + $0x10] sm:$0xff]
  %v2165 = vld [vmem:[%s2161 + $0x18] sm:$0xff]
  %2170 = vrot.lane.b32.xlu0 %v2162, 8
  %v2171 = vpop.permute.xlu0 %2170
  %2172 = vrot.lane.b32.xlu0 %v2163, 8
  %v2173 = vpop.permute.xlu0 %2172
  %2174 = vrot.lane.b32.xlu0 %v2164, 8
  %v2175 = vpop.permute.xlu0 %2174
  %2176 = vrot.lane.b32.xlu0 %v2165, 8
  %v2177 = vpop.permute.xlu0 %2176
  %2182 = vst.msk [vmem:[#allocation2] sm:$0xff] %vm148, %v2171
  %2183 = vst.msk [vmem:[#allocation2 + $0x8] sm:$0xff] %vm150, %v2171
  %2184 = vst.msk [vmem:[#allocation2 + $0x10] sm:$0xff] %vm148, %v2173
  %2185 = vst.msk [vmem:[#allocation2 + $0x18] sm:$0xff] %vm150, %v2173
  %2186 = vst.msk [vmem:[#allocation2 + $0x20] sm:$0xff] %vm148, %v2175
  %2187 = vst.msk [vmem:[#allocation2 + $0x28] sm:$0xff] %vm150, %v2175
  %2188 = vst.msk [vmem:[#allocation2 + $0x30] sm:$0xff] %vm148, %v2177
  %2189 = vst.msk [vmem:[#allocation2 + $0x38] sm:$0xff] %vm150, %v2177
  %v2190 = vld [vmem:[#allocation2] sm:$0xff]
  %v2191 = vld [vmem:[#allocation2 + $0x10] sm:$0xff]
  %v2192 = vld [vmem:[#allocation2 + $0x20] sm:$0xff]
  %v2193 = vld [vmem:[#allocation2 + $0x30] sm:$0xff]
  %v2194 = vmul.f32 %v2190, %v81
  %v2195 = vmul.f32 %v2191, %v81
  %v2196 = vmul.f32 %v2192, %v81
  %v2197 = vmul.f32 %v2193, %v81
  %2198 = vst [vmem:[#allocation4] sm:$0xff] %v2194
  %2199 = vst [vmem:[#allocation4 + $0x8] sm:$0xff] %v2195
  %2200 = vst [vmem:[#allocation4 + $0x10] sm:$0xff] %v2196
  %2201 = vst [vmem:[#allocation4 + $0x18] sm:$0xff] %v2197
  %v2202 = vld [vmem:[#allocation2] sm:$0xff]
  %v2203 = vld [vmem:[#allocation2 + $0x8] sm:$0xff]
  %v2204 = vld [vmem:[#allocation2 + $0x10] sm:$0xff]
  %v2205 = vld [vmem:[#allocation2 + $0x18] sm:$0xff]
  %v2206 = vld [vmem:[#allocation2 + $0x20] sm:$0xff]
  %v2207 = vld [vmem:[#allocation2 + $0x28] sm:$0xff]
  %v2208 = vld [vmem:[#allocation2 + $0x30] sm:$0xff]
  %v2209 = vld [vmem:[#allocation2 + $0x38] sm:$0xff]
  %v2210 = vmul.f32 %v2202, %v180
  %v2211 = vmul.f32 %v2203, %v180
  %v2212 = vmul.f32 %v2204, %v180
  %v2213 = vmul.f32 %v2205, %v180
  %v2214 = vmul.f32 %v2206, %v180
  %v2215 = vmul.f32 %v2207, %v180
  %v2216 = vmul.f32 %v2208, %v180
  %v2217 = vmul.f32 %v2209, %v180
  %2226 = vrot.lane.b32.xlu0 %v2210, 127
  %v2227 = vpop.permute.xlu0 %2226
  %2228 = vrot.lane.b32.xlu0 %v2211, 127
  %v2229 = vpop.permute.xlu0 %2228
  %2230 = vrot.lane.b32.xlu0 %v2212, 127
  %v2231 = vpop.permute.xlu0 %2230
  %2232 = vrot.lane.b32.xlu0 %v2213, 127
  %v2233 = vpop.permute.xlu0 %2232
  %2234 = vrot.lane.b32.xlu0 %v2214, 127
  %v2235 = vpop.permute.xlu0 %2234
  %2236 = vrot.lane.b32.xlu0 %v2215, 127
  %v2237 = vpop.permute.xlu0 %2236
  %2238 = vrot.lane.b32.xlu0 %v2216, 127
  %v2239 = vpop.permute.xlu0 %2238
  %2240 = vrot.lane.b32.xlu0 %v2217, 127
  %v2241 = vpop.permute.xlu0 %2240
  %v2242 = vsel %vm214, %v2227, %v2229
  %v2243 = vsel %vm214, %v2231, %v2233
  %v2244 = vsel %vm214, %v2235, %v2237
  %v2245 = vsel %vm214, %v2239, %v2241
  %2250 = vst [vmem:[#allocation4 + $0x20] sm:$0xff] %v2242
  %2251 = vst [vmem:[#allocation4 + $0x28] sm:$0xff] %v2243
  %2252 = vst [vmem:[#allocation4 + $0x30] sm:$0xff] %v2244
  %2253 = vst [vmem:[#allocation4 + $0x38] sm:$0xff] %v2245
  %v2254 = vld [vmem:[#allocation2] sm:$0xff]
  %v2255 = vld [vmem:[#allocation2 + $0x8] sm:$0xff]
  %v2256 = vld [vmem:[#allocation2 + $0x10] sm:$0xff]
  %v2257 = vld [vmem:[#allocation2 + $0x18] sm:$0xff]
  %v2258 = vld [vmem:[#allocation2 + $0x20] sm:$0xff]
  %v2259 = vld [vmem:[#allocation2 + $0x28] sm:$0xff]
  %v2260 = vld [vmem:[#allocation2 + $0x30] sm:$0xff]
  %v2261 = vld [vmem:[#allocation2 + $0x38] sm:$0xff]
  %v2262 = vmul.f32 %v2254, %v237
  %v2263 = vmul.f32 %v2255, %v237
  %v2264 = vmul.f32 %v2256, %v237
  %v2265 = vmul.f32 %v2257, %v237
  %v2266 = vmul.f32 %v2258, %v237
  %v2267 = vmul.f32 %v2259, %v237
  %v2268 = vmul.f32 %v2260, %v237
  %v2269 = vmul.f32 %v2261, %v237
  %2278 = vrot.lane.b32.xlu0 %v2262, 126
  %v2279 = vpop.permute.xlu0 %2278
  %2280 = vrot.lane.b32.xlu0 %v2263, 126
  %v2281 = vpop.permute.xlu0 %2280
  %2282 = vrot.lane.b32.xlu0 %v2264, 126
  %v2283 = vpop.permute.xlu0 %2282
  %2284 = vrot.lane.b32.xlu0 %v2265, 126
  %v2285 = vpop.permute.xlu0 %2284
  %2286 = vrot.lane.b32.xlu0 %v2266, 126
  %v2287 = vpop.permute.xlu0 %2286
  %2288 = vrot.lane.b32.xlu0 %v2267, 126
  %v2289 = vpop.permute.xlu0 %2288
  %2290 = vrot.lane.b32.xlu0 %v2268, 126
  %v2291 = vpop.permute.xlu0 %2290
  %2292 = vrot.lane.b32.xlu0 %v2269, 126
  %v2293 = vpop.permute.xlu0 %2292
  %v2294 = vsel %vm271, %v2279, %v2281
  %v2295 = vsel %vm271, %v2283, %v2285
  %v2296 = vsel %vm271, %v2287, %v2289
  %v2297 = vsel %vm271, %v2291, %v2293
  %2302 = vst [vmem:[#allocation4 + $0x40] sm:$0xff] %v2294
  %2303 = vst [vmem:[#allocation4 + $0x48] sm:$0xff] %v2295
  %2304 = vst [vmem:[#allocation4 + $0x50] sm:$0xff] %v2296
  %2305 = vst [vmem:[#allocation4 + $0x58] sm:$0xff] %v2297
  %v2306 = vld [vmem:[#allocation2] sm:$0xff]
  %v2307 = vld [vmem:[#allocation2 + $0x8] sm:$0xff]
  %v2308 = vld [vmem:[#allocation2 + $0x10] sm:$0xff]
  %v2309 = vld [vmem:[#allocation2 + $0x18] sm:$0xff]
  %v2310 = vld [vmem:[#allocation2 + $0x20] sm:$0xff]
  %v2311 = vld [vmem:[#allocation2 + $0x28] sm:$0xff]
  %v2312 = vld [vmem:[#allocation2 + $0x30] sm:$0xff]
  %v2313 = vld [vmem:[#allocation2 + $0x38] sm:$0xff]
  %v2314 = vmul.f32 %v2306, %v294
  %v2315 = vmul.f32 %v2307, %v294
  %v2316 = vmul.f32 %v2308, %v294
  %v2317 = vmul.f32 %v2309, %v294
  %v2318 = vmul.f32 %v2310, %v294
  %v2319 = vmul.f32 %v2311, %v294
  %v2320 = vmul.f32 %v2312, %v294
  %v2321 = vmul.f32 %v2313, %v294
  %2330 = vrot.lane.b32.xlu0 %v2314, 121
  %v2331 = vpop.permute.xlu0 %2330
  %2332 = vrot.lane.b32.xlu0 %v2315, 121
  %v2333 = vpop.permute.xlu0 %2332
  %2334 = vrot.lane.b32.xlu0 %v2316, 121
  %v2335 = vpop.permute.xlu0 %2334
  %2336 = vrot.lane.b32.xlu0 %v2317, 121
  %v2337 = vpop.permute.xlu0 %2336
  %2338 = vrot.lane.b32.xlu0 %v2318, 121
  %v2339 = vpop.permute.xlu0 %2338
  %2340 = vrot.lane.b32.xlu0 %v2319, 121
  %v2341 = vpop.permute.xlu0 %2340
  %2342 = vrot.lane.b32.xlu0 %v2320, 121
  %v2343 = vpop.permute.xlu0 %2342
  %2344 = vrot.lane.b32.xlu0 %v2321, 121
  %v2345 = vpop.permute.xlu0 %2344
  %v2346 = vsel %vm328, %v2331, %v2333
  %v2347 = vsel %vm328, %v2335, %v2337
  %v2348 = vsel %vm328, %v2339, %v2341
  %v2349 = vsel %vm328, %v2343, %v2345
  %2354 = vst [vmem:[#allocation4 + $0x60] sm:$0xff] %v2346
  %2355 = vst [vmem:[#allocation4 + $0x68] sm:$0xff] %v2347
  %2356 = vst [vmem:[#allocation4 + $0x70] sm:$0xff] %v2348
  %2357 = vst [vmem:[#allocation4 + $0x78] sm:$0xff] %v2349
  %v2358 = vld [vmem:[#allocation2] sm:$0xff]
  %v2359 = vld [vmem:[#allocation2 + $0x8] sm:$0xff]
  %v2360 = vld [vmem:[#allocation2 + $0x10] sm:$0xff]
  %v2361 = vld [vmem:[#allocation2 + $0x18] sm:$0xff]
  %v2362 = vld [vmem:[#allocation2 + $0x20] sm:$0xff]
  %v2363 = vld [vmem:[#allocation2 + $0x28] sm:$0xff]
  %v2364 = vld [vmem:[#allocation2 + $0x30] sm:$0xff]
  %v2365 = vld [vmem:[#allocation2 + $0x38] sm:$0xff]
  %v2366 = vmul.f32 %v2358, %v351
  %v2367 = vmul.f32 %v2359, %v351
  %v2368 = vmul.f32 %v2360, %v351
  %v2369 = vmul.f32 %v2361, %v351
  %v2370 = vmul.f32 %v2362, %v351
  %v2371 = vmul.f32 %v2363, %v351
  %v2372 = vmul.f32 %v2364, %v351
  %v2373 = vmul.f32 %v2365, %v351
  %2382 = vrot.lane.b32.xlu0 %v2366, 120
  %v2383 = vpop.permute.xlu0 %2382
  %2384 = vrot.lane.b32.xlu0 %v2367, 120
  %v2385 = vpop.permute.xlu0 %2384
  %2386 = vrot.lane.b32.xlu0 %v2368, 120
  %v2387 = vpop.permute.xlu0 %2386
  %2388 = vrot.lane.b32.xlu0 %v2369, 120
  %v2389 = vpop.permute.xlu0 %2388
  %2390 = vrot.lane.b32.xlu0 %v2370, 120
  %v2391 = vpop.permute.xlu0 %2390
  %2392 = vrot.lane.b32.xlu0 %v2371, 120
  %v2393 = vpop.permute.xlu0 %2392
  %2394 = vrot.lane.b32.xlu0 %v2372, 120
  %v2395 = vpop.permute.xlu0 %2394
  %2396 = vrot.lane.b32.xlu0 %v2373, 120
  %v2397 = vpop.permute.xlu0 %2396
  %v2398 = vsel %vm385, %v2383, %v2385
  %v2399 = vsel %vm385, %v2387, %v2389
  %v2400 = vsel %vm385, %v2391, %v2393
  %v2401 = vsel %vm385, %v2395, %v2397
  %2406 = vst [vmem:[#allocation4 + $0x80] sm:$0xff] %v2398
  %2407 = vst [vmem:[#allocation4 + $0x88] sm:$0xff] %v2399
  %2408 = vst [vmem:[#allocation4 + $0x90] sm:$0xff] %v2400
  %2409 = vst [vmem:[#allocation4 + $0x98] sm:$0xff] %v2401
  %v2410 = vld [vmem:[#allocation2] sm:$0xff]
  %v2411 = vld [vmem:[#allocation2 + $0x8] sm:$0xff]
  %v2412 = vld [vmem:[#allocation2 + $0x10] sm:$0xff]
  %v2413 = vld [vmem:[#allocation2 + $0x18] sm:$0xff]
  %v2414 = vld [vmem:[#allocation2 + $0x20] sm:$0xff]
  %v2415 = vld [vmem:[#allocation2 + $0x28] sm:$0xff]
  %v2416 = vld [vmem:[#allocation2 + $0x30] sm:$0xff]
  %v2417 = vld [vmem:[#allocation2 + $0x38] sm:$0xff]
  %v2418 = vmul.f32 %v2410, %v408
  %v2419 = vmul.f32 %v2411, %v408
  %v2420 = vmul.f32 %v2412, %v408
  %v2421 = vmul.f32 %v2413, %v408
  %v2422 = vmul.f32 %v2414, %v408
  %v2423 = vmul.f32 %v2415, %v408
  %v2424 = vmul.f32 %v2416, %v408
  %v2425 = vmul.f32 %v2417, %v408
  %2434 = vrot.lane.b32.xlu0 %v2418, 119
  %v2435 = vpop.permute.xlu0 %2434
  %2436 = vrot.lane.b32.xlu0 %v2419, 119
  %v2437 = vpop.permute.xlu0 %2436
  %2438 = vrot.lane.b32.xlu0 %v2420, 119
  %v2439 = vpop.permute.xlu0 %2438
  %2440 = vrot.lane.b32.xlu0 %v2421, 119
  %v2441 = vpop.permute.xlu0 %2440
  %2442 = vrot.lane.b32.xlu0 %v2422, 119
  %v2443 = vpop.permute.xlu0 %2442
  %2444 = vrot.lane.b32.xlu0 %v2423, 119
  %v2445 = vpop.permute.xlu0 %2444
  %2446 = vrot.lane.b32.xlu0 %v2424, 119
  %v2447 = vpop.permute.xlu0 %2446
  %2448 = vrot.lane.b32.xlu0 %v2425, 119
  %v2449 = vpop.permute.xlu0 %2448
  %v2450 = vsel %vm442, %v2435, %v2437
  %v2451 = vsel %vm442, %v2439, %v2441
  %v2452 = vsel %vm442, %v2443, %v2445
  %v2453 = vsel %vm442, %v2447, %v2449
  %2458 = vst [vmem:[#allocation4 + $0xa0] sm:$0xff] %v2450
  %2459 = vst [vmem:[#allocation4 + $0xa8] sm:$0xff] %v2451
  %2460 = vst [vmem:[#allocation4 + $0xb0] sm:$0xff] %v2452
  %2461 = vst [vmem:[#allocation4 + $0xb8] sm:$0xff] %v2453
  %v2462 = vld [vmem:[#allocation2] sm:$0xff]
  %v2463 = vld [vmem:[#allocation2 + $0x8] sm:$0xff]
  %v2464 = vld [vmem:[#allocation2 + $0x10] sm:$0xff]
  %v2465 = vld [vmem:[#allocation2 + $0x18] sm:$0xff]
  %v2466 = vld [vmem:[#allocation2 + $0x20] sm:$0xff]
  %v2467 = vld [vmem:[#allocation2 + $0x28] sm:$0xff]
  %v2468 = vld [vmem:[#allocation2 + $0x30] sm:$0xff]
  %v2469 = vld [vmem:[#allocation2 + $0x38] sm:$0xff]
  %v2470 = vmul.f32 %v2462, %v465
  %v2471 = vmul.f32 %v2463, %v465
  %v2472 = vmul.f32 %v2464, %v465
  %v2473 = vmul.f32 %v2465, %v465
  %v2474 = vmul.f32 %v2466, %v465
  %v2475 = vmul.f32 %v2467, %v465
  %v2476 = vmul.f32 %v2468, %v465
  %v2477 = vmul.f32 %v2469, %v465
  %2486 = vrot.lane.b32.xlu0 %v2470, 114
  %v2487 = vpop.permute.xlu0 %2486
  %2488 = vrot.lane.b32.xlu0 %v2471, 114
  %v2489 = vpop.permute.xlu0 %2488
  %2490 = vrot.lane.b32.xlu0 %v2472, 114
  %v2491 = vpop.permute.xlu0 %2490
  %2492 = vrot.lane.b32.xlu0 %v2473, 114
  %v2493 = vpop.permute.xlu0 %2492
  %2494 = vrot.lane.b32.xlu0 %v2474, 114
  %v2495 = vpop.permute.xlu0 %2494
  %2496 = vrot.lane.b32.xlu0 %v2475, 114
  %v2497 = vpop.permute.xlu0 %2496
  %2498 = vrot.lane.b32.xlu0 %v2476, 114
  %v2499 = vpop.permute.xlu0 %2498
  %2500 = vrot.lane.b32.xlu0 %v2477, 114
  %v2501 = vpop.permute.xlu0 %2500
  %v2502 = vsel %vm499, %v2487, %v2489
  %v2503 = vsel %vm499, %v2491, %v2493
  %v2504 = vsel %vm499, %v2495, %v2497
  %v2505 = vsel %vm499, %v2499, %v2501
  %2510 = vst [vmem:[#allocation4 + $0xc0] sm:$0xff] %v2502
  %2511 = vst [vmem:[#allocation4 + $0xc8] sm:$0xff] %v2503
  %2512 = vst [vmem:[#allocation4 + $0xd0] sm:$0xff] %v2504
  %2513 = vst [vmem:[#allocation4 + $0xd8] sm:$0xff] %v2505
  %v2514 = vld [vmem:[#allocation2] sm:$0xff]
  %v2515 = vld [vmem:[#allocation2 + $0x8] sm:$0xff]
  %v2516 = vld [vmem:[#allocation2 + $0x10] sm:$0xff]
  %v2517 = vld [vmem:[#allocation2 + $0x18] sm:$0xff]
  %v2518 = vld [vmem:[#allocation2 + $0x20] sm:$0xff]
  %v2519 = vld [vmem:[#allocation2 + $0x28] sm:$0xff]
  %v2520 = vld [vmem:[#allocation2 + $0x30] sm:$0xff]
  %v2521 = vld [vmem:[#allocation2 + $0x38] sm:$0xff]
  %v2522 = vmul.f32 %v2514, %v522
  %v2523 = vmul.f32 %v2515, %v522
  %v2524 = vmul.f32 %v2516, %v522
  %v2525 = vmul.f32 %v2517, %v522
  %v2526 = vmul.f32 %v2518, %v522
  %v2527 = vmul.f32 %v2519, %v522
  %v2528 = vmul.f32 %v2520, %v522
  %v2529 = vmul.f32 %v2521, %v522
  %2538 = vrot.lane.b32.xlu0 %v2522, 113
  %v2539 = vpop.permute.xlu0 %2538
  %2540 = vrot.lane.b32.xlu0 %v2523, 113
  %v2541 = vpop.permute.xlu0 %2540
  %2542 = vrot.lane.b32.xlu0 %v2524, 113
  %v2543 = vpop.permute.xlu0 %2542
  %2544 = vrot.lane.b32.xlu0 %v2525, 113
  %v2545 = vpop.permute.xlu0 %2544
  %2546 = vrot.lane.b32.xlu0 %v2526, 113
  %v2547 = vpop.permute.xlu0 %2546
  %2548 = vrot.lane.b32.xlu0 %v2527, 113
  %v2549 = vpop.permute.xlu0 %2548
  %2550 = vrot.lane.b32.xlu0 %v2528, 113
  %v2551 = vpop.permute.xlu0 %2550
  %2552 = vrot.lane.b32.xlu0 %v2529, 113
  %v2553 = vpop.permute.xlu0 %2552
  %v2554 = vsel %vm556, %v2539, %v2541
  %v2555 = vsel %vm556, %v2543, %v2545
  %v2556 = vsel %vm556, %v2547, %v2549
  %v2557 = vsel %vm556, %v2551, %v2553
  %2562 = vst [vmem:[#allocation4 + $0xe0] sm:$0xff] %v2554
  %2563 = vst [vmem:[#allocation4 + $0xe8] sm:$0xff] %v2555
  %2564 = vst [vmem:[#allocation4 + $0xf0] sm:$0xff] %v2556
  %2565 = vst [vmem:[#allocation4 + $0xf8] sm:$0xff] %v2557
  %v2566 = vld [vmem:[#allocation2] sm:$0xff]
  %v2567 = vld [vmem:[#allocation2 + $0x8] sm:$0xff]
  %v2568 = vld [vmem:[#allocation2 + $0x10] sm:$0xff]
  %v2569 = vld [vmem:[#allocation2 + $0x18] sm:$0xff]
  %v2570 = vld [vmem:[#allocation2 + $0x20] sm:$0xff]
  %v2571 = vld [vmem:[#allocation2 + $0x28] sm:$0xff]
  %v2572 = vld [vmem:[#allocation2 + $0x30] sm:$0xff]
  %v2573 = vld [vmem:[#allocation2 + $0x38] sm:$0xff]
  %v2574 = vmul.f32 %v2566, %v579
  %v2575 = vmul.f32 %v2567, %v579
  %v2576 = vmul.f32 %v2568, %v579
  %v2577 = vmul.f32 %v2569, %v579
  %v2578 = vmul.f32 %v2570, %v579
  %v2579 = vmul.f32 %v2571, %v579
  %v2580 = vmul.f32 %v2572, %v579
  %v2581 = vmul.f32 %v2573, %v579
  %2590 = vrot.lane.b32.xlu0 %v2574, 112
  %v2591 = vpop.permute.xlu0 %2590
  %2592 = vrot.lane.b32.xlu0 %v2575, 112
  %v2593 = vpop.permute.xlu0 %2592
  %2594 = vrot.lane.b32.xlu0 %v2576, 112
  %v2595 = vpop.permute.xlu0 %2594
  %2596 = vrot.lane.b32.xlu0 %v2577, 112
  %v2597 = vpop.permute.xlu0 %2596
  %2598 = vrot.lane.b32.xlu0 %v2578, 112
  %v2599 = vpop.permute.xlu0 %2598
  %2600 = vrot.lane.b32.xlu0 %v2579, 112
  %v2601 = vpop.permute.xlu0 %2600
  %2602 = vrot.lane.b32.xlu0 %v2580, 112
  %v2603 = vpop.permute.xlu0 %2602
  %2604 = vrot.lane.b32.xlu0 %v2581, 112
  %v2605 = vpop.permute.xlu0 %2604
  %v2606 = vsel %vm613, %v2591, %v2593
  %v2607 = vsel %vm613, %v2595, %v2597
  %v2608 = vsel %vm613, %v2599, %v2601
  %v2609 = vsel %vm613, %v2603, %v2605
  %2614 = vst [vmem:[#allocation4 + $0x100] sm:$0xff] %v2606
  %2615 = vst [vmem:[#allocation4 + $0x108] sm:$0xff] %v2607
  %2616 = vst [vmem:[#allocation4 + $0x110] sm:$0xff] %v2608
  %2617 = vst [vmem:[#allocation4 + $0x118] sm:$0xff] %v2609
  %s2618 = scalar_lea.vmem %s1, 192
  %v2619 = vld [vmem:[%s2618] sm:$0xff]
  %v2620 = vld [vmem:[%s2618 + $0x8] sm:$0xff]
  %v2621 = vld [vmem:[%s2618 + $0x10] sm:$0xff]
  %v2622 = vld [vmem:[%s2618 + $0x18] sm:$0xff]
  %v2623 = vld [vmem:[%s2618 + $0x20] sm:$0xff]
  %v2624 = vld [vmem:[%s2618 + $0x28] sm:$0xff]
  %v2625 = vld [vmem:[%s2618 + $0x30] sm:$0xff]
  %v2626 = vld [vmem:[%s2618 + $0x38] sm:$0xff]
  %v2627 = vld [vmem:[%s2618 + $0x40] sm:$0xff]
  %v2628 = vld [vmem:[%s2618 + $0x48] sm:$0xff]
  %v2629 = vld [vmem:[%s2618 + $0x50] sm:$0xff]
  %v2630 = vld [vmem:[%s2618 + $0x58] sm:$0xff]
  %v2631 = vld [vmem:[%s2618 + $0x60] sm:$0xff]
  %v2632 = vld [vmem:[%s2618 + $0x68] sm:$0xff]
  %v2633 = vld [vmem:[%s2618 + $0x70] sm:$0xff]
  %v2634 = vld [vmem:[%s2618 + $0x78] sm:$0xff]
  %v2635 = vld [vmem:[%s2618 + $0x80] sm:$0xff]
  %v2636 = vld [vmem:[%s2618 + $0x88] sm:$0xff]
  %v2637 = vld [vmem:[%s2618 + $0x90] sm:$0xff]
  %v2638 = vld [vmem:[%s2618 + $0x98] sm:$0xff]
  %v2639 = vld [vmem:[%s2618 + $0xa0] sm:$0xff]
  %v2640 = vld [vmem:[%s2618 + $0xa8] sm:$0xff]
  %v2641 = vld [vmem:[%s2618 + $0xb0] sm:$0xff]
  %v2642 = vld [vmem:[%s2618 + $0xb8] sm:$0xff]
  %v2643 = vld [vmem:[#allocation4] sm:$0xff]
  %v2644 = vld [vmem:[#allocation4 + $0x8] sm:$0xff]
  %v2645 = vld [vmem:[#allocation4 + $0x10] sm:$0xff]
  %v2646 = vld [vmem:[#allocation4 + $0x18] sm:$0xff]
  %v2647 = vld [vmem:[#allocation4 + $0x20] sm:$0xff]
  %v2648 = vld [vmem:[#allocation4 + $0x28] sm:$0xff]
  %v2649 = vld [vmem:[#allocation4 + $0x30] sm:$0xff]
  %v2650 = vld [vmem:[#allocation4 + $0x38] sm:$0xff]
  %v2651 = vld [vmem:[#allocation4 + $0x40] sm:$0xff]
  %v2652 = vld [vmem:[#allocation4 + $0x48] sm:$0xff]
  %v2653 = vld [vmem:[#allocation4 + $0x50] sm:$0xff]
  %v2654 = vld [vmem:[#allocation4 + $0x58] sm:$0xff]
  %v2655 = vld [vmem:[#allocation4 + $0x60] sm:$0xff]
  %v2656 = vld [vmem:[#allocation4 + $0x68] sm:$0xff]
  %v2657 = vld [vmem:[#allocation4 + $0x70] sm:$0xff]
  %v2658 = vld [vmem:[#allocation4 + $0x78] sm:$0xff]
  %v2659 = vld [vmem:[#allocation4 + $0x80] sm:$0xff]
  %v2660 = vld [vmem:[#allocation4 + $0x88] sm:$0xff]
  %v2661 = vld [vmem:[#allocation4 + $0x90] sm:$0xff]
  %v2662 = vld [vmem:[#allocation4 + $0x98] sm:$0xff]
  %v2663 = vld [vmem:[#allocation4 + $0xa0] sm:$0xff]
  %v2664 = vld [vmem:[#allocation4 + $0xa8] sm:$0xff]
  %v2665 = vld [vmem:[#allocation4 + $0xb0] sm:$0xff]
  %v2666 = vld [vmem:[#allocation4 + $0xb8] sm:$0xff]
  %v2667 = vld [vmem:[#allocation4 + $0xc0] sm:$0xff]
  %v2668 = vld [vmem:[#allocation4 + $0xc8] sm:$0xff]
  %v2669 = vld [vmem:[#allocation4 + $0xd0] sm:$0xff]
  %v2670 = vld [vmem:[#allocation4 + $0xd8] sm:$0xff]
  %v2671 = vld [vmem:[#allocation4 + $0xe0] sm:$0xff]
  %v2672 = vld [vmem:[#allocation4 + $0xe8] sm:$0xff]
  %v2673 = vld [vmem:[#allocation4 + $0xf0] sm:$0xff]
  %v2674 = vld [vmem:[#allocation4 + $0xf8] sm:$0xff]
  %v2675 = vld [vmem:[#allocation4 + $0x100] sm:$0xff]
  %v2676 = vld [vmem:[#allocation4 + $0x108] sm:$0xff]
  %v2677 = vld [vmem:[#allocation4 + $0x110] sm:$0xff]
  %v2678 = vld [vmem:[#allocation4 + $0x118] sm:$0xff]
  %v2679 = vld [vmem:[#allocation4 + $0x120] sm:$0xff]
  %v2681 = vsel %vm687, %v2621, 0
  %v2684 = vsel %vm687, %v2624, 0
  %v2687 = vsel %vm687, %v2627, 0
  %v2690 = vsel %vm687, %v2630, 0
  %v2693 = vsel %vm687, %v2633, 0
  %v2696 = vsel %vm687, %v2636, 0
  %v2699 = vsel %vm687, %v2639, 0
  %v2702 = vsel %vm687, %v2642, 0
  %2704 = vmatprep.subr.mxu0 0.0
  %2705 = vmatpush1.msra.mxu0 %v2658
  %2706 = vmatprep.subr.mxu0 0.0
  %2707 = vmatpush1.msra.mxu0 %v2657
  %2708 = vmatprep.subr.mxu0 0.0
  %2709 = vmatpush1.msra.mxu0 %v2656
  %2710 = vmatprep.subr.mxu0 0.0
  %2711 = vmatpush1.msra.mxu0 %v2655
  %2712 = vmatprep.subr.mxu0 0.0
  %2713 = vmatpush1.msra.mxu0 %v2654
  %2714 = vmatprep.subr.mxu0 0.0
  %2715 = vmatpush1.msra.mxu0 %v2653
  %2716 = vmatprep.subr.mxu0 0.0
  %2717 = vmatpush1.msra.mxu0 %v2652
  %2718 = vmatprep.subr.mxu0 0.0
  %2719 = vmatpush1.msra.mxu0 %v2651
  %2720 = vmatprep.subr.mxu0 0.0
  %2721 = vmatpush1.msra.mxu0 %v2650
  %2722 = vmatprep.subr.mxu0 0.0
  %2723 = vmatpush1.msra.mxu0 %v2649
  %2724 = vmatprep.subr.mxu0 0.0
  %2725 = vmatpush1.msra.mxu0 %v2648
  %2726 = vmatprep.subr.mxu0 0.0
  %2727 = vmatpush1.msra.mxu0 %v2647
  %2728 = vmatprep.subr.mxu0 0.0
  %2729 = vmatpush1.msra.mxu0 %v2646
  %2730 = vmatprep.subr.mxu0 0.0
  %2731 = vmatpush1.msra.mxu0 %v2645
  %2732 = vmatprep.subr.mxu0 0.0
  %2733 = vmatpush1.msra.mxu0 %v2644
  %2734 = vmatprep.subr.mxu0 0.0
  %2735 = vmatpush1.msra.mxu0 %v2643
  %2736 = vmatprep.subr.mxu0 0.0
  %2737 = vmatpush2.msra.mxu0 %v2674
  %2738 = vmatprep.subr.mxu0 0.0
  %2739 = vmatpush2.msra.mxu0 %v2673
  %2740 = vmatprep.subr.mxu0 0.0
  %2741 = vmatpush2.msra.mxu0 %v2672
  %2742 = vmatprep.subr.mxu0 0.0
  %2743 = vmatpush2.msra.mxu0 %v2671
  %2744 = vmatprep.subr.mxu0 0.0
  %2745 = vmatpush2.msra.mxu0 %v2670
  %2746 = vmatprep.subr.mxu0 0.0
  %2747 = vmatpush2.msra.mxu0 %v2669
  %2748 = vmatprep.subr.mxu0 0.0
  %2749 = vmatpush2.msra.mxu0 %v2668
  %2750 = vmatprep.subr.mxu0 0.0
  %2751 = vmatpush2.msra.mxu0 %v2667
  %2752 = vmatprep.subr.mxu0 0.0
  %2753 = vmatpush2.msra.mxu0 %v2666
  %2754 = vmatprep.subr.mxu0 0.0
  %2755 = vmatpush2.msra.mxu0 %v2665
  %2756 = vmatprep.subr.mxu0 0.0
  %2757 = vmatpush2.msra.mxu0 %v2664
  %2758 = vmatprep.subr.mxu0 0.0
  %2759 = vmatpush2.msra.mxu0 %v2663
  %2760 = vmatprep.subr.mxu0 0.0
  %2761 = vmatpush2.msra.mxu0 %v2662
  %2762 = vmatprep.subr.mxu0 0.0
  %2763 = vmatpush2.msra.mxu0 %v2661
  %2764 = vmatprep.subr.mxu0 0.0
  %2765 = vmatpush2.msra.mxu0 %v2660
  %2766 = vmatprep.subr.mxu0 0.0
  %2767 = vmatpush2.msra.mxu0 %v2659
  %2768 = vmatprep.mubr.f32.mxu0 %v2620
  %2769 = vmatmul.mubr.f32.gmra.mxu0 %v2619
  %v2770 = vpop.f32.mrf.mxu0
  %v2771 = vadd.f32 0.0, %v2770
  %v2772 = vpop.f32.mrf.mxu0
  %2773 = vmatprep.mubr.f32.mxu0 %v2623
  %2774 = vmatmul.mubr.f32.gmra.mxu0 %v2622
  %v2775 = vpop.f32.mrf.mxu0
  %v2776 = vadd.f32 0.0, %v2775
  %v2777 = vpop.f32.mrf.mxu0
  %2778 = vmatprep.mubr.f32.mxu0 %v2626
  %2779 = vmatmul.mubr.f32.gmra.mxu0 %v2625
  %v2780 = vpop.f32.mrf.mxu0
  %v2781 = vadd.f32 0.0, %v2780
  %v2782 = vpop.f32.mrf.mxu0
  %2783 = vmatprep.mubr.f32.mxu0 %v2629
  %2784 = vmatmul.mubr.f32.gmra.mxu0 %v2628
  %v2785 = vpop.f32.mrf.mxu0
  %v2786 = vadd.f32 0.0, %v2785
  %v2787 = vpop.f32.mrf.mxu0
  %2788 = vmatprep.mubr.f32.mxu0 %v2632
  %2789 = vmatmul.mubr.f32.gmra.mxu0 %v2631
  %v2790 = vpop.f32.mrf.mxu0
  %v2791 = vadd.f32 0.0, %v2790
  %v2792 = vpop.f32.mrf.mxu0
  %2793 = vmatprep.mubr.f32.mxu0 %v2635
  %2794 = vmatmul.mubr.f32.gmra.mxu0 %v2634
  %v2795 = vpop.f32.mrf.mxu0
  %v2796 = vadd.f32 0.0, %v2795
  %v2797 = vpop.f32.mrf.mxu0
  %2798 = vmatprep.mubr.f32.mxu0 %v2638
  %2799 = vmatmul.mubr.f32.gmra.mxu0 %v2637
  %v2800 = vpop.f32.mrf.mxu0
  %v2801 = vadd.f32 0.0, %v2800
  %v2802 = vpop.f32.mrf.mxu0
  %2803 = vmatprep.mubr.f32.mxu0 %v2641
  %2804 = vmatmul.mubr.f32.gmra.mxu0 %v2640
  %v2805 = vpop.f32.mrf.mxu0
  %v2806 = vadd.f32 0.0, %v2805
  %v2807 = vpop.f32.mrf.mxu0
  %2808 = vdwg.mxu0
  %2809 = vmatprep.subr.mxu0 0.0
  %2810 = vmatpush1.msra.mxu0 0.0
  %2811 = vmatprep.subr.mxu0 0.0
  %2812 = vmatpush1.msra.mxu0 0.0
  %2813 = vmatprep.subr.mxu0 0.0
  %2814 = vmatpush1.msra.mxu0 0.0
  %2815 = vmatprep.subr.mxu0 0.0
  %2816 = vmatpush1.msra.mxu0 0.0
  %2817 = vmatprep.subr.mxu0 0.0
  %2818 = vmatpush1.msra.mxu0 0.0
  %2819 = vmatprep.subr.mxu0 0.0
  %2820 = vmatpush1.msra.mxu0 0.0
  %2821 = vmatprep.subr.mxu0 0.0
  %2822 = vmatpush1.msra.mxu0 0.0
  %2823 = vmatprep.subr.mxu0 0.0
  %2824 = vmatpush1.msra.mxu0 0.0
  %2825 = vmatprep.subr.mxu0 0.0
  %2826 = vmatpush1.msra.mxu0 0.0
  %2827 = vmatprep.subr.mxu0 0.0
  %2828 = vmatpush1.msra.mxu0 0.0
  %2829 = vmatprep.subr.mxu0 0.0
  %2830 = vmatpush1.msra.mxu0 0.0
  %2831 = vmatprep.subr.mxu0 0.0
  %2832 = vmatpush1.msra.mxu0 %v2679
  %2833 = vmatprep.subr.mxu0 0.0
  %2834 = vmatpush1.msra.mxu0 %v2678
  %2835 = vmatprep.subr.mxu0 0.0
  %2836 = vmatpush1.msra.mxu0 %v2677
  %2837 = vmatprep.subr.mxu0 0.0
  %2838 = vmatpush1.msra.mxu0 %v2676
  %2839 = vmatprep.subr.mxu0 0.0
  %2840 = vmatpush1.msra.mxu0 %v2675
  %2841 = vmatprep.subr.mxu0 0.0
  %2842 = vmatpush2.msra.mxu0 0.0
  %2843 = vmatprep.subr.mxu0 0.0
  %2844 = vmatpush2.msra.mxu0 0.0
  %2845 = vmatprep.subr.mxu0 0.0
  %2846 = vmatpush2.msra.mxu0 0.0
  %2847 = vmatprep.subr.mxu0 0.0
  %2848 = vmatpush2.msra.mxu0 0.0
  %2849 = vmatprep.subr.mxu0 0.0
  %2850 = vmatpush2.msra.mxu0 0.0
  %2851 = vmatprep.subr.mxu0 0.0
  %2852 = vmatpush2.msra.mxu0 0.0
  %2853 = vmatprep.subr.mxu0 0.0
  %2854 = vmatpush2.msra.mxu0 0.0
  %2855 = vmatprep.subr.mxu0 0.0
  %2856 = vmatpush2.msra.mxu0 0.0
  %2857 = vmatprep.subr.mxu0 0.0
  %2858 = vmatpush2.msra.mxu0 0.0
  %2859 = vmatprep.subr.mxu0 0.0
  %2860 = vmatpush2.msra.mxu0 0.0
  %2861 = vmatprep.subr.mxu0 0.0
  %2862 = vmatpush2.msra.mxu0 0.0
  %2863 = vmatprep.subr.mxu0 0.0
  %2864 = vmatpush2.msra.mxu0 0.0
  %2865 = vmatprep.subr.mxu0 0.0
  %2866 = vmatpush2.msra.mxu0 0.0
  %2867 = vmatprep.subr.mxu0 0.0
  %2868 = vmatpush2.msra.mxu0 0.0
  %2869 = vmatprep.subr.mxu0 0.0
  %2870 = vmatpush2.msra.mxu0 0.0
  %2871 = vmatprep.subr.mxu0 0.0
  %2872 = vmatpush2.msra.mxu0 0.0
  %2873 = vmatprep.mubr.f32.mxu0 0.0
  %2874 = vmatmul.mubr.f32.gmra.mxu0 %v2681
  %v2875 = vpop.f32.mrf.mxu0
  %v2876 = vadd.f32 %v2771, %v2875
  %v2877 = vpop.f32.mrf.mxu0
  %2878 = vmatprep.mubr.f32.mxu0 0.0
  %2879 = vmatmul.mubr.f32.gmra.mxu0 %v2684
  %v2880 = vpop.f32.mrf.mxu0
  %v2881 = vadd.f32 %v2776, %v2880
  %v2882 = vpop.f32.mrf.mxu0
  %2883 = vmatprep.mubr.f32.mxu0 0.0
  %2884 = vmatmul.mubr.f32.gmra.mxu0 %v2687
  %v2885 = vpop.f32.mrf.mxu0
  %v2886 = vadd.f32 %v2781, %v2885
  %v2887 = vpop.f32.mrf.mxu0
  %2888 = vmatprep.mubr.f32.mxu0 0.0
  %2889 = vmatmul.mubr.f32.gmra.mxu0 %v2690
  %v2890 = vpop.f32.mrf.mxu0
  %v2891 = vadd.f32 %v2786, %v2890
  %v2892 = vpop.f32.mrf.mxu0
  %2893 = vmatprep.mubr.f32.mxu0 0.0
  %2894 = vmatmul.mubr.f32.gmra.mxu0 %v2693
  %v2895 = vpop.f32.mrf.mxu0
  %v2896 = vadd.f32 %v2791, %v2895
  %v2897 = vpop.f32.mrf.mxu0
  %2898 = vmatprep.mubr.f32.mxu0 0.0
  %2899 = vmatmul.mubr.f32.gmra.mxu0 %v2696
  %v2900 = vpop.f32.mrf.mxu0
  %v2901 = vadd.f32 %v2796, %v2900
  %v2902 = vpop.f32.mrf.mxu0
  %2903 = vmatprep.mubr.f32.mxu0 0.0
  %2904 = vmatmul.mubr.f32.gmra.mxu0 %v2699
  %v2905 = vpop.f32.mrf.mxu0
  %v2906 = vadd.f32 %v2801, %v2905
  %v2907 = vpop.f32.mrf.mxu0
  %2908 = vmatprep.mubr.f32.mxu0 0.0
  %2909 = vmatmul.mubr.f32.gmra.mxu0 %v2702
  %v2910 = vpop.f32.mrf.mxu0
  %v2911 = vadd.f32 %v2806, %v2910
  %v2912 = vpop.f32.mrf.mxu0
  %2913 = vdwg.mxu0
  %v2914 = vmax.f32 %v2876, 0.0
  %v2915 = vmax.f32 %v2881, 0.0
  %v2916 = vmax.f32 %v2886, 0.0
  %v2917 = vmax.f32 %v2891, 0.0
  %v2918 = vmax.f32 %v2896, 0.0
  %v2919 = vmax.f32 %v2901, 0.0
  %v2920 = vmax.f32 %v2906, 0.0
  %v2921 = vmax.f32 %v2911, 0.0
  %2930 = vrot.lane.b32.xlu0 %v2914, 8
  %v2931 = vpop.permute.xlu0 %2930
  %2932 = vrot.lane.b32.xlu0 %v2915, 8
  %v2933 = vpop.permute.xlu0 %2932
  %2934 = vrot.lane.b32.xlu0 %v2916, 8
  %v2935 = vpop.permute.xlu0 %2934
  %2936 = vrot.lane.b32.xlu0 %v2917, 8
  %v2937 = vpop.permute.xlu0 %2936
  %2938 = vrot.lane.b32.xlu0 %v2918, 8
  %v2939 = vpop.permute.xlu0 %2938
  %2940 = vrot.lane.b32.xlu0 %v2919, 8
  %v2941 = vpop.permute.xlu0 %2940
  %2942 = vrot.lane.b32.xlu0 %v2920, 8
  %v2943 = vpop.permute.xlu0 %2942
  %2944 = vrot.lane.b32.xlu0 %v2921, 8
  %v2945 = vpop.permute.xlu0 %2944
  %2954 = vst.msk [vmem:[#allocation3] sm:$0xff] %vm148, %v2931
  %2955 = vst.msk [vmem:[#allocation3 + $0x8] sm:$0xff] %vm150, %v2931
  %2956 = vst.msk [vmem:[#allocation3 + $0x10] sm:$0xff] %vm148, %v2933
  %2957 = vst.msk [vmem:[#allocation3 + $0x18] sm:$0xff] %vm150, %v2933
  %2958 = vst.msk [vmem:[#allocation3 + $0x20] sm:$0xff] %vm148, %v2935
  %2959 = vst.msk [vmem:[#allocation3 + $0x28] sm:$0xff] %vm150, %v2935
  %2960 = vst.msk [vmem:[#allocation3 + $0x30] sm:$0xff] %vm148, %v2937
  %2961 = vst.msk [vmem:[#allocation3 + $0x38] sm:$0xff] %vm150, %v2937
  %2962 = vst.msk [vmem:[#allocation3 + $0x40] sm:$0xff] %vm148, %v2939
  %2963 = vst.msk [vmem:[#allocation3 + $0x48] sm:$0xff] %vm150, %v2939
  %2964 = vst.msk [vmem:[#allocation3 + $0x50] sm:$0xff] %vm148, %v2941
  %2965 = vst.msk [vmem:[#allocation3 + $0x58] sm:$0xff] %vm150, %v2941
  %2966 = vst.msk [vmem:[#allocation3 + $0x60] sm:$0xff] %vm148, %v2943
  %2967 = vst.msk [vmem:[#allocation3 + $0x68] sm:$0xff] %vm150, %v2943
  %2968 = vst.msk [vmem:[#allocation3 + $0x70] sm:$0xff] %vm148, %v2945
  %2969 = vst.msk [vmem:[#allocation3 + $0x78] sm:$0xff] %vm150, %v2945
  %v2970 = vld [vmem:[#allocation3] sm:$0xff]
  %v2971 = vld [vmem:[#allocation3 + $0x10] sm:$0xff]
  %v2972 = vld [vmem:[#allocation3 + $0x20] sm:$0xff]
  %v2973 = vld [vmem:[#allocation3 + $0x30] sm:$0xff]
  %v2974 = vld [vmem:[#allocation3 + $0x40] sm:$0xff]
  %v2975 = vld [vmem:[#allocation3 + $0x50] sm:$0xff]
  %v2976 = vld [vmem:[#allocation3 + $0x60] sm:$0xff]
  %v2977 = vld [vmem:[#allocation3 + $0x70] sm:$0xff]
  %v2978 = vmul.f32 %v2970, %v81
  %v2979 = vmul.f32 %v2971, %v81
  %v2980 = vmul.f32 %v2972, %v81
  %v2981 = vmul.f32 %v2973, %v81
  %v2982 = vmul.f32 %v2974, %v81
  %v2983 = vmul.f32 %v2975, %v81
  %v2984 = vmul.f32 %v2976, %v81
  %v2985 = vmul.f32 %v2977, %v81
  %2986 = vst [vmem:[#allocation5] sm:$0xff] %v2978
  %2987 = vst [vmem:[#allocation5 + $0x8] sm:$0xff] %v2979
  %2988 = vst [vmem:[#allocation5 + $0x10] sm:$0xff] %v2980
  %2989 = vst [vmem:[#allocation5 + $0x18] sm:$0xff] %v2981
  %2990 = vst [vmem:[#allocation5 + $0x20] sm:$0xff] %v2982
  %2991 = vst [vmem:[#allocation5 + $0x28] sm:$0xff] %v2983
  %2992 = vst [vmem:[#allocation5 + $0x30] sm:$0xff] %v2984
  %2993 = vst [vmem:[#allocation5 + $0x38] sm:$0xff] %v2985
  %v2994 = vld [vmem:[#allocation3] sm:$0xff]
  %v2995 = vld [vmem:[#allocation3 + $0x8] sm:$0xff]
  %v2996 = vld [vmem:[#allocation3 + $0x10] sm:$0xff]
  %v2997 = vld [vmem:[#allocation3 + $0x18] sm:$0xff]
  %v2998 = vld [vmem:[#allocation3 + $0x20] sm:$0xff]
  %v2999 = vld [vmem:[#allocation3 + $0x28] sm:$0xff]
  %v3000 = vld [vmem:[#allocation3 + $0x30] sm:$0xff]
  %v3001 = vld [vmem:[#allocation3 + $0x38] sm:$0xff]
  %v3002 = vld [vmem:[#allocation3 + $0x40] sm:$0xff]
  %v3003 = vld [vmem:[#allocation3 + $0x48] sm:$0xff]
  %v3004 = vld [vmem:[#allocation3 + $0x50] sm:$0xff]
  %v3005 = vld [vmem:[#allocation3 + $0x58] sm:$0xff]
  %v3006 = vld [vmem:[#allocation3 + $0x60] sm:$0xff]
  %v3007 = vld [vmem:[#allocation3 + $0x68] sm:$0xff]
  %v3008 = vld [vmem:[#allocation3 + $0x70] sm:$0xff]
  %v3009 = vld [vmem:[#allocation3 + $0x78] sm:$0xff]
  %v3010 = vmul.f32 %v2994, %v180
  %v3011 = vmul.f32 %v2995, %v180
  %v3012 = vmul.f32 %v2996, %v180
  %v3013 = vmul.f32 %v2997, %v180
  %v3014 = vmul.f32 %v2998, %v180
  %v3015 = vmul.f32 %v2999, %v180
  %v3016 = vmul.f32 %v3000, %v180
  %v3017 = vmul.f32 %v3001, %v180
  %v3018 = vmul.f32 %v3002, %v180
  %v3019 = vmul.f32 %v3003, %v180
  %v3020 = vmul.f32 %v3004, %v180
  %v3021 = vmul.f32 %v3005, %v180
  %v3022 = vmul.f32 %v3006, %v180
  %v3023 = vmul.f32 %v3007, %v180
  %v3024 = vmul.f32 %v3008, %v180
  %v3025 = vmul.f32 %v3009, %v180
  %3042 = vrot.lane.b32.xlu0 %v3010, 127
  %v3043 = vpop.permute.xlu0 %3042
  %3044 = vrot.lane.b32.xlu0 %v3011, 127
  %v3045 = vpop.permute.xlu0 %3044
  %3046 = vrot.lane.b32.xlu0 %v3012, 127
  %v3047 = vpop.permute.xlu0 %3046
  %3048 = vrot.lane.b32.xlu0 %v3013, 127
  %v3049 = vpop.permute.xlu0 %3048
  %3050 = vrot.lane.b32.xlu0 %v3014, 127
  %v3051 = vpop.permute.xlu0 %3050
  %3052 = vrot.lane.b32.xlu0 %v3015, 127
  %v3053 = vpop.permute.xlu0 %3052
  %3054 = vrot.lane.b32.xlu0 %v3016, 127
  %v3055 = vpop.permute.xlu0 %3054
  %3056 = vrot.lane.b32.xlu0 %v3017, 127
  %v3057 = vpop.permute.xlu0 %3056
  %3058 = vrot.lane.b32.xlu0 %v3018, 127
  %v3059 = vpop.permute.xlu0 %3058
  %3060 = vrot.lane.b32.xlu0 %v3019, 127
  %v3061 = vpop.permute.xlu0 %3060
  %3062 = vrot.lane.b32.xlu0 %v3020, 127
  %v3063 = vpop.permute.xlu0 %3062
  %3064 = vrot.lane.b32.xlu0 %v3021, 127
  %v3065 = vpop.permute.xlu0 %3064
  %3066 = vrot.lane.b32.xlu0 %v3022, 127
  %v3067 = vpop.permute.xlu0 %3066
  %3068 = vrot.lane.b32.xlu0 %v3023, 127
  %v3069 = vpop.permute.xlu0 %3068
  %3070 = vrot.lane.b32.xlu0 %v3024, 127
  %v3071 = vpop.permute.xlu0 %3070
  %3072 = vrot.lane.b32.xlu0 %v3025, 127
  %v3073 = vpop.permute.xlu0 %3072
  %v3074 = vsel %vm214, %v3043, %v3045
  %v3075 = vsel %vm214, %v3047, %v3049
  %v3076 = vsel %vm214, %v3051, %v3053
  %v3077 = vsel %vm214, %v3055, %v3057
  %v3078 = vsel %vm214, %v3059, %v3061
  %v3079 = vsel %vm214, %v3063, %v3065
  %v3080 = vsel %vm214, %v3067, %v3069
  %v3081 = vsel %vm214, %v3071, %v3073
  %3090 = vst [vmem:[#allocation5 + $0x40] sm:$0xff] %v3074
  %3091 = vst [vmem:[#allocation5 + $0x48] sm:$0xff] %v3075
  %3092 = vst [vmem:[#allocation5 + $0x50] sm:$0xff] %v3076
  %3093 = vst [vmem:[#allocation5 + $0x58] sm:$0xff] %v3077
  %3094 = vst [vmem:[#allocation5 + $0x60] sm:$0xff] %v3078
  %3095 = vst [vmem:[#allocation5 + $0x68] sm:$0xff] %v3079
  %3096 = vst [vmem:[#allocation5 + $0x70] sm:$0xff] %v3080
  %3097 = vst [vmem:[#allocation5 + $0x78] sm:$0xff] %v3081
  %v3098 = vld [vmem:[#allocation3] sm:$0xff]
  %v3099 = vld [vmem:[#allocation3 + $0x8] sm:$0xff]
  %v3100 = vld [vmem:[#allocation3 + $0x10] sm:$0xff]
  %v3101 = vld [vmem:[#allocation3 + $0x18] sm:$0xff]
  %v3102 = vld [vmem:[#allocation3 + $0x20] sm:$0xff]
  %v3103 = vld [vmem:[#allocation3 + $0x28] sm:$0xff]
  %v3104 = vld [vmem:[#allocation3 + $0x30] sm:$0xff]
  %v3105 = vld [vmem:[#allocation3 + $0x38] sm:$0xff]
  %v3106 = vld [vmem:[#allocation3 + $0x40] sm:$0xff]
  %v3107 = vld [vmem:[#allocation3 + $0x48] sm:$0xff]
  %v3108 = vld [vmem:[#allocation3 + $0x50] sm:$0xff]
  %v3109 = vld [vmem:[#allocation3 + $0x58] sm:$0xff]
  %v3110 = vld [vmem:[#allocation3 + $0x60] sm:$0xff]
  %v3111 = vld [vmem:[#allocation3 + $0x68] sm:$0xff]
  %v3112 = vld [vmem:[#allocation3 + $0x70] sm:$0xff]
  %v3113 = vld [vmem:[#allocation3 + $0x78] sm:$0xff]
  %v3114 = vmul.f32 %v3098, %v237
  %v3115 = vmul.f32 %v3099, %v237
  %v3116 = vmul.f32 %v3100, %v237
  %v3117 = vmul.f32 %v3101, %v237
  %v3118 = vmul.f32 %v3102, %v237
  %v3119 = vmul.f32 %v3103, %v237
  %v3120 = vmul.f32 %v3104, %v237
  %v3121 = vmul.f32 %v3105, %v237
  %v3122 = vmul.f32 %v3106, %v237
  %v3123 = vmul.f32 %v3107, %v237
  %v3124 = vmul.f32 %v3108, %v237
  %v3125 = vmul.f32 %v3109, %v237
  %v3126 = vmul.f32 %v3110, %v237
  %v3127 = vmul.f32 %v3111, %v237
  %v3128 = vmul.f32 %v3112, %v237
  %v3129 = vmul.f32 %v3113, %v237
  %3146 = vrot.lane.b32.xlu0 %v3114, 126
  %v3147 = vpop.permute.xlu0 %3146
  %3148 = vrot.lane.b32.xlu0 %v3115, 126
  %v3149 = vpop.permute.xlu0 %3148
  %3150 = vrot.lane.b32.xlu0 %v3116, 126
  %v3151 = vpop.permute.xlu0 %3150
  %3152 = vrot.lane.b32.xlu0 %v3117, 126
  %v3153 = vpop.permute.xlu0 %3152
  %3154 = vrot.lane.b32.xlu0 %v3118, 126
  %v3155 = vpop.permute.xlu0 %3154
  %3156 = vrot.lane.b32.xlu0 %v3119, 126
  %v3157 = vpop.permute.xlu0 %3156
  %3158 = vrot.lane.b32.xlu0 %v3120, 126
  %v3159 = vpop.permute.xlu0 %3158
  %3160 = vrot.lane.b32.xlu0 %v3121, 126
  %v3161 = vpop.permute.xlu0 %3160
  %3162 = vrot.lane.b32.xlu0 %v3122, 126
  %v3163 = vpop.permute.xlu0 %3162
  %3164 = vrot.lane.b32.xlu0 %v3123, 126
  %v3165 = vpop.permute.xlu0 %3164
  %3166 = vrot.lane.b32.xlu0 %v3124, 126
  %v3167 = vpop.permute.xlu0 %3166
  %3168 = vrot.lane.b32.xlu0 %v3125, 126
  %v3169 = vpop.permute.xlu0 %3168
  %3170 = vrot.lane.b32.xlu0 %v3126, 126
  %v3171 = vpop.permute.xlu0 %3170
  %3172 = vrot.lane.b32.xlu0 %v3127, 126
  %v3173 = vpop.permute.xlu0 %3172
  %3174 = vrot.lane.b32.xlu0 %v3128, 126
  %v3175 = vpop.permute.xlu0 %3174
  %3176 = vrot.lane.b32.xlu0 %v3129, 126
  %v3177 = vpop.permute.xlu0 %3176
  %v3178 = vsel %vm271, %v3147, %v3149
  %v3179 = vsel %vm271, %v3151, %v3153
  %v3180 = vsel %vm271, %v3155, %v3157
  %v3181 = vsel %vm271, %v3159, %v3161
  %v3182 = vsel %vm271, %v3163, %v3165
  %v3183 = vsel %vm271, %v3167, %v3169
  %v3184 = vsel %vm271, %v3171, %v3173
  %v3185 = vsel %vm271, %v3175, %v3177
  %3194 = vst [vmem:[#allocation5 + $0x80] sm:$0xff] %v3178
  %3195 = vst [vmem:[#allocation5 + $0x88] sm:$0xff] %v3179
  %3196 = vst [vmem:[#allocation5 + $0x90] sm:$0xff] %v3180
  %3197 = vst [vmem:[#allocation5 + $0x98] sm:$0xff] %v3181
  %3198 = vst [vmem:[#allocation5 + $0xa0] sm:$0xff] %v3182
  %3199 = vst [vmem:[#allocation5 + $0xa8] sm:$0xff] %v3183
  %3200 = vst [vmem:[#allocation5 + $0xb0] sm:$0xff] %v3184
  %3201 = vst [vmem:[#allocation5 + $0xb8] sm:$0xff] %v3185
  %v3202 = vld [vmem:[#allocation3] sm:$0xff]
  %v3203 = vld [vmem:[#allocation3 + $0x8] sm:$0xff]
  %v3204 = vld [vmem:[#allocation3 + $0x10] sm:$0xff]
  %v3205 = vld [vmem:[#allocation3 + $0x18] sm:$0xff]
  %v3206 = vld [vmem:[#allocation3 + $0x20] sm:$0xff]
  %v3207 = vld [vmem:[#allocation3 + $0x28] sm:$0xff]
  %v3208 = vld [vmem:[#allocation3 + $0x30] sm:$0xff]
  %v3209 = vld [vmem:[#allocation3 + $0x38] sm:$0xff]
  %v3210 = vld [vmem:[#allocation3 + $0x40] sm:$0xff]
  %v3211 = vld [vmem:[#allocation3 + $0x48] sm:$0xff]
  %v3212 = vld [vmem:[#allocation3 + $0x50] sm:$0xff]
  %v3213 = vld [vmem:[#allocation3 + $0x58] sm:$0xff]
  %v3214 = vld [vmem:[#allocation3 + $0x60] sm:$0xff]
  %v3215 = vld [vmem:[#allocation3 + $0x68] sm:$0xff]
  %v3216 = vld [vmem:[#allocation3 + $0x70] sm:$0xff]
  %v3217 = vld [vmem:[#allocation3 + $0x78] sm:$0xff]
  %v3218 = vmul.f32 %v3202, %v294
  %v3219 = vmul.f32 %v3203, %v294
  %v3220 = vmul.f32 %v3204, %v294
  %v3221 = vmul.f32 %v3205, %v294
  %v3222 = vmul.f32 %v3206, %v294
  %v3223 = vmul.f32 %v3207, %v294
  %v3224 = vmul.f32 %v3208, %v294
  %v3225 = vmul.f32 %v3209, %v294
  %v3226 = vmul.f32 %v3210, %v294
  %v3227 = vmul.f32 %v3211, %v294
  %v3228 = vmul.f32 %v3212, %v294
  %v3229 = vmul.f32 %v3213, %v294
  %v3230 = vmul.f32 %v3214, %v294
  %v3231 = vmul.f32 %v3215, %v294
  %v3232 = vmul.f32 %v3216, %v294
  %v3233 = vmul.f32 %v3217, %v294
  %3250 = vrot.lane.b32.xlu0 %v3218, 121
  %v3251 = vpop.permute.xlu0 %3250
  %3252 = vrot.lane.b32.xlu0 %v3219, 121
  %v3253 = vpop.permute.xlu0 %3252
  %3254 = vrot.lane.b32.xlu0 %v3220, 121
  %v3255 = vpop.permute.xlu0 %3254
  %3256 = vrot.lane.b32.xlu0 %v3221, 121
  %v3257 = vpop.permute.xlu0 %3256
  %3258 = vrot.lane.b32.xlu0 %v3222, 121
  %v3259 = vpop.permute.xlu0 %3258
  %3260 = vrot.lane.b32.xlu0 %v3223, 121
  %v3261 = vpop.permute.xlu0 %3260
  %3262 = vrot.lane.b32.xlu0 %v3224, 121
  %v3263 = vpop.permute.xlu0 %3262
  %3264 = vrot.lane.b32.xlu0 %v3225, 121
  %v3265 = vpop.permute.xlu0 %3264
  %3266 = vrot.lane.b32.xlu0 %v3226, 121
  %v3267 = vpop.permute.xlu0 %3266
  %3268 = vrot.lane.b32.xlu0 %v3227, 121
  %v3269 = vpop.permute.xlu0 %3268
  %3270 = vrot.lane.b32.xlu0 %v3228, 121
  %v3271 = vpop.permute.xlu0 %3270
  %3272 = vrot.lane.b32.xlu0 %v3229, 121
  %v3273 = vpop.permute.xlu0 %3272
  %3274 = vrot.lane.b32.xlu0 %v3230, 121
  %v3275 = vpop.permute.xlu0 %3274
  %3276 = vrot.lane.b32.xlu0 %v3231, 121
  %v3277 = vpop.permute.xlu0 %3276
  %3278 = vrot.lane.b32.xlu0 %v3232, 121
  %v3279 = vpop.permute.xlu0 %3278
  %3280 = vrot.lane.b32.xlu0 %v3233, 121
  %v3281 = vpop.permute.xlu0 %3280
  %v3282 = vsel %vm328, %v3251, %v3253
  %v3283 = vsel %vm328, %v3255, %v3257
  %v3284 = vsel %vm328, %v3259, %v3261
  %v3285 = vsel %vm328, %v3263, %v3265
  %v3286 = vsel %vm328, %v3267, %v3269
  %v3287 = vsel %vm328, %v3271, %v3273
  %v3288 = vsel %vm328, %v3275, %v3277
  %v3289 = vsel %vm328, %v3279, %v3281
  %3298 = vst [vmem:[#allocation5 + $0xc0] sm:$0xff] %v3282
  %3299 = vst [vmem:[#allocation5 + $0xc8] sm:$0xff] %v3283
  %3300 = vst [vmem:[#allocation5 + $0xd0] sm:$0xff] %v3284
  %3301 = vst [vmem:[#allocation5 + $0xd8] sm:$0xff] %v3285
  %3302 = vst [vmem:[#allocation5 + $0xe0] sm:$0xff] %v3286
  %3303 = vst [vmem:[#allocation5 + $0xe8] sm:$0xff] %v3287
  %3304 = vst [vmem:[#allocation5 + $0xf0] sm:$0xff] %v3288
  %3305 = vst [vmem:[#allocation5 + $0xf8] sm:$0xff] %v3289
  %v3306 = vld [vmem:[#allocation3] sm:$0xff]
  %v3307 = vld [vmem:[#allocation3 + $0x8] sm:$0xff]
  %v3308 = vld [vmem:[#allocation3 + $0x10] sm:$0xff]
  %v3309 = vld [vmem:[#allocation3 + $0x18] sm:$0xff]
  %v3310 = vld [vmem:[#allocation3 + $0x20] sm:$0xff]
  %v3311 = vld [vmem:[#allocation3 + $0x28] sm:$0xff]
  %v3312 = vld [vmem:[#allocation3 + $0x30] sm:$0xff]
  %v3313 = vld [vmem:[#allocation3 + $0x38] sm:$0xff]
  %v3314 = vld [vmem:[#allocation3 + $0x40] sm:$0xff]
  %v3315 = vld [vmem:[#allocation3 + $0x48] sm:$0xff]
  %v3316 = vld [vmem:[#allocation3 + $0x50] sm:$0xff]
  %v3317 = vld [vmem:[#allocation3 + $0x58] sm:$0xff]
  %v3318 = vld [vmem:[#allocation3 + $0x60] sm:$0xff]
  %v3319 = vld [vmem:[#allocation3 + $0x68] sm:$0xff]
  %v3320 = vld [vmem:[#allocation3 + $0x70] sm:$0xff]
  %v3321 = vld [vmem:[#allocation3 + $0x78] sm:$0xff]
  %v3322 = vmul.f32 %v3306, %v351
  %v3323 = vmul.f32 %v3307, %v351
  %v3324 = vmul.f32 %v3308, %v351
  %v3325 = vmul.f32 %v3309, %v351
  %v3326 = vmul.f32 %v3310, %v351
  %v3327 = vmul.f32 %v3311, %v351
  %v3328 = vmul.f32 %v3312, %v351
  %v3329 = vmul.f32 %v3313, %v351
  %v3330 = vmul.f32 %v3314, %v351
  %v3331 = vmul.f32 %v3315, %v351
  %v3332 = vmul.f32 %v3316, %v351
  %v3333 = vmul.f32 %v3317, %v351
  %v3334 = vmul.f32 %v3318, %v351
  %v3335 = vmul.f32 %v3319, %v351
  %v3336 = vmul.f32 %v3320, %v351
  %v3337 = vmul.f32 %v3321, %v351
  %3354 = vrot.lane.b32.xlu0 %v3322, 120
  %v3355 = vpop.permute.xlu0 %3354
  %3356 = vrot.lane.b32.xlu0 %v3323, 120
  %v3357 = vpop.permute.xlu0 %3356
  %3358 = vrot.lane.b32.xlu0 %v3324, 120
  %v3359 = vpop.permute.xlu0 %3358
  %3360 = vrot.lane.b32.xlu0 %v3325, 120
  %v3361 = vpop.permute.xlu0 %3360
  %3362 = vrot.lane.b32.xlu0 %v3326, 120
  %v3363 = vpop.permute.xlu0 %3362
  %3364 = vrot.lane.b32.xlu0 %v3327, 120
  %v3365 = vpop.permute.xlu0 %3364
  %3366 = vrot.lane.b32.xlu0 %v3328, 120
  %v3367 = vpop.permute.xlu0 %3366
  %3368 = vrot.lane.b32.xlu0 %v3329, 120
  %v3369 = vpop.permute.xlu0 %3368
  %3370 = vrot.lane.b32.xlu0 %v3330, 120
  %v3371 = vpop.permute.xlu0 %3370
  %3372 = vrot.lane.b32.xlu0 %v3331, 120
  %v3373 = vpop.permute.xlu0 %3372
  %3374 = vrot.lane.b32.xlu0 %v3332, 120
  %v3375 = vpop.permute.xlu0 %3374
  %3376 = vrot.lane.b32.xlu0 %v3333, 120
  %v3377 = vpop.permute.xlu0 %3376
  %3378 = vrot.lane.b32.xlu0 %v3334, 120
  %v3379 = vpop.permute.xlu0 %3378
  %3380 = vrot.lane.b32.xlu0 %v3335, 120
  %v3381 = vpop.permute.xlu0 %3380
  %3382 = vrot.lane.b32.xlu0 %v3336, 120
  %v3383 = vpop.permute.xlu0 %3382
  %3384 = vrot.lane.b32.xlu0 %v3337, 120
  %v3385 = vpop.permute.xlu0 %3384
  %v3386 = vsel %vm385, %v3355, %v3357
  %v3387 = vsel %vm385, %v3359, %v3361
  %v3388 = vsel %vm385, %v3363, %v3365
  %v3389 = vsel %vm385, %v3367, %v3369
  %v3390 = vsel %vm385, %v3371, %v3373
  %v3391 = vsel %vm385, %v3375, %v3377
  %v3392 = vsel %vm385, %v3379, %v3381
  %v3393 = vsel %vm385, %v3383, %v3385
  %3402 = vst [vmem:[#allocation5 + $0x100] sm:$0xff] %v3386
  %3403 = vst [vmem:[#allocation5 + $0x108] sm:$0xff] %v3387
  %3404 = vst [vmem:[#allocation5 + $0x110] sm:$0xff] %v3388
  %3405 = vst [vmem:[#allocation5 + $0x118] sm:$0xff] %v3389
  %3406 = vst [vmem:[#allocation5 + $0x120] sm:$0xff] %v3390
  %3407 = vst [vmem:[#allocation5 + $0x128] sm:$0xff] %v3391
  %3408 = vst [vmem:[#allocation5 + $0x130] sm:$0xff] %v3392
  %3409 = vst [vmem:[#allocation5 + $0x138] sm:$0xff] %v3393
  %v3410 = vld [vmem:[#allocation3] sm:$0xff]
  %v3411 = vld [vmem:[#allocation3 + $0x8] sm:$0xff]
  %v3412 = vld [vmem:[#allocation3 + $0x10] sm:$0xff]
  %v3413 = vld [vmem:[#allocation3 + $0x18] sm:$0xff]
  %v3414 = vld [vmem:[#allocation3 + $0x20] sm:$0xff]
  %v3415 = vld [vmem:[#allocation3 + $0x28] sm:$0xff]
  %v3416 = vld [vmem:[#allocation3 + $0x30] sm:$0xff]
  %v3417 = vld [vmem:[#allocation3 + $0x38] sm:$0xff]
  %v3418 = vld [vmem:[#allocation3 + $0x40] sm:$0xff]
  %v3419 = vld [vmem:[#allocation3 + $0x48] sm:$0xff]
  %v3420 = vld [vmem:[#allocation3 + $0x50] sm:$0xff]
  %v3421 = vld [vmem:[#allocation3 + $0x58] sm:$0xff]
  %v3422 = vld [vmem:[#allocation3 + $0x60] sm:$0xff]
  %v3423 = vld [vmem:[#allocation3 + $0x68] sm:$0xff]
  %v3424 = vld [vmem:[#allocation3 + $0x70] sm:$0xff]
  %v3425 = vld [vmem:[#allocation3 + $0x78] sm:$0xff]
  %v3426 = vmul.f32 %v3410, %v408
  %v3427 = vmul.f32 %v3411, %v408
  %v3428 = vmul.f32 %v3412, %v408
  %v3429 = vmul.f32 %v3413, %v408
  %v3430 = vmul.f32 %v3414, %v408
  %v3431 = vmul.f32 %v3415, %v408
  %v3432 = vmul.f32 %v3416, %v408
  %v3433 = vmul.f32 %v3417, %v408
  %v3434 = vmul.f32 %v3418, %v408
  %v3435 = vmul.f32 %v3419, %v408
  %v3436 = vmul.f32 %v3420, %v408
  %v3437 = vmul.f32 %v3421, %v408
  %v3438 = vmul.f32 %v3422, %v408
  %v3439 = vmul.f32 %v3423, %v408
  %v3440 = vmul.f32 %v3424, %v408
  %v3441 = vmul.f32 %v3425, %v408
  %3458 = vrot.lane.b32.xlu0 %v3426, 119
  %v3459 = vpop.permute.xlu0 %3458
  %3460 = vrot.lane.b32.xlu0 %v3427, 119
  %v3461 = vpop.permute.xlu0 %3460
  %3462 = vrot.lane.b32.xlu0 %v3428, 119
  %v3463 = vpop.permute.xlu0 %3462
  %3464 = vrot.lane.b32.xlu0 %v3429, 119
  %v3465 = vpop.permute.xlu0 %3464
  %3466 = vrot.lane.b32.xlu0 %v3430, 119
  %v3467 = vpop.permute.xlu0 %3466
  %3468 = vrot.lane.b32.xlu0 %v3431, 119
  %v3469 = vpop.permute.xlu0 %3468
  %3470 = vrot.lane.b32.xlu0 %v3432, 119
  %v3471 = vpop.permute.xlu0 %3470
  %3472 = vrot.lane.b32.xlu0 %v3433, 119
  %v3473 = vpop.permute.xlu0 %3472
  %3474 = vrot.lane.b32.xlu0 %v3434, 119
  %v3475 = vpop.permute.xlu0 %3474
  %3476 = vrot.lane.b32.xlu0 %v3435, 119
  %v3477 = vpop.permute.xlu0 %3476
  %3478 = vrot.lane.b32.xlu0 %v3436, 119
  %v3479 = vpop.permute.xlu0 %3478
  %3480 = vrot.lane.b32.xlu0 %v3437, 119
  %v3481 = vpop.permute.xlu0 %3480
  %3482 = vrot.lane.b32.xlu0 %v3438, 119
  %v3483 = vpop.permute.xlu0 %3482
  %3484 = vrot.lane.b32.xlu0 %v3439, 119
  %v3485 = vpop.permute.xlu0 %3484
  %3486 = vrot.lane.b32.xlu0 %v3440, 119
  %v3487 = vpop.permute.xlu0 %3486
  %3488 = vrot.lane.b32.xlu0 %v3441, 119
  %v3489 = vpop.permute.xlu0 %3488
  %v3490 = vsel %vm442, %v3459, %v3461
  %v3491 = vsel %vm442, %v3463, %v3465
  %v3492 = vsel %vm442, %v3467, %v3469
  %v3493 = vsel %vm442, %v3471, %v3473
  %v3494 = vsel %vm442, %v3475, %v3477
  %v3495 = vsel %vm442, %v3479, %v3481
  %v3496 = vsel %vm442, %v3483, %v3485
  %v3497 = vsel %vm442, %v3487, %v3489
  %3506 = vst [vmem:[#allocation5 + $0x140] sm:$0xff] %v3490
  %3507 = vst [vmem:[#allocation5 + $0x148] sm:$0xff] %v3491
  %3508 = vst [vmem:[#allocation5 + $0x150] sm:$0xff] %v3492
  %3509 = vst [vmem:[#allocation5 + $0x158] sm:$0xff] %v3493
  %3510 = vst [vmem:[#allocation5 + $0x160] sm:$0xff] %v3494
  %3511 = vst [vmem:[#allocation5 + $0x168] sm:$0xff] %v3495
  %3512 = vst [vmem:[#allocation5 + $0x170] sm:$0xff] %v3496
  %3513 = vst [vmem:[#allocation5 + $0x178] sm:$0xff] %v3497
  %v3514 = vld [vmem:[#allocation3] sm:$0xff]
  %v3515 = vld [vmem:[#allocation3 + $0x8] sm:$0xff]
  %v3516 = vld [vmem:[#allocation3 + $0x10] sm:$0xff]
  %v3517 = vld [vmem:[#allocation3 + $0x18] sm:$0xff]
  %v3518 = vld [vmem:[#allocation3 + $0x20] sm:$0xff]
  %v3519 = vld [vmem:[#allocation3 + $0x28] sm:$0xff]
  %v3520 = vld [vmem:[#allocation3 + $0x30] sm:$0xff]
  %v3521 = vld [vmem:[#allocation3 + $0x38] sm:$0xff]
  %v3522 = vld [vmem:[#allocation3 + $0x40] sm:$0xff]
  %v3523 = vld [vmem:[#allocation3 + $0x48] sm:$0xff]
  %v3524 = vld [vmem:[#allocation3 + $0x50] sm:$0xff]
  %v3525 = vld [vmem:[#allocation3 + $0x58] sm:$0xff]
  %v3526 = vld [vmem:[#allocation3 + $0x60] sm:$0xff]
  %v3527 = vld [vmem:[#allocation3 + $0x68] sm:$0xff]
  %v3528 = vld [vmem:[#allocation3 + $0x70] sm:$0xff]
  %v3529 = vld [vmem:[#allocation3 + $0x78] sm:$0xff]
  %v3530 = vmul.f32 %v3514, %v465
  %v3531 = vmul.f32 %v3515, %v465
  %v3532 = vmul.f32 %v3516, %v465
  %v3533 = vmul.f32 %v3517, %v465
  %v3534 = vmul.f32 %v3518, %v465
  %v3535 = vmul.f32 %v3519, %v465
  %v3536 = vmul.f32 %v3520, %v465
  %v3537 = vmul.f32 %v3521, %v465
  %v3538 = vmul.f32 %v3522, %v465
  %v3539 = vmul.f32 %v3523, %v465
  %v3540 = vmul.f32 %v3524, %v465
  %v3541 = vmul.f32 %v3525, %v465
  %v3542 = vmul.f32 %v3526, %v465
  %v3543 = vmul.f32 %v3527, %v465
  %v3544 = vmul.f32 %v3528, %v465
  %v3545 = vmul.f32 %v3529, %v465
  %3562 = vrot.lane.b32.xlu0 %v3530, 114
  %v3563 = vpop.permute.xlu0 %3562
  %3564 = vrot.lane.b32.xlu0 %v3531, 114
  %v3565 = vpop.permute.xlu0 %3564
  %3566 = vrot.lane.b32.xlu0 %v3532, 114
  %v3567 = vpop.permute.xlu0 %3566
  %3568 = vrot.lane.b32.xlu0 %v3533, 114
  %v3569 = vpop.permute.xlu0 %3568
  %3570 = vrot.lane.b32.xlu0 %v3534, 114
  %v3571 = vpop.permute.xlu0 %3570
  %3572 = vrot.lane.b32.xlu0 %v3535, 114
  %v3573 = vpop.permute.xlu0 %3572
  %3574 = vrot.lane.b32.xlu0 %v3536, 114
  %v3575 = vpop.permute.xlu0 %3574
  %3576 = vrot.lane.b32.xlu0 %v3537, 114
  %v3577 = vpop.permute.xlu0 %3576
  %3578 = vrot.lane.b32.xlu0 %v3538, 114
  %v3579 = vpop.permute.xlu0 %3578
  %3580 = vrot.lane.b32.xlu0 %v3539, 114
  %v3581 = vpop.permute.xlu0 %3580
  %3582 = vrot.lane.b32.xlu0 %v3540, 114
  %v3583 = vpop.permute.xlu0 %3582
  %3584 = vrot.lane.b32.xlu0 %v3541, 114
  %v3585 = vpop.permute.xlu0 %3584
  %3586 = vrot.lane.b32.xlu0 %v3542, 114
  %v3587 = vpop.permute.xlu0 %3586
  %3588 = vrot.lane.b32.xlu0 %v3543, 114
  %v3589 = vpop.permute.xlu0 %3588
  %3590 = vrot.lane.b32.xlu0 %v3544, 114
  %v3591 = vpop.permute.xlu0 %3590
  %3592 = vrot.lane.b32.xlu0 %v3545, 114
  %v3593 = vpop.permute.xlu0 %3592
  %v3594 = vsel %vm499, %v3563, %v3565
  %v3595 = vsel %vm499, %v3567, %v3569
  %v3596 = vsel %vm499, %v3571, %v3573
  %v3597 = vsel %vm499, %v3575, %v3577
  %v3598 = vsel %vm499, %v3579, %v3581
  %v3599 = vsel %vm499, %v3583, %v3585
  %v3600 = vsel %vm499, %v3587, %v3589
  %v3601 = vsel %vm499, %v3591, %v3593
  %3610 = vst [vmem:[#allocation5 + $0x180] sm:$0xff] %v3594
  %3611 = vst [vmem:[#allocation5 + $0x188] sm:$0xff] %v3595
  %3612 = vst [vmem:[#allocation5 + $0x190] sm:$0xff] %v3596
  %3613 = vst [vmem:[#allocation5 + $0x198] sm:$0xff] %v3597
  %3614 = vst [vmem:[#allocation5 + $0x1a0] sm:$0xff] %v3598
  %3615 = vst [vmem:[#allocation5 + $0x1a8] sm:$0xff] %v3599
  %3616 = vst [vmem:[#allocation5 + $0x1b0] sm:$0xff] %v3600
  %3617 = vst [vmem:[#allocation5 + $0x1b8] sm:$0xff] %v3601
  %v3618 = vld [vmem:[#allocation3] sm:$0xff]
  %v3619 = vld [vmem:[#allocation3 + $0x8] sm:$0xff]
  %v3620 = vld [vmem:[#allocation3 + $0x10] sm:$0xff]
  %v3621 = vld [vmem:[#allocation3 + $0x18] sm:$0xff]
  %v3622 = vld [vmem:[#allocation3 + $0x20] sm:$0xff]
  %v3623 = vld [vmem:[#allocation3 + $0x28] sm:$0xff]
  %v3624 = vld [vmem:[#allocation3 + $0x30] sm:$0xff]
  %v3625 = vld [vmem:[#allocation3 + $0x38] sm:$0xff]
  %v3626 = vld [vmem:[#allocation3 + $0x40] sm:$0xff]
  %v3627 = vld [vmem:[#allocation3 + $0x48] sm:$0xff]
  %v3628 = vld [vmem:[#allocation3 + $0x50] sm:$0xff]
  %v3629 = vld [vmem:[#allocation3 + $0x58] sm:$0xff]
  %v3630 = vld [vmem:[#allocation3 + $0x60] sm:$0xff]
  %v3631 = vld [vmem:[#allocation3 + $0x68] sm:$0xff]
  %v3632 = vld [vmem:[#allocation3 + $0x70] sm:$0xff]
  %v3633 = vld [vmem:[#allocation3 + $0x78] sm:$0xff]
  %v3634 = vmul.f32 %v3618, %v522
  %v3635 = vmul.f32 %v3619, %v522
  %v3636 = vmul.f32 %v3620, %v522
  %v3637 = vmul.f32 %v3621, %v522
  %v3638 = vmul.f32 %v3622, %v522
  %v3639 = vmul.f32 %v3623, %v522
  %v3640 = vmul.f32 %v3624, %v522
  %v3641 = vmul.f32 %v3625, %v522
  %v3642 = vmul.f32 %v3626, %v522
  %v3643 = vmul.f32 %v3627, %v522
  %v3644 = vmul.f32 %v3628, %v522
  %v3645 = vmul.f32 %v3629, %v522
  %v3646 = vmul.f32 %v3630, %v522
  %v3647 = vmul.f32 %v3631, %v522
  %v3648 = vmul.f32 %v3632, %v522
  %v3649 = vmul.f32 %v3633, %v522
  %3666 = vrot.lane.b32.xlu0 %v3634, 113
  %v3667 = vpop.permute.xlu0 %3666
  %3668 = vrot.lane.b32.xlu0 %v3635, 113
  %v3669 = vpop.permute.xlu0 %3668
  %3670 = vrot.lane.b32.xlu0 %v3636, 113
  %v3671 = vpop.permute.xlu0 %3670
  %3672 = vrot.lane.b32.xlu0 %v3637, 113
  %v3673 = vpop.permute.xlu0 %3672
  %3674 = vrot.lane.b32.xlu0 %v3638, 113
  %v3675 = vpop.permute.xlu0 %3674
  %3676 = vrot.lane.b32.xlu0 %v3639, 113
  %v3677 = vpop.permute.xlu0 %3676
  %3678 = vrot.lane.b32.xlu0 %v3640, 113
  %v3679 = vpop.permute.xlu0 %3678
  %3680 = vrot.lane.b32.xlu0 %v3641, 113
  %v3681 = vpop.permute.xlu0 %3680
  %3682 = vrot.lane.b32.xlu0 %v3642, 113
  %v3683 = vpop.permute.xlu0 %3682
  %3684 = vrot.lane.b32.xlu0 %v3643, 113
  %v3685 = vpop.permute.xlu0 %3684
  %3686 = vrot.lane.b32.xlu0 %v3644, 113
  %v3687 = vpop.permute.xlu0 %3686
  %3688 = vrot.lane.b32.xlu0 %v3645, 113
  %v3689 = vpop.permute.xlu0 %3688
  %3690 = vrot.lane.b32.xlu0 %v3646, 113
  %v3691 = vpop.permute.xlu0 %3690
  %3692 = vrot.lane.b32.xlu0 %v3647, 113
  %v3693 = vpop.permute.xlu0 %3692
  %3694 = vrot.lane.b32.xlu0 %v3648, 113
  %v3695 = vpop.permute.xlu0 %3694
  %3696 = vrot.lane.b32.xlu0 %v3649, 113
  %v3697 = vpop.permute.xlu0 %3696
  %v3698 = vsel %vm556, %v3667, %v3669
  %v3699 = vsel %vm556, %v3671, %v3673
  %v3700 = vsel %vm556, %v3675, %v3677
  %v3701 = vsel %vm556, %v3679, %v3681
  %v3702 = vsel %vm556, %v3683, %v3685
  %v3703 = vsel %vm556, %v3687, %v3689
  %v3704 = vsel %vm556, %v3691, %v3693
  %v3705 = vsel %vm556, %v3695, %v3697
  %3714 = vst [vmem:[#allocation5 + $0x1c0] sm:$0xff] %v3698
  %3715 = vst [vmem:[#allocation5 + $0x1c8] sm:$0xff] %v3699
  %3716 = vst [vmem:[#allocation5 + $0x1d0] sm:$0xff] %v3700
  %3717 = vst [vmem:[#allocation5 + $0x1d8] sm:$0xff] %v3701
  %3718 = vst [vmem:[#allocation5 + $0x1e0] sm:$0xff] %v3702
  %3719 = vst [vmem:[#allocation5 + $0x1e8] sm:$0xff] %v3703
  %3720 = vst [vmem:[#allocation5 + $0x1f0] sm:$0xff] %v3704
  %3721 = vst [vmem:[#allocation5 + $0x1f8] sm:$0xff] %v3705
  %v3722 = vld [vmem:[#allocation3] sm:$0xff]
  %v3723 = vld [vmem:[#allocation3 + $0x8] sm:$0xff]
  %v3724 = vld [vmem:[#allocation3 + $0x10] sm:$0xff]
  %v3725 = vld [vmem:[#allocation3 + $0x18] sm:$0xff]
  %v3726 = vld [vmem:[#allocation3 + $0x20] sm:$0xff]
  %v3727 = vld [vmem:[#allocation3 + $0x28] sm:$0xff]
  %v3728 = vld [vmem:[#allocation3 + $0x30] sm:$0xff]
  %v3729 = vld [vmem:[#allocation3 + $0x38] sm:$0xff]
  %v3730 = vld [vmem:[#allocation3 + $0x40] sm:$0xff]
  %v3731 = vld [vmem:[#allocation3 + $0x48] sm:$0xff]
  %v3732 = vld [vmem:[#allocation3 + $0x50] sm:$0xff]
  %v3733 = vld [vmem:[#allocation3 + $0x58] sm:$0xff]
  %v3734 = vld [vmem:[#allocation3 + $0x60] sm:$0xff]
  %v3735 = vld [vmem:[#allocation3 + $0x68] sm:$0xff]
  %v3736 = vld [vmem:[#allocation3 + $0x70] sm:$0xff]
  %v3737 = vld [vmem:[#allocation3 + $0x78] sm:$0xff]
  %v3738 = vmul.f32 %v3722, %v579
  %v3739 = vmul.f32 %v3723, %v579
  %v3740 = vmul.f32 %v3724, %v579
  %v3741 = vmul.f32 %v3725, %v579
  %v3742 = vmul.f32 %v3726, %v579
  %v3743 = vmul.f32 %v3727, %v579
  %v3744 = vmul.f32 %v3728, %v579
  %v3745 = vmul.f32 %v3729, %v579
  %v3746 = vmul.f32 %v3730, %v579
  %v3747 = vmul.f32 %v3731, %v579
  %v3748 = vmul.f32 %v3732, %v579
  %v3749 = vmul.f32 %v3733, %v579
  %v3750 = vmul.f32 %v3734, %v579
  %v3751 = vmul.f32 %v3735, %v579
  %v3752 = vmul.f32 %v3736, %v579
  %v3753 = vmul.f32 %v3737, %v579
  %3770 = vrot.lane.b32.xlu0 %v3738, 112
  %v3771 = vpop.permute.xlu0 %3770
  %3772 = vrot.lane.b32.xlu0 %v3739, 112
  %v3773 = vpop.permute.xlu0 %3772
  %3774 = vrot.lane.b32.xlu0 %v3740, 112
  %v3775 = vpop.permute.xlu0 %3774
  %3776 = vrot.lane.b32.xlu0 %v3741, 112
  %v3777 = vpop.permute.xlu0 %3776
  %3778 = vrot.lane.b32.xlu0 %v3742, 112
  %v3779 = vpop.permute.xlu0 %3778
  %3780 = vrot.lane.b32.xlu0 %v3743, 112
  %v3781 = vpop.permute.xlu0 %3780
  %3782 = vrot.lane.b32.xlu0 %v3744, 112
  %v3783 = vpop.permute.xlu0 %3782
  %3784 = vrot.lane.b32.xlu0 %v3745, 112
  %v3785 = vpop.permute.xlu0 %3784
  %3786 = vrot.lane.b32.xlu0 %v3746, 112
  %v3787 = vpop.permute.xlu0 %3786
  %3788 = vrot.lane.b32.xlu0 %v3747, 112
  %v3789 = vpop.permute.xlu0 %3788
  %3790 = vrot.lane.b32.xlu0 %v3748, 112
  %v3791 = vpop.permute.xlu0 %3790
  %3792 = vrot.lane.b32.xlu0 %v3749, 112
  %v3793 = vpop.permute.xlu0 %3792
  %3794 = vrot.lane.b32.xlu0 %v3750, 112
  %v3795 = vpop.permute.xlu0 %3794
  %3796 = vrot.lane.b32.xlu0 %v3751, 112
  %v3797 = vpop.permute.xlu0 %3796
  %3798 = vrot.lane.b32.xlu0 %v3752, 112
  %v3799 = vpop.permute.xlu0 %3798
  %3800 = vrot.lane.b32.xlu0 %v3753, 112
  %v3801 = vpop.permute.xlu0 %3800
  %v3802 = vsel %vm613, %v3771, %v3773
  %v3803 = vsel %vm613, %v3775, %v3777
  %v3804 = vsel %vm613, %v3779, %v3781
  %v3805 = vsel %vm613, %v3783, %v3785
  %v3806 = vsel %vm613, %v3787, %v3789
  %v3807 = vsel %vm613, %v3791, %v3793
  %v3808 = vsel %vm613, %v3795, %v3797
  %v3809 = vsel %vm613, %v3799, %v3801
  %3818 = vst [vmem:[#allocation5 + $0x200] sm:$0xff] %v3802
  %3819 = vst [vmem:[#allocation5 + $0x208] sm:$0xff] %v3803
  %3820 = vst [vmem:[#allocation5 + $0x210] sm:$0xff] %v3804
  %3821 = vst [vmem:[#allocation5 + $0x218] sm:$0xff] %v3805
  %3822 = vst [vmem:[#allocation5 + $0x220] sm:$0xff] %v3806
  %3823 = vst [vmem:[#allocation5 + $0x228] sm:$0xff] %v3807
  %3824 = vst [vmem:[#allocation5 + $0x230] sm:$0xff] %v3808
  %3825 = vst [vmem:[#allocation5 + $0x238] sm:$0xff] %v3809
  %s3826 = scalar_lea.vmem %s2, 80
  %v3827 = vld [vmem:[%s3826] sm:$0xff]
  %v3828 = vld [vmem:[%s3826 + $0x8] sm:$0xff]
  %v3829 = vld [vmem:[%s3826 + $0x10] sm:$0xff]
  %v3830 = vld [vmem:[%s3826 + $0x18] sm:$0xff]
  %v3831 = vld [vmem:[%s3826 + $0x20] sm:$0xff]
  %v3832 = vld [vmem:[%s3826 + $0x28] sm:$0xff]
  %v3833 = vld [vmem:[%s3826 + $0x30] sm:$0xff]
  %v3834 = vld [vmem:[%s3826 + $0x38] sm:$0xff]
  %v3835 = vld [vmem:[%s3826 + $0x40] sm:$0xff]
  %v3836 = vld [vmem:[%s3826 + $0x48] sm:$0xff]
  %v3837 = vld [vmem:[#allocation5] sm:$0xff]
  %v3838 = vld [vmem:[#allocation5 + $0x8] sm:$0xff]
  %v3839 = vld [vmem:[#allocation5 + $0x10] sm:$0xff]
  %v3840 = vld [vmem:[#allocation5 + $0x18] sm:$0xff]
  %v3841 = vld [vmem:[#allocation5 + $0x20] sm:$0xff]
  %v3842 = vld [vmem:[#allocation5 + $0x28] sm:$0xff]
  %v3843 = vld [vmem:[#allocation5 + $0x30] sm:$0xff]
  %v3844 = vld [vmem:[#allocation5 + $0x38] sm:$0xff]
  %v3845 = vld [vmem:[#allocation5 + $0x40] sm:$0xff]
  %v3846 = vld [vmem:[#allocation5 + $0x48] sm:$0xff]
  %v3847 = vld [vmem:[#allocation5 + $0x50] sm:$0xff]
  %v3848 = vld [vmem:[#allocation5 + $0x58] sm:$0xff]
  %v3849 = vld [vmem:[#allocation5 + $0x60] sm:$0xff]
  %v3850 = vld [vmem:[#allocation5 + $0x68] sm:$0xff]
  %v3851 = vld [vmem:[#allocation5 + $0x70] sm:$0xff]
  %v3852 = vld [vmem:[#allocation5 + $0x78] sm:$0xff]
  %v3853 = vld [vmem:[#allocation5 + $0x80] sm:$0xff]
  %v3854 = vld [vmem:[#allocation5 + $0x88] sm:$0xff]
  %v3855 = vld [vmem:[#allocation5 + $0x90] sm:$0xff]
  %v3856 = vld [vmem:[#allocation5 + $0x98] sm:$0xff]
  %v3857 = vld [vmem:[#allocation5 + $0xa0] sm:$0xff]
  %v3858 = vld [vmem:[#allocation5 + $0xa8] sm:$0xff]
  %v3859 = vld [vmem:[#allocation5 + $0xb0] sm:$0xff]
  %v3860 = vld [vmem:[#allocation5 + $0xb8] sm:$0xff]
  %v3861 = vld [vmem:[#allocation5 + $0xc0] sm:$0xff]
  %v3862 = vld [vmem:[#allocation5 + $0xc8] sm:$0xff]
  %v3863 = vld [vmem:[#allocation5 + $0xd0] sm:$0xff]
  %v3864 = vld [vmem:[#allocation5 + $0xd8] sm:$0xff]
  %v3865 = vld [vmem:[#allocation5 + $0xe0] sm:$0xff]
  %v3866 = vld [vmem:[#allocation5 + $0xe8] sm:$0xff]
  %v3867 = vld [vmem:[#allocation5 + $0xf0] sm:$0xff]
  %v3868 = vld [vmem:[#allocation5 + $0xf8] sm:$0xff]
  %v3869 = vld [vmem:[#allocation5 + $0x100] sm:$0xff]
  %v3870 = vld [vmem:[#allocation5 + $0x108] sm:$0xff]
  %v3871 = vld [vmem:[#allocation5 + $0x110] sm:$0xff]
  %v3872 = vld [vmem:[#allocation5 + $0x118] sm:$0xff]
  %v3873 = vld [vmem:[#allocation5 + $0x120] sm:$0xff]
  %v3874 = vld [vmem:[#allocation5 + $0x128] sm:$0xff]
  %v3875 = vld [vmem:[#allocation5 + $0x130] sm:$0xff]
  %v3876 = vld [vmem:[#allocation5 + $0x138] sm:$0xff]
  %v3877 = vld [vmem:[#allocation5 + $0x140] sm:$0xff]
  %v3878 = vld [vmem:[#allocation5 + $0x148] sm:$0xff]
  %v3879 = vld [vmem:[#allocation5 + $0x150] sm:$0xff]
  %v3880 = vld [vmem:[#allocation5 + $0x158] sm:$0xff]
  %v3881 = vld [vmem:[#allocation5 + $0x160] sm:$0xff]
  %v3882 = vld [vmem:[#allocation5 + $0x168] sm:$0xff]
  %v3883 = vld [vmem:[#allocation5 + $0x170] sm:$0xff]
  %v3884 = vld [vmem:[#allocation5 + $0x178] sm:$0xff]
  %v3885 = vld [vmem:[#allocation5 + $0x180] sm:$0xff]
  %v3886 = vld [vmem:[#allocation5 + $0x188] sm:$0xff]
  %v3887 = vld [vmem:[#allocation5 + $0x190] sm:$0xff]
  %v3888 = vld [vmem:[#allocation5 + $0x198] sm:$0xff]
  %v3889 = vld [vmem:[#allocation5 + $0x1a0] sm:$0xff]
  %v3890 = vld [vmem:[#allocation5 + $0x1a8] sm:$0xff]
  %v3891 = vld [vmem:[#allocation5 + $0x1b0] sm:$0xff]
  %v3892 = vld [vmem:[#allocation5 + $0x1b8] sm:$0xff]
  %v3893 = vld [vmem:[#allocation5 + $0x1c0] sm:$0xff]
  %v3894 = vld [vmem:[#allocation5 + $0x1c8] sm:$0xff]
  %v3895 = vld [vmem:[#allocation5 + $0x1d0] sm:$0xff]
  %v3896 = vld [vmem:[#allocation5 + $0x1d8] sm:$0xff]
  %v3897 = vld [vmem:[#allocation5 + $0x1e0] sm:$0xff]
  %v3898 = vld [vmem:[#allocation5 + $0x1e8] sm:$0xff]
  %v3899 = vld [vmem:[#allocation5 + $0x1f0] sm:$0xff]
  %v3900 = vld [vmem:[#allocation5 + $0x1f8] sm:$0xff]
  %v3901 = vld [vmem:[#allocation5 + $0x200] sm:$0xff]
  %v3902 = vld [vmem:[#allocation5 + $0x208] sm:$0xff]
  %v3903 = vld [vmem:[#allocation5 + $0x210] sm:$0xff]
  %v3904 = vld [vmem:[#allocation5 + $0x218] sm:$0xff]
  %v3905 = vld [vmem:[#allocation5 + $0x220] sm:$0xff]
  %v3906 = vld [vmem:[#allocation5 + $0x228] sm:$0xff]
  %v3907 = vld [vmem:[#allocation5 + $0x230] sm:$0xff]
  %v3908 = vld [vmem:[#allocation5 + $0x238] sm:$0xff]
  %v3909 = vld [vmem:[#allocation5 + $0x240] sm:$0xff]
  %v3911 = vsel %vm1917, %v3831, 0
  %v3914 = vsel %vm1917, %v3836, 0
  %3916 = vmatprep.subr.mxu0 0.0
  %3917 = vmatpush1.msra.mxu0 %v3852
  %3918 = vmatprep.subr.mxu0 0.0
  %3919 = vmatpush1.msra.mxu0 %v3851
  %3920 = vmatprep.subr.mxu0 0.0
  %3921 = vmatpush1.msra.mxu0 %v3850
  %3922 = vmatprep.subr.mxu0 0.0
  %3923 = vmatpush1.msra.mxu0 %v3849
  %3924 = vmatprep.subr.mxu0 0.0
  %3925 = vmatpush1.msra.mxu0 %v3848
  %3926 = vmatprep.subr.mxu0 0.0
  %3927 = vmatpush1.msra.mxu0 %v3847
  %3928 = vmatprep.subr.mxu0 0.0
  %3929 = vmatpush1.msra.mxu0 %v3846
  %3930 = vmatprep.subr.mxu0 0.0
  %3931 = vmatpush1.msra.mxu0 %v3845
  %3932 = vmatprep.subr.mxu0 0.0
  %3933 = vmatpush1.msra.mxu0 %v3844
  %3934 = vmatprep.subr.mxu0 0.0
  %3935 = vmatpush1.msra.mxu0 %v3843
  %3936 = vmatprep.subr.mxu0 0.0
  %3937 = vmatpush1.msra.mxu0 %v3842
  %3938 = vmatprep.subr.mxu0 0.0
  %3939 = vmatpush1.msra.mxu0 %v3841
  %3940 = vmatprep.subr.mxu0 0.0
  %3941 = vmatpush1.msra.mxu0 %v3840
  %3942 = vmatprep.subr.mxu0 0.0
  %3943 = vmatpush1.msra.mxu0 %v3839
  %3944 = vmatprep.subr.mxu0 0.0
  %3945 = vmatpush1.msra.mxu0 %v3838
  %3946 = vmatprep.subr.mxu0 0.0
  %3947 = vmatpush1.msra.mxu0 %v3837
  %3948 = vmatprep.subr.mxu0 0.0
  %3949 = vmatpush2.msra.mxu0 %v3868
  %3950 = vmatprep.subr.mxu0 0.0
  %3951 = vmatpush2.msra.mxu0 %v3867
  %3952 = vmatprep.subr.mxu0 0.0
  %3953 = vmatpush2.msra.mxu0 %v3866
  %3954 = vmatprep.subr.mxu0 0.0
  %3955 = vmatpush2.msra.mxu0 %v3865
  %3956 = vmatprep.subr.mxu0 0.0
  %3957 = vmatpush2.msra.mxu0 %v3864
  %3958 = vmatprep.subr.mxu0 0.0
  %3959 = vmatpush2.msra.mxu0 %v3863
  %3960 = vmatprep.subr.mxu0 0.0
  %3961 = vmatpush2.msra.mxu0 %v3862
  %3962 = vmatprep.subr.mxu0 0.0
  %3963 = vmatpush2.msra.mxu0 %v3861
  %3964 = vmatprep.subr.mxu0 0.0
  %3965 = vmatpush2.msra.mxu0 %v3860
  %3966 = vmatprep.subr.mxu0 0.0
  %3967 = vmatpush2.msra.mxu0 %v3859
  %3968 = vmatprep.subr.mxu0 0.0
  %3969 = vmatpush2.msra.mxu0 %v3858
  %3970 = vmatprep.subr.mxu0 0.0
  %3971 = vmatpush2.msra.mxu0 %v3857
  %3972 = vmatprep.subr.mxu0 0.0
  %3973 = vmatpush2.msra.mxu0 %v3856
  %3974 = vmatprep.subr.mxu0 0.0
  %3975 = vmatpush2.msra.mxu0 %v3855
  %3976 = vmatprep.subr.mxu0 0.0
  %3977 = vmatpush2.msra.mxu0 %v3854
  %3978 = vmatprep.subr.mxu0 0.0
  %3979 = vmatpush2.msra.mxu0 %v3853
  %3980 = vmatprep.mubr.f32.mxu0 %v3828
  %3981 = vmatmul.mubr.f32.gmra.mxu0 %v3827
  %v3982 = vpop.f32.mrf.mxu0
  %v3983 = vadd.f32 0.0, %v3982
  %v3984 = vpop.f32.mrf.mxu0
  %3985 = vmatprep.mubr.f32.mxu0 %v3833
  %3986 = vmatmul.mubr.f32.gmra.mxu0 %v3832
  %v3987 = vpop.f32.mrf.mxu0
  %v3988 = vadd.f32 0.0, %v3987
  %v3989 = vpop.f32.mrf.mxu0
  %3990 = vdwg.mxu0
  %3991 = vmatprep.subr.mxu0 0.0
  %3992 = vmatpush1.msra.mxu0 %v3884
  %3993 = vmatprep.subr.mxu0 0.0
  %3994 = vmatpush1.msra.mxu0 %v3883
  %3995 = vmatprep.subr.mxu0 0.0
  %3996 = vmatpush1.msra.mxu0 %v3882
  %3997 = vmatprep.subr.mxu0 0.0
  %3998 = vmatpush1.msra.mxu0 %v3881
  %3999 = vmatprep.subr.mxu0 0.0
  %4000 = vmatpush1.msra.mxu0 %v3880
  %4001 = vmatprep.subr.mxu0 0.0
  %4002 = vmatpush1.msra.mxu0 %v3879
  %4003 = vmatprep.subr.mxu0 0.0
  %4004 = vmatpush1.msra.mxu0 %v3878
  %4005 = vmatprep.subr.mxu0 0.0
  %4006 = vmatpush1.msra.mxu0 %v3877
  %4007 = vmatprep.subr.mxu0 0.0
  %4008 = vmatpush1.msra.mxu0 %v3876
  %4009 = vmatprep.subr.mxu0 0.0
  %4010 = vmatpush1.msra.mxu0 %v3875
  %4011 = vmatprep.subr.mxu0 0.0
  %4012 = vmatpush1.msra.mxu0 %v3874
  %4013 = vmatprep.subr.mxu0 0.0
  %4014 = vmatpush1.msra.mxu0 %v3873
  %4015 = vmatprep.subr.mxu0 0.0
  %4016 = vmatpush1.msra.mxu0 %v3872
  %4017 = vmatprep.subr.mxu0 0.0
  %4018 = vmatpush1.msra.mxu0 %v3871
  %4019 = vmatprep.subr.mxu0 0.0
  %4020 = vmatpush1.msra.mxu0 %v3870
  %4021 = vmatprep.subr.mxu0 0.0
  %4022 = vmatpush1.msra.mxu0 %v3869
  %4023 = vmatprep.subr.mxu0 0.0
  %4024 = vmatpush2.msra.mxu0 %v3900
  %4025 = vmatprep.subr.mxu0 0.0
  %4026 = vmatpush2.msra.mxu0 %v3899
  %4027 = vmatprep.subr.mxu0 0.0
  %4028 = vmatpush2.msra.mxu0 %v3898
  %4029 = vmatprep.subr.mxu0 0.0
  %4030 = vmatpush2.msra.mxu0 %v3897
  %4031 = vmatprep.subr.mxu0 0.0
  %4032 = vmatpush2.msra.mxu0 %v3896
  %4033 = vmatprep.subr.mxu0 0.0
  %4034 = vmatpush2.msra.mxu0 %v3895
  %4035 = vmatprep.subr.mxu0 0.0
  %4036 = vmatpush2.msra.mxu0 %v3894
  %4037 = vmatprep.subr.mxu0 0.0
  %4038 = vmatpush2.msra.mxu0 %v3893
  %4039 = vmatprep.subr.mxu0 0.0
  %4040 = vmatpush2.msra.mxu0 %v3892
  %4041 = vmatprep.subr.mxu0 0.0
  %4042 = vmatpush2.msra.mxu0 %v3891
  %4043 = vmatprep.subr.mxu0 0.0
  %4044 = vmatpush2.msra.mxu0 %v3890
  %4045 = vmatprep.subr.mxu0 0.0
  %4046 = vmatpush2.msra.mxu0 %v3889
  %4047 = vmatprep.subr.mxu0 0.0
  %4048 = vmatpush2.msra.mxu0 %v3888
  %4049 = vmatprep.subr.mxu0 0.0
  %4050 = vmatpush2.msra.mxu0 %v3887
  %4051 = vmatprep.subr.mxu0 0.0
  %4052 = vmatpush2.msra.mxu0 %v3886
  %4053 = vmatprep.subr.mxu0 0.0
  %4054 = vmatpush2.msra.mxu0 %v3885
  %4055 = vmatprep.mubr.f32.mxu0 %v3830
  %4056 = vmatmul.mubr.f32.gmra.mxu0 %v3829
  %v4057 = vpop.f32.mrf.mxu0
  %v4058 = vadd.f32 %v3983, %v4057
  %v4059 = vpop.f32.mrf.mxu0
  %4060 = vmatprep.mubr.f32.mxu0 %v3835
  %4061 = vmatmul.mubr.f32.gmra.mxu0 %v3834
  %v4062 = vpop.f32.mrf.mxu0
  %v4063 = vadd.f32 %v3988, %v4062
  %v4064 = vpop.f32.mrf.mxu0
  %4065 = vdwg.mxu0
  %4066 = vmatprep.subr.mxu0 0.0
  %4067 = vmatpush1.msra.mxu0 0.0
  %4068 = vmatprep.subr.mxu0 0.0
  %4069 = vmatpush1.msra.mxu0 0.0
  %4070 = vmatprep.subr.mxu0 0.0
  %4071 = vmatpush1.msra.mxu0 0.0
  %4072 = vmatprep.subr.mxu0 0.0
  %4073 = vmatpush1.msra.mxu0 0.0
  %4074 = vmatprep.subr.mxu0 0.0
  %4075 = vmatpush1.msra.mxu0 0.0
  %4076 = vmatprep.subr.mxu0 0.0
  %4077 = vmatpush1.msra.mxu0 0.0
  %4078 = vmatprep.subr.mxu0 0.0
  %4079 = vmatpush1.msra.mxu0 0.0
  %4080 = vmatprep.subr.mxu0 0.0
  %4081 = vmatpush1.msra.mxu0 %v3909
  %4082 = vmatprep.subr.mxu0 0.0
  %4083 = vmatpush1.msra.mxu0 %v3908
  %4084 = vmatprep.subr.mxu0 0.0
  %4085 = vmatpush1.msra.mxu0 %v3907
  %4086 = vmatprep.subr.mxu0 0.0
  %4087 = vmatpush1.msra.mxu0 %v3906
  %4088 = vmatprep.subr.mxu0 0.0
  %4089 = vmatpush1.msra.mxu0 %v3905
  %4090 = vmatprep.subr.mxu0 0.0
  %4091 = vmatpush1.msra.mxu0 %v3904
  %4092 = vmatprep.subr.mxu0 0.0
  %4093 = vmatpush1.msra.mxu0 %v3903
  %4094 = vmatprep.subr.mxu0 0.0
  %4095 = vmatpush1.msra.mxu0 %v3902
  %4096 = vmatprep.subr.mxu0 0.0
  %4097 = vmatpush1.msra.mxu0 %v3901
  %4098 = vmatprep.subr.mxu0 0.0
  %4099 = vmatpush2.msra.mxu0 0.0
  %4100 = vmatprep.subr.mxu0 0.0
  %4101 = vmatpush2.msra.mxu0 0.0
  %4102 = vmatprep.subr.mxu0 0.0
  %4103 = vmatpush2.msra.mxu0 0.0
  %4104 = vmatprep.subr.mxu0 0.0
  %4105 = vmatpush2.msra.mxu0 0.0
  %4106 = vmatprep.subr.mxu0 0.0
  %4107 = vmatpush2.msra.mxu0 0.0
  %4108 = vmatprep.subr.mxu0 0.0
  %4109 = vmatpush2.msra.mxu0 0.0
  %4110 = vmatprep.subr.mxu0 0.0
  %4111 = vmatpush2.msra.mxu0 0.0
  %4112 = vmatprep.subr.mxu0 0.0
  %4113 = vmatpush2.msra.mxu0 0.0
  %4114 = vmatprep.subr.mxu0 0.0
  %4115 = vmatpush2.msra.mxu0 0.0
  %4116 = vmatprep.subr.mxu0 0.0
  %4117 = vmatpush2.msra.mxu0 0.0
  %4118 = vmatprep.subr.mxu0 0.0
  %4119 = vmatpush2.msra.mxu0 0.0
  %4120 = vmatprep.subr.mxu0 0.0
  %4121 = vmatpush2.msra.mxu0 0.0
  %4122 = vmatprep.subr.mxu0 0.0
  %4123 = vmatpush2.msra.mxu0 0.0
  %4124 = vmatprep.subr.mxu0 0.0
  %4125 = vmatpush2.msra.mxu0 0.0
  %4126 = vmatprep.subr.mxu0 0.0
  %4127 = vmatpush2.msra.mxu0 0.0
  %4128 = vmatprep.subr.mxu0 0.0
  %4129 = vmatpush2.msra.mxu0 0.0
  %4130 = vmatprep.mubr.f32.mxu0 0.0
  %4131 = vmatmul.mubr.f32.gmra.mxu0 %v3911
  %v4132 = vpop.f32.mrf.mxu0
  %v4133 = vadd.f32 %v4058, %v4132
  %v4134 = vpop.f32.mrf.mxu0
  %4135 = vmatprep.mubr.f32.mxu0 0.0
  %4136 = vmatmul.mubr.f32.gmra.mxu0 %v3914
  %v4137 = vpop.f32.mrf.mxu0
  %v4138 = vadd.f32 %v4063, %v4137
  %v4139 = vpop.f32.mrf.mxu0
  %4140 = vdwg.mxu0
  %v4141 = vsub.f32 0.0, %v4133
  %v4142 = vsub.f32 0.0, %v4138
  %v4143 = vmul.f32 %v4141, 1.442695
  %v4144 = vpow.pop %v4143
  %v4145 = vmul.f32 %v4142, 1.442695
  %v4146 = vpow.pop %v4145
  %v4147 = vadd.f32 %v4144, 1.0
  %v4148 = vadd.f32 %v4146, 1.0
  %v4149 = vrcp.pop %v4147
  %v4150 = vrcp.pop %v4148
  %s4151 = scalar_lea.vmem %s3, 16
  %4152 = vst [vmem:[%s4151] sm:$0xff] %v4149
  %4153 = vst [vmem:[%s4151 + $0x8] sm:$0xff] %v4150
  %s4154 = scalar_lea.vmem %s0, 64
  %v4155 = vld [vmem:[%s4154] sm:$0xff]
  %v4156 = vld [vmem:[%s4154 + $0x8] sm:$0xff]
  %v4157 = vld [vmem:[%s4154 + $0x10] sm:$0xff]
  %v4158 = vld [vmem:[%s4154 + $0x18] sm:$0xff]
  %4163 = vrot.lane.b32.xlu0 %v4155, 8
  %v4164 = vpop.permute.xlu0 %4163
  %4165 = vrot.lane.b32.xlu0 %v4156, 8
  %v4166 = vpop.permute.xlu0 %4165
  %4167 = vrot.lane.b32.xlu0 %v4157, 8
  %v4168 = vpop.permute.xlu0 %4167
  %4169 = vrot.lane.b32.xlu0 %v4158, 8
  %v4170 = vpop.permute.xlu0 %4169
  %4175 = vst.msk [vmem:[#allocation2] sm:$0xff] %vm148, %v4164
  %4176 = vst.msk [vmem:[#allocation2 + $0x8] sm:$0xff] %vm150, %v4164
  %4177 = vst.msk [vmem:[#allocation2 + $0x10] sm:$0xff] %vm148, %v4166
  %4178 = vst.msk [vmem:[#allocation2 + $0x18] sm:$0xff] %vm150, %v4166
  %4179 = vst.msk [vmem:[#allocation2 + $0x20] sm:$0xff] %vm148, %v4168
  %4180 = vst.msk [vmem:[#allocation2 + $0x28] sm:$0xff] %vm150, %v4168
  %4181 = vst.msk [vmem:[#allocation2 + $0x30] sm:$0xff] %vm148, %v4170
  %4182 = vst.msk [vmem:[#allocation2 + $0x38] sm:$0xff] %vm150, %v4170
  %v4183 = vld [vmem:[#allocation2] sm:$0xff]
  %v4184 = vld [vmem:[#allocation2 + $0x10] sm:$0xff]
  %v4185 = vld [vmem:[#allocation2 + $0x20] sm:$0xff]
  %v4186 = vld [vmem:[#allocation2 + $0x30] sm:$0xff]
  %v4187 = vmul.f32 %v4183, %v81
  %v4188 = vmul.f32 %v4184, %v81
  %v4189 = vmul.f32 %v4185, %v81
  %v4190 = vmul.f32 %v4186, %v81
  %4191 = vst [vmem:[#allocation4] sm:$0xff] %v4187
  %4192 = vst [vmem:[#allocation4 + $0x8] sm:$0xff] %v4188
  %4193 = vst [vmem:[#allocation4 + $0x10] sm:$0xff] %v4189
  %4194 = vst [vmem:[#allocation4 + $0x18] sm:$0xff] %v4190
  %v4195 = vld [vmem:[#allocation2] sm:$0xff]
  %v4196 = vld [vmem:[#allocation2 + $0x8] sm:$0xff]
  %v4197 = vld [vmem:[#allocation2 + $0x10] sm:$0xff]
  %v4198 = vld [vmem:[#allocation2 + $0x18] sm:$0xff]
  %v4199 = vld [vmem:[#allocation2 + $0x20] sm:$0xff]
  %v4200 = vld [vmem:[#allocation2 + $0x28] sm:$0xff]
  %v4201 = vld [vmem:[#allocation2 + $0x30] sm:$0xff]
  %v4202 = vld [vmem:[#allocation2 + $0x38] sm:$0xff]
  %v4203 = vmul.f32 %v4195, %v180
  %v4204 = vmul.f32 %v4196, %v180
  %v4205 = vmul.f32 %v4197, %v180
  %v4206 = vmul.f32 %v4198, %v180
  %v4207 = vmul.f32 %v4199, %v180
  %v4208 = vmul.f32 %v4200, %v180
  %v4209 = vmul.f32 %v4201, %v180
  %v4210 = vmul.f32 %v4202, %v180
  %4219 = vrot.lane.b32.xlu0 %v4203, 127
  %v4220 = vpop.permute.xlu0 %4219
  %4221 = vrot.lane.b32.xlu0 %v4204, 127
  %v4222 = vpop.permute.xlu0 %4221
  %4223 = vrot.lane.b32.xlu0 %v4205, 127
  %v4224 = vpop.permute.xlu0 %4223
  %4225 = vrot.lane.b32.xlu0 %v4206, 127
  %v4226 = vpop.permute.xlu0 %4225
  %4227 = vrot.lane.b32.xlu0 %v4207, 127
  %v4228 = vpop.permute.xlu0 %4227
  %4229 = vrot.lane.b32.xlu0 %v4208, 127
  %v4230 = vpop.permute.xlu0 %4229
  %4231 = vrot.lane.b32.xlu0 %v4209, 127
  %v4232 = vpop.permute.xlu0 %4231
  %4233 = vrot.lane.b32.xlu0 %v4210, 127
  %v4234 = vpop.permute.xlu0 %4233
  %v4235 = vsel %vm214, %v4220, %v4222
  %v4236 = vsel %vm214, %v4224, %v4226
  %v4237 = vsel %vm214, %v4228, %v4230
  %v4238 = vsel %vm214, %v4232, %v4234
  %4243 = vst [vmem:[#allocation4 + $0x20] sm:$0xff] %v4235
  %4244 = vst [vmem:[#allocation4 + $0x28] sm:$0xff] %v4236
  %4245 = vst [vmem:[#allocation4 + $0x30] sm:$0xff] %v4237
  %4246 = vst [vmem:[#allocation4 + $0x38] sm:$0xff] %v4238
  %v4247 = vld [vmem:[#allocation2] sm:$0xff]
  %v4248 = vld [vmem:[#allocation2 + $0x8] sm:$0xff]
  %v4249 = vld [vmem:[#allocation2 + $0x10] sm:$0xff]
  %v4250 = vld [vmem:[#allocation2 + $0x18] sm:$0xff]
  %v4251 = vld [vmem:[#allocation2 + $0x20] sm:$0xff]
  %v4252 = vld [vmem:[#allocation2 + $0x28] sm:$0xff]
  %v4253 = vld [vmem:[#allocation2 + $0x30] sm:$0xff]
  %v4254 = vld [vmem:[#allocation2 + $0x38] sm:$0xff]
  %v4255 = vmul.f32 %v4247, %v237
  %v4256 = vmul.f32 %v4248, %v237
  %v4257 = vmul.f32 %v4249, %v237
  %v4258 = vmul.f32 %v4250, %v237
  %v4259 = vmul.f32 %v4251, %v237
  %v4260 = vmul.f32 %v4252, %v237
  %v4261 = vmul.f32 %v4253, %v237
  %v4262 = vmul.f32 %v4254, %v237
  %4271 = vrot.lane.b32.xlu0 %v4255, 126
  %v4272 = vpop.permute.xlu0 %4271
  %4273 = vrot.lane.b32.xlu0 %v4256, 126
  %v4274 = vpop.permute.xlu0 %4273
  %4275 = vrot.lane.b32.xlu0 %v4257, 126
  %v4276 = vpop.permute.xlu0 %4275
  %4277 = vrot.lane.b32.xlu0 %v4258, 126
  %v4278 = vpop.permute.xlu0 %4277
  %4279 = vrot.lane.b32.xlu0 %v4259, 126
  %v4280 = vpop.permute.xlu0 %4279
  %4281 = vrot.lane.b32.xlu0 %v4260, 126
  %v4282 = vpop.permute.xlu0 %4281
  %4283 = vrot.lane.b32.xlu0 %v4261, 126
  %v4284 = vpop.permute.xlu0 %4283
  %4285 = vrot.lane.b32.xlu0 %v4262, 126
  %v4286 = vpop.permute.xlu0 %4285
  %v4287 = vsel %vm271, %v4272, %v4274
  %v4288 = vsel %vm271, %v4276, %v4278
  %v4289 = vsel %vm271, %v4280, %v4282
  %v4290 = vsel %vm271, %v4284, %v4286
  %4295 = vst [vmem:[#allocation4 + $0x40] sm:$0xff] %v4287
  %4296 = vst [vmem:[#allocation4 + $0x48] sm:$0xff] %v4288
  %4297 = vst [vmem:[#allocation4 + $0x50] sm:$0xff] %v4289
  %4298 = vst [vmem:[#allocation4 + $0x58] sm:$0xff] %v4290
  %v4299 = vld [vmem:[#allocation2] sm:$0xff]
  %v4300 = vld [vmem:[#allocation2 + $0x8] sm:$0xff]
  %v4301 = vld [vmem:[#allocation2 + $0x10] sm:$0xff]
  %v4302 = vld [vmem:[#allocation2 + $0x18] sm:$0xff]
  %v4303 = vld [vmem:[#allocation2 + $0x20] sm:$0xff]
  %v4304 = vld [vmem:[#allocation2 + $0x28] sm:$0xff]
  %v4305 = vld [vmem:[#allocation2 + $0x30] sm:$0xff]
  %v4306 = vld [vmem:[#allocation2 + $0x38] sm:$0xff]
  %v4307 = vmul.f32 %v4299, %v294
  %v4308 = vmul.f32 %v4300, %v294
  %v4309 = vmul.f32 %v4301, %v294
  %v4310 = vmul.f32 %v4302, %v294
  %v4311 = vmul.f32 %v4303, %v294
  %v4312 = vmul.f32 %v4304, %v294
  %v4313 = vmul.f32 %v4305, %v294
  %v4314 = vmul.f32 %v4306, %v294
  %4323 = vrot.lane.b32.xlu0 %v4307, 121
  %v4324 = vpop.permute.xlu0 %4323
  %4325 = vrot.lane.b32.xlu0 %v4308, 121
  %v4326 = vpop.permute.xlu0 %4325
  %4327 = vrot.lane.b32.xlu0 %v4309, 121
  %v4328 = vpop.permute.xlu0 %4327
  %4329 = vrot.lane.b32.xlu0 %v4310, 121
  %v4330 = vpop.permute.xlu0 %4329
  %4331 = vrot.lane.b32.xlu0 %v4311, 121
  %v4332 = vpop.permute.xlu0 %4331
  %4333 = vrot.lane.b32.xlu0 %v4312, 121
  %v4334 = vpop.permute.xlu0 %4333
  %4335 = vrot.lane.b32.xlu0 %v4313, 121
  %v4336 = vpop.permute.xlu0 %4335
  %4337 = vrot.lane.b32.xlu0 %v4314, 121
  %v4338 = vpop.permute.xlu0 %4337
  %v4339 = vsel %vm328, %v4324, %v4326
  %v4340 = vsel %vm328, %v4328, %v4330
  %v4341 = vsel %vm328, %v4332, %v4334
  %v4342 = vsel %vm328, %v4336, %v4338
  %4347 = vst [vmem:[#allocation4 + $0x60] sm:$0xff] %v4339
  %4348 = vst [vmem:[#allocation4 + $0x68] sm:$0xff] %v4340
  %4349 = vst [vmem:[#allocation4 + $0x70] sm:$0xff] %v4341
  %4350 = vst [vmem:[#allocation4 + $0x78] sm:$0xff] %v4342
  %v4351 = vld [vmem:[#allocation2] sm:$0xff]
  %v4352 = vld [vmem:[#allocation2 + $0x8] sm:$0xff]
  %v4353 = vld [vmem:[#allocation2 + $0x10] sm:$0xff]
  %v4354 = vld [vmem:[#allocation2 + $0x18] sm:$0xff]
  %v4355 = vld [vmem:[#allocation2 + $0x20] sm:$0xff]
  %v4356 = vld [vmem:[#allocation2 + $0x28] sm:$0xff]
  %v4357 = vld [vmem:[#allocation2 + $0x30] sm:$0xff]
  %v4358 = vld [vmem:[#allocation2 + $0x38] sm:$0xff]
  %v4359 = vmul.f32 %v4351, %v351
  %v4360 = vmul.f32 %v4352, %v351
  %v4361 = vmul.f32 %v4353, %v351
  %v4362 = vmul.f32 %v4354, %v351
  %v4363 = vmul.f32 %v4355, %v351
  %v4364 = vmul.f32 %v4356, %v351
  %v4365 = vmul.f32 %v4357, %v351
  %v4366 = vmul.f32 %v4358, %v351
  %4375 = vrot.lane.b32.xlu0 %v4359, 120
  %v4376 = vpop.permute.xlu0 %4375
  %4377 = vrot.lane.b32.xlu0 %v4360, 120
  %v4378 = vpop.permute.xlu0 %4377
  %4379 = vrot.lane.b32.xlu0 %v4361, 120
  %v4380 = vpop.permute.xlu0 %4379
  %4381 = vrot.lane.b32.xlu0 %v4362, 120
  %v4382 = vpop.permute.xlu0 %4381
  %4383 = vrot.lane.b32.xlu0 %v4363, 120
  %v4384 = vpop.permute.xlu0 %4383
  %4385 = vrot.lane.b32.xlu0 %v4364, 120
  %v4386 = vpop.permute.xlu0 %4385
  %4387 = vrot.lane.b32.xlu0 %v4365, 120
  %v4388 = vpop.permute.xlu0 %4387
  %4389 = vrot.lane.b32.xlu0 %v4366, 120
  %v4390 = vpop.permute.xlu0 %4389
  %v4391 = vsel %vm385, %v4376, %v4378
  %v4392 = vsel %vm385, %v4380, %v4382
  %v4393 = vsel %vm385, %v4384, %v4386
  %v4394 = vsel %vm385, %v4388, %v4390
  %4399 = vst [vmem:[#allocation4 + $0x80] sm:$0xff] %v4391
  %4400 = vst [vmem:[#allocation4 + $0x88] sm:$0xff] %v4392
  %4401 = vst [vmem:[#allocation4 + $0x90] sm:$0xff] %v4393
  %4402 = vst [vmem:[#allocation4 + $0x98] sm:$0xff] %v4394
  %v4403 = vld [vmem:[#allocation2] sm:$0xff]
  %v4404 = vld [vmem:[#allocation2 + $0x8] sm:$0xff]
  %v4405 = vld [vmem:[#allocation2 + $0x10] sm:$0xff]
  %v4406 = vld [vmem:[#allocation2 + $0x18] sm:$0xff]
  %v4407 = vld [vmem:[#allocation2 + $0x20] sm:$0xff]
  %v4408 = vld [vmem:[#allocation2 + $0x28] sm:$0xff]
  %v4409 = vld [vmem:[#allocation2 + $0x30] sm:$0xff]
  %v4410 = vld [vmem:[#allocation2 + $0x38] sm:$0xff]
  %v4411 = vmul.f32 %v4403, %v408
  %v4412 = vmul.f32 %v4404, %v408
  %v4413 = vmul.f32 %v4405, %v408
  %v4414 = vmul.f32 %v4406, %v408
  %v4415 = vmul.f32 %v4407, %v408
  %v4416 = vmul.f32 %v4408, %v408
  %v4417 = vmul.f32 %v4409, %v408
  %v4418 = vmul.f32 %v4410, %v408
  %4427 = vrot.lane.b32.xlu0 %v4411, 119
  %v4428 = vpop.permute.xlu0 %4427
  %4429 = vrot.lane.b32.xlu0 %v4412, 119
  %v4430 = vpop.permute.xlu0 %4429
  %4431 = vrot.lane.b32.xlu0 %v4413, 119
  %v4432 = vpop.permute.xlu0 %4431
  %4433 = vrot.lane.b32.xlu0 %v4414, 119
  %v4434 = vpop.permute.xlu0 %4433
  %4435 = vrot.lane.b32.xlu0 %v4415, 119
  %v4436 = vpop.permute.xlu0 %4435
  %4437 = vrot.lane.b32.xlu0 %v4416, 119
  %v4438 = vpop.permute.xlu0 %4437
  %4439 = vrot.lane.b32.xlu0 %v4417, 119
  %v4440 = vpop.permute.xlu0 %4439
  %4441 = vrot.lane.b32.xlu0 %v4418, 119
  %v4442 = vpop.permute.xlu0 %4441
  %v4443 = vsel %vm442, %v4428, %v4430
  %v4444 = vsel %vm442, %v4432, %v4434
  %v4445 = vsel %vm442, %v4436, %v4438
  %v4446 = vsel %vm442, %v4440, %v4442
  %4451 = vst [vmem:[#allocation4 + $0xa0] sm:$0xff] %v4443
  %4452 = vst [vmem:[#allocation4 + $0xa8] sm:$0xff] %v4444
  %4453 = vst [vmem:[#allocation4 + $0xb0] sm:$0xff] %v4445
  %4454 = vst [vmem:[#allocation4 + $0xb8] sm:$0xff] %v4446
  %v4455 = vld [vmem:[#allocation2] sm:$0xff]
  %v4456 = vld [vmem:[#allocation2 + $0x8] sm:$0xff]
  %v4457 = vld [vmem:[#allocation2 + $0x10] sm:$0xff]
  %v4458 = vld [vmem:[#allocation2 + $0x18] sm:$0xff]
  %v4459 = vld [vmem:[#allocation2 + $0x20] sm:$0xff]
  %v4460 = vld [vmem:[#allocation2 + $0x28] sm:$0xff]
  %v4461 = vld [vmem:[#allocation2 + $0x30] sm:$0xff]
  %v4462 = vld [vmem:[#allocation2 + $0x38] sm:$0xff]
  %v4463 = vmul.f32 %v4455, %v465
  %v4464 = vmul.f32 %v4456, %v465
  %v4465 = vmul.f32 %v4457, %v465
  %v4466 = vmul.f32 %v4458, %v465
  %v4467 = vmul.f32 %v4459, %v465
  %v4468 = vmul.f32 %v4460, %v465
  %v4469 = vmul.f32 %v4461, %v465
  %v4470 = vmul.f32 %v4462, %v465
  %4479 = vrot.lane.b32.xlu0 %v4463, 114
  %v4480 = vpop.permute.xlu0 %4479
  %4481 = vrot.lane.b32.xlu0 %v4464, 114
  %v4482 = vpop.permute.xlu0 %4481
  %4483 = vrot.lane.b32.xlu0 %v4465, 114
  %v4484 = vpop.permute.xlu0 %4483
  %4485 = vrot.lane.b32.xlu0 %v4466, 114
  %v4486 = vpop.permute.xlu0 %4485
  %4487 = vrot.lane.b32.xlu0 %v4467, 114
  %v4488 = vpop.permute.xlu0 %4487
  %4489 = vrot.lane.b32.xlu0 %v4468, 114
  %v4490 = vpop.permute.xlu0 %4489
  %4491 = vrot.lane.b32.xlu0 %v4469, 114
  %v4492 = vpop.permute.xlu0 %4491
  %4493 = vrot.lane.b32.xlu0 %v4470, 114
  %v4494 = vpop.permute.xlu0 %4493
  %v4495 = vsel %vm499, %v4480, %v4482
  %v4496 = vsel %vm499, %v4484, %v4486
  %v4497 = vsel %vm499, %v4488, %v4490
  %v4498 = vsel %vm499, %v4492, %v4494
  %4503 = vst [vmem:[#allocation4 + $0xc0] sm:$0xff] %v4495
  %4504 = vst [vmem:[#allocation4 + $0xc8] sm:$0xff] %v4496
  %4505 = vst [vmem:[#allocation4 + $0xd0] sm:$0xff] %v4497
  %4506 = vst [vmem:[#allocation4 + $0xd8] sm:$0xff] %v4498
  %v4507 = vld [vmem:[#allocation2] sm:$0xff]
  %v4508 = vld [vmem:[#allocation2 + $0x8] sm:$0xff]
  %v4509 = vld [vmem:[#allocation2 + $0x10] sm:$0xff]
  %v4510 = vld [vmem:[#allocation2 + $0x18] sm:$0xff]
  %v4511 = vld [vmem:[#allocation2 + $0x20] sm:$0xff]
  %v4512 = vld [vmem:[#allocation2 + $0x28] sm:$0xff]
  %v4513 = vld [vmem:[#allocation2 + $0x30] sm:$0xff]
  %v4514 = vld [vmem:[#allocation2 + $0x38] sm:$0xff]
  %v4515 = vmul.f32 %v4507, %v522
  %v4516 = vmul.f32 %v4508, %v522
  %v4517 = vmul.f32 %v4509, %v522
  %v4518 = vmul.f32 %v4510, %v522
  %v4519 = vmul.f32 %v4511, %v522
  %v4520 = vmul.f32 %v4512, %v522
  %v4521 = vmul.f32 %v4513, %v522
  %v4522 = vmul.f32 %v4514, %v522
  %4531 = vrot.lane.b32.xlu0 %v4515, 113
  %v4532 = vpop.permute.xlu0 %4531
  %4533 = vrot.lane.b32.xlu0 %v4516, 113
  %v4534 = vpop.permute.xlu0 %4533
  %4535 = vrot.lane.b32.xlu0 %v4517, 113
  %v4536 = vpop.permute.xlu0 %4535
  %4537 = vrot.lane.b32.xlu0 %v4518, 113
  %v4538 = vpop.permute.xlu0 %4537
  %4539 = vrot.lane.b32.xlu0 %v4519, 113
  %v4540 = vpop.permute.xlu0 %4539
  %4541 = vrot.lane.b32.xlu0 %v4520, 113
  %v4542 = vpop.permute.xlu0 %4541
  %4543 = vrot.lane.b32.xlu0 %v4521, 113
  %v4544 = vpop.permute.xlu0 %4543
  %4545 = vrot.lane.b32.xlu0 %v4522, 113
  %v4546 = vpop.permute.xlu0 %4545
  %v4547 = vsel %vm556, %v4532, %v4534
  %v4548 = vsel %vm556, %v4536, %v4538
  %v4549 = vsel %vm556, %v4540, %v4542
  %v4550 = vsel %vm556, %v4544, %v4546
  %4555 = vst [vmem:[#allocation4 + $0xe0] sm:$0xff] %v4547
  %4556 = vst [vmem:[#allocation4 + $0xe8] sm:$0xff] %v4548
  %4557 = vst [vmem:[#allocation4 + $0xf0] sm:$0xff] %v4549
  %4558 = vst [vmem:[#allocation4 + $0xf8] sm:$0xff] %v4550
  %v4559 = vld [vmem:[#allocation2] sm:$0xff]
  %v4560 = vld [vmem:[#allocation2 + $0x8] sm:$0xff]
  %v4561 = vld [vmem:[#allocation2 + $0x10] sm:$0xff]
  %v4562 = vld [vmem:[#allocation2 + $0x18] sm:$0xff]
  %v4563 = vld [vmem:[#allocation2 + $0x20] sm:$0xff]
  %v4564 = vld [vmem:[#allocation2 + $0x28] sm:$0xff]
  %v4565 = vld [vmem:[#allocation2 + $0x30] sm:$0xff]
  %v4566 = vld [vmem:[#allocation2 + $0x38] sm:$0xff]
  %v4567 = vmul.f32 %v4559, %v579
  %v4568 = vmul.f32 %v4560, %v579
  %v4569 = vmul.f32 %v4561, %v579
  %v4570 = vmul.f32 %v4562, %v579
  %v4571 = vmul.f32 %v4563, %v579
  %v4572 = vmul.f32 %v4564, %v579
  %v4573 = vmul.f32 %v4565, %v579
  %v4574 = vmul.f32 %v4566, %v579
  %4583 = vrot.lane.b32.xlu0 %v4567, 112
  %v4584 = vpop.permute.xlu0 %4583
  %4585 = vrot.lane.b32.xlu0 %v4568, 112
  %v4586 = vpop.permute.xlu0 %4585
  %4587 = vrot.lane.b32.xlu0 %v4569, 112
  %v4588 = vpop.permute.xlu0 %4587
  %4589 = vrot.lane.b32.xlu0 %v4570, 112
  %v4590 = vpop.permute.xlu0 %4589
  %4591 = vrot.lane.b32.xlu0 %v4571, 112
  %v4592 = vpop.permute.xlu0 %4591
  %4593 = vrot.lane.b32.xlu0 %v4572, 112
  %v4594 = vpop.permute.xlu0 %4593
  %4595 = vrot.lane.b32.xlu0 %v4573, 112
  %v4596 = vpop.permute.xlu0 %4595
  %4597 = vrot.lane.b32.xlu0 %v4574, 112
  %v4598 = vpop.permute.xlu0 %4597
  %v4599 = vsel %vm613, %v4584, %v4586
  %v4600 = vsel %vm613, %v4588, %v4590
  %v4601 = vsel %vm613, %v4592, %v4594
  %v4602 = vsel %vm613, %v4596, %v4598
  %4607 = vst [vmem:[#allocation4 + $0x100] sm:$0xff] %v4599
  %4608 = vst [vmem:[#allocation4 + $0x108] sm:$0xff] %v4600
  %4609 = vst [vmem:[#allocation4 + $0x110] sm:$0xff] %v4601
  %4610 = vst [vmem:[#allocation4 + $0x118] sm:$0xff] %v4602
  %s4611 = scalar_lea.vmem %s1, 384
  %v4612 = vld [vmem:[%s4611] sm:$0xff]
  %v4613 = vld [vmem:[%s4611 + $0x8] sm:$0xff]
  %v4614 = vld [vmem:[%s4611 + $0x10] sm:$0xff]
  %v4615 = vld [vmem:[%s4611 + $0x18] sm:$0xff]
  %v4616 = vld [vmem:[%s4611 + $0x20] sm:$0xff]
  %v4617 = vld [vmem:[%s4611 + $0x28] sm:$0xff]
  %v4618 = vld [vmem:[%s4611 + $0x30] sm:$0xff]
  %v4619 = vld [vmem:[%s4611 + $0x38] sm:$0xff]
  %v4620 = vld [vmem:[%s4611 + $0x40] sm:$0xff]
  %v4621 = vld [vmem:[%s4611 + $0x48] sm:$0xff]
  %v4622 = vld [vmem:[%s4611 + $0x50] sm:$0xff]
  %v4623 = vld [vmem:[%s4611 + $0x58] sm:$0xff]
  %v4624 = vld [vmem:[%s4611 + $0x60] sm:$0xff]
  %v4625 = vld [vmem:[%s4611 + $0x68] sm:$0xff]
  %v4626 = vld [vmem:[%s4611 + $0x70] sm:$0xff]
  %v4627 = vld [vmem:[%s4611 + $0x78] sm:$0xff]
  %v4628 = vld [vmem:[%s4611 + $0x80] sm:$0xff]
  %v4629 = vld [vmem:[%s4611 + $0x88] sm:$0xff]
  %v4630 = vld [vmem:[%s4611 + $0x90] sm:$0xff]
  %v4631 = vld [vmem:[%s4611 + $0x98] sm:$0xff]
  %v4632 = vld [vmem:[%s4611 + $0xa0] sm:$0xff]
  %v4633 = vld [vmem:[%s4611 + $0xa8] sm:$0xff]
  %v4634 = vld [vmem:[%s4611 + $0xb0] sm:$0xff]
  %v4635 = vld [vmem:[%s4611 + $0xb8] sm:$0xff]
  %v4636 = vld [vmem:[#allocation4] sm:$0xff]
  %v4637 = vld [vmem:[#allocation4 + $0x8] sm:$0xff]
  %v4638 = vld [vmem:[#allocation4 + $0x10] sm:$0xff]
  %v4639 = vld [vmem:[#allocation4 + $0x18] sm:$0xff]
  %v4640 = vld [vmem:[#allocation4 + $0x20] sm:$0xff]
  %v4641 = vld [vmem:[#allocation4 + $0x28] sm:$0xff]
  %v4642 = vld [vmem:[#allocation4 + $0x30] sm:$0xff]
  %v4643 = vld [vmem:[#allocation4 + $0x38] sm:$0xff]
  %v4644 = vld [vmem:[#allocation4 + $0x40] sm:$0xff]
  %v4645 = vld [vmem:[#allocation4 + $0x48] sm:$0xff]
  %v4646 = vld [vmem:[#allocation4 + $0x50] sm:$0xff]
  %v4647 = vld [vmem:[#allocation4 + $0x58] sm:$0xff]
  %v4648 = vld [vmem:[#allocation4 + $0x60] sm:$0xff]
  %v4649 = vld [vmem:[#allocation4 + $0x68] sm:$0xff]
  %v4650 = vld [vmem:[#allocation4 + $0x70] sm:$0xff]
  %v4651 = vld [vmem:[#allocation4 + $0x78] sm:$0xff]
  %v4652 = vld [vmem:[#allocation4 + $0x80] sm:$0xff]
  %v4653 = vld [vmem:[#allocation4 + $0x88] sm:$0xff]
  %v4654 = vld [vmem:[#allocation4 + $0x90] sm:$0xff]
  %v4655 = vld [vmem:[#allocation4 + $0x98] sm:$0xff]
  %v4656 = vld [vmem:[#allocation4 + $0xa0] sm:$0xff]
  %v4657 = vld [vmem:[#allocation4 + $0xa8] sm:$0xff]
  %v4658 = vld [vmem:[#allocation4 + $0xb0] sm:$0xff]
  %v4659 = vld [vmem:[#allocation4 + $0xb8] sm:$0xff]
  %v4660 = vld [vmem:[#allocation4 + $0xc0] sm:$0xff]
  %v4661 = vld [vmem:[#allocation4 + $0xc8] sm:$0xff]
  %v4662 = vld [vmem:[#allocation4 + $0xd0] sm:$0xff]
  %v4663 = vld [vmem:[#allocation4 + $0xd8] sm:$0xff]
  %v4664 = vld [vmem:[#allocation4 + $0xe0] sm:$0xff]
  %v4665 = vld [vmem:[#allocation4 + $0xe8] sm:$0xff]
  %v4666 = vld [vmem:[#allocation4 + $0xf0] sm:$0xff]
  %v4667 = vld [vmem:[#allocation4 + $0xf8] sm:$0xff]
  %v4668 = vld [vmem:[#allocation4 + $0x100] sm:$0xff]
  %v4669 = vld [vmem:[#allocation4 + $0x108] sm:$0xff]
  %v4670 = vld [vmem:[#allocation4 + $0x110] sm:$0xff]
  %v4671 = vld [vmem:[#allocation4 + $0x118] sm:$0xff]
  %v4672 = vld [vmem:[#allocation4 + $0x120] sm:$0xff]
  %v4674 = vsel %vm687, %v4614, 0
  %v4677 = vsel %vm687, %v4617, 0
  %v4680 = vsel %vm687, %v4620, 0
  %v4683 = vsel %vm687, %v4623, 0
  %v4686 = vsel %vm687, %v4626, 0
  %v4689 = vsel %vm687, %v4629, 0
  %v4692 = vsel %vm687, %v4632, 0
  %v4695 = vsel %vm687, %v4635, 0
  %4697 = vmatprep.subr.mxu0 0.0
  %4698 = vmatpush1.msra.mxu0 %v4651
  %4699 = vmatprep.subr.mxu0 0.0
  %4700 = vmatpush1.msra.mxu0 %v4650
  %4701 = vmatprep.subr.mxu0 0.0
  %4702 = vmatpush1.msra.mxu0 %v4649
  %4703 = vmatprep.subr.mxu0 0.0
  %4704 = vmatpush1.msra.mxu0 %v4648
  %4705 = vmatprep.subr.mxu0 0.0
  %4706 = vmatpush1.msra.mxu0 %v4647
  %4707 = vmatprep.subr.mxu0 0.0
  %4708 = vmatpush1.msra.mxu0 %v4646
  %4709 = vmatprep.subr.mxu0 0.0
  %4710 = vmatpush1.msra.mxu0 %v4645
  %4711 = vmatprep.subr.mxu0 0.0
  %4712 = vmatpush1.msra.mxu0 %v4644
  %4713 = vmatprep.subr.mxu0 0.0
  %4714 = vmatpush1.msra.mxu0 %v4643
  %4715 = vmatprep.subr.mxu0 0.0
  %4716 = vmatpush1.msra.mxu0 %v4642
  %4717 = vmatprep.subr.mxu0 0.0
  %4718 = vmatpush1.msra.mxu0 %v4641
  %4719 = vmatprep.subr.mxu0 0.0
  %4720 = vmatpush1.msra.mxu0 %v4640
  %4721 = vmatprep.subr.mxu0 0.0
  %4722 = vmatpush1.msra.mxu0 %v4639
  %4723 = vmatprep.subr.mxu0 0.0
  %4724 = vmatpush1.msra.mxu0 %v4638
  %4725 = vmatprep.subr.mxu0 0.0
  %4726 = vmatpush1.msra.mxu0 %v4637
  %4727 = vmatprep.subr.mxu0 0.0
  %4728 = vmatpush1.msra.mxu0 %v4636
  %4729 = vmatprep.subr.mxu0 0.0
  %4730 = vmatpush2.msra.mxu0 %v4667
  %4731 = vmatprep.subr.mxu0 0.0
  %4732 = vmatpush2.msra.mxu0 %v4666
  %4733 = vmatprep.subr.mxu0 0.0
  %4734 = vmatpush2.msra.mxu0 %v4665
  %4735 = vmatprep.subr.mxu0 0.0
  %4736 = vmatpush2.msra.mxu0 %v4664
  %4737 = vmatprep.subr.mxu0 0.0
  %4738 = vmatpush2.msra.mxu0 %v4663
  %4739 = vmatprep.subr.mxu0 0.0
  %4740 = vmatpush2.msra.mxu0 %v4662
  %4741 = vmatprep.subr.mxu0 0.0
  %4742 = vmatpush2.msra.mxu0 %v4661
  %4743 = vmatprep.subr.mxu0 0.0
  %4744 = vmatpush2.msra.mxu0 %v4660
  %4745 = vmatprep.subr.mxu0 0.0
  %4746 = vmatpush2.msra.mxu0 %v4659
  %4747 = vmatprep.subr.mxu0 0.0
  %4748 = vmatpush2.msra.mxu0 %v4658
  %4749 = vmatprep.subr.mxu0 0.0
  %4750 = vmatpush2.msra.mxu0 %v4657
  %4751 = vmatprep.subr.mxu0 0.0
  %4752 = vmatpush2.msra.mxu0 %v4656
  %4753 = vmatprep.subr.mxu0 0.0
  %4754 = vmatpush2.msra.mxu0 %v4655
  %4755 = vmatprep.subr.mxu0 0.0
  %4756 = vmatpush2.msra.mxu0 %v4654
  %4757 = vmatprep.subr.mxu0 0.0
  %4758 = vmatpush2.msra.mxu0 %v4653
  %4759 = vmatprep.subr.mxu0 0.0
  %4760 = vmatpush2.msra.mxu0 %v4652
  %4761 = vmatprep.mubr.f32.mxu0 %v4613
  %4762 = vmatmul.mubr.f32.gmra.mxu0 %v4612
  %v4763 = vpop.f32.mrf.mxu0
  %v4764 = vadd.f32 0.0, %v4763
  %v4765 = vpop.f32.mrf.mxu0
  %4766 = vmatprep.mubr.f32.mxu0 %v4616
  %4767 = vmatmul.mubr.f32.gmra.mxu0 %v4615
  %v4768 = vpop.f32.mrf.mxu0
  %v4769 = vadd.f32 0.0, %v4768
  %v4770 = vpop.f32.mrf.mxu0
  %4771 = vmatprep.mubr.f32.mxu0 %v4619
  %4772 = vmatmul.mubr.f32.gmra.mxu0 %v4618
  %v4773 = vpop.f32.mrf.mxu0
  %v4774 = vadd.f32 0.0, %v4773
  %v4775 = vpop.f32.mrf.mxu0
  %4776 = vmatprep.mubr.f32.mxu0 %v4622
  %4777 = vmatmul.mubr.f32.gmra.mxu0 %v4621
  %v4778 = vpop.f32.mrf.mxu0
  %v4779 = vadd.f32 0.0, %v4778
  %v4780 = vpop.f32.mrf.mxu0
  %4781 = vmatprep.mubr.f32.mxu0 %v4625
  %4782 = vmatmul.mubr.f32.gmra.mxu0 %v4624
  %v4783 = vpop.f32.mrf.mxu0
  %v4784 = vadd.f32 0.0, %v4783
  %v4785 = vpop.f32.mrf.mxu0
  %4786 = vmatprep.mubr.f32.mxu0 %v4628
  %4787 = vmatmul.mubr.f32.gmra.mxu0 %v4627
  %v4788 = vpop.f32.mrf.mxu0
  %v4789 = vadd.f32 0.0, %v4788
  %v4790 = vpop.f32.mrf.mxu0
  %4791 = vmatprep.mubr.f32.mxu0 %v4631
  %4792 = vmatmul.mubr.f32.gmra.mxu0 %v4630
  %v4793 = vpop.f32.mrf.mxu0
  %v4794 = vadd.f32 0.0, %v4793
  %v4795 = vpop.f32.mrf.mxu0
  %4796 = vmatprep.mubr.f32.mxu0 %v4634
  %4797 = vmatmul.mubr.f32.gmra.mxu0 %v4633
  %v4798 = vpop.f32.mrf.mxu0
  %v4799 = vadd.f32 0.0, %v4798
  %v4800 = vpop.f32.mrf.mxu0
  %4801 = vdwg.mxu0
  %4802 = vmatprep.subr.mxu0 0.0
  %4803 = vmatpush1.msra.mxu0 0.0
  %4804 = vmatprep.subr.mxu0 0.0
  %4805 = vmatpush1.msra.mxu0 0.0
  %4806 = vmatprep.subr.mxu0 0.0
  %4807 = vmatpush1.msra.mxu0 0.0
  %4808 = vmatprep.subr.mxu0 0.0
  %4809 = vmatpush1.msra.mxu0 0.0
  %4810 = vmatprep.subr.mxu0 0.0
  %4811 = vmatpush1.msra.mxu0 0.0
  %4812 = vmatprep.subr.mxu0 0.0
  %4813 = vmatpush1.msra.mxu0 0.0
  %4814 = vmatprep.subr.mxu0 0.0
  %4815 = vmatpush1.msra.mxu0 0.0
  %4816 = vmatprep.subr.mxu0 0.0
  %4817 = vmatpush1.msra.mxu0 0.0
  %4818 = vmatprep.subr.mxu0 0.0
  %4819 = vmatpush1.msra.mxu0 0.0
  %4820 = vmatprep.subr.mxu0 0.0
  %4821 = vmatpush1.msra.mxu0 0.0
  %4822 = vmatprep.subr.mxu0 0.0
  %4823 = vmatpush1.msra.mxu0 0.0
  %4824 = vmatprep.subr.mxu0 0.0
  %4825 = vmatpush1.msra.mxu0 %v4672
  %4826 = vmatprep.subr.mxu0 0.0
  %4827 = vmatpush1.msra.mxu0 %v4671
  %4828 = vmatprep.subr.mxu0 0.0
  %4829 = vmatpush1.msra.mxu0 %v4670
  %4830 = vmatprep.subr.mxu0 0.0
  %4831 = vmatpush1.msra.mxu0 %v4669
  %4832 = vmatprep.subr.mxu0 0.0
  %4833 = vmatpush1.msra.mxu0 %v4668
  %4834 = vmatprep.subr.mxu0 0.0
  %4835 = vmatpush2.msra.mxu0 0.0
  %4836 = vmatprep.subr.mxu0 0.0
  %4837 = vmatpush2.msra.mxu0 0.0
  %4838 = vmatprep.subr.mxu0 0.0
  %4839 = vmatpush2.msra.mxu0 0.0
  %4840 = vmatprep.subr.mxu0 0.0
  %4841 = vmatpush2.msra.mxu0 0.0
  %4842 = vmatprep.subr.mxu0 0.0
  %4843 = vmatpush2.msra.mxu0 0.0
  %4844 = vmatprep.subr.mxu0 0.0
  %4845 = vmatpush2.msra.mxu0 0.0
  %4846 = vmatprep.subr.mxu0 0.0
  %4847 = vmatpush2.msra.mxu0 0.0
  %4848 = vmatprep.subr.mxu0 0.0
  %4849 = vmatpush2.msra.mxu0 0.0
  %4850 = vmatprep.subr.mxu0 0.0
  %4851 = vmatpush2.msra.mxu0 0.0
  %4852 = vmatprep.subr.mxu0 0.0
  %4853 = vmatpush2.msra.mxu0 0.0
  %4854 = vmatprep.subr.mxu0 0.0
  %4855 = vmatpush2.msra.mxu0 0.0
  %4856 = vmatprep.subr.mxu0 0.0
  %4857 = vmatpush2.msra.mxu0 0.0
  %4858 = vmatprep.subr.mxu0 0.0
  %4859 = vmatpush2.msra.mxu0 0.0
  %4860 = vmatprep.subr.mxu0 0.0
  %4861 = vmatpush2.msra.mxu0 0.0
  %4862 = vmatprep.subr.mxu0 0.0
  %4863 = vmatpush2.msra.mxu0 0.0
  %4864 = vmatprep.subr.mxu0 0.0
  %4865 = vmatpush2.msra.mxu0 0.0
  %4866 = vmatprep.mubr.f32.mxu0 0.0
  %4867 = vmatmul.mubr.f32.gmra.mxu0 %v4674
  %v4868 = vpop.f32.mrf.mxu0
  %v4869 = vadd.f32 %v4764, %v4868
  %v4870 = vpop.f32.mrf.mxu0
  %4871 = vmatprep.mubr.f32.mxu0 0.0
  %4872 = vmatmul.mubr.f32.gmra.mxu0 %v4677
  %v4873 = vpop.f32.mrf.mxu0
  %v4874 = vadd.f32 %v4769, %v4873
  %v4875 = vpop.f32.mrf.mxu0
  %4876 = vmatprep.mubr.f32.mxu0 0.0
  %4877 = vmatmul.mubr.f32.gmra.mxu0 %v4680
  %v4878 = vpop.f32.mrf.mxu0
  %v4879 = vadd.f32 %v4774, %v4878
  %v4880 = vpop.f32.mrf.mxu0
  %4881 = vmatprep.mubr.f32.mxu0 0.0
  %4882 = vmatmul.mubr.f32.gmra.mxu0 %v4683
  %v4883 = vpop.f32.mrf.mxu0
  %v4884 = vadd.f32 %v4779, %v4883
  %v4885 = vpop.f32.mrf.mxu0
  %4886 = vmatprep.mubr.f32.mxu0 0.0
  %4887 = vmatmul.mubr.f32.gmra.mxu0 %v4686
  %v4888 = vpop.f32.mrf.mxu0
  %v4889 = vadd.f32 %v4784, %v4888
  %v4890 = vpop.f32.mrf.mxu0
  %4891 = vmatprep.mubr.f32.mxu0 0.0
  %4892 = vmatmul.mubr.f32.gmra.mxu0 %v4689
  %v4893 = vpop.f32.mrf.mxu0
  %v4894 = vadd.f32 %v4789, %v4893
  %v4895 = vpop.f32.mrf.mxu0
  %4896 = vmatprep.mubr.f32.mxu0 0.0
  %4897 = vmatmul.mubr.f32.gmra.mxu0 %v4692
  %v4898 = vpop.f32.mrf.mxu0
  %v4899 = vadd.f32 %v4794, %v4898
  %v4900 = vpop.f32.mrf.mxu0
  %4901 = vmatprep.mubr.f32.mxu0 0.0
  %4902 = vmatmul.mubr.f32.gmra.mxu0 %v4695
  %v4903 = vpop.f32.mrf.mxu0
  %v4904 = vadd.f32 %v4799, %v4903
  %v4905 = vpop.f32.mrf.mxu0
  %4906 = vdwg.mxu0
  %v4907 = vmax.f32 %v4869, 0.0
  %v4908 = vmax.f32 %v4874, 0.0
  %v4909 = vmax.f32 %v4879, 0.0
  %v4910 = vmax.f32 %v4884, 0.0
  %v4911 = vmax.f32 %v4889, 0.0
  %v4912 = vmax.f32 %v4894, 0.0
  %v4913 = vmax.f32 %v4899, 0.0
  %v4914 = vmax.f32 %v4904, 0.0
  %4923 = vrot.lane.b32.xlu0 %v4907, 8
  %v4924 = vpop.permute.xlu0 %4923
  %4925 = vrot.lane.b32.xlu0 %v4908, 8
  %v4926 = vpop.permute.xlu0 %4925
  %4927 = vrot.lane.b32.xlu0 %v4909, 8
  %v4928 = vpop.permute.xlu0 %4927
  %4929 = vrot.lane.b32.xlu0 %v4910, 8
  %v4930 = vpop.permute.xlu0 %4929
  %4931 = vrot.lane.b32.xlu0 %v4911, 8
  %v4932 = vpop.permute.xlu0 %4931
  %4933 = vrot.lane.b32.xlu0 %v4912, 8
  %v4934 = vpop.permute.xlu0 %4933
  %4935 = vrot.lane.b32.xlu0 %v4913, 8
  %v4936 = vpop.permute.xlu0 %4935
  %4937 = vrot.lane.b32.xlu0 %v4914, 8
  %v4938 = vpop.permute.xlu0 %4937
  %4947 = vst.msk [vmem:[#allocation3] sm:$0xff] %vm148, %v4924
  %4948 = vst.msk [vmem:[#allocation3 + $0x8] sm:$0xff] %vm150, %v4924
  %4949 = vst.msk [vmem:[#allocation3 + $0x10] sm:$0xff] %vm148, %v4926
  %4950 = vst.msk [vmem:[#allocation3 + $0x18] sm:$0xff] %vm150, %v4926
  %4951 = vst.msk [vmem:[#allocation3 + $0x20] sm:$0xff] %vm148, %v4928
  %4952 = vst.msk [vmem:[#allocation3 + $0x28] sm:$0xff] %vm150, %v4928
  %4953 = vst.msk [vmem:[#allocation3 + $0x30] sm:$0xff] %vm148, %v4930
  %4954 = vst.msk [vmem:[#allocation3 + $0x38] sm:$0xff] %vm150, %v4930
  %4955 = vst.msk [vmem:[#allocation3 + $0x40] sm:$0xff] %vm148, %v4932
  %4956 = vst.msk [vmem:[#allocation3 + $0x48] sm:$0xff] %vm150, %v4932
  %4957 = vst.msk [vmem:[#allocation3 + $0x50] sm:$0xff] %vm148, %v4934
  %4958 = vst.msk [vmem:[#allocation3 + $0x58] sm:$0xff] %vm150, %v4934
  %4959 = vst.msk [vmem:[#allocation3 + $0x60] sm:$0xff] %vm148, %v4936
  %4960 = vst.msk [vmem:[#allocation3 + $0x68] sm:$0xff] %vm150, %v4936
  %4961 = vst.msk [vmem:[#allocation3 + $0x70] sm:$0xff] %vm148, %v4938
  %4962 = vst.msk [vmem:[#allocation3 + $0x78] sm:$0xff] %vm150, %v4938
  %v4963 = vld [vmem:[#allocation3] sm:$0xff]
  %v4964 = vld [vmem:[#allocation3 + $0x10] sm:$0xff]
  %v4965 = vld [vmem:[#allocation3 + $0x20] sm:$0xff]
  %v4966 = vld [vmem:[#allocation3 + $0x30] sm:$0xff]
  %v4967 = vld [vmem:[#allocation3 + $0x40] sm:$0xff]
  %v4968 = vld [vmem:[#allocation3 + $0x50] sm:$0xff]
  %v4969 = vld [vmem:[#allocation3 + $0x60] sm:$0xff]
  %v4970 = vld [vmem:[#allocation3 + $0x70] sm:$0xff]
  %v4971 = vmul.f32 %v4963, %v81
  %v4972 = vmul.f32 %v4964, %v81
  %v4973 = vmul.f32 %v4965, %v81
  %v4974 = vmul.f32 %v4966, %v81
  %v4975 = vmul.f32 %v4967, %v81
  %v4976 = vmul.f32 %v4968, %v81
  %v4977 = vmul.f32 %v4969, %v81
  %v4978 = vmul.f32 %v4970, %v81
  %4979 = vst [vmem:[#allocation5] sm:$0xff] %v4971
  %4980 = vst [vmem:[#allocation5 + $0x8] sm:$0xff] %v4972
  %4981 = vst [vmem:[#allocation5 + $0x10] sm:$0xff] %v4973
  %4982 = vst [vmem:[#allocation5 + $0x18] sm:$0xff] %v4974
  %4983 = vst [vmem:[#allocation5 + $0x20] sm:$0xff] %v4975
  %4984 = vst [vmem:[#allocation5 + $0x28] sm:$0xff] %v4976
  %4985 = vst [vmem:[#allocation5 + $0x30] sm:$0xff] %v4977
  %4986 = vst [vmem:[#allocation5 + $0x38] sm:$0xff] %v4978
  %v4987 = vld [vmem:[#allocation3] sm:$0xff]
  %v4988 = vld [vmem:[#allocation3 + $0x8] sm:$0xff]
  %v4989 = vld [vmem:[#allocation3 + $0x10] sm:$0xff]
  %v4990 = vld [vmem:[#allocation3 + $0x18] sm:$0xff]
  %v4991 = vld [vmem:[#allocation3 + $0x20] sm:$0xff]
  %v4992 = vld [vmem:[#allocation3 + $0x28] sm:$0xff]
  %v4993 = vld [vmem:[#allocation3 + $0x30] sm:$0xff]
  %v4994 = vld [vmem:[#allocation3 + $0x38] sm:$0xff]
  %v4995 = vld [vmem:[#allocation3 + $0x40] sm:$0xff]
  %v4996 = vld [vmem:[#allocation3 + $0x48] sm:$0xff]
  %v4997 = vld [vmem:[#allocation3 + $0x50] sm:$0xff]
  %v4998 = vld [vmem:[#allocation3 + $0x58] sm:$0xff]
  %v4999 = vld [vmem:[#allocation3 + $0x60] sm:$0xff]
  %v5000 = vld [vmem:[#allocation3 + $0x68] sm:$0xff]
  %v5001 = vld [vmem:[#allocation3 + $0x70] sm:$0xff]
  %v5002 = vld [vmem:[#allocation3 + $0x78] sm:$0xff]
  %v5003 = vmul.f32 %v4987, %v180
  %v5004 = vmul.f32 %v4988, %v180
  %v5005 = vmul.f32 %v4989, %v180
  %v5006 = vmul.f32 %v4990, %v180
  %v5007 = vmul.f32 %v4991, %v180
  %v5008 = vmul.f32 %v4992, %v180
  %v5009 = vmul.f32 %v4993, %v180
  %v5010 = vmul.f32 %v4994, %v180
  %v5011 = vmul.f32 %v4995, %v180
  %v5012 = vmul.f32 %v4996, %v180
  %v5013 = vmul.f32 %v4997, %v180
  %v5014 = vmul.f32 %v4998, %v180
  %v5015 = vmul.f32 %v4999, %v180
  %v5016 = vmul.f32 %v5000, %v180
  %v5017 = vmul.f32 %v5001, %v180
  %v5018 = vmul.f32 %v5002, %v180
  %5035 = vrot.lane.b32.xlu0 %v5003, 127
  %v5036 = vpop.permute.xlu0 %5035
  %5037 = vrot.lane.b32.xlu0 %v5004, 127
  %v5038 = vpop.permute.xlu0 %5037
  %5039 = vrot.lane.b32.xlu0 %v5005, 127
  %v5040 = vpop.permute.xlu0 %5039
  %5041 = vrot.lane.b32.xlu0 %v5006, 127
  %v5042 = vpop.permute.xlu0 %5041
  %5043 = vrot.lane.b32.xlu0 %v5007, 127
  %v5044 = vpop.permute.xlu0 %5043
  %5045 = vrot.lane.b32.xlu0 %v5008, 127
  %v5046 = vpop.permute.xlu0 %5045
  %5047 = vrot.lane.b32.xlu0 %v5009, 127
  %v5048 = vpop.permute.xlu0 %5047
  %5049 = vrot.lane.b32.xlu0 %v5010, 127
  %v5050 = vpop.permute.xlu0 %5049
  %5051 = vrot.lane.b32.xlu0 %v5011, 127
  %v5052 = vpop.permute.xlu0 %5051
  %5053 = vrot.lane.b32.xlu0 %v5012, 127
  %v5054 = vpop.permute.xlu0 %5053
  %5055 = vrot.lane.b32.xlu0 %v5013, 127
  %v5056 = vpop.permute.xlu0 %5055
  %5057 = vrot.lane.b32.xlu0 %v5014, 127
  %v5058 = vpop.permute.xlu0 %5057
  %5059 = vrot.lane.b32.xlu0 %v5015, 127
  %v5060 = vpop.permute.xlu0 %5059
  %5061 = vrot.lane.b32.xlu0 %v5016, 127
  %v5062 = vpop.permute.xlu0 %5061
  %5063 = vrot.lane.b32.xlu0 %v5017, 127
  %v5064 = vpop.permute.xlu0 %5063
  %5065 = vrot.lane.b32.xlu0 %v5018, 127
  %v5066 = vpop.permute.xlu0 %5065
  %v5067 = vsel %vm214, %v5036, %v5038
  %v5068 = vsel %vm214, %v5040, %v5042
  %v5069 = vsel %vm214, %v5044, %v5046
  %v5070 = vsel %vm214, %v5048, %v5050
  %v5071 = vsel %vm214, %v5052, %v5054
  %v5072 = vsel %vm214, %v5056, %v5058
  %v5073 = vsel %vm214, %v5060, %v5062
  %v5074 = vsel %vm214, %v5064, %v5066
  %5083 = vst [vmem:[#allocation5 + $0x40] sm:$0xff] %v5067
  %5084 = vst [vmem:[#allocation5 + $0x48] sm:$0xff] %v5068
  %5085 = vst [vmem:[#allocation5 + $0x50] sm:$0xff] %v5069
  %5086 = vst [vmem:[#allocation5 + $0x58] sm:$0xff] %v5070
  %5087 = vst [vmem:[#allocation5 + $0x60] sm:$0xff] %v5071
  %5088 = vst [vmem:[#allocation5 + $0x68] sm:$0xff] %v5072
  %5089 = vst [vmem:[#allocation5 + $0x70] sm:$0xff] %v5073
  %5090 = vst [vmem:[#allocation5 + $0x78] sm:$0xff] %v5074
  %v5091 = vld [vmem:[#allocation3] sm:$0xff]
  %v5092 = vld [vmem:[#allocation3 + $0x8] sm:$0xff]
  %v5093 = vld [vmem:[#allocation3 + $0x10] sm:$0xff]
  %v5094 = vld [vmem:[#allocation3 + $0x18] sm:$0xff]
  %v5095 = vld [vmem:[#allocation3 + $0x20] sm:$0xff]
  %v5096 = vld [vmem:[#allocation3 + $0x28] sm:$0xff]
  %v5097 = vld [vmem:[#allocation3 + $0x30] sm:$0xff]
  %v5098 = vld [vmem:[#allocation3 + $0x38] sm:$0xff]
  %v5099 = vld [vmem:[#allocation3 + $0x40] sm:$0xff]
  %v5100 = vld [vmem:[#allocation3 + $0x48] sm:$0xff]
  %v5101 = vld [vmem:[#allocation3 + $0x50] sm:$0xff]
  %v5102 = vld [vmem:[#allocation3 + $0x58] sm:$0xff]
  %v5103 = vld [vmem:[#allocation3 + $0x60] sm:$0xff]
  %v5104 = vld [vmem:[#allocation3 + $0x68] sm:$0xff]
  %v5105 = vld [vmem:[#allocation3 + $0x70] sm:$0xff]
  %v5106 = vld [vmem:[#allocation3 + $0x78] sm:$0xff]
  %v5107 = vmul.f32 %v5091, %v237
  %v5108 = vmul.f32 %v5092, %v237
  %v5109 = vmul.f32 %v5093, %v237
  %v5110 = vmul.f32 %v5094, %v237
  %v5111 = vmul.f32 %v5095, %v237
  %v5112 = vmul.f32 %v5096, %v237
  %v5113 = vmul.f32 %v5097, %v237
  %v5114 = vmul.f32 %v5098, %v237
  %v5115 = vmul.f32 %v5099, %v237
  %v5116 = vmul.f32 %v5100, %v237
  %v5117 = vmul.f32 %v5101, %v237
  %v5118 = vmul.f32 %v5102, %v237
  %v5119 = vmul.f32 %v5103, %v237
  %v5120 = vmul.f32 %v5104, %v237
  %v5121 = vmul.f32 %v5105, %v237
  %v5122 = vmul.f32 %v5106, %v237
  %5139 = vrot.lane.b32.xlu0 %v5107, 126
  %v5140 = vpop.permute.xlu0 %5139
  %5141 = vrot.lane.b32.xlu0 %v5108, 126
  %v5142 = vpop.permute.xlu0 %5141
  %5143 = vrot.lane.b32.xlu0 %v5109, 126
  %v5144 = vpop.permute.xlu0 %5143
  %5145 = vrot.lane.b32.xlu0 %v5110, 126
  %v5146 = vpop.permute.xlu0 %5145
  %5147 = vrot.lane.b32.xlu0 %v5111, 126
  %v5148 = vpop.permute.xlu0 %5147
  %5149 = vrot.lane.b32.xlu0 %v5112, 126
  %v5150 = vpop.permute.xlu0 %5149
  %5151 = vrot.lane.b32.xlu0 %v5113, 126
  %v5152 = vpop.permute.xlu0 %5151
  %5153 = vrot.lane.b32.xlu0 %v5114, 126
  %v5154 = vpop.permute.xlu0 %5153
  %5155 = vrot.lane.b32.xlu0 %v5115, 126
  %v5156 = vpop.permute.xlu0 %5155
  %5157 = vrot.lane.b32.xlu0 %v5116, 126
  %v5158 = vpop.permute.xlu0 %5157
  %5159 = vrot.lane.b32.xlu0 %v5117, 126
  %v5160 = vpop.permute.xlu0 %5159
  %5161 = vrot.lane.b32.xlu0 %v5118, 126
  %v5162 = vpop.permute.xlu0 %5161
  %5163 = vrot.lane.b32.xlu0 %v5119, 126
  %v5164 = vpop.permute.xlu0 %5163
  %5165 = vrot.lane.b32.xlu0 %v5120, 126
  %v5166 = vpop.permute.xlu0 %5165
  %5167 = vrot.lane.b32.xlu0 %v5121, 126
  %v5168 = vpop.permute.xlu0 %5167
  %5169 = vrot.lane.b32.xlu0 %v5122, 126
  %v5170 = vpop.permute.xlu0 %5169
  %v5171 = vsel %vm271, %v5140, %v5142
  %v5172 = vsel %vm271, %v5144, %v5146
  %v5173 = vsel %vm271, %v5148, %v5150
  %v5174 = vsel %vm271, %v5152, %v5154
  %v5175 = vsel %vm271, %v5156, %v5158
  %v5176 = vsel %vm271, %v5160, %v5162
  %v5177 = vsel %vm271, %v5164, %v5166
  %v5178 = vsel %vm271, %v5168, %v5170
  %5187 = vst [vmem:[#allocation5 + $0x80] sm:$0xff] %v5171
  %5188 = vst [vmem:[#allocation5 + $0x88] sm:$0xff] %v5172
  %5189 = vst [vmem:[#allocation5 + $0x90] sm:$0xff] %v5173
  %5190 = vst [vmem:[#allocation5 + $0x98] sm:$0xff] %v5174
  %5191 = vst [vmem:[#allocation5 + $0xa0] sm:$0xff] %v5175
  %5192 = vst [vmem:[#allocation5 + $0xa8] sm:$0xff] %v5176
  %5193 = vst [vmem:[#allocation5 + $0xb0] sm:$0xff] %v5177
  %5194 = vst [vmem:[#allocation5 + $0xb8] sm:$0xff] %v5178
  %v5195 = vld [vmem:[#allocation3] sm:$0xff]
  %v5196 = vld [vmem:[#allocation3 + $0x8] sm:$0xff]
  %v5197 = vld [vmem:[#allocation3 + $0x10] sm:$0xff]
  %v5198 = vld [vmem:[#allocation3 + $0x18] sm:$0xff]
  %v5199 = vld [vmem:[#allocation3 + $0x20] sm:$0xff]
  %v5200 = vld [vmem:[#allocation3 + $0x28] sm:$0xff]
  %v5201 = vld [vmem:[#allocation3 + $0x30] sm:$0xff]
  %v5202 = vld [vmem:[#allocation3 + $0x38] sm:$0xff]
  %v5203 = vld [vmem:[#allocation3 + $0x40] sm:$0xff]
  %v5204 = vld [vmem:[#allocation3 + $0x48] sm:$0xff]
  %v5205 = vld [vmem:[#allocation3 + $0x50] sm:$0xff]
  %v5206 = vld [vmem:[#allocation3 + $0x58] sm:$0xff]
  %v5207 = vld [vmem:[#allocation3 + $0x60] sm:$0xff]
  %v5208 = vld [vmem:[#allocation3 + $0x68] sm:$0xff]
  %v5209 = vld [vmem:[#allocation3 + $0x70] sm:$0xff]
  %v5210 = vld [vmem:[#allocation3 + $0x78] sm:$0xff]
  %v5211 = vmul.f32 %v5195, %v294
  %v5212 = vmul.f32 %v5196, %v294
  %v5213 = vmul.f32 %v5197, %v294
  %v5214 = vmul.f32 %v5198, %v294
  %v5215 = vmul.f32 %v5199, %v294
  %v5216 = vmul.f32 %v5200, %v294
  %v5217 = vmul.f32 %v5201, %v294
  %v5218 = vmul.f32 %v5202, %v294
  %v5219 = vmul.f32 %v5203, %v294
  %v5220 = vmul.f32 %v5204, %v294
  %v5221 = vmul.f32 %v5205, %v294
  %v5222 = vmul.f32 %v5206, %v294
  %v5223 = vmul.f32 %v5207, %v294
  %v5224 = vmul.f32 %v5208, %v294
  %v5225 = vmul.f32 %v5209, %v294
  %v5226 = vmul.f32 %v5210, %v294
  %5243 = vrot.lane.b32.xlu0 %v5211, 121
  %v5244 = vpop.permute.xlu0 %5243
  %5245 = vrot.lane.b32.xlu0 %v5212, 121
  %v5246 = vpop.permute.xlu0 %5245
  %5247 = vrot.lane.b32.xlu0 %v5213, 121
  %v5248 = vpop.permute.xlu0 %5247
  %5249 = vrot.lane.b32.xlu0 %v5214, 121
  %v5250 = vpop.permute.xlu0 %5249
  %5251 = vrot.lane.b32.xlu0 %v5215, 121
  %v5252 = vpop.permute.xlu0 %5251
  %5253 = vrot.lane.b32.xlu0 %v5216, 121
  %v5254 = vpop.permute.xlu0 %5253
  %5255 = vrot.lane.b32.xlu0 %v5217, 121
  %v5256 = vpop.permute.xlu0 %5255
  %5257 = vrot.lane.b32.xlu0 %v5218, 121
  %v5258 = vpop.permute.xlu0 %5257
  %5259 = vrot.lane.b32.xlu0 %v5219, 121
  %v5260 = vpop.permute.xlu0 %5259
  %5261 = vrot.lane.b32.xlu0 %v5220, 121
  %v5262 = vpop.permute.xlu0 %5261
  %5263 = vrot.lane.b32.xlu0 %v5221, 121
  %v5264 = vpop.permute.xlu0 %5263
  %5265 = vrot.lane.b32.xlu0 %v5222, 121
  %v5266 = vpop.permute.xlu0 %5265
  %5267 = vrot.lane.b32.xlu0 %v5223, 121
  %v5268 = vpop.permute.xlu0 %5267
  %5269 = vrot.lane.b32.xlu0 %v5224, 121
  %v5270 = vpop.permute.xlu0 %5269
  %5271 = vrot.lane.b32.xlu0 %v5225, 121
  %v5272 = vpop.permute.xlu0 %5271
  %5273 = vrot.lane.b32.xlu0 %v5226, 121
  %v5274 = vpop.permute.xlu0 %5273
  %v5275 = vsel %vm328, %v5244, %v5246
  %v5276 = vsel %vm328, %v5248, %v5250
  %v5277 = vsel %vm328, %v5252, %v5254
  %v5278 = vsel %vm328, %v5256, %v5258
  %v5279 = vsel %vm328, %v5260, %v5262
  %v5280 = vsel %vm328, %v5264, %v5266
  %v5281 = vsel %vm328, %v5268, %v5270
  %v5282 = vsel %vm328, %v5272, %v5274
  %5291 = vst [vmem:[#allocation5 + $0xc0] sm:$0xff] %v5275
  %5292 = vst [vmem:[#allocation5 + $0xc8] sm:$0xff] %v5276
  %5293 = vst [vmem:[#allocation5 + $0xd0] sm:$0xff] %v5277
  %5294 = vst [vmem:[#allocation5 + $0xd8] sm:$0xff] %v5278
  %5295 = vst [vmem:[#allocation5 + $0xe0] sm:$0xff] %v5279
  %5296 = vst [vmem:[#allocation5 + $0xe8] sm:$0xff] %v5280
  %5297 = vst [vmem:[#allocation5 + $0xf0] sm:$0xff] %v5281
  %5298 = vst [vmem:[#allocation5 + $0xf8] sm:$0xff] %v5282
  %v5299 = vld [vmem:[#allocation3] sm:$0xff]
  %v5300 = vld [vmem:[#allocation3 + $0x8] sm:$0xff]
  %v5301 = vld [vmem:[#allocation3 + $0x10] sm:$0xff]
  %v5302 = vld [vmem:[#allocation3 + $0x18] sm:$0xff]
  %v5303 = vld [vmem:[#allocation3 + $0x20] sm:$0xff]
  %v5304 = vld [vmem:[#allocation3 + $0x28] sm:$0xff]
  %v5305 = vld [vmem:[#allocation3 + $0x30] sm:$0xff]
  %v5306 = vld [vmem:[#allocation3 + $0x38] sm:$0xff]
  %v5307 = vld [vmem:[#allocation3 + $0x40] sm:$0xff]
  %v5308 = vld [vmem:[#allocation3 + $0x48] sm:$0xff]
  %v5309 = vld [vmem:[#allocation3 + $0x50] sm:$0xff]
  %v5310 = vld [vmem:[#allocation3 + $0x58] sm:$0xff]
  %v5311 = vld [vmem:[#allocation3 + $0x60] sm:$0xff]
  %v5312 = vld [vmem:[#allocation3 + $0x68] sm:$0xff]
  %v5313 = vld [vmem:[#allocation3 + $0x70] sm:$0xff]
  %v5314 = vld [vmem:[#allocation3 + $0x78] sm:$0xff]
  %v5315 = vmul.f32 %v5299, %v351
  %v5316 = vmul.f32 %v5300, %v351
  %v5317 = vmul.f32 %v5301, %v351
  %v5318 = vmul.f32 %v5302, %v351
  %v5319 = vmul.f32 %v5303, %v351
  %v5320 = vmul.f32 %v5304, %v351
  %v5321 = vmul.f32 %v5305, %v351
  %v5322 = vmul.f32 %v5306, %v351
  %v5323 = vmul.f32 %v5307, %v351
  %v5324 = vmul.f32 %v5308, %v351
  %v5325 = vmul.f32 %v5309, %v351
  %v5326 = vmul.f32 %v5310, %v351
  %v5327 = vmul.f32 %v5311, %v351
  %v5328 = vmul.f32 %v5312, %v351
  %v5329 = vmul.f32 %v5313, %v351
  %v5330 = vmul.f32 %v5314, %v351
  %5347 = vrot.lane.b32.xlu0 %v5315, 120
  %v5348 = vpop.permute.xlu0 %5347
  %5349 = vrot.lane.b32.xlu0 %v5316, 120
  %v5350 = vpop.permute.xlu0 %5349
  %5351 = vrot.lane.b32.xlu0 %v5317, 120
  %v5352 = vpop.permute.xlu0 %5351
  %5353 = vrot.lane.b32.xlu0 %v5318, 120
  %v5354 = vpop.permute.xlu0 %5353
  %5355 = vrot.lane.b32.xlu0 %v5319, 120
  %v5356 = vpop.permute.xlu0 %5355
  %5357 = vrot.lane.b32.xlu0 %v5320, 120
  %v5358 = vpop.permute.xlu0 %5357
  %5359 = vrot.lane.b32.xlu0 %v5321, 120
  %v5360 = vpop.permute.xlu0 %5359
  %5361 = vrot.lane.b32.xlu0 %v5322, 120
  %v5362 = vpop.permute.xlu0 %5361
  %5363 = vrot.lane.b32.xlu0 %v5323, 120
  %v5364 = vpop.permute.xlu0 %5363
  %5365 = vrot.lane.b32.xlu0 %v5324, 120
  %v5366 = vpop.permute.xlu0 %5365
  %5367 = vrot.lane.b32.xlu0 %v5325, 120
  %v5368 = vpop.permute.xlu0 %5367
  %5369 = vrot.lane.b32.xlu0 %v5326, 120
  %v5370 = vpop.permute.xlu0 %5369
  %5371 = vrot.lane.b32.xlu0 %v5327, 120
  %v5372 = vpop.permute.xlu0 %5371
  %5373 = vrot.lane.b32.xlu0 %v5328, 120
  %v5374 = vpop.permute.xlu0 %5373
  %5375 = vrot.lane.b32.xlu0 %v5329, 120
  %v5376 = vpop.permute.xlu0 %5375
  %5377 = vrot.lane.b32.xlu0 %v5330, 120
  %v5378 = vpop.permute.xlu0 %5377
  %v5379 = vsel %vm385, %v5348, %v5350
  %v5380 = vsel %vm385, %v5352, %v5354
  %v5381 = vsel %vm385, %v5356, %v5358
  %v5382 = vsel %vm385, %v5360, %v5362
  %v5383 = vsel %vm385, %v5364, %v5366
  %v5384 = vsel %vm385, %v5368, %v5370
  %v5385 = vsel %vm385, %v5372, %v5374
  %v5386 = vsel %vm385, %v5376, %v5378
  %5395 = vst [vmem:[#allocation5 + $0x100] sm:$0xff] %v5379
  %5396 = vst [vmem:[#allocation5 + $0x108] sm:$0xff] %v5380
  %5397 = vst [vmem:[#allocation5 + $0x110] sm:$0xff] %v5381
  %5398 = vst [vmem:[#allocation5 + $0x118] sm:$0xff] %v5382
  %5399 = vst [vmem:[#allocation5 + $0x120] sm:$0xff] %v5383
  %5400 = vst [vmem:[#allocation5 + $0x128] sm:$0xff] %v5384
  %5401 = vst [vmem:[#allocation5 + $0x130] sm:$0xff] %v5385
  %5402 = vst [vmem:[#allocation5 + $0x138] sm:$0xff] %v5386
  %v5403 = vld [vmem:[#allocation3] sm:$0xff]
  %v5404 = vld [vmem:[#allocation3 + $0x8] sm:$0xff]
  %v5405 = vld [vmem:[#allocation3 + $0x10] sm:$0xff]
  %v5406 = vld [vmem:[#allocation3 + $0x18] sm:$0xff]
  %v5407 = vld [vmem:[#allocation3 + $0x20] sm:$0xff]
  %v5408 = vld [vmem:[#allocation3 + $0x28] sm:$0xff]
  %v5409 = vld [vmem:[#allocation3 + $0x30] sm:$0xff]
  %v5410 = vld [vmem:[#allocation3 + $0x38] sm:$0xff]
  %v5411 = vld [vmem:[#allocation3 + $0x40] sm:$0xff]
  %v5412 = vld [vmem:[#allocation3 + $0x48] sm:$0xff]
  %v5413 = vld [vmem:[#allocation3 + $0x50] sm:$0xff]
  %v5414 = vld [vmem:[#allocation3 + $0x58] sm:$0xff]
  %v5415 = vld [vmem:[#allocation3 + $0x60] sm:$0xff]
  %v5416 = vld [vmem:[#allocation3 + $0x68] sm:$0xff]
  %v5417 = vld [vmem:[#allocation3 + $0x70] sm:$0xff]
  %v5418 = vld [vmem:[#allocation3 + $0x78] sm:$0xff]
  %v5419 = vmul.f32 %v5403, %v408
  %v5420 = vmul.f32 %v5404, %v408
  %v5421 = vmul.f32 %v5405, %v408
  %v5422 = vmul.f32 %v5406, %v408
  %v5423 = vmul.f32 %v5407, %v408
  %v5424 = vmul.f32 %v5408, %v408
  %v5425 = vmul.f32 %v5409, %v408
  %v5426 = vmul.f32 %v5410, %v408
  %v5427 = vmul.f32 %v5411, %v408
  %v5428 = vmul.f32 %v5412, %v408
  %v5429 = vmul.f32 %v5413, %v408
  %v5430 = vmul.f32 %v5414, %v408
  %v5431 = vmul.f32 %v5415, %v408
  %v5432 = vmul.f32 %v5416, %v408
  %v5433 = vmul.f32 %v5417, %v408
  %v5434 = vmul.f32 %v5418, %v408
  %5451 = vrot.lane.b32.xlu0 %v5419, 119
  %v5452 = vpop.permute.xlu0 %5451
  %5453 = vrot.lane.b32.xlu0 %v5420, 119
  %v5454 = vpop.permute.xlu0 %5453
  %5455 = vrot.lane.b32.xlu0 %v5421, 119
  %v5456 = vpop.permute.xlu0 %5455
  %5457 = vrot.lane.b32.xlu0 %v5422, 119
  %v5458 = vpop.permute.xlu0 %5457
  %5459 = vrot.lane.b32.xlu0 %v5423, 119
  %v5460 = vpop.permute.xlu0 %5459
  %5461 = vrot.lane.b32.xlu0 %v5424, 119
  %v5462 = vpop.permute.xlu0 %5461
  %5463 = vrot.lane.b32.xlu0 %v5425, 119
  %v5464 = vpop.permute.xlu0 %5463
  %5465 = vrot.lane.b32.xlu0 %v5426, 119
  %v5466 = vpop.permute.xlu0 %5465
  %5467 = vrot.lane.b32.xlu0 %v5427, 119
  %v5468 = vpop.permute.xlu0 %5467
  %5469 = vrot.lane.b32.xlu0 %v5428, 119
  %v5470 = vpop.permute.xlu0 %5469
  %5471 = vrot.lane.b32.xlu0 %v5429, 119
  %v5472 = vpop.permute.xlu0 %5471
  %5473 = vrot.lane.b32.xlu0 %v5430, 119
  %v5474 = vpop.permute.xlu0 %5473
  %5475 = vrot.lane.b32.xlu0 %v5431, 119
  %v5476 = vpop.permute.xlu0 %5475
  %5477 = vrot.lane.b32.xlu0 %v5432, 119
  %v5478 = vpop.permute.xlu0 %5477
  %5479 = vrot.lane.b32.xlu0 %v5433, 119
  %v5480 = vpop.permute.xlu0 %5479
  %5481 = vrot.lane.b32.xlu0 %v5434, 119
  %v5482 = vpop.permute.xlu0 %5481
  %v5483 = vsel %vm442, %v5452, %v5454
  %v5484 = vsel %vm442, %v5456, %v5458
  %v5485 = vsel %vm442, %v5460, %v5462
  %v5486 = vsel %vm442, %v5464, %v5466
  %v5487 = vsel %vm442, %v5468, %v5470
  %v5488 = vsel %vm442, %v5472, %v5474
  %v5489 = vsel %vm442, %v5476, %v5478
  %v5490 = vsel %vm442, %v5480, %v5482
  %5499 = vst [vmem:[#allocation5 + $0x140] sm:$0xff] %v5483
  %5500 = vst [vmem:[#allocation5 + $0x148] sm:$0xff] %v5484
  %5501 = vst [vmem:[#allocation5 + $0x150] sm:$0xff] %v5485
  %5502 = vst [vmem:[#allocation5 + $0x158] sm:$0xff] %v5486
  %5503 = vst [vmem:[#allocation5 + $0x160] sm:$0xff] %v5487
  %5504 = vst [vmem:[#allocation5 + $0x168] sm:$0xff] %v5488
  %5505 = vst [vmem:[#allocation5 + $0x170] sm:$0xff] %v5489
  %5506 = vst [vmem:[#allocation5 + $0x178] sm:$0xff] %v5490
  %v5507 = vld [vmem:[#allocation3] sm:$0xff]
  %v5508 = vld [vmem:[#allocation3 + $0x8] sm:$0xff]
  %v5509 = vld [vmem:[#allocation3 + $0x10] sm:$0xff]
  %v5510 = vld [vmem:[#allocation3 + $0x18] sm:$0xff]
  %v5511 = vld [vmem:[#allocation3 + $0x20] sm:$0xff]
  %v5512 = vld [vmem:[#allocation3 + $0x28] sm:$0xff]
  %v5513 = vld [vmem:[#allocation3 + $0x30] sm:$0xff]
  %v5514 = vld [vmem:[#allocation3 + $0x38] sm:$0xff]
  %v5515 = vld [vmem:[#allocation3 + $0x40] sm:$0xff]
  %v5516 = vld [vmem:[#allocation3 + $0x48] sm:$0xff]
  %v5517 = vld [vmem:[#allocation3 + $0x50] sm:$0xff]
  %v5518 = vld [vmem:[#allocation3 + $0x58] sm:$0xff]
  %v5519 = vld [vmem:[#allocation3 + $0x60] sm:$0xff]
  %v5520 = vld [vmem:[#allocation3 + $0x68] sm:$0xff]
  %v5521 = vld [vmem:[#allocation3 + $0x70] sm:$0xff]
  %v5522 = vld [vmem:[#allocation3 + $0x78] sm:$0xff]
  %v5523 = vmul.f32 %v5507, %v465
  %v5524 = vmul.f32 %v5508, %v465
  %v5525 = vmul.f32 %v5509, %v465
  %v5526 = vmul.f32 %v5510, %v465
  %v5527 = vmul.f32 %v5511, %v465
  %v5528 = vmul.f32 %v5512, %v465
  %v5529 = vmul.f32 %v5513, %v465
  %v5530 = vmul.f32 %v5514, %v465
  %v5531 = vmul.f32 %v5515, %v465
  %v5532 = vmul.f32 %v5516, %v465
  %v5533 = vmul.f32 %v5517, %v465
  %v5534 = vmul.f32 %v5518, %v465
  %v5535 = vmul.f32 %v5519, %v465
  %v5536 = vmul.f32 %v5520, %v465
  %v5537 = vmul.f32 %v5521, %v465
  %v5538 = vmul.f32 %v5522, %v465
  %5555 = vrot.lane.b32.xlu0 %v5523, 114
  %v5556 = vpop.permute.xlu0 %5555
  %5557 = vrot.lane.b32.xlu0 %v5524, 114
  %v5558 = vpop.permute.xlu0 %5557
  %5559 = vrot.lane.b32.xlu0 %v5525, 114
  %v5560 = vpop.permute.xlu0 %5559
  %5561 = vrot.lane.b32.xlu0 %v5526, 114
  %v5562 = vpop.permute.xlu0 %5561
  %5563 = vrot.lane.b32.xlu0 %v5527, 114
  %v5564 = vpop.permute.xlu0 %5563
  %5565 = vrot.lane.b32.xlu0 %v5528, 114
  %v5566 = vpop.permute.xlu0 %5565
  %5567 = vrot.lane.b32.xlu0 %v5529, 114
  %v5568 = vpop.permute.xlu0 %5567
  %5569 = vrot.lane.b32.xlu0 %v5530, 114
  %v5570 = vpop.permute.xlu0 %5569
  %5571 = vrot.lane.b32.xlu0 %v5531, 114
  %v5572 = vpop.permute.xlu0 %5571
  %5573 = vrot.lane.b32.xlu0 %v5532, 114
  %v5574 = vpop.permute.xlu0 %5573
  %5575 = vrot.lane.b32.xlu0 %v5533, 114
  %v5576 = vpop.permute.xlu0 %5575
  %5577 = vrot.lane.b32.xlu0 %v5534, 114
  %v5578 = vpop.permute.xlu0 %5577
  %5579 = vrot.lane.b32.xlu0 %v5535, 114
  %v5580 = vpop.permute.xlu0 %5579
  %5581 = vrot.lane.b32.xlu0 %v5536, 114
  %v5582 = vpop.permute.xlu0 %5581
  %5583 = vrot.lane.b32.xlu0 %v5537, 114
  %v5584 = vpop.permute.xlu0 %5583
  %5585 = vrot.lane.b32.xlu0 %v5538, 114
  %v5586 = vpop.permute.xlu0 %5585
  %v5587 = vsel %vm499, %v5556, %v5558
  %v5588 = vsel %vm499, %v5560, %v5562
  %v5589 = vsel %vm499, %v5564, %v5566
  %v5590 = vsel %vm499, %v5568, %v5570
  %v5591 = vsel %vm499, %v5572, %v5574
  %v5592 = vsel %vm499, %v5576, %v5578
  %v5593 = vsel %vm499, %v5580, %v5582
  %v5594 = vsel %vm499, %v5584, %v5586
  %5603 = vst [vmem:[#allocation5 + $0x180] sm:$0xff] %v5587
  %5604 = vst [vmem:[#allocation5 + $0x188] sm:$0xff] %v5588
  %5605 = vst [vmem:[#allocation5 + $0x190] sm:$0xff] %v5589
  %5606 = vst [vmem:[#allocation5 + $0x198] sm:$0xff] %v5590
  %5607 = vst [vmem:[#allocation5 + $0x1a0] sm:$0xff] %v5591
  %5608 = vst [vmem:[#allocation5 + $0x1a8] sm:$0xff] %v5592
  %5609 = vst [vmem:[#allocation5 + $0x1b0] sm:$0xff] %v5593
  %5610 = vst [vmem:[#allocation5 + $0x1b8] sm:$0xff] %v5594
  %v5611 = vld [vmem:[#allocation3] sm:$0xff]
  %v5612 = vld [vmem:[#allocation3 + $0x8] sm:$0xff]
  %v5613 = vld [vmem:[#allocation3 + $0x10] sm:$0xff]
  %v5614 = vld [vmem:[#allocation3 + $0x18] sm:$0xff]
  %v5615 = vld [vmem:[#allocation3 + $0x20] sm:$0xff]
  %v5616 = vld [vmem:[#allocation3 + $0x28] sm:$0xff]
  %v5617 = vld [vmem:[#allocation3 + $0x30] sm:$0xff]
  %v5618 = vld [vmem:[#allocation3 + $0x38] sm:$0xff]
  %v5619 = vld [vmem:[#allocation3 + $0x40] sm:$0xff]
  %v5620 = vld [vmem:[#allocation3 + $0x48] sm:$0xff]
  %v5621 = vld [vmem:[#allocation3 + $0x50] sm:$0xff]
  %v5622 = vld [vmem:[#allocation3 + $0x58] sm:$0xff]
  %v5623 = vld [vmem:[#allocation3 + $0x60] sm:$0xff]
  %v5624 = vld [vmem:[#allocation3 + $0x68] sm:$0xff]
  %v5625 = vld [vmem:[#allocation3 + $0x70] sm:$0xff]
  %v5626 = vld [vmem:[#allocation3 + $0x78] sm:$0xff]
  %v5627 = vmul.f32 %v5611, %v522
  %v5628 = vmul.f32 %v5612, %v522
  %v5629 = vmul.f32 %v5613, %v522
  %v5630 = vmul.f32 %v5614, %v522
  %v5631 = vmul.f32 %v5615, %v522
  %v5632 = vmul.f32 %v5616, %v522
  %v5633 = vmul.f32 %v5617, %v522
  %v5634 = vmul.f32 %v5618, %v522
  %v5635 = vmul.f32 %v5619, %v522
  %v5636 = vmul.f32 %v5620, %v522
  %v5637 = vmul.f32 %v5621, %v522
  %v5638 = vmul.f32 %v5622, %v522
  %v5639 = vmul.f32 %v5623, %v522
  %v5640 = vmul.f32 %v5624, %v522
  %v5641 = vmul.f32 %v5625, %v522
  %v5642 = vmul.f32 %v5626, %v522
  %5659 = vrot.lane.b32.xlu0 %v5627, 113
  %v5660 = vpop.permute.xlu0 %5659
  %5661 = vrot.lane.b32.xlu0 %v5628, 113
  %v5662 = vpop.permute.xlu0 %5661
  %5663 = vrot.lane.b32.xlu0 %v5629, 113
  %v5664 = vpop.permute.xlu0 %5663
  %5665 = vrot.lane.b32.xlu0 %v5630, 113
  %v5666 = vpop.permute.xlu0 %5665
  %5667 = vrot.lane.b32.xlu0 %v5631, 113
  %v5668 = vpop.permute.xlu0 %5667
  %5669 = vrot.lane.b32.xlu0 %v5632, 113
  %v5670 = vpop.permute.xlu0 %5669
  %5671 = vrot.lane.b32.xlu0 %v5633, 113
  %v5672 = vpop.permute.xlu0 %5671
  %5673 = vrot.lane.b32.xlu0 %v5634, 113
  %v5674 = vpop.permute.xlu0 %5673
  %5675 = vrot.lane.b32.xlu0 %v5635, 113
  %v5676 = vpop.permute.xlu0 %5675
  %5677 = vrot.lane.b32.xlu0 %v5636, 113
  %v5678 = vpop.permute.xlu0 %5677
  %5679 = vrot.lane.b32.xlu0 %v5637, 113
  %v5680 = vpop.permute.xlu0 %5679
  %5681 = vrot.lane.b32.xlu0 %v5638, 113
  %v5682 = vpop.permute.xlu0 %5681
  %5683 = vrot.lane.b32.xlu0 %v5639, 113
  %v5684 = vpop.permute.xlu0 %5683
  %5685 = vrot.lane.b32.xlu0 %v5640, 113
  %v5686 = vpop.permute.xlu0 %5685
  %5687 = vrot.lane.b32.xlu0 %v5641, 113
  %v5688 = vpop.permute.xlu0 %5687
  %5689 = vrot.lane.b32.xlu0 %v5642, 113
  %v5690 = vpop.permute.xlu0 %5689
  %v5691 = vsel %vm556, %v5660, %v5662
  %v5692 = vsel %vm556, %v5664, %v5666
  %v5693 = vsel %vm556, %v5668, %v5670
  %v5694 = vsel %vm556, %v5672, %v5674
  %v5695 = vsel %vm556, %v5676, %v5678
  %v5696 = vsel %vm556, %v5680, %v5682
  %v5697 = vsel %vm556, %v5684, %v5686
  %v5698 = vsel %vm556, %v5688, %v5690
  %5707 = vst [vmem:[#allocation5 + $0x1c0] sm:$0xff] %v5691
  %5708 = vst [vmem:[#allocation5 + $0x1c8] sm:$0xff] %v5692
  %5709 = vst [vmem:[#allocation5 + $0x1d0] sm:$0xff] %v5693
  %5710 = vst [vmem:[#allocation5 + $0x1d8] sm:$0xff] %v5694
  %5711 = vst [vmem:[#allocation5 + $0x1e0] sm:$0xff] %v5695
  %5712 = vst [vmem:[#allocation5 + $0x1e8] sm:$0xff] %v5696
  %5713 = vst [vmem:[#allocation5 + $0x1f0] sm:$0xff] %v5697
  %5714 = vst [vmem:[#allocation5 + $0x1f8] sm:$0xff] %v5698
  %v5715 = vld [vmem:[#allocation3] sm:$0xff]
  %v5716 = vld [vmem:[#allocation3 + $0x8] sm:$0xff]
  %v5717 = vld [vmem:[#allocation3 + $0x10] sm:$0xff]
  %v5718 = vld [vmem:[#allocation3 + $0x18] sm:$0xff]
  %v5719 = vld [vmem:[#allocation3 + $0x20] sm:$0xff]
  %v5720 = vld [vmem:[#allocation3 + $0x28] sm:$0xff]
  %v5721 = vld [vmem:[#allocation3 + $0x30] sm:$0xff]
  %v5722 = vld [vmem:[#allocation3 + $0x38] sm:$0xff]
  %v5723 = vld [vmem:[#allocation3 + $0x40] sm:$0xff]
  %v5724 = vld [vmem:[#allocation3 + $0x48] sm:$0xff]
  %v5725 = vld [vmem:[#allocation3 + $0x50] sm:$0xff]
  %v5726 = vld [vmem:[#allocation3 + $0x58] sm:$0xff]
  %v5727 = vld [vmem:[#allocation3 + $0x60] sm:$0xff]
  %v5728 = vld [vmem:[#allocation3 + $0x68] sm:$0xff]
  %v5729 = vld [vmem:[#allocation3 + $0x70] sm:$0xff]
  %v5730 = vld [vmem:[#allocation3 + $0x78] sm:$0xff]
  %v5731 = vmul.f32 %v5715, %v579
  %v5732 = vmul.f32 %v5716, %v579
  %v5733 = vmul.f32 %v5717, %v579
  %v5734 = vmul.f32 %v5718, %v579
  %v5735 = vmul.f32 %v5719, %v579
  %v5736 = vmul.f32 %v5720, %v579
  %v5737 = vmul.f32 %v5721, %v579
  %v5738 = vmul.f32 %v5722, %v579
  %v5739 = vmul.f32 %v5723, %v579
  %v5740 = vmul.f32 %v5724, %v579
  %v5741 = vmul.f32 %v5725, %v579
  %v5742 = vmul.f32 %v5726, %v579
  %v5743 = vmul.f32 %v5727, %v579
  %v5744 = vmul.f32 %v5728, %v579
  %v5745 = vmul.f32 %v5729, %v579
  %v5746 = vmul.f32 %v5730, %v579
  %5763 = vrot.lane.b32.xlu0 %v5731, 112
  %v5764 = vpop.permute.xlu0 %5763
  %5765 = vrot.lane.b32.xlu0 %v5732, 112
  %v5766 = vpop.permute.xlu0 %5765
  %5767 = vrot.lane.b32.xlu0 %v5733, 112
  %v5768 = vpop.permute.xlu0 %5767
  %5769 = vrot.lane.b32.xlu0 %v5734, 112
  %v5770 = vpop.permute.xlu0 %5769
  %5771 = vrot.lane.b32.xlu0 %v5735, 112
  %v5772 = vpop.permute.xlu0 %5771
  %5773 = vrot.lane.b32.xlu0 %v5736, 112
  %v5774 = vpop.permute.xlu0 %5773
  %5775 = vrot.lane.b32.xlu0 %v5737, 112
  %v5776 = vpop.permute.xlu0 %5775
  %5777 = vrot.lane.b32.xlu0 %v5738, 112
  %v5778 = vpop.permute.xlu0 %5777
  %5779 = vrot.lane.b32.xlu0 %v5739, 112
  %v5780 = vpop.permute.xlu0 %5779
  %5781 = vrot.lane.b32.xlu0 %v5740, 112
  %v5782 = vpop.permute.xlu0 %5781
  %5783 = vrot.lane.b32.xlu0 %v5741, 112
  %v5784 = vpop.permute.xlu0 %5783
  %5785 = vrot.lane.b32.xlu0 %v5742, 112
  %v5786 = vpop.permute.xlu0 %5785
  %5787 = vrot.lane.b32.xlu0 %v5743, 112
  %v5788 = vpop.permute.xlu0 %5787
  %5789 = vrot.lane.b32.xlu0 %v5744, 112
  %v5790 = vpop.permute.xlu0 %5789
  %5791 = vrot.lane.b32.xlu0 %v5745, 112
  %v5792 = vpop.permute.xlu0 %5791
  %5793 = vrot.lane.b32.xlu0 %v5746, 112
  %v5794 = vpop.permute.xlu0 %5793
  %v5795 = vsel %vm613, %v5764, %v5766
  %v5796 = vsel %vm613, %v5768, %v5770
  %v5797 = vsel %vm613, %v5772, %v5774
  %v5798 = vsel %vm613, %v5776, %v5778
  %v5799 = vsel %vm613, %v5780, %v5782
  %v5800 = vsel %vm613, %v5784, %v5786
  %v5801 = vsel %vm613, %v5788, %v5790
  %v5802 = vsel %vm613, %v5792, %v5794
  %5811 = vst [vmem:[#allocation5 + $0x200] sm:$0xff] %v5795
  %5812 = vst [vmem:[#allocation5 + $0x208] sm:$0xff] %v5796
  %5813 = vst [vmem:[#allocation5 + $0x210] sm:$0xff] %v5797
  %5814 = vst [vmem:[#allocation5 + $0x218] sm:$0xff] %v5798
  %5815 = vst [vmem:[#allocation5 + $0x220] sm:$0xff] %v5799
  %5816 = vst [vmem:[#allocation5 + $0x228] sm:$0xff] %v5800
  %5817 = vst [vmem:[#allocation5 + $0x230] sm:$0xff] %v5801
  %5818 = vst [vmem:[#allocation5 + $0x238] sm:$0xff] %v5802
  %s5819 = scalar_lea.vmem %s2, 160
  %v5820 = vld [vmem:[%s5819] sm:$0xff]
  %v5821 = vld [vmem:[%s5819 + $0x8] sm:$0xff]
  %v5822 = vld [vmem:[%s5819 + $0x10] sm:$0xff]
  %v5823 = vld [vmem:[%s5819 + $0x18] sm:$0xff]
  %v5824 = vld [vmem:[%s5819 + $0x20] sm:$0xff]
  %v5825 = vld [vmem:[%s5819 + $0x28] sm:$0xff]
  %v5826 = vld [vmem:[%s5819 + $0x30] sm:$0xff]
  %v5827 = vld [vmem:[%s5819 + $0x38] sm:$0xff]
  %v5828 = vld [vmem:[%s5819 + $0x40] sm:$0xff]
  %v5829 = vld [vmem:[%s5819 + $0x48] sm:$0xff]
  %v5830 = vld [vmem:[#allocation5] sm:$0xff]
  %v5831 = vld [vmem:[#allocation5 + $0x8] sm:$0xff]
  %v5832 = vld [vmem:[#allocation5 + $0x10] sm:$0xff]
  %v5833 = vld [vmem:[#allocation5 + $0x18] sm:$0xff]
  %v5834 = vld [vmem:[#allocation5 + $0x20] sm:$0xff]
  %v5835 = vld [vmem:[#allocation5 + $0x28] sm:$0xff]
  %v5836 = vld [vmem:[#allocation5 + $0x30] sm:$0xff]
  %v5837 = vld [vmem:[#allocation5 + $0x38] sm:$0xff]
  %v5838 = vld [vmem:[#allocation5 + $0x40] sm:$0xff]
  %v5839 = vld [vmem:[#allocation5 + $0x48] sm:$0xff]
  %v5840 = vld [vmem:[#allocation5 + $0x50] sm:$0xff]
  %v5841 = vld [vmem:[#allocation5 + $0x58] sm:$0xff]
  %v5842 = vld [vmem:[#allocation5 + $0x60] sm:$0xff]
  %v5843 = vld [vmem:[#allocation5 + $0x68] sm:$0xff]
  %v5844 = vld [vmem:[#allocation5 + $0x70] sm:$0xff]
  %v5845 = vld [vmem:[#allocation5 + $0x78] sm:$0xff]
  %v5846 = vld [vmem:[#allocation5 + $0x80] sm:$0xff]
  %v5847 = vld [vmem:[#allocation5 + $0x88] sm:$0xff]
  %v5848 = vld [vmem:[#allocation5 + $0x90] sm:$0xff]
  %v5849 = vld [vmem:[#allocation5 + $0x98] sm:$0xff]
  %v5850 = vld [vmem:[#allocation5 + $0xa0] sm:$0xff]
  %v5851 = vld [vmem:[#allocation5 + $0xa8] sm:$0xff]
  %v5852 = vld [vmem:[#allocation5 + $0xb0] sm:$0xff]
  %v5853 = vld [vmem:[#allocation5 + $0xb8] sm:$0xff]
  %v5854 = vld [vmem:[#allocation5 + $0xc0] sm:$0xff]
  %v5855 = vld [vmem:[#allocation5 + $0xc8] sm:$0xff]
  %v5856 = vld [vmem:[#allocation5 + $0xd0] sm:$0xff]
  %v5857 = vld [vmem:[#allocation5 + $0xd8] sm:$0xff]
  %v5858 = vld [vmem:[#allocation5 + $0xe0] sm:$0xff]
  %v5859 = vld [vmem:[#allocation5 + $0xe8] sm:$0xff]
  %v5860 = vld [vmem:[#allocation5 + $0xf0] sm:$0xff]
  %v5861 = vld [vmem:[#allocation5 + $0xf8] sm:$0xff]
  %v5862 = vld [vmem:[#allocation5 + $0x100] sm:$0xff]
  %v5863 = vld [vmem:[#allocation5 + $0x108] sm:$0xff]
  %v5864 = vld [vmem:[#allocation5 + $0x110] sm:$0xff]
  %v5865 = vld [vmem:[#allocation5 + $0x118] sm:$0xff]
  %v5866 = vld [vmem:[#allocation5 + $0x120] sm:$0xff]
  %v5867 = vld [vmem:[#allocation5 + $0x128] sm:$0xff]
  %v5868 = vld [vmem:[#allocation5 + $0x130] sm:$0xff]
  %v5869 = vld [vmem:[#allocation5 + $0x138] sm:$0xff]
  %v5870 = vld [vmem:[#allocation5 + $0x140] sm:$0xff]
  %v5871 = vld [vmem:[#allocation5 + $0x148] sm:$0xff]
  %v5872 = vld [vmem:[#allocation5 + $0x150] sm:$0xff]
  %v5873 = vld [vmem:[#allocation5 + $0x158] sm:$0xff]
  %v5874 = vld [vmem:[#allocation5 + $0x160] sm:$0xff]
  %v5875 = vld [vmem:[#allocation5 + $0x168] sm:$0xff]
  %v5876 = vld [vmem:[#allocation5 + $0x170] sm:$0xff]
  %v5877 = vld [vmem:[#allocation5 + $0x178] sm:$0xff]
  %v5878 = vld [vmem:[#allocation5 + $0x180] sm:$0xff]
  %v5879 = vld [vmem:[#allocation5 + $0x188] sm:$0xff]
  %v5880 = vld [vmem:[#allocation5 + $0x190] sm:$0xff]
  %v5881 = vld [vmem:[#allocation5 + $0x198] sm:$0xff]
  %v5882 = vld [vmem:[#allocation5 + $0x1a0] sm:$0xff]
  %v5883 = vld [vmem:[#allocation5 + $0x1a8] sm:$0xff]
  %v5884 = vld [vmem:[#allocation5 + $0x1b0] sm:$0xff]
  %v5885 = vld [vmem:[#allocation5 + $0x1b8] sm:$0xff]
  %v5886 = vld [vmem:[#allocation5 + $0x1c0] sm:$0xff]
  %v5887 = vld [vmem:[#allocation5 + $0x1c8] sm:$0xff]
  %v5888 = vld [vmem:[#allocation5 + $0x1d0] sm:$0xff]
  %v5889 = vld [vmem:[#allocation5 + $0x1d8] sm:$0xff]
  %v5890 = vld [vmem:[#allocation5 + $0x1e0] sm:$0xff]
  %v5891 = vld [vmem:[#allocation5 + $0x1e8] sm:$0xff]
  %v5892 = vld [vmem:[#allocation5 + $0x1f0] sm:$0xff]
  %v5893 = vld [vmem:[#allocation5 + $0x1f8] sm:$0xff]
  %v5894 = vld [vmem:[#allocation5 + $0x200] sm:$0xff]
  %v5895 = vld [vmem:[#allocation5 + $0x208] sm:$0xff]
  %v5896 = vld [vmem:[#allocation5 + $0x210] sm:$0xff]
  %v5897 = vld [vmem:[#allocation5 + $0x218] sm:$0xff]
  %v5898 = vld [vmem:[#allocation5 + $0x220] sm:$0xff]
  %v5899 = vld [vmem:[#allocation5 + $0x228] sm:$0xff]
  %v5900 = vld [vmem:[#allocation5 + $0x230] sm:$0xff]
  %v5901 = vld [vmem:[#allocation5 + $0x238] sm:$0xff]
  %v5902 = vld [vmem:[#allocation5 + $0x240] sm:$0xff]
  %v5904 = vsel %vm1917, %v5824, 0
  %v5907 = vsel %vm1917, %v5829, 0
  %5909 = vmatprep.subr.mxu0 0.0
  %5910 = vmatpush1.msra.mxu0 %v5845
  %5911 = vmatprep.subr.mxu0 0.0
  %5912 = vmatpush1.msra.mxu0 %v5844
  %5913 = vmatprep.subr.mxu0 0.0
  %5914 = vmatpush1.msra.mxu0 %v5843
  %5915 = vmatprep.subr.mxu0 0.0
  %5916 = vmatpush1.msra.mxu0 %v5842
  %5917 = vmatprep.subr.mxu0 0.0
  %5918 = vmatpush1.msra.mxu0 %v5841
  %5919 = vmatprep.subr.mxu0 0.0
  %5920 = vmatpush1.msra.mxu0 %v5840
  %5921 = vmatprep.subr.mxu0 0.0
  %5922 = vmatpush1.msra.mxu0 %v5839
  %5923 = vmatprep.subr.mxu0 0.0
  %5924 = vmatpush1.msra.mxu0 %v5838
  %5925 = vmatprep.subr.mxu0 0.0
  %5926 = vmatpush1.msra.mxu0 %v5837
  %5927 = vmatprep.subr.mxu0 0.0
  %5928 = vmatpush1.msra.mxu0 %v5836
  %5929 = vmatprep.subr.mxu0 0.0
  %5930 = vmatpush1.msra.mxu0 %v5835
  %5931 = vmatprep.subr.mxu0 0.0
  %5932 = vmatpush1.msra.mxu0 %v5834
  %5933 = vmatprep.subr.mxu0 0.0
  %5934 = vmatpush1.msra.mxu0 %v5833
  %5935 = vmatprep.subr.mxu0 0.0
  %5936 = vmatpush1.msra.mxu0 %v5832
  %5937 = vmatprep.subr.mxu0 0.0
  %5938 = vmatpush1.msra.mxu0 %v5831
  %5939 = vmatprep.subr.mxu0 0.0
  %5940 = vmatpush1.msra.mxu0 %v5830
  %5941 = vmatprep.subr.mxu0 0.0
  %5942 = vmatpush2.msra.mxu0 %v5861
  %5943 = vmatprep.subr.mxu0 0.0
  %5944 = vmatpush2.msra.mxu0 %v5860
  %5945 = vmatprep.subr.mxu0 0.0
  %5946 = vmatpush2.msra.mxu0 %v5859
  %5947 = vmatprep.subr.mxu0 0.0
  %5948 = vmatpush2.msra.mxu0 %v5858
  %5949 = vmatprep.subr.mxu0 0.0
  %5950 = vmatpush2.msra.mxu0 %v5857
  %5951 = vmatprep.subr.mxu0 0.0
  %5952 = vmatpush2.msra.mxu0 %v5856
  %5953 = vmatprep.subr.mxu0 0.0
  %5954 = vmatpush2.msra.mxu0 %v5855
  %5955 = vmatprep.subr.mxu0 0.0
  %5956 = vmatpush2.msra.mxu0 %v5854
  %5957 = vmatprep.subr.mxu0 0.0
  %5958 = vmatpush2.msra.mxu0 %v5853
  %5959 = vmatprep.subr.mxu0 0.0
  %5960 = vmatpush2.msra.mxu0 %v5852
  %5961 = vmatprep.subr.mxu0 0.0
  %5962 = vmatpush2.msra.mxu0 %v5851
  %5963 = vmatprep.subr.mxu0 0.0
  %5964 = vmatpush2.msra.mxu0 %v5850
  %5965 = vmatprep.subr.mxu0 0.0
  %5966 = vmatpush2.msra.mxu0 %v5849
  %5967 = vmatprep.subr.mxu0 0.0
  %5968 = vmatpush2.msra.mxu0 %v5848
  %5969 = vmatprep.subr.mxu0 0.0
  %5970 = vmatpush2.msra.mxu0 %v5847
  %5971 = vmatprep.subr.mxu0 0.0
  %5972 = vmatpush2.msra.mxu0 %v5846
  %5973 = vmatprep.mubr.f32.mxu0 %v5821
  %5974 = vmatmul.mubr.f32.gmra.mxu0 %v5820
  %v5975 = vpop.f32.mrf.mxu0
  %v5976 = vadd.f32 0.0, %v5975
  %v5977 = vpop.f32.mrf.mxu0
  %5978 = vmatprep.mubr.f32.mxu0 %v5826
  %5979 = vmatmul.mubr.f32.gmra.mxu0 %v5825
  %v5980 = vpop.f32.mrf.mxu0
  %v5981 = vadd.f32 0.0, %v5980
  %v5982 = vpop.f32.mrf.mxu0
  %5983 = vdwg.mxu0
  %5984 = vmatprep.subr.mxu0 0.0
  %5985 = vmatpush1.msra.mxu0 %v5877
  %5986 = vmatprep.subr.mxu0 0.0
  %5987 = vmatpush1.msra.mxu0 %v5876
  %5988 = vmatprep.subr.mxu0 0.0
  %5989 = vmatpush1.msra.mxu0 %v5875
  %5990 = vmatprep.subr.mxu0 0.0
  %5991 = vmatpush1.msra.mxu0 %v5874
  %5992 = vmatprep.subr.mxu0 0.0
  %5993 = vmatpush1.msra.mxu0 %v5873
  %5994 = vmatprep.subr.mxu0 0.0
  %5995 = vmatpush1.msra.mxu0 %v5872
  %5996 = vmatprep.subr.mxu0 0.0
  %5997 = vmatpush1.msra.mxu0 %v5871
  %5998 = vmatprep.subr.mxu0 0.0
  %5999 = vmatpush1.msra.mxu0 %v5870
  %6000 = vmatprep.subr.mxu0 0.0
  %6001 = vmatpush1.msra.mxu0 %v5869
  %6002 = vmatprep.subr.mxu0 0.0
  %6003 = vmatpush1.msra.mxu0 %v5868
  %6004 = vmatprep.subr.mxu0 0.0
  %6005 = vmatpush1.msra.mxu0 %v5867
  %6006 = vmatprep.subr.mxu0 0.0
  %6007 = vmatpush1.msra.mxu0 %v5866
  %6008 = vmatprep.subr.mxu0 0.0
  %6009 = vmatpush1.msra.mxu0 %v5865
  %6010 = vmatprep.subr.mxu0 0.0
  %6011 = vmatpush1.msra.mxu0 %v5864
  %6012 = vmatprep.subr.mxu0 0.0
  %6013 = vmatpush1.msra.mxu0 %v5863
  %6014 = vmatprep.subr.mxu0 0.0
  %6015 = vmatpush1.msra.mxu0 %v5862
  %6016 = vmatprep.subr.mxu0 0.0
  %6017 = vmatpush2.msra.mxu0 %v5893
  %6018 = vmatprep.subr.mxu0 0.0
  %6019 = vmatpush2.msra.mxu0 %v5892
  %6020 = vmatprep.subr.mxu0 0.0
  %6021 = vmatpush2.msra.mxu0 %v5891
  %6022 = vmatprep.subr.mxu0 0.0
  %6023 = vmatpush2.msra.mxu0 %v5890
  %6024 = vmatprep.subr.mxu0 0.0
  %6025 = vmatpush2.msra.mxu0 %v5889
  %6026 = vmatprep.subr.mxu0 0.0
  %6027 = vmatpush2.msra.mxu0 %v5888
  %6028 = vmatprep.subr.mxu0 0.0
  %6029 = vmatpush2.msra.mxu0 %v5887
  %6030 = vmatprep.subr.mxu0 0.0
  %6031 = vmatpush2.msra.mxu0 %v5886
  %6032 = vmatprep.subr.mxu0 0.0
  %6033 = vmatpush2.msra.mxu0 %v5885
  %6034 = vmatprep.subr.mxu0 0.0
  %6035 = vmatpush2.msra.mxu0 %v5884
  %6036 = vmatprep.subr.mxu0 0.0
  %6037 = vmatpush2.msra.mxu0 %v5883
  %6038 = vmatprep.subr.mxu0 0.0
  %6039 = vmatpush2.msra.mxu0 %v5882
  %6040 = vmatprep.subr.mxu0 0.0
  %6041 = vmatpush2.msra.mxu0 %v5881
  %6042 = vmatprep.subr.mxu0 0.0
  %6043 = vmatpush2.msra.mxu0 %v5880
  %6044 = vmatprep.subr.mxu0 0.0
  %6045 = vmatpush2.msra.mxu0 %v5879
  %6046 = vmatprep.subr.mxu0 0.0
  %6047 = vmatpush2.msra.mxu0 %v5878
  %6048 = vmatprep.mubr.f32.mxu0 %v5823
  %6049 = vmatmul.mubr.f32.gmra.mxu0 %v5822
  %v6050 = vpop.f32.mrf.mxu0
  %v6051 = vadd.f32 %v5976, %v6050
  %v6052 = vpop.f32.mrf.mxu0
  %6053 = vmatprep.mubr.f32.mxu0 %v5828
  %6054 = vmatmul.mubr.f32.gmra.mxu0 %v5827
  %v6055 = vpop.f32.mrf.mxu0
  %v6056 = vadd.f32 %v5981, %v6055
  %v6057 = vpop.f32.mrf.mxu0
  %6058 = vdwg.mxu0
  %6059 = vmatprep.subr.mxu0 0.0
  %6060 = vmatpush1.msra.mxu0 0.0
  %6061 = vmatprep.subr.mxu0 0.0
  %6062 = vmatpush1.msra.mxu0 0.0
  %6063 = vmatprep.subr.mxu0 0.0
  %6064 = vmatpush1.msra.mxu0 0.0
  %6065 = vmatprep.subr.mxu0 0.0
  %6066 = vmatpush1.msra.mxu0 0.0
  %6067 = vmatprep.subr.mxu0 0.0
  %6068 = vmatpush1.msra.mxu0 0.0
  %6069 = vmatprep.subr.mxu0 0.0
  %6070 = vmatpush1.msra.mxu0 0.0
  %6071 = vmatprep.subr.mxu0 0.0
  %6072 = vmatpush1.msra.mxu0 0.0
  %6073 = vmatprep.subr.mxu0 0.0
  %6074 = vmatpush1.msra.mxu0 %v5902
  %6075 = vmatprep.subr.mxu0 0.0
  %6076 = vmatpush1.msra.mxu0 %v5901
  %6077 = vmatprep.subr.mxu0 0.0
  %6078 = vmatpush1.msra.mxu0 %v5900
  %6079 = vmatprep.subr.mxu0 0.0
  %6080 = vmatpush1.msra.mxu0 %v5899
  %6081 = vmatprep.subr.mxu0 0.0
  %6082 = vmatpush1.msra.mxu0 %v5898
  %6083 = vmatprep.subr.mxu0 0.0
  %6084 = vmatpush1.msra.mxu0 %v5897
  %6085 = vmatprep.subr.mxu0 0.0
  %6086 = vmatpush1.msra.mxu0 %v5896
  %6087 = vmatprep.subr.mxu0 0.0
  %6088 = vmatpush1.msra.mxu0 %v5895
  %6089 = vmatprep.subr.mxu0 0.0
  %6090 = vmatpush1.msra.mxu0 %v5894
  %6091 = vmatprep.subr.mxu0 0.0
  %6092 = vmatpush2.msra.mxu0 0.0
  %6093 = vmatprep.subr.mxu0 0.0
  %6094 = vmatpush2.msra.mxu0 0.0
  %6095 = vmatprep.subr.mxu0 0.0
  %6096 = vmatpush2.msra.mxu0 0.0
  %6097 = vmatprep.subr.mxu0 0.0
  %6098 = vmatpush2.msra.mxu0 0.0
  %6099 = vmatprep.subr.mxu0 0.0
  %6100 = vmatpush2.msra.mxu0 0.0
  %6101 = vmatprep.subr.mxu0 0.0
  %6102 = vmatpush2.msra.mxu0 0.0
  %6103 = vmatprep.subr.mxu0 0.0
  %6104 = vmatpush2.msra.mxu0 0.0
  %6105 = vmatprep.subr.mxu0 0.0
  %6106 = vmatpush2.msra.mxu0 0.0
  %6107 = vmatprep.subr.mxu0 0.0
  %6108 = vmatpush2.msra.mxu0 0.0
  %6109 = vmatprep.subr.mxu0 0.0
  %6110 = vmatpush2.msra.mxu0 0.0
  %6111 = vmatprep.subr.mxu0 0.0
  %6112 = vmatpush2.msra.mxu0 0.0
  %6113 = vmatprep.subr.mxu0 0.0
  %6114 = vmatpush2.msra.mxu0 0.0
  %6115 = vmatprep.subr.mxu0 0.0
  %6116 = vmatpush2.msra.mxu0 0.0
  %6117 = vmatprep.subr.mxu0 0.0
  %6118 = vmatpush2.msra.mxu0 0.0
  %6119 = vmatprep.subr.mxu0 0.0
  %6120 = vmatpush2.msra.mxu0 0.0
  %6121 = vmatprep.subr.mxu0 0.0
  %6122 = vmatpush2.msra.mxu0 0.0
  %6123 = vmatprep.mubr.f32.mxu0 0.0
  %6124 = vmatmul.mubr.f32.gmra.mxu0 %v5904
  %v6125 = vpop.f32.mrf.mxu0
  %v6126 = vadd.f32 %v6051, %v6125
  %v6127 = vpop.f32.mrf.mxu0
  %6128 = vmatprep.mubr.f32.mxu0 0.0
  %6129 = vmatmul.mubr.f32.gmra.mxu0 %v5907
  %v6130 = vpop.f32.mrf.mxu0
  %v6131 = vadd.f32 %v6056, %v6130
  %v6132 = vpop.f32.mrf.mxu0
  %6133 = vdwg.mxu0
  %v6134 = vsub.f32 0.0, %v6126
  %v6135 = vsub.f32 0.0, %v6131
  %v6136 = vmul.f32 %v6134, 1.442695
  %v6137 = vpow.pop %v6136
  %v6138 = vmul.f32 %v6135, 1.442695
  %v6139 = vpow.pop %v6138
  %v6140 = vadd.f32 %v6137, 1.0
  %v6141 = vadd.f32 %v6139, 1.0
  %v6142 = vrcp.pop %v6140
  %v6143 = vrcp.pop %v6141
  %s6144 = scalar_lea.vmem %s3, 32
  %6145 = vst [vmem:[%s6144] sm:$0xff] %v6142
  %6146 = vst [vmem:[%s6144 + $0x8] sm:$0xff] %v6143
  // Predicated region
  $region14: #{forward.1} parent=0 // pred_check
    _
  $region15: #{forward.1} parent=0 // pred_check_branch
    %6148 = sbr.rel (0) target = $region17
  $region16: #{forward.1} parent=0 // pred_region
    _
  $region17: #{forward.1} parent=0 // pred_fallthru
    _
  // Predicated region
  $region18: #{forward.1} parent=0 // pred_check
    _
  $region19: #{forward.1} parent=0 // pred_check_branch
    %6150 = sbr.rel (0) target = $region21
  $region20: #{forward.1} parent=0 // pred_region
    _
  $region21: #{forward.1} parent=0 // pred_fallthru
    _

</llo_original>
